<compile_context>
chip_gen: v7x
topology: tpu7x:2x2x1
jax: 0.10.0
libtpu: 0.0.40
codegen_flags: <defaults>
</compile_context>

<pallas_src>
import math

import jax
import jax.numpy as jnp
import numpy as np
from jax.experimental import pallas as pl
from jax.experimental.pallas import tpu as pltpu  # noqa: F401  (no grid / manual DMA needed at this size)

# ---- small demo hyper-parameters consistent with the module ----
FEATURE_DIM = 32                       # H  (feature_dim)
NUM_HEAD = 2                           # Transformer.num_head
HEAD_DIM = FEATURE_DIM // NUM_HEAD
ACT_DIM = 3
RSD_NSTEP = 4
SEQ_IN = (ACT_DIM + 1) * RSD_NSTEP     # embed_seq input width
OMEGA_NUM_SAMPLE = 8                   # N
OUTPUT_DIM = 8                         # P  (output_dim)
BATCH = 2                              # B
NUM_BLOCKS = 3                         # blocks[0], block_cos, block_sin
LN_EPS = 1e-5
ATTN_SCALE = 1.0 / math.sqrt(HEAD_DIM)
OUT_PAD = 128                          # lane-dense output slab width
DOT_PREC = jax.lax.Precision.HIGHEST   # per-dot precision (no global config)


def _erf(x):
    # Abramowitz & Stegun 7.1.26 polynomial erf (max abs err ~1.5e-7); used so
    # the exact-GELU path lowers cleanly in Mosaic (avoids lax.erf). Matches
    # torch's exact GELU to f32 precision.
    ax = jnp.abs(x)
    t = 1.0 / (1.0 + 0.3275911 * ax)
    poly = t * (0.254829592 + t * (-0.284496736 + t * (1.421413741
             + t * (-1.453152027 + t * 1.061405429))))
    y = 1.0 - poly * jnp.exp(-ax * ax)
    return jnp.where(x >= 0.0, y, -y)


def _gelu(x):
    # exact (erf-based) GELU == torch.nn.functional.gelu default
    return 0.5 * x * (1.0 + _erf(x * 0.7071067811865476))


def transformer_kernel(
    xin_ref,                                   # (3M, H): [z | pad(seq_cat) | t_emb]
    w_emb_ref, b_emb_ref,                      # (H, H) zero-row-padded, (1, H)
    ln_g_ref, ln_b_ref,                        # (NB, 2, 1, H)
    w_qkv_ref, b_qkv_ref,                      # (NB, H, 3H), (NB, 1, 3H)
    w_proj_ref, b_proj_ref,                    # (NB, H, H), (NB, 1, H)
    w1_ref, b1_ref, w2_ref, b2_ref,            # MLP
    lnf_g_ref, lnf_b_ref,                      # (1, H)
    w_head_ref, b_head_ref,                    # (H, 128), (1, 128)  [cos|sin|0..]
    headmask_ref,                              # (H, H): 1.0 where same head
    out_ref,                                   # (2M, 128)
):
    H = FEATURE_DIM
    M = xin_ref.shape[0] // 3                  # rows per token (B*N), static

    def layernorm(x, g, b):
        mu = jnp.mean(x, axis=-1, keepdims=True)
        var = jnp.mean(jnp.square(x - mu), axis=-1, keepdims=True)
        return (x - mu) * jax.lax.rsqrt(var + LN_EPS) * g + b

    def linear(x, w, b):
        return jnp.dot(x, w, precision=DOT_PREC,
                       preferred_element_type=jnp.float32) + b

    def softmax2(sa, sb):                      # softmax over the 2 key tokens
        m = jnp.maximum(sa, sb)
        ea, eb = jnp.exp(sa - m), jnp.exp(sb - m)
        inv = 1.0 / (ea + eb)
        return ea * inv, eb * inv

    hm = headmask_ref[...]

    def block_full(x, bi):
        # x: (2M, H); rows [:M] = token 0, rows [M:] = token 1.
        g1, be1 = ln_g_ref[bi, 0], ln_b_ref[bi, 0]
        g2, be2 = ln_g_ref[bi, 1], ln_b_ref[bi, 1]

        h = layernorm(x, g1, be1)
        qkv = linear(h, w_qkv_ref[bi], b_qkv_ref[bi])          # (2M, 3H)
        q, k, v = qkv[:, 0:H], qkv[:, H:2 * H], qkv[:, 2 * H:3 * H]
        q0, q1 = q[:M], q[M:]
        k0, k1 = k[:M], k[M:]
        v0, v1 = v[:M], v[M:]

        # batched per-head scores: one (4M, H) x (H, H) matmul
        qk = jnp.concatenate([q0 * k0, q0 * k1, q1 * k0, q1 * k1], axis=0)
        s = jnp.dot(qk, hm, precision=DOT_PREC,
                    preferred_element_type=jnp.float32) * ATTN_SCALE
        s00, s01, s10, s11 = s[:M], s[M:2 * M], s[2 * M:3 * M], s[3 * M:]
        p00, p01 = softmax2(s00, s01)
        p10, p11 = softmax2(s10, s11)

        y = jnp.concatenate([p00 * v0 + p01 * v1,
                             p10 * v0 + p11 * v1], axis=0)     # (2M, H)
        x = x + linear(y, w_proj_ref[bi], b_proj_ref[bi])

        m = layernorm(x, g2, be2)
        x = x + linear(_gelu(linear(m, w1_ref[bi], b1_ref[bi])),
                       w2_ref[bi], b2_ref[bi])
        return x

    def block_token0(x, bi):
        # Only token 0's block output is consumed downstream (ln_f + heads),
        # so the token-1 attention output / proj / MLP paths are skipped.
        g1, be1 = ln_g_ref[bi, 0], ln_b_ref[bi, 0]
        g2, be2 = ln_g_ref[bi, 1], ln_b_ref[bi, 1]

        h = layernorm(x, g1, be1)                              # need both tokens (k1, v1)
        qkv = linear(h, w_qkv_ref[bi], b_qkv_ref[bi])          # (2M, 3H)
        q0 = qkv[:M, 0:H]
        k, v = qkv[:, H:2 * H], qkv[:, 2 * H:3 * H]
        k0, k1 = k[:M], k[M:]
        v0, v1 = v[:M], v[M:]

        qk = jnp.concatenate([q0 * k0, q0 * k1], axis=0)       # (2M, H)
        s = jnp.dot(qk, hm, precision=DOT_PREC,
                    preferred_element_type=jnp.float32) * ATTN_SCALE
        p00, p01 = softmax2(s[:M], s[M:])
        y0 = p00 * v0 + p01 * v1

        x0 = x[:M] + linear(y0, w_proj_ref[bi], b_proj_ref[bi])
        m0 = layernorm(x0, g2, be2)
        x0 = x0 + linear(_gelu(linear(m0, w1_ref[bi], b1_ref[bi])),
                         w2_ref[bi], b2_ref[bi])
        return x0

    # ---- embedding: token 0 = z ; token 1 = tanh(seq @ W_emb + b) + t_emb ----
    z = xin_ref[0:M, :]
    sc = xin_ref[M:2 * M, :]        # seq_cat zero-padded to H lanes
    te = xin_ref[2 * M:3 * M, :]
    x1 = jnp.tanh(linear(sc, w_emb_ref[...], b_emb_ref[...])) + te
    x = jnp.concatenate([z, x1], axis=0)                        # (2M, H)

    x = block_full(x, 0)            # self.blocks (num_layer - 1 == 1 block)
    c0 = block_token0(x, 1)         # block_cos  (token-0 path only)
    s0 = block_token0(x, 2)         # block_sin  (token-0 path only)

    # ln_f + fused cos/sin heads: single lane-dense (2M, H) x (H, 128) matmul,
    # single unmasked full-width store.
    zc = layernorm(jnp.concatenate([c0, s0], axis=0),
                   lnf_g_ref[...], lnf_b_ref[...])              # (2M, H)
    out_ref[...] = linear(zc, w_head_ref[...], b_head_ref[...]) # (2M, 128)


def init_params(key):
    H, P, N = FEATURE_DIM, OUTPUT_DIM, OMEGA_NUM_SAMPLE
    ks = jax.random.split(key, 13)
    r = lambda k, s: (0.02 * jax.random.normal(k, s)).astype(jnp.float32)
    return dict(
        embed_timestep=r(ks[0], (N, H)),
        w_emb=r(ks[1], (SEQ_IN, H)),
        b_emb=r(ks[2], (1, H)),
        ln_g=jnp.ones((NUM_BLOCKS, 2, 1, H), jnp.float32),
        ln_b=jnp.zeros((NUM_BLOCKS, 2, 1, H), jnp.float32),
        wqkvp=r(ks[3], (NUM_BLOCKS, 4, H, H)),        # q, k, v, proj (in, out)
        bqkvp=r(ks[4], (NUM_BLOCKS, 4, 1, H)),
        w1=r(ks[5], (NUM_BLOCKS, H, 4 * H)),
        b1=r(ks[6], (NUM_BLOCKS, 1, 4 * H)),
        w2=r(ks[7], (NUM_BLOCKS, 4 * H, H)),
        b2=r(ks[8], (NUM_BLOCKS, 1, H)),
        lnf_g=jnp.ones((1, H), jnp.float32),
        lnf_b=jnp.zeros((1, H), jnp.float32),
        wcos=r(ks[9], (H, P)),
        bcos=r(ks[10], (1, P)),
        wsin=r(ks[11], (H, P)),
        bsin=r(ks[12], (1, P)),
    )


def transformer_forward(z, a_seq, w_seq, params):
    B, H = z.shape
    N, T = w_seq.shape
    M = B * N
    P = OUTPUT_DIM
    assert SEQ_IN <= H and 2 * P <= OUT_PAD
    # M is a multiple of 8 at the demo size; non-multiples remain correct but
    # would introduce unaligned sublane slices.

    # ---- glue (plain JAX): broadcast / concat, mirrors the PyTorch forward ----
    a_flat = a_seq.reshape(B, -1)
    seq_cat = jnp.concatenate([
        jnp.broadcast_to(a_flat[:, None, :], (B, N, a_flat.shape[-1])),
        jnp.broadcast_to(w_seq[None, :, :], (B, N, T)),
    ], axis=-1).reshape(M, SEQ_IN).astype(jnp.float32)
    te = jnp.broadcast_to(params["embed_timestep"][None], (B, N, H)).reshape(M, H)
    z_rows = jnp.broadcast_to(z[:, None, :], (B, N, H)).reshape(M, H)

    # single fused activation input: rows [z | zero-padded seq_cat | t_emb]
    sc_pad = jnp.pad(seq_cat, ((0, 0), (0, H - SEQ_IN)))
    xin = jnp.concatenate([z_rows.astype(jnp.float32), sc_pad,
                           te.astype(jnp.float32)], axis=0)          # (3M, H)

    # fused / padded weights
    w_emb_pad = jnp.pad(params["w_emb"], ((0, H - SEQ_IN), (0, 0)))   # (H, H)
    w_qkv = jnp.concatenate([params["wqkvp"][:, i] for i in range(3)], axis=-1)
    b_qkv = jnp.concatenate([params["bqkvp"][:, i] for i in range(3)], axis=-1)
    w_proj = params["wqkvp"][:, 3]
    b_proj = params["bqkvp"][:, 3]
    w_head = (jnp.zeros((H, OUT_PAD), jnp.float32)
              .at[:, :P].set(params["wcos"])
              .at[:, P:2 * P].set(params["wsin"]))
    b_head = (jnp.zeros((1, OUT_PAD), jnp.float32)
              .at[:, :P].set(params["bcos"])
              .at[:, P:2 * P].set(params["bsin"]))

    head_id = jnp.arange(H) // HEAD_DIM
    headmask = (head_id[:, None] == head_id[None, :]).astype(jnp.float32)

    # Single-step pallas_call (no grid): every operand is a full VMEM block.
    out = pl.pallas_call(
        transformer_kernel,
        out_shape=jax.ShapeDtypeStruct((2 * M, OUT_PAD), jnp.float32),
    )(xin, w_emb_pad, params["b_emb"], params["ln_g"], params["ln_b"],
      w_qkv, b_qkv, w_proj, b_proj,
      params["w1"], params["b1"], params["w2"], params["b2"],
      params["lnf_g"], params["lnf_b"], w_head, b_head, headmask)

    pred_cos = out[:M, :P].reshape(B, N, P)
    pred_sin = out[M:, P:2 * P].reshape(B, N, P)
    return pred_cos, pred_sin


def reference_forward(z, a_seq, w_seq, p):
    """Pure-JAX mirror of the PyTorch forward (for validation)."""
    B, H = z.shape
    N, T = w_seq.shape
    mm = lambda a, b: jnp.matmul(a, b, precision=DOT_PREC)
    a_flat = a_seq.reshape(B, -1)
    seq = jnp.concatenate([
        jnp.broadcast_to(a_flat[:, None, :], (B, N, a_flat.shape[-1])),
        jnp.broadcast_to(w_seq[None, :, :], (B, N, T))], axis=-1)
    seq = jnp.tanh(mm(seq, p["w_emb"]) + p["b_emb"][0]) + p["embed_timestep"]
    zc = jnp.broadcast_to(z[:, None, :], (B, N, H))
    x = jnp.stack([zc, seq], axis=-2).reshape(-1, 2, H)

    def layernorm(t, g, b):
        mu = t.mean(-1, keepdims=True)
        var = ((t - mu) ** 2).mean(-1, keepdims=True)
        return (t - mu) / jnp.sqrt(var + LN_EPS) * g + b

    def block(x, bi):
        Mr = x.shape[0]
        g1, be1 = p["ln_g"][bi, 0, 0], p["ln_b"][bi, 0, 0]
        g2, be2 = p["ln_g"][bi, 1, 0], p["ln_b"][bi, 1, 0]
        h = layernorm(x, g1, be1)

        def heads(t):
            return t.reshape(Mr, 2, NUM_HEAD, HEAD_DIM).transpose(0, 2, 1, 3)

        q = heads(mm(h, p["wqkvp"][bi, 0]) + p["bqkvp"][bi, 0, 0])
        k = heads(mm(h, p["wqkvp"][bi, 1]) + p["bqkvp"][bi, 1, 0])
        v = heads(mm(h, p["wqkvp"][bi, 2]) + p["bqkvp"][bi, 2, 0])
        att = jnp.einsum("mhtd,mhsd->mhts", q, k, precision=DOT_PREC) * ATTN_SCALE
        att = jax.nn.softmax(att, axis=-1)
        y = jnp.einsum("mhts,mhsd->mhtd", att, v,
                       precision=DOT_PREC).transpose(0, 2, 1, 3).reshape(Mr, 2, H)
        x = x + (mm(y, p["wqkvp"][bi, 3]) + p["bqkvp"][bi, 3, 0])
        h2 = layernorm(x, g2, be2)
        m = jax.nn.gelu(mm(h2, p["w1"][bi]) + p["b1"][bi, 0], approximate=False)
        m = mm(m, p["w2"][bi]) + p["b2"][bi, 0]
        return x + m

    x = block(x, 0)
    x1 = layernorm(block(x, 1), p["lnf_g"][0], p["lnf_b"][0])
    x2 = layernorm(block(x, 2), p["lnf_g"][0], p["lnf_b"][0])
    pred_cos = (mm(x1, p["wcos"]) + p["bcos"][0])[:, 0].reshape(B, N, -1)
    pred_sin = (mm(x2, p["wsin"]) + p["bsin"][0])[:, 0].reshape(B, N, -1)
    return pred_cos, pred_sin


if __name__ == "__main__":
    key = jax.random.PRNGKey(0)
    kp, kz, ka, kw = jax.random.split(key, 4)
    params = init_params(kp)

    z = jax.random.normal(kz, (BATCH, FEATURE_DIM), dtype=jnp.float32)
    a_seq = jax.random.normal(ka, (BATCH, RSD_NSTEP, ACT_DIM), dtype=jnp.float32)
    w_seq = jax.random.normal(kw, (OMEGA_NUM_SAMPLE, RSD_NSTEP), dtype=jnp.float32)

    fwd = jax.jit(transformer_forward)
    pred_cos, pred_sin = fwd(z, a_seq, w_seq, params)
    jax.block_until_ready((pred_cos, pred_sin))

    ref_cos, ref_sin = reference_forward(z, a_seq, w_seq, params)
    assert pred_cos.shape == (BATCH, OMEGA_NUM_SAMPLE, OUTPUT_DIM)
    assert pred_sin.shape == (BATCH, OMEGA_NUM_SAMPLE, OUTPUT_DIM)
    np.testing.assert_allclose(np.asarray(pred_cos), np.asarray(ref_cos),
                               rtol=1e-3, atol=2e-4)
    np.testing.assert_allclose(np.asarray(pred_sin), np.asarray(ref_sin),
                               rtol=1e-3, atol=2e-4)
    print("KERNEL_OK")
</pallas_src>

<mosaic_0001>
module attributes {stable_mosaic.version = 11 : i64} {
  func.func @transformer_kernel(%arg0: memref<48x32xf32, #tpu.memory_space<vmem>>, %arg1: memref<32x32xf32, #tpu.memory_space<vmem>>, %arg2: memref<1x32xf32, #tpu.memory_space<vmem>>, %arg3: memref<3x2x1x32xf32, #tpu.memory_space<vmem>>, %arg4: memref<3x2x1x32xf32, #tpu.memory_space<vmem>>, %arg5: memref<3x32x96xf32, #tpu.memory_space<vmem>>, %arg6: memref<3x1x96xf32, #tpu.memory_space<vmem>>, %arg7: memref<3x32x32xf32, #tpu.memory_space<vmem>>, %arg8: memref<3x1x32xf32, #tpu.memory_space<vmem>>, %arg9: memref<3x32x128xf32, #tpu.memory_space<vmem>>, %arg10: memref<3x1x128xf32, #tpu.memory_space<vmem>>, %arg11: memref<3x128x32xf32, #tpu.memory_space<vmem>>, %arg12: memref<3x1x32xf32, #tpu.memory_space<vmem>>, %arg13: memref<1x32xf32, #tpu.memory_space<vmem>>, %arg14: memref<1x32xf32, #tpu.memory_space<vmem>>, %arg15: memref<32x128xf32, #tpu.memory_space<vmem>>, %arg16: memref<1x128xf32, #tpu.memory_space<vmem>>, %arg17: memref<32x32xf32, #tpu.memory_space<vmem>>, %arg18: memref<32x128xf32, #tpu.memory_space<vmem>>) attributes {dimension_semantics = [], scalar_prefetch = 0 : i64, scratch_operands = 0 : i64, tpu.core_type = #tpu.core_type<tc>} {
    %c0 = arith.constant 0 : index
    %c0_0 = arith.constant 0 : index
    %0 = vector.load %arg17[%c0, %c0_0] : memref<32x32xf32, #tpu.memory_space<vmem>>, vector<32x32xf32>
    %c0_1 = arith.constant 0 : index
    %c0_2 = arith.constant 0 : index
    %1 = vector.load %arg0[%c0_1, %c0_2] : memref<48x32xf32, #tpu.memory_space<vmem>>, vector<16x32xf32>
    %c16 = arith.constant 16 : index
    %c0_3 = arith.constant 0 : index
    %2 = vector.load %arg0[%c16, %c0_3] : memref<48x32xf32, #tpu.memory_space<vmem>>, vector<16x32xf32>
    %c32 = arith.constant 32 : index
    %c0_4 = arith.constant 0 : index
    %3 = vector.load %arg0[%c32, %c0_4] : memref<48x32xf32, #tpu.memory_space<vmem>>, vector<16x32xf32>
    %c0_5 = arith.constant 0 : index
    %c0_6 = arith.constant 0 : index
    %4 = vector.load %arg1[%c0_5, %c0_6] : memref<32x32xf32, #tpu.memory_space<vmem>>, vector<32x32xf32>
    %c0_7 = arith.constant 0 : index
    %c0_8 = arith.constant 0 : index
    %5 = vector.load %arg2[%c0_7, %c0_8] : memref<1x32xf32, #tpu.memory_space<vmem>>, vector<1x32xf32>
    %cst = arith.constant dense<0.000000e+00> : vector<16x32xf32>
    %6 = tpu.matmul %2, %4, %cst {dimension_numbers = #tpu.dot_dimension_numbers<[1], [0], [0], [1], [0, 0, 1, 1], [], []>, precision = #tpu.contract_precision<fp32>} : vector<16x32xf32>, vector<32x32xf32>, vector<16x32xf32> -> vector<16x32xf32>
    %7 = vector.broadcast %5 : vector<1x32xf32> to vector<16x32xf32>
    %8 = arith.addf %6, %7 : vector<16x32xf32>
    %9 = math.tanh %8 : vector<16x32xf32>
    %10 = arith.addf %9, %3 : vector<16x32xf32>
    %11 = tpu.concatenate %1, %10 in 0 : vector<16x32xf32>, vector<16x32xf32> -> vector<32x32xf32>
    %c0_9 = arith.constant 0 : index
    %c0_10 = arith.constant 0 : index
    %c0_11 = arith.constant 0 : index
    %c0_12 = arith.constant 0 : index
    %12 = vector.load %arg3[%c0_9, %c0_10, %c0_11, %c0_12] : memref<3x2x1x32xf32, #tpu.memory_space<vmem>>, vector<1x1x1x32xf32>
    %13 = vector.shape_cast %12 : vector<1x1x1x32xf32> to vector<1x32xf32>
    %c0_13 = arith.constant 0 : index
    %c0_14 = arith.constant 0 : index
    %c0_15 = arith.constant 0 : index
    %c0_16 = arith.constant 0 : index
    %14 = vector.load %arg4[%c0_13, %c0_14, %c0_15, %c0_16] : memref<3x2x1x32xf32, #tpu.memory_space<vmem>>, vector<1x1x1x32xf32>
    %15 = vector.shape_cast %14 : vector<1x1x1x32xf32> to vector<1x32xf32>
    %c0_17 = arith.constant 0 : index
    %c1 = arith.constant 1 : index
    %c0_18 = arith.constant 0 : index
    %c0_19 = arith.constant 0 : index
    %16 = vector.load %arg3[%c0_17, %c1, %c0_18, %c0_19] : memref<3x2x1x32xf32, #tpu.memory_space<vmem>>, vector<1x1x1x32xf32>
    %17 = vector.shape_cast %16 : vector<1x1x1x32xf32> to vector<1x32xf32>
    %c0_20 = arith.constant 0 : index
    %c1_21 = arith.constant 1 : index
    %c0_22 = arith.constant 0 : index
    %c0_23 = arith.constant 0 : index
    %18 = vector.load %arg4[%c0_20, %c1_21, %c0_22, %c0_23] : memref<3x2x1x32xf32, #tpu.memory_space<vmem>>, vector<1x1x1x32xf32>
    %19 = vector.shape_cast %18 : vector<1x1x1x32xf32> to vector<1x32xf32>
    %cst_24 = arith.constant dense<0.000000e+00> : vector<32xf32>
    %20 = vector.multi_reduction <add>, %11, %cst_24 [1] : vector<32x32xf32> to vector<32xf32>
    %21 = vector.shape_cast %20 : vector<32xf32> to vector<32x1xf32>
    %cst_25 = arith.constant 3.200000e+01 : f32
    %22 = vector.broadcast %cst_25 : f32 to vector<32x1xf32>
    %23 = arith.divf %21, %22 : vector<32x1xf32>
    %24 = vector.broadcast %23 : vector<32x1xf32> to vector<32x32xf32>
    %25 = arith.subf %11, %24 : vector<32x32xf32>
    %26 = arith.mulf %25, %25 : vector<32x32xf32>
    %cst_26 = arith.constant dense<0.000000e+00> : vector<32xf32>
    %27 = vector.multi_reduction <add>, %26, %cst_26 [1] : vector<32x32xf32> to vector<32xf32>
    %28 = vector.shape_cast %27 : vector<32xf32> to vector<32x1xf32>
    %cst_27 = arith.constant 3.200000e+01 : f32
    %29 = vector.broadcast %cst_27 : f32 to vector<32x1xf32>
    %30 = arith.divf %28, %29 : vector<32x1xf32>
    %31 = vector.broadcast %23 : vector<32x1xf32> to vector<32x32xf32>
    %32 = arith.subf %11, %31 : vector<32x32xf32>
    %cst_28 = arith.constant 9.99999974E-6 : f32
    %33 = vector.broadcast %cst_28 : f32 to vector<32x1xf32>
    %34 = arith.addf %30, %33 : vector<32x1xf32>
    %35 = math.rsqrt %34 : vector<32x1xf32>
    %36 = vector.broadcast %35 : vector<32x1xf32> to vector<32x32xf32>
    %37 = arith.mulf %32, %36 : vector<32x32xf32>
    %38 = vector.broadcast %13 : vector<1x32xf32> to vector<32x32xf32>
    %39 = arith.mulf %37, %38 : vector<32x32xf32>
    %40 = vector.broadcast %15 : vector<1x32xf32> to vector<32x32xf32>
    %41 = arith.addf %39, %40 : vector<32x32xf32>
    %c0_29 = arith.constant 0 : index
    %c0_30 = arith.constant 0 : index
    %c0_31 = arith.constant 0 : index
    %42 = vector.load %arg5[%c0_29, %c0_30, %c0_31] : memref<3x32x96xf32, #tpu.memory_space<vmem>>, vector<1x32x96xf32>
    %43 = vector.shape_cast %42 : vector<1x32x96xf32> to vector<32x96xf32>
    %c0_32 = arith.constant 0 : index
    %c0_33 = arith.constant 0 : index
    %c0_34 = arith.constant 0 : index
    %44 = vector.load %arg6[%c0_32, %c0_33, %c0_34] : memref<3x1x96xf32, #tpu.memory_space<vmem>>, vector<1x1x96xf32>
    %45 = vector.shape_cast %44 : vector<1x1x96xf32> to vector<1x96xf32>
    %cst_35 = arith.constant dense<0.000000e+00> : vector<32x96xf32>
    %46 = tpu.matmul %41, %43, %cst_35 {dimension_numbers = #tpu.dot_dimension_numbers<[1], [0], [0], [1], [0, 0, 1, 1], [], []>, precision = #tpu.contract_precision<fp32>} : vector<32x32xf32>, vector<32x96xf32>, vector<32x96xf32> -> vector<32x96xf32>
    %47 = vector.broadcast %45 : vector<1x96xf32> to vector<32x96xf32>
    %48 = arith.addf %46, %47 : vector<32x96xf32>
    %49 = vector.extract_strided_slice %48 {offsets = [0, 0], sizes = [32, 32], strides = [1, 1]} : vector<32x96xf32> to vector<32x32xf32>
    %50 = vector.extract_strided_slice %48 {offsets = [0, 32], sizes = [32, 32], strides = [1, 1]} : vector<32x96xf32> to vector<32x32xf32>
    %51 = vector.extract_strided_slice %48 {offsets = [0, 64], sizes = [32, 32], strides = [1, 1]} : vector<32x96xf32> to vector<32x32xf32>
    %52 = vector.extract_strided_slice %49 {offsets = [0, 0], sizes = [16, 32], strides = [1, 1]} : vector<32x32xf32> to vector<16x32xf32>
    %53 = vector.extract_strided_slice %49 {offsets = [16, 0], sizes = [16, 32], strides = [1, 1]} : vector<32x32xf32> to vector<16x32xf32>
    %54 = vector.extract_strided_slice %50 {offsets = [0, 0], sizes = [16, 32], strides = [1, 1]} : vector<32x32xf32> to vector<16x32xf32>
    %55 = vector.extract_strided_slice %50 {offsets = [16, 0], sizes = [16, 32], strides = [1, 1]} : vector<32x32xf32> to vector<16x32xf32>
    %56 = vector.extract_strided_slice %51 {offsets = [0, 0], sizes = [16, 32], strides = [1, 1]} : vector<32x32xf32> to vector<16x32xf32>
    %57 = vector.extract_strided_slice %51 {offsets = [16, 0], sizes = [16, 32], strides = [1, 1]} : vector<32x32xf32> to vector<16x32xf32>
    %58 = arith.mulf %52, %54 : vector<16x32xf32>
    %59 = arith.mulf %52, %55 : vector<16x32xf32>
    %60 = arith.mulf %53, %54 : vector<16x32xf32>
    %61 = arith.mulf %53, %55 : vector<16x32xf32>
    %62 = tpu.concatenate %58, %59, %60, %61 in 0 : vector<16x32xf32>, vector<16x32xf32>, vector<16x32xf32>, vector<16x32xf32> -> vector<64x32xf32>
    %cst_36 = arith.constant dense<0.000000e+00> : vector<64x32xf32>
    %63 = tpu.matmul %62, %0, %cst_36 {dimension_numbers = #tpu.dot_dimension_numbers<[1], [0], [0], [1], [0, 0, 1, 1], [], []>, precision = #tpu.contract_precision<fp32>} : vector<64x32xf32>, vector<32x32xf32>, vector<64x32xf32> -> vector<64x32xf32>
    %cst_37 = arith.constant 2.500000e-01 : f32
    %64 = vector.broadcast %cst_37 : f32 to vector<64x32xf32>
    %65 = arith.mulf %63, %64 : vector<64x32xf32>
    %66 = vector.extract_strided_slice %65 {offsets = [0, 0], sizes = [16, 32], strides = [1, 1]} : vector<64x32xf32> to vector<16x32xf32>
    %67 = vector.extract_strided_slice %65 {offsets = [16, 0], sizes = [16, 32], strides = [1, 1]} : vector<64x32xf32> to vector<16x32xf32>
    %68 = vector.extract_strided_slice %65 {offsets = [32, 0], sizes = [16, 32], strides = [1, 1]} : vector<64x32xf32> to vector<16x32xf32>
    %69 = vector.extract_strided_slice %65 {offsets = [48, 0], sizes = [16, 32], strides = [1, 1]} : vector<64x32xf32> to vector<16x32xf32>
    %70 = arith.maximumf %66, %67 : vector<16x32xf32>
    %71 = arith.subf %66, %70 : vector<16x32xf32>
    %72 = math.exp %71 : vector<16x32xf32>
    %73 = arith.subf %67, %70 : vector<16x32xf32>
    %74 = math.exp %73 : vector<16x32xf32>
    %75 = arith.addf %72, %74 : vector<16x32xf32>
    %cst_38 = arith.constant 1.000000e+00 : f32
    %76 = vector.broadcast %cst_38 : f32 to vector<16x32xf32>
    %77 = arith.divf %76, %75 : vector<16x32xf32>
    %78 = arith.mulf %72, %77 : vector<16x32xf32>
    %79 = arith.mulf %74, %77 : vector<16x32xf32>
    %80 = arith.maximumf %68, %69 : vector<16x32xf32>
    %81 = arith.subf %68, %80 : vector<16x32xf32>
    %82 = math.exp %81 : vector<16x32xf32>
    %83 = arith.subf %69, %80 : vector<16x32xf32>
    %84 = math.exp %83 : vector<16x32xf32>
    %85 = arith.addf %82, %84 : vector<16x32xf32>
    %cst_39 = arith.constant 1.000000e+00 : f32
    %86 = vector.broadcast %cst_39 : f32 to vector<16x32xf32>
    %87 = arith.divf %86, %85 : vector<16x32xf32>
    %88 = arith.mulf %82, %87 : vector<16x32xf32>
    %89 = arith.mulf %84, %87 : vector<16x32xf32>
    %90 = arith.mulf %78, %56 : vector<16x32xf32>
    %91 = arith.mulf %79, %57 : vector<16x32xf32>
    %92 = arith.addf %90, %91 : vector<16x32xf32>
    %93 = arith.mulf %88, %56 : vector<16x32xf32>
    %94 = arith.mulf %89, %57 : vector<16x32xf32>
    %95 = arith.addf %93, %94 : vector<16x32xf32>
    %96 = tpu.concatenate %92, %95 in 0 : vector<16x32xf32>, vector<16x32xf32> -> vector<32x32xf32>
    %c0_40 = arith.constant 0 : index
    %c0_41 = arith.constant 0 : index
    %c0_42 = arith.constant 0 : index
    %97 = vector.load %arg7[%c0_40, %c0_41, %c0_42] : memref<3x32x32xf32, #tpu.memory_space<vmem>>, vector<1x32x32xf32>
    %98 = vector.shape_cast %97 : vector<1x32x32xf32> to vector<32x32xf32>
    %c0_43 = arith.constant 0 : index
    %c0_44 = arith.constant 0 : index
    %c0_45 = arith.constant 0 : index
    %99 = vector.load %arg8[%c0_43, %c0_44, %c0_45] : memref<3x1x32xf32, #tpu.memory_space<vmem>>, vector<1x1x32xf32>
    %100 = vector.shape_cast %99 : vector<1x1x32xf32> to vector<1x32xf32>
    %cst_46 = arith.constant dense<0.000000e+00> : vector<32x32xf32>
    %101 = tpu.matmul %96, %98, %cst_46 {dimension_numbers = #tpu.dot_dimension_numbers<[1], [0], [0], [1], [0, 0, 1, 1], [], []>, precision = #tpu.contract_precision<fp32>} : vector<32x32xf32>, vector<32x32xf32>, vector<32x32xf32> -> vector<32x32xf32>
    %102 = vector.broadcast %100 : vector<1x32xf32> to vector<32x32xf32>
    %103 = arith.addf %101, %102 : vector<32x32xf32>
    %104 = arith.addf %11, %103 : vector<32x32xf32>
    %cst_47 = arith.constant dense<0.000000e+00> : vector<32xf32>
    %105 = vector.multi_reduction <add>, %104, %cst_47 [1] : vector<32x32xf32> to vector<32xf32>
    %106 = vector.shape_cast %105 : vector<32xf32> to vector<32x1xf32>
    %cst_48 = arith.constant 3.200000e+01 : f32
    %107 = vector.broadcast %cst_48 : f32 to vector<32x1xf32>
    %108 = arith.divf %106, %107 : vector<32x1xf32>
    %109 = vector.broadcast %108 : vector<32x1xf32> to vector<32x32xf32>
    %110 = arith.subf %104, %109 : vector<32x32xf32>
    %111 = arith.mulf %110, %110 : vector<32x32xf32>
    %cst_49 = arith.constant dense<0.000000e+00> : vector<32xf32>
    %112 = vector.multi_reduction <add>, %111, %cst_49 [1] : vector<32x32xf32> to vector<32xf32>
    %113 = vector.shape_cast %112 : vector<32xf32> to vector<32x1xf32>
    %cst_50 = arith.constant 3.200000e+01 : f32
    %114 = vector.broadcast %cst_50 : f32 to vector<32x1xf32>
    %115 = arith.divf %113, %114 : vector<32x1xf32>
    %116 = vector.broadcast %108 : vector<32x1xf32> to vector<32x32xf32>
    %117 = arith.subf %104, %116 : vector<32x32xf32>
    %cst_51 = arith.constant 9.99999974E-6 : f32
    %118 = vector.broadcast %cst_51 : f32 to vector<32x1xf32>
    %119 = arith.addf %115, %118 : vector<32x1xf32>
    %120 = math.rsqrt %119 : vector<32x1xf32>
    %121 = vector.broadcast %120 : vector<32x1xf32> to vector<32x32xf32>
    %122 = arith.mulf %117, %121 : vector<32x32xf32>
    %123 = vector.broadcast %17 : vector<1x32xf32> to vector<32x32xf32>
    %124 = arith.mulf %122, %123 : vector<32x32xf32>
    %125 = vector.broadcast %19 : vector<1x32xf32> to vector<32x32xf32>
    %126 = arith.addf %124, %125 : vector<32x32xf32>
    %c0_52 = arith.constant 0 : index
    %c0_53 = arith.constant 0 : index
    %c0_54 = arith.constant 0 : index
    %127 = vector.load %arg9[%c0_52, %c0_53, %c0_54] : memref<3x32x128xf32, #tpu.memory_space<vmem>>, vector<1x32x128xf32>
    %128 = vector.shape_cast %127 : vector<1x32x128xf32> to vector<32x128xf32>
    %c0_55 = arith.constant 0 : index
    %c0_56 = arith.constant 0 : index
    %c0_57 = arith.constant 0 : index
    %129 = vector.load %arg10[%c0_55, %c0_56, %c0_57] : memref<3x1x128xf32, #tpu.memory_space<vmem>>, vector<1x1x128xf32>
    %130 = vector.shape_cast %129 : vector<1x1x128xf32> to vector<1x128xf32>
    %cst_58 = arith.constant dense<0.000000e+00> : vector<32x128xf32>
    %131 = tpu.matmul %126, %128, %cst_58 {dimension_numbers = #tpu.dot_dimension_numbers<[1], [0], [0], [1], [0, 0, 1, 1], [], []>, precision = #tpu.contract_precision<fp32>} : vector<32x32xf32>, vector<32x128xf32>, vector<32x128xf32> -> vector<32x128xf32>
    %132 = vector.broadcast %130 : vector<1x128xf32> to vector<32x128xf32>
    %133 = arith.addf %131, %132 : vector<32x128xf32>
    %cst_59 = arith.constant 5.000000e-01 : f32
    %134 = vector.broadcast %cst_59 : f32 to vector<32x128xf32>
    %135 = arith.mulf %134, %133 : vector<32x128xf32>
    %cst_60 = arith.constant 0.707106769 : f32
    %136 = vector.broadcast %cst_60 : f32 to vector<32x128xf32>
    %137 = arith.mulf %133, %136 : vector<32x128xf32>
    %138 = math.absf %137 : vector<32x128xf32>
    %cst_61 = arith.constant 0.327591091 : f32
    %139 = vector.broadcast %cst_61 : f32 to vector<32x128xf32>
    %140 = arith.mulf %139, %138 : vector<32x128xf32>
    %cst_62 = arith.constant 1.000000e+00 : f32
    %141 = vector.broadcast %cst_62 : f32 to vector<32x128xf32>
    %142 = arith.addf %141, %140 : vector<32x128xf32>
    %cst_63 = arith.constant 1.000000e+00 : f32
    %143 = vector.broadcast %cst_63 : f32 to vector<32x128xf32>
    %144 = arith.divf %143, %142 : vector<32x128xf32>
    %cst_64 = arith.constant 1.06140542 : f32
    %145 = vector.broadcast %cst_64 : f32 to vector<32x128xf32>
    %146 = arith.mulf %144, %145 : vector<32x128xf32>
    %cst_65 = arith.constant -1.45315206 : f32
    %147 = vector.broadcast %cst_65 : f32 to vector<32x128xf32>
    %148 = arith.addf %147, %146 : vector<32x128xf32>
    %149 = arith.mulf %144, %148 : vector<32x128xf32>
    %cst_66 = arith.constant 1.42141378 : f32
    %150 = vector.broadcast %cst_66 : f32 to vector<32x128xf32>
    %151 = arith.addf %150, %149 : vector<32x128xf32>
    %152 = arith.mulf %144, %151 : vector<32x128xf32>
    %cst_67 = arith.constant -0.284496725 : f32
    %153 = vector.broadcast %cst_67 : f32 to vector<32x128xf32>
    %154 = arith.addf %153, %152 : vector<32x128xf32>
    %155 = arith.mulf %144, %154 : vector<32x128xf32>
    %cst_68 = arith.constant 0.254829586 : f32
    %156 = vector.broadcast %cst_68 : f32 to vector<32x128xf32>
    %157 = arith.addf %156, %155 : vector<32x128xf32>
    %158 = arith.mulf %144, %157 : vector<32x128xf32>
    %cst_69 = arith.constant 0.000000e+00 : f32
    %159 = vector.broadcast %cst_69 : f32 to vector<32x128xf32>
    %160 = arith.subf %159, %138 : vector<32x128xf32>
    %161 = arith.mulf %160, %138 : vector<32x128xf32>
    %162 = math.exp %161 : vector<32x128xf32>
    %163 = arith.mulf %158, %162 : vector<32x128xf32>
    %cst_70 = arith.constant 1.000000e+00 : f32
    %164 = vector.broadcast %cst_70 : f32 to vector<32x128xf32>
    %165 = arith.subf %164, %163 : vector<32x128xf32>
    %cst_71 = arith.constant 0.000000e+00 : f32
    %166 = vector.broadcast %cst_71 : f32 to vector<32x128xf32>
    %167 = arith.cmpf oge, %137, %166 : vector<32x128xf32>
    %cst_72 = arith.constant 0.000000e+00 : f32
    %168 = vector.broadcast %cst_72 : f32 to vector<32x128xf32>
    %169 = arith.subf %168, %165 : vector<32x128xf32>
    %170 = arith.select %167, %165, %169 : vector<32x128xi1>, vector<32x128xf32>
    %cst_73 = arith.constant 1.000000e+00 : f32
    %171 = vector.broadcast %cst_73 : f32 to vector<32x128xf32>
    %172 = arith.addf %171, %170 : vector<32x128xf32>
    %173 = arith.mulf %135, %172 : vector<32x128xf32>
    %c0_74 = arith.constant 0 : index
    %c0_75 = arith.constant 0 : index
    %c0_76 = arith.constant 0 : index
    %174 = vector.load %arg11[%c0_74, %c0_75, %c0_76] : memref<3x128x32xf32, #tpu.memory_space<vmem>>, vector<1x128x32xf32>
    %175 = vector.shape_cast %174 : vector<1x128x32xf32> to vector<128x32xf32>
    %c0_77 = arith.constant 0 : index
    %c0_78 = arith.constant 0 : index
    %c0_79 = arith.constant 0 : index
    %176 = vector.load %arg12[%c0_77, %c0_78, %c0_79] : memref<3x1x32xf32, #tpu.memory_space<vmem>>, vector<1x1x32xf32>
    %177 = vector.shape_cast %176 : vector<1x1x32xf32> to vector<1x32xf32>
    %cst_80 = arith.constant dense<0.000000e+00> : vector<32x32xf32>
    %178 = tpu.matmul %173, %175, %cst_80 {dimension_numbers = #tpu.dot_dimension_numbers<[1], [0], [0], [1], [0, 0, 1, 1], [], []>, precision = #tpu.contract_precision<fp32>} : vector<32x128xf32>, vector<128x32xf32>, vector<32x32xf32> -> vector<32x32xf32>
    %179 = vector.broadcast %177 : vector<1x32xf32> to vector<32x32xf32>
    %180 = arith.addf %178, %179 : vector<32x32xf32>
    %181 = arith.addf %104, %180 : vector<32x32xf32>
    %c1_81 = arith.constant 1 : index
    %c0_82 = arith.constant 0 : index
    %c0_83 = arith.constant 0 : index
    %c0_84 = arith.constant 0 : index
    %182 = vector.load %arg3[%c1_81, %c0_82, %c0_83, %c0_84] : memref<3x2x1x32xf32, #tpu.memory_space<vmem>>, vector<1x1x1x32xf32>
    %183 = vector.shape_cast %182 : vector<1x1x1x32xf32> to vector<1x32xf32>
    %c1_85 = arith.constant 1 : index
    %c0_86 = arith.constant 0 : index
    %c0_87 = arith.constant 0 : index
    %c0_88 = arith.constant 0 : index
    %184 = vector.load %arg4[%c1_85, %c0_86, %c0_87, %c0_88] : memref<3x2x1x32xf32, #tpu.memory_space<vmem>>, vector<1x1x1x32xf32>
    %185 = vector.shape_cast %184 : vector<1x1x1x32xf32> to vector<1x32xf32>
    %c1_89 = arith.constant 1 : index
    %c1_90 = arith.constant 1 : index
    %c0_91 = arith.constant 0 : index
    %c0_92 = arith.constant 0 : index
    %186 = vector.load %arg3[%c1_89, %c1_90, %c0_91, %c0_92] : memref<3x2x1x32xf32, #tpu.memory_space<vmem>>, vector<1x1x1x32xf32>
    %187 = vector.shape_cast %186 : vector<1x1x1x32xf32> to vector<1x32xf32>
    %c1_93 = arith.constant 1 : index
    %c1_94 = arith.constant 1 : index
    %c0_95 = arith.constant 0 : index
    %c0_96 = arith.constant 0 : index
    %188 = vector.load %arg4[%c1_93, %c1_94, %c0_95, %c0_96] : memref<3x2x1x32xf32, #tpu.memory_space<vmem>>, vector<1x1x1x32xf32>
    %189 = vector.shape_cast %188 : vector<1x1x1x32xf32> to vector<1x32xf32>
    %cst_97 = arith.constant dense<0.000000e+00> : vector<32xf32>
    %190 = vector.multi_reduction <add>, %181, %cst_97 [1] : vector<32x32xf32> to vector<32xf32>
    %191 = vector.shape_cast %190 : vector<32xf32> to vector<32x1xf32>
    %cst_98 = arith.constant 3.200000e+01 : f32
    %192 = vector.broadcast %cst_98 : f32 to vector<32x1xf32>
    %193 = arith.divf %191, %192 : vector<32x1xf32>
    %194 = vector.broadcast %193 : vector<32x1xf32> to vector<32x32xf32>
    %195 = arith.subf %181, %194 : vector<32x32xf32>
    %196 = arith.mulf %195, %195 : vector<32x32xf32>
    %cst_99 = arith.constant dense<0.000000e+00> : vector<32xf32>
    %197 = vector.multi_reduction <add>, %196, %cst_99 [1] : vector<32x32xf32> to vector<32xf32>
    %198 = vector.shape_cast %197 : vector<32xf32> to vector<32x1xf32>
    %cst_100 = arith.constant 3.200000e+01 : f32
    %199 = vector.broadcast %cst_100 : f32 to vector<32x1xf32>
    %200 = arith.divf %198, %199 : vector<32x1xf32>
    %201 = vector.broadcast %193 : vector<32x1xf32> to vector<32x32xf32>
    %202 = arith.subf %181, %201 : vector<32x32xf32>
    %cst_101 = arith.constant 9.99999974E-6 : f32
    %203 = vector.broadcast %cst_101 : f32 to vector<32x1xf32>
    %204 = arith.addf %200, %203 : vector<32x1xf32>
    %205 = math.rsqrt %204 : vector<32x1xf32>
    %206 = vector.broadcast %205 : vector<32x1xf32> to vector<32x32xf32>
    %207 = arith.mulf %202, %206 : vector<32x32xf32>
    %208 = vector.broadcast %183 : vector<1x32xf32> to vector<32x32xf32>
    %209 = arith.mulf %207, %208 : vector<32x32xf32>
    %210 = vector.broadcast %185 : vector<1x32xf32> to vector<32x32xf32>
    %211 = arith.addf %209, %210 : vector<32x32xf32>
    %c1_102 = arith.constant 1 : index
    %c0_103 = arith.constant 0 : index
    %c0_104 = arith.constant 0 : index
    %212 = vector.load %arg5[%c1_102, %c0_103, %c0_104] : memref<3x32x96xf32, #tpu.memory_space<vmem>>, vector<1x32x96xf32>
    %213 = vector.shape_cast %212 : vector<1x32x96xf32> to vector<32x96xf32>
    %c1_105 = arith.constant 1 : index
    %c0_106 = arith.constant 0 : index
    %c0_107 = arith.constant 0 : index
    %214 = vector.load %arg6[%c1_105, %c0_106, %c0_107] : memref<3x1x96xf32, #tpu.memory_space<vmem>>, vector<1x1x96xf32>
    %215 = vector.shape_cast %214 : vector<1x1x96xf32> to vector<1x96xf32>
    %cst_108 = arith.constant dense<0.000000e+00> : vector<32x96xf32>
    %216 = tpu.matmul %211, %213, %cst_108 {dimension_numbers = #tpu.dot_dimension_numbers<[1], [0], [0], [1], [0, 0, 1, 1], [], []>, precision = #tpu.contract_precision<fp32>} : vector<32x32xf32>, vector<32x96xf32>, vector<32x96xf32> -> vector<32x96xf32>
    %217 = vector.broadcast %215 : vector<1x96xf32> to vector<32x96xf32>
    %218 = arith.addf %216, %217 : vector<32x96xf32>
    %219 = vector.extract_strided_slice %218 {offsets = [0, 0], sizes = [16, 32], strides = [1, 1]} : vector<32x96xf32> to vector<16x32xf32>
    %220 = vector.extract_strided_slice %218 {offsets = [0, 32], sizes = [32, 32], strides = [1, 1]} : vector<32x96xf32> to vector<32x32xf32>
    %221 = vector.extract_strided_slice %218 {offsets = [0, 64], sizes = [32, 32], strides = [1, 1]} : vector<32x96xf32> to vector<32x32xf32>
    %222 = vector.extract_strided_slice %220 {offsets = [0, 0], sizes = [16, 32], strides = [1, 1]} : vector<32x32xf32> to vector<16x32xf32>
    %223 = vector.extract_strided_slice %220 {offsets = [16, 0], sizes = [16, 32], strides = [1, 1]} : vector<32x32xf32> to vector<16x32xf32>
    %224 = vector.extract_strided_slice %221 {offsets = [0, 0], sizes = [16, 32], strides = [1, 1]} : vector<32x32xf32> to vector<16x32xf32>
    %225 = vector.extract_strided_slice %221 {offsets = [16, 0], sizes = [16, 32], strides = [1, 1]} : vector<32x32xf32> to vector<16x32xf32>
    %226 = arith.mulf %219, %222 : vector<16x32xf32>
    %227 = arith.mulf %219, %223 : vector<16x32xf32>
    %228 = tpu.concatenate %226, %227 in 0 : vector<16x32xf32>, vector<16x32xf32> -> vector<32x32xf32>
    %cst_109 = arith.constant dense<0.000000e+00> : vector<32x32xf32>
    %229 = tpu.matmul %228, %0, %cst_109 {dimension_numbers = #tpu.dot_dimension_numbers<[1], [0], [0], [1], [0, 0, 1, 1], [], []>, precision = #tpu.contract_precision<fp32>} : vector<32x32xf32>, vector<32x32xf32>, vector<32x32xf32> -> vector<32x32xf32>
    %cst_110 = arith.constant 2.500000e-01 : f32
    %230 = vector.broadcast %cst_110 : f32 to vector<32x32xf32>
    %231 = arith.mulf %229, %230 : vector<32x32xf32>
    %232 = vector.extract_strided_slice %231 {offsets = [0, 0], sizes = [16, 32], strides = [1, 1]} : vector<32x32xf32> to vector<16x32xf32>
    %233 = vector.extract_strided_slice %231 {offsets = [16, 0], sizes = [16, 32], strides = [1, 1]} : vector<32x32xf32> to vector<16x32xf32>
    %234 = arith.maximumf %232, %233 : vector<16x32xf32>
    %235 = arith.subf %232, %234 : vector<16x32xf32>
    %236 = math.exp %235 : vector<16x32xf32>
    %237 = arith.subf %233, %234 : vector<16x32xf32>
    %238 = math.exp %237 : vector<16x32xf32>
    %239 = arith.addf %236, %238 : vector<16x32xf32>
    %cst_111 = arith.constant 1.000000e+00 : f32
    %240 = vector.broadcast %cst_111 : f32 to vector<16x32xf32>
    %241 = arith.divf %240, %239 : vector<16x32xf32>
    %242 = arith.mulf %236, %241 : vector<16x32xf32>
    %243 = arith.mulf %238, %241 : vector<16x32xf32>
    %244 = arith.mulf %242, %224 : vector<16x32xf32>
    %245 = arith.mulf %243, %225 : vector<16x32xf32>
    %246 = arith.addf %244, %245 : vector<16x32xf32>
    %247 = vector.extract_strided_slice %181 {offsets = [0, 0], sizes = [16, 32], strides = [1, 1]} : vector<32x32xf32> to vector<16x32xf32>
    %c1_112 = arith.constant 1 : index
    %c0_113 = arith.constant 0 : index
    %c0_114 = arith.constant 0 : index
    %248 = vector.load %arg7[%c1_112, %c0_113, %c0_114] : memref<3x32x32xf32, #tpu.memory_space<vmem>>, vector<1x32x32xf32>
    %249 = vector.shape_cast %248 : vector<1x32x32xf32> to vector<32x32xf32>
    %c1_115 = arith.constant 1 : index
    %c0_116 = arith.constant 0 : index
    %c0_117 = arith.constant 0 : index
    %250 = vector.load %arg8[%c1_115, %c0_116, %c0_117] : memref<3x1x32xf32, #tpu.memory_space<vmem>>, vector<1x1x32xf32>
    %251 = vector.shape_cast %250 : vector<1x1x32xf32> to vector<1x32xf32>
    %cst_118 = arith.constant dense<0.000000e+00> : vector<16x32xf32>
    %252 = tpu.matmul %246, %249, %cst_118 {dimension_numbers = #tpu.dot_dimension_numbers<[1], [0], [0], [1], [0, 0, 1, 1], [], []>, precision = #tpu.contract_precision<fp32>} : vector<16x32xf32>, vector<32x32xf32>, vector<16x32xf32> -> vector<16x32xf32>
    %253 = vector.broadcast %251 : vector<1x32xf32> to vector<16x32xf32>
    %254 = arith.addf %252, %253 : vector<16x32xf32>
    %255 = arith.addf %247, %254 : vector<16x32xf32>
    %cst_119 = arith.constant dense<0.000000e+00> : vector<16xf32>
    %256 = vector.multi_reduction <add>, %255, %cst_119 [1] : vector<16x32xf32> to vector<16xf32>
    %257 = vector.shape_cast %256 : vector<16xf32> to vector<16x1xf32>
    %cst_120 = arith.constant 3.200000e+01 : f32
    %258 = vector.broadcast %cst_120 : f32 to vector<16x1xf32>
    %259 = arith.divf %257, %258 : vector<16x1xf32>
    %260 = vector.broadcast %259 : vector<16x1xf32> to vector<16x32xf32>
    %261 = arith.subf %255, %260 : vector<16x32xf32>
    %262 = arith.mulf %261, %261 : vector<16x32xf32>
    %cst_121 = arith.constant dense<0.000000e+00> : vector<16xf32>
    %263 = vector.multi_reduction <add>, %262, %cst_121 [1] : vector<16x32xf32> to vector<16xf32>
    %264 = vector.shape_cast %263 : vector<16xf32> to vector<16x1xf32>
    %cst_122 = arith.constant 3.200000e+01 : f32
    %265 = vector.broadcast %cst_122 : f32 to vector<16x1xf32>
    %266 = arith.divf %264, %265 : vector<16x1xf32>
    %267 = vector.broadcast %259 : vector<16x1xf32> to vector<16x32xf32>
    %268 = arith.subf %255, %267 : vector<16x32xf32>
    %cst_123 = arith.constant 9.99999974E-6 : f32
    %269 = vector.broadcast %cst_123 : f32 to vector<16x1xf32>
    %270 = arith.addf %266, %269 : vector<16x1xf32>
    %271 = math.rsqrt %270 : vector<16x1xf32>
    %272 = vector.broadcast %271 : vector<16x1xf32> to vector<16x32xf32>
    %273 = arith.mulf %268, %272 : vector<16x32xf32>
    %274 = vector.broadcast %187 : vector<1x32xf32> to vector<16x32xf32>
    %275 = arith.mulf %273, %274 : vector<16x32xf32>
    %276 = vector.broadcast %189 : vector<1x32xf32> to vector<16x32xf32>
    %277 = arith.addf %275, %276 : vector<16x32xf32>
    %c1_124 = arith.constant 1 : index
    %c0_125 = arith.constant 0 : index
    %c0_126 = arith.constant 0 : index
    %278 = vector.load %arg9[%c1_124, %c0_125, %c0_126] : memref<3x32x128xf32, #tpu.memory_space<vmem>>, vector<1x32x128xf32>
    %279 = vector.shape_cast %278 : vector<1x32x128xf32> to vector<32x128xf32>
    %c1_127 = arith.constant 1 : index
    %c0_128 = arith.constant 0 : index
    %c0_129 = arith.constant 0 : index
    %280 = vector.load %arg10[%c1_127, %c0_128, %c0_129] : memref<3x1x128xf32, #tpu.memory_space<vmem>>, vector<1x1x128xf32>
    %281 = vector.shape_cast %280 : vector<1x1x128xf32> to vector<1x128xf32>
    %cst_130 = arith.constant dense<0.000000e+00> : vector<16x128xf32>
    %282 = tpu.matmul %277, %279, %cst_130 {dimension_numbers = #tpu.dot_dimension_numbers<[1], [0], [0], [1], [0, 0, 1, 1], [], []>, precision = #tpu.contract_precision<fp32>} : vector<16x32xf32>, vector<32x128xf32>, vector<16x128xf32> -> vector<16x128xf32>
    %283 = vector.broadcast %281 : vector<1x128xf32> to vector<16x128xf32>
    %284 = arith.addf %282, %283 : vector<16x128xf32>
    %cst_131 = arith.constant 5.000000e-01 : f32
    %285 = vector.broadcast %cst_131 : f32 to vector<16x128xf32>
    %286 = arith.mulf %285, %284 : vector<16x128xf32>
    %cst_132 = arith.constant 0.707106769 : f32
    %287 = vector.broadcast %cst_132 : f32 to vector<16x128xf32>
    %288 = arith.mulf %284, %287 : vector<16x128xf32>
    %289 = math.absf %288 : vector<16x128xf32>
    %cst_133 = arith.constant 0.327591091 : f32
    %290 = vector.broadcast %cst_133 : f32 to vector<16x128xf32>
    %291 = arith.mulf %290, %289 : vector<16x128xf32>
    %cst_134 = arith.constant 1.000000e+00 : f32
    %292 = vector.broadcast %cst_134 : f32 to vector<16x128xf32>
    %293 = arith.addf %292, %291 : vector<16x128xf32>
    %cst_135 = arith.constant 1.000000e+00 : f32
    %294 = vector.broadcast %cst_135 : f32 to vector<16x128xf32>
    %295 = arith.divf %294, %293 : vector<16x128xf32>
    %cst_136 = arith.constant 1.06140542 : f32
    %296 = vector.broadcast %cst_136 : f32 to vector<16x128xf32>
    %297 = arith.mulf %295, %296 : vector<16x128xf32>
    %cst_137 = arith.constant -1.45315206 : f32
    %298 = vector.broadcast %cst_137 : f32 to vector<16x128xf32>
    %299 = arith.addf %298, %297 : vector<16x128xf32>
    %300 = arith.mulf %295, %299 : vector<16x128xf32>
    %cst_138 = arith.constant 1.42141378 : f32
    %301 = vector.broadcast %cst_138 : f32 to vector<16x128xf32>
    %302 = arith.addf %301, %300 : vector<16x128xf32>
    %303 = arith.mulf %295, %302 : vector<16x128xf32>
    %cst_139 = arith.constant -0.284496725 : f32
    %304 = vector.broadcast %cst_139 : f32 to vector<16x128xf32>
    %305 = arith.addf %304, %303 : vector<16x128xf32>
    %306 = arith.mulf %295, %305 : vector<16x128xf32>
    %cst_140 = arith.constant 0.254829586 : f32
    %307 = vector.broadcast %cst_140 : f32 to vector<16x128xf32>
    %308 = arith.addf %307, %306 : vector<16x128xf32>
    %309 = arith.mulf %295, %308 : vector<16x128xf32>
    %cst_141 = arith.constant 0.000000e+00 : f32
    %310 = vector.broadcast %cst_141 : f32 to vector<16x128xf32>
    %311 = arith.subf %310, %289 : vector<16x128xf32>
    %312 = arith.mulf %311, %289 : vector<16x128xf32>
    %313 = math.exp %312 : vector<16x128xf32>
    %314 = arith.mulf %309, %313 : vector<16x128xf32>
    %cst_142 = arith.constant 1.000000e+00 : f32
    %315 = vector.broadcast %cst_142 : f32 to vector<16x128xf32>
    %316 = arith.subf %315, %314 : vector<16x128xf32>
    %cst_143 = arith.constant 0.000000e+00 : f32
    %317 = vector.broadcast %cst_143 : f32 to vector<16x128xf32>
    %318 = arith.cmpf oge, %288, %317 : vector<16x128xf32>
    %cst_144 = arith.constant 0.000000e+00 : f32
    %319 = vector.broadcast %cst_144 : f32 to vector<16x128xf32>
    %320 = arith.subf %319, %316 : vector<16x128xf32>
    %321 = arith.select %318, %316, %320 : vector<16x128xi1>, vector<16x128xf32>
    %cst_145 = arith.constant 1.000000e+00 : f32
    %322 = vector.broadcast %cst_145 : f32 to vector<16x128xf32>
    %323 = arith.addf %322, %321 : vector<16x128xf32>
    %324 = arith.mulf %286, %323 : vector<16x128xf32>
    %c1_146 = arith.constant 1 : index
    %c0_147 = arith.constant 0 : index
    %c0_148 = arith.constant 0 : index
    %325 = vector.load %arg11[%c1_146, %c0_147, %c0_148] : memref<3x128x32xf32, #tpu.memory_space<vmem>>, vector<1x128x32xf32>
    %326 = vector.shape_cast %325 : vector<1x128x32xf32> to vector<128x32xf32>
    %c1_149 = arith.constant 1 : index
    %c0_150 = arith.constant 0 : index
    %c0_151 = arith.constant 0 : index
    %327 = vector.load %arg12[%c1_149, %c0_150, %c0_151] : memref<3x1x32xf32, #tpu.memory_space<vmem>>, vector<1x1x32xf32>
    %328 = vector.shape_cast %327 : vector<1x1x32xf32> to vector<1x32xf32>
    %cst_152 = arith.constant dense<0.000000e+00> : vector<16x32xf32>
    %329 = tpu.matmul %324, %326, %cst_152 {dimension_numbers = #tpu.dot_dimension_numbers<[1], [0], [0], [1], [0, 0, 1, 1], [], []>, precision = #tpu.contract_precision<fp32>} : vector<16x128xf32>, vector<128x32xf32>, vector<16x32xf32> -> vector<16x32xf32>
    %330 = vector.broadcast %328 : vector<1x32xf32> to vector<16x32xf32>
    %331 = arith.addf %329, %330 : vector<16x32xf32>
    %332 = arith.addf %255, %331 : vector<16x32xf32>
    %c2 = arith.constant 2 : index
    %c0_153 = arith.constant 0 : index
    %c0_154 = arith.constant 0 : index
    %c0_155 = arith.constant 0 : index
    %333 = vector.load %arg3[%c2, %c0_153, %c0_154, %c0_155] : memref<3x2x1x32xf32, #tpu.memory_space<vmem>>, vector<1x1x1x32xf32>
    %334 = vector.shape_cast %333 : vector<1x1x1x32xf32> to vector<1x32xf32>
    %c2_156 = arith.constant 2 : index
    %c0_157 = arith.constant 0 : index
    %c0_158 = arith.constant 0 : index
    %c0_159 = arith.constant 0 : index
    %335 = vector.load %arg4[%c2_156, %c0_157, %c0_158, %c0_159] : memref<3x2x1x32xf32, #tpu.memory_space<vmem>>, vector<1x1x1x32xf32>
    %336 = vector.shape_cast %335 : vector<1x1x1x32xf32> to vector<1x32xf32>
    %c2_160 = arith.constant 2 : index
    %c1_161 = arith.constant 1 : index
    %c0_162 = arith.constant 0 : index
    %c0_163 = arith.constant 0 : index
    %337 = vector.load %arg3[%c2_160, %c1_161, %c0_162, %c0_163] : memref<3x2x1x32xf32, #tpu.memory_space<vmem>>, vector<1x1x1x32xf32>
    %338 = vector.shape_cast %337 : vector<1x1x1x32xf32> to vector<1x32xf32>
    %c2_164 = arith.constant 2 : index
    %c1_165 = arith.constant 1 : index
    %c0_166 = arith.constant 0 : index
    %c0_167 = arith.constant 0 : index
    %339 = vector.load %arg4[%c2_164, %c1_165, %c0_166, %c0_167] : memref<3x2x1x32xf32, #tpu.memory_space<vmem>>, vector<1x1x1x32xf32>
    %340 = vector.shape_cast %339 : vector<1x1x1x32xf32> to vector<1x32xf32>
    %cst_168 = arith.constant dense<0.000000e+00> : vector<32xf32>
    %341 = vector.multi_reduction <add>, %181, %cst_168 [1] : vector<32x32xf32> to vector<32xf32>
    %342 = vector.shape_cast %341 : vector<32xf32> to vector<32x1xf32>
    %cst_169 = arith.constant 3.200000e+01 : f32
    %343 = vector.broadcast %cst_169 : f32 to vector<32x1xf32>
    %344 = arith.divf %342, %343 : vector<32x1xf32>
    %345 = vector.broadcast %344 : vector<32x1xf32> to vector<32x32xf32>
    %346 = arith.subf %181, %345 : vector<32x32xf32>
    %347 = arith.mulf %346, %346 : vector<32x32xf32>
    %cst_170 = arith.constant dense<0.000000e+00> : vector<32xf32>
    %348 = vector.multi_reduction <add>, %347, %cst_170 [1] : vector<32x32xf32> to vector<32xf32>
    %349 = vector.shape_cast %348 : vector<32xf32> to vector<32x1xf32>
    %cst_171 = arith.constant 3.200000e+01 : f32
    %350 = vector.broadcast %cst_171 : f32 to vector<32x1xf32>
    %351 = arith.divf %349, %350 : vector<32x1xf32>
    %352 = vector.broadcast %344 : vector<32x1xf32> to vector<32x32xf32>
    %353 = arith.subf %181, %352 : vector<32x32xf32>
    %cst_172 = arith.constant 9.99999974E-6 : f32
    %354 = vector.broadcast %cst_172 : f32 to vector<32x1xf32>
    %355 = arith.addf %351, %354 : vector<32x1xf32>
    %356 = math.rsqrt %355 : vector<32x1xf32>
    %357 = vector.broadcast %356 : vector<32x1xf32> to vector<32x32xf32>
    %358 = arith.mulf %353, %357 : vector<32x32xf32>
    %359 = vector.broadcast %334 : vector<1x32xf32> to vector<32x32xf32>
    %360 = arith.mulf %358, %359 : vector<32x32xf32>
    %361 = vector.broadcast %336 : vector<1x32xf32> to vector<32x32xf32>
    %362 = arith.addf %360, %361 : vector<32x32xf32>
    %c2_173 = arith.constant 2 : index
    %c0_174 = arith.constant 0 : index
    %c0_175 = arith.constant 0 : index
    %363 = vector.load %arg5[%c2_173, %c0_174, %c0_175] : memref<3x32x96xf32, #tpu.memory_space<vmem>>, vector<1x32x96xf32>
    %364 = vector.shape_cast %363 : vector<1x32x96xf32> to vector<32x96xf32>
    %c2_176 = arith.constant 2 : index
    %c0_177 = arith.constant 0 : index
    %c0_178 = arith.constant 0 : index
    %365 = vector.load %arg6[%c2_176, %c0_177, %c0_178] : memref<3x1x96xf32, #tpu.memory_space<vmem>>, vector<1x1x96xf32>
    %366 = vector.shape_cast %365 : vector<1x1x96xf32> to vector<1x96xf32>
    %cst_179 = arith.constant dense<0.000000e+00> : vector<32x96xf32>
    %367 = tpu.matmul %362, %364, %cst_179 {dimension_numbers = #tpu.dot_dimension_numbers<[1], [0], [0], [1], [0, 0, 1, 1], [], []>, precision = #tpu.contract_precision<fp32>} : vector<32x32xf32>, vector<32x96xf32>, vector<32x96xf32> -> vector<32x96xf32>
    %368 = vector.broadcast %366 : vector<1x96xf32> to vector<32x96xf32>
    %369 = arith.addf %367, %368 : vector<32x96xf32>
    %370 = vector.extract_strided_slice %369 {offsets = [0, 0], sizes = [16, 32], strides = [1, 1]} : vector<32x96xf32> to vector<16x32xf32>
    %371 = vector.extract_strided_slice %369 {offsets = [0, 32], sizes = [32, 32], strides = [1, 1]} : vector<32x96xf32> to vector<32x32xf32>
    %372 = vector.extract_strided_slice %369 {offsets = [0, 64], sizes = [32, 32], strides = [1, 1]} : vector<32x96xf32> to vector<32x32xf32>
    %373 = vector.extract_strided_slice %371 {offsets = [0, 0], sizes = [16, 32], strides = [1, 1]} : vector<32x32xf32> to vector<16x32xf32>
    %374 = vector.extract_strided_slice %371 {offsets = [16, 0], sizes = [16, 32], strides = [1, 1]} : vector<32x32xf32> to vector<16x32xf32>
    %375 = vector.extract_strided_slice %372 {offsets = [0, 0], sizes = [16, 32], strides = [1, 1]} : vector<32x32xf32> to vector<16x32xf32>
    %376 = vector.extract_strided_slice %372 {offsets = [16, 0], sizes = [16, 32], strides = [1, 1]} : vector<32x32xf32> to vector<16x32xf32>
    %377 = arith.mulf %370, %373 : vector<16x32xf32>
    %378 = arith.mulf %370, %374 : vector<16x32xf32>
    %379 = tpu.concatenate %377, %378 in 0 : vector<16x32xf32>, vector<16x32xf32> -> vector<32x32xf32>
    %cst_180 = arith.constant dense<0.000000e+00> : vector<32x32xf32>
    %380 = tpu.matmul %379, %0, %cst_180 {dimension_numbers = #tpu.dot_dimension_numbers<[1], [0], [0], [1], [0, 0, 1, 1], [], []>, precision = #tpu.contract_precision<fp32>} : vector<32x32xf32>, vector<32x32xf32>, vector<32x32xf32> -> vector<32x32xf32>
    %cst_181 = arith.constant 2.500000e-01 : f32
    %381 = vector.broadcast %cst_181 : f32 to vector<32x32xf32>
    %382 = arith.mulf %380, %381 : vector<32x32xf32>
    %383 = vector.extract_strided_slice %382 {offsets = [0, 0], sizes = [16, 32], strides = [1, 1]} : vector<32x32xf32> to vector<16x32xf32>
    %384 = vector.extract_strided_slice %382 {offsets = [16, 0], sizes = [16, 32], strides = [1, 1]} : vector<32x32xf32> to vector<16x32xf32>
    %385 = arith.maximumf %383, %384 : vector<16x32xf32>
    %386 = arith.subf %383, %385 : vector<16x32xf32>
    %387 = math.exp %386 : vector<16x32xf32>
    %388 = arith.subf %384, %385 : vector<16x32xf32>
    %389 = math.exp %388 : vector<16x32xf32>
    %390 = arith.addf %387, %389 : vector<16x32xf32>
    %cst_182 = arith.constant 1.000000e+00 : f32
    %391 = vector.broadcast %cst_182 : f32 to vector<16x32xf32>
    %392 = arith.divf %391, %390 : vector<16x32xf32>
    %393 = arith.mulf %387, %392 : vector<16x32xf32>
    %394 = arith.mulf %389, %392 : vector<16x32xf32>
    %395 = arith.mulf %393, %375 : vector<16x32xf32>
    %396 = arith.mulf %394, %376 : vector<16x32xf32>
    %397 = arith.addf %395, %396 : vector<16x32xf32>
    %398 = vector.extract_strided_slice %181 {offsets = [0, 0], sizes = [16, 32], strides = [1, 1]} : vector<32x32xf32> to vector<16x32xf32>
    %c2_183 = arith.constant 2 : index
    %c0_184 = arith.constant 0 : index
    %c0_185 = arith.constant 0 : index
    %399 = vector.load %arg7[%c2_183, %c0_184, %c0_185] : memref<3x32x32xf32, #tpu.memory_space<vmem>>, vector<1x32x32xf32>
    %400 = vector.shape_cast %399 : vector<1x32x32xf32> to vector<32x32xf32>
    %c2_186 = arith.constant 2 : index
    %c0_187 = arith.constant 0 : index
    %c0_188 = arith.constant 0 : index
    %401 = vector.load %arg8[%c2_186, %c0_187, %c0_188] : memref<3x1x32xf32, #tpu.memory_space<vmem>>, vector<1x1x32xf32>
    %402 = vector.shape_cast %401 : vector<1x1x32xf32> to vector<1x32xf32>
    %cst_189 = arith.constant dense<0.000000e+00> : vector<16x32xf32>
    %403 = tpu.matmul %397, %400, %cst_189 {dimension_numbers = #tpu.dot_dimension_numbers<[1], [0], [0], [1], [0, 0, 1, 1], [], []>, precision = #tpu.contract_precision<fp32>} : vector<16x32xf32>, vector<32x32xf32>, vector<16x32xf32> -> vector<16x32xf32>
    %404 = vector.broadcast %402 : vector<1x32xf32> to vector<16x32xf32>
    %405 = arith.addf %403, %404 : vector<16x32xf32>
    %406 = arith.addf %398, %405 : vector<16x32xf32>
    %cst_190 = arith.constant dense<0.000000e+00> : vector<16xf32>
    %407 = vector.multi_reduction <add>, %406, %cst_190 [1] : vector<16x32xf32> to vector<16xf32>
    %408 = vector.shape_cast %407 : vector<16xf32> to vector<16x1xf32>
    %cst_191 = arith.constant 3.200000e+01 : f32
    %409 = vector.broadcast %cst_191 : f32 to vector<16x1xf32>
    %410 = arith.divf %408, %409 : vector<16x1xf32>
    %411 = vector.broadcast %410 : vector<16x1xf32> to vector<16x32xf32>
    %412 = arith.subf %406, %411 : vector<16x32xf32>
    %413 = arith.mulf %412, %412 : vector<16x32xf32>
    %cst_192 = arith.constant dense<0.000000e+00> : vector<16xf32>
    %414 = vector.multi_reduction <add>, %413, %cst_192 [1] : vector<16x32xf32> to vector<16xf32>
    %415 = vector.shape_cast %414 : vector<16xf32> to vector<16x1xf32>
    %cst_193 = arith.constant 3.200000e+01 : f32
    %416 = vector.broadcast %cst_193 : f32 to vector<16x1xf32>
    %417 = arith.divf %415, %416 : vector<16x1xf32>
    %418 = vector.broadcast %410 : vector<16x1xf32> to vector<16x32xf32>
    %419 = arith.subf %406, %418 : vector<16x32xf32>
    %cst_194 = arith.constant 9.99999974E-6 : f32
    %420 = vector.broadcast %cst_194 : f32 to vector<16x1xf32>
    %421 = arith.addf %417, %420 : vector<16x1xf32>
    %422 = math.rsqrt %421 : vector<16x1xf32>
    %423 = vector.broadcast %422 : vector<16x1xf32> to vector<16x32xf32>
    %424 = arith.mulf %419, %423 : vector<16x32xf32>
    %425 = vector.broadcast %338 : vector<1x32xf32> to vector<16x32xf32>
    %426 = arith.mulf %424, %425 : vector<16x32xf32>
    %427 = vector.broadcast %340 : vector<1x32xf32> to vector<16x32xf32>
    %428 = arith.addf %426, %427 : vector<16x32xf32>
    %c2_195 = arith.constant 2 : index
    %c0_196 = arith.constant 0 : index
    %c0_197 = arith.constant 0 : index
    %429 = vector.load %arg9[%c2_195, %c0_196, %c0_197] : memref<3x32x128xf32, #tpu.memory_space<vmem>>, vector<1x32x128xf32>
    %430 = vector.shape_cast %429 : vector<1x32x128xf32> to vector<32x128xf32>
    %c2_198 = arith.constant 2 : index
    %c0_199 = arith.constant 0 : index
    %c0_200 = arith.constant 0 : index
    %431 = vector.load %arg10[%c2_198, %c0_199, %c0_200] : memref<3x1x128xf32, #tpu.memory_space<vmem>>, vector<1x1x128xf32>
    %432 = vector.shape_cast %431 : vector<1x1x128xf32> to vector<1x128xf32>
    %cst_201 = arith.constant dense<0.000000e+00> : vector<16x128xf32>
    %433 = tpu.matmul %428, %430, %cst_201 {dimension_numbers = #tpu.dot_dimension_numbers<[1], [0], [0], [1], [0, 0, 1, 1], [], []>, precision = #tpu.contract_precision<fp32>} : vector<16x32xf32>, vector<32x128xf32>, vector<16x128xf32> -> vector<16x128xf32>
    %434 = vector.broadcast %432 : vector<1x128xf32> to vector<16x128xf32>
    %435 = arith.addf %433, %434 : vector<16x128xf32>
    %cst_202 = arith.constant 5.000000e-01 : f32
    %436 = vector.broadcast %cst_202 : f32 to vector<16x128xf32>
    %437 = arith.mulf %436, %435 : vector<16x128xf32>
    %cst_203 = arith.constant 0.707106769 : f32
    %438 = vector.broadcast %cst_203 : f32 to vector<16x128xf32>
    %439 = arith.mulf %435, %438 : vector<16x128xf32>
    %440 = math.absf %439 : vector<16x128xf32>
    %cst_204 = arith.constant 0.327591091 : f32
    %441 = vector.broadcast %cst_204 : f32 to vector<16x128xf32>
    %442 = arith.mulf %441, %440 : vector<16x128xf32>
    %cst_205 = arith.constant 1.000000e+00 : f32
    %443 = vector.broadcast %cst_205 : f32 to vector<16x128xf32>
    %444 = arith.addf %443, %442 : vector<16x128xf32>
    %cst_206 = arith.constant 1.000000e+00 : f32
    %445 = vector.broadcast %cst_206 : f32 to vector<16x128xf32>
    %446 = arith.divf %445, %444 : vector<16x128xf32>
    %cst_207 = arith.constant 1.06140542 : f32
    %447 = vector.broadcast %cst_207 : f32 to vector<16x128xf32>
    %448 = arith.mulf %446, %447 : vector<16x128xf32>
    %cst_208 = arith.constant -1.45315206 : f32
    %449 = vector.broadcast %cst_208 : f32 to vector<16x128xf32>
    %450 = arith.addf %449, %448 : vector<16x128xf32>
    %451 = arith.mulf %446, %450 : vector<16x128xf32>
    %cst_209 = arith.constant 1.42141378 : f32
    %452 = vector.broadcast %cst_209 : f32 to vector<16x128xf32>
    %453 = arith.addf %452, %451 : vector<16x128xf32>
    %454 = arith.mulf %446, %453 : vector<16x128xf32>
    %cst_210 = arith.constant -0.284496725 : f32
    %455 = vector.broadcast %cst_210 : f32 to vector<16x128xf32>
    %456 = arith.addf %455, %454 : vector<16x128xf32>
    %457 = arith.mulf %446, %456 : vector<16x128xf32>
    %cst_211 = arith.constant 0.254829586 : f32
    %458 = vector.broadcast %cst_211 : f32 to vector<16x128xf32>
    %459 = arith.addf %458, %457 : vector<16x128xf32>
    %460 = arith.mulf %446, %459 : vector<16x128xf32>
    %cst_212 = arith.constant 0.000000e+00 : f32
    %461 = vector.broadcast %cst_212 : f32 to vector<16x128xf32>
    %462 = arith.subf %461, %440 : vector<16x128xf32>
    %463 = arith.mulf %462, %440 : vector<16x128xf32>
    %464 = math.exp %463 : vector<16x128xf32>
    %465 = arith.mulf %460, %464 : vector<16x128xf32>
    %cst_213 = arith.constant 1.000000e+00 : f32
    %466 = vector.broadcast %cst_213 : f32 to vector<16x128xf32>
    %467 = arith.subf %466, %465 : vector<16x128xf32>
    %cst_214 = arith.constant 0.000000e+00 : f32
    %468 = vector.broadcast %cst_214 : f32 to vector<16x128xf32>
    %469 = arith.cmpf oge, %439, %468 : vector<16x128xf32>
    %cst_215 = arith.constant 0.000000e+00 : f32
    %470 = vector.broadcast %cst_215 : f32 to vector<16x128xf32>
    %471 = arith.subf %470, %467 : vector<16x128xf32>
    %472 = arith.select %469, %467, %471 : vector<16x128xi1>, vector<16x128xf32>
    %cst_216 = arith.constant 1.000000e+00 : f32
    %473 = vector.broadcast %cst_216 : f32 to vector<16x128xf32>
    %474 = arith.addf %473, %472 : vector<16x128xf32>
    %475 = arith.mulf %437, %474 : vector<16x128xf32>
    %c2_217 = arith.constant 2 : index
    %c0_218 = arith.constant 0 : index
    %c0_219 = arith.constant 0 : index
    %476 = vector.load %arg11[%c2_217, %c0_218, %c0_219] : memref<3x128x32xf32, #tpu.memory_space<vmem>>, vector<1x128x32xf32>
    %477 = vector.shape_cast %476 : vector<1x128x32xf32> to vector<128x32xf32>
    %c2_220 = arith.constant 2 : index
    %c0_221 = arith.constant 0 : index
    %c0_222 = arith.constant 0 : index
    %478 = vector.load %arg12[%c2_220, %c0_221, %c0_222] : memref<3x1x32xf32, #tpu.memory_space<vmem>>, vector<1x1x32xf32>
    %479 = vector.shape_cast %478 : vector<1x1x32xf32> to vector<1x32xf32>
    %cst_223 = arith.constant dense<0.000000e+00> : vector<16x32xf32>
    %480 = tpu.matmul %475, %477, %cst_223 {dimension_numbers = #tpu.dot_dimension_numbers<[1], [0], [0], [1], [0, 0, 1, 1], [], []>, precision = #tpu.contract_precision<fp32>} : vector<16x128xf32>, vector<128x32xf32>, vector<16x32xf32> -> vector<16x32xf32>
    %481 = vector.broadcast %479 : vector<1x32xf32> to vector<16x32xf32>
    %482 = arith.addf %480, %481 : vector<16x32xf32>
    %483 = arith.addf %406, %482 : vector<16x32xf32>
    %484 = tpu.concatenate %332, %483 in 0 : vector<16x32xf32>, vector<16x32xf32> -> vector<32x32xf32>
    %c0_224 = arith.constant 0 : index
    %c0_225 = arith.constant 0 : index
    %485 = vector.load %arg13[%c0_224, %c0_225] : memref<1x32xf32, #tpu.memory_space<vmem>>, vector<1x32xf32>
    %c0_226 = arith.constant 0 : index
    %c0_227 = arith.constant 0 : index
    %486 = vector.load %arg14[%c0_226, %c0_227] : memref<1x32xf32, #tpu.memory_space<vmem>>, vector<1x32xf32>
    %cst_228 = arith.constant dense<0.000000e+00> : vector<32xf32>
    %487 = vector.multi_reduction <add>, %484, %cst_228 [1] : vector<32x32xf32> to vector<32xf32>
    %488 = vector.shape_cast %487 : vector<32xf32> to vector<32x1xf32>
    %cst_229 = arith.constant 3.200000e+01 : f32
    %489 = vector.broadcast %cst_229 : f32 to vector<32x1xf32>
    %490 = arith.divf %488, %489 : vector<32x1xf32>
    %491 = vector.broadcast %490 : vector<32x1xf32> to vector<32x32xf32>
    %492 = arith.subf %484, %491 : vector<32x32xf32>
    %493 = arith.mulf %492, %492 : vector<32x32xf32>
    %cst_230 = arith.constant dense<0.000000e+00> : vector<32xf32>
    %494 = vector.multi_reduction <add>, %493, %cst_230 [1] : vector<32x32xf32> to vector<32xf32>
    %495 = vector.shape_cast %494 : vector<32xf32> to vector<32x1xf32>
    %cst_231 = arith.constant 3.200000e+01 : f32
    %496 = vector.broadcast %cst_231 : f32 to vector<32x1xf32>
    %497 = arith.divf %495, %496 : vector<32x1xf32>
    %498 = vector.broadcast %490 : vector<32x1xf32> to vector<32x32xf32>
    %499 = arith.subf %484, %498 : vector<32x32xf32>
    %cst_232 = arith.constant 9.99999974E-6 : f32
    %500 = vector.broadcast %cst_232 : f32 to vector<32x1xf32>
    %501 = arith.addf %497, %500 : vector<32x1xf32>
    %502 = math.rsqrt %501 : vector<32x1xf32>
    %503 = vector.broadcast %502 : vector<32x1xf32> to vector<32x32xf32>
    %504 = arith.mulf %499, %503 : vector<32x32xf32>
    %505 = vector.broadcast %485 : vector<1x32xf32> to vector<32x32xf32>
    %506 = arith.mulf %504, %505 : vector<32x32xf32>
    %507 = vector.broadcast %486 : vector<1x32xf32> to vector<32x32xf32>
    %508 = arith.addf %506, %507 : vector<32x32xf32>
    %c0_233 = arith.constant 0 : index
    %c0_234 = arith.constant 0 : index
    %509 = vector.load %arg15[%c0_233, %c0_234] : memref<32x128xf32, #tpu.memory_space<vmem>>, vector<32x128xf32>
    %c0_235 = arith.constant 0 : index
    %c0_236 = arith.constant 0 : index
    %510 = vector.load %arg16[%c0_235, %c0_236] : memref<1x128xf32, #tpu.memory_space<vmem>>, vector<1x128xf32>
    %cst_237 = arith.constant dense<0.000000e+00> : vector<32x128xf32>
    %511 = tpu.matmul %508, %509, %cst_237 {dimension_numbers = #tpu.dot_dimension_numbers<[1], [0], [0], [1], [0, 0, 1, 1], [], []>, precision = #tpu.contract_precision<fp32>} : vector<32x32xf32>, vector<32x128xf32>, vector<32x128xf32> -> vector<32x128xf32>
    %512 = vector.broadcast %510 : vector<1x128xf32> to vector<32x128xf32>
    %513 = arith.addf %511, %512 : vector<32x128xf32>
    %c0_238 = arith.constant 0 : index
    %c0_239 = arith.constant 0 : index
    %514 = vector.load %arg18[%c0_238, %c0_239] : memref<32x128xf32, #tpu.memory_space<vmem>>, vector<32x128xf32>
    tpu.vector_store %arg18[%c0_238, %c0_239], %513 {strides = array<i32>} : memref<32x128xf32, #tpu.memory_space<vmem>>, vector<32x128xf32>,
    return
  }
}

</mosaic_0001>

<llo_original>
// kernel: transformer_forward.1
$region0: #{transformer_forward.1}
  #allocation0 [shape = 'u32[]', space=smem, size = 0x4, offset = 0x4, fixed_abs, tag = 'smem constant byte address 0x4 - core index']
  #allocation1 [shape = 'u32[144,128]{1,0:T(1,128)}', space=vmem, size = 0x12000, scoped, tag = 'internal scratch']
  %s0 = inlined_call_operand.vmem [shape: f32[48,32], index: 0, kind: input, shape index: {}]
  %s1 = inlined_call_operand.vmem [shape: f32[32,32], index: 1, kind: input, shape index: {}]
  %s2 = inlined_call_operand.vmem [shape: f32[1,32], index: 2, kind: input, shape index: {}]
  %s3 = inlined_call_operand.vmem [shape: f32[3,2,1,32], index: 3, kind: input, shape index: {}]
  %s4 = inlined_call_operand.vmem [shape: f32[3,2,1,32], index: 4, kind: input, shape index: {}]
  %s5 = inlined_call_operand.vmem [shape: f32[3,32,96], index: 5, kind: input, shape index: {}]
  %s6 = inlined_call_operand.vmem [shape: f32[3,1,96], index: 6, kind: input, shape index: {}]
  %s7 = inlined_call_operand.vmem [shape: f32[3,32,32], index: 7, kind: input, shape index: {}]
  %s8 = inlined_call_operand.vmem [shape: f32[3,1,32], index: 8, kind: input, shape index: {}]
  %s9 = inlined_call_operand.vmem [shape: f32[3,32,128], index: 9, kind: input, shape index: {}]
  %s10 = inlined_call_operand.vmem [shape: f32[3,1,128], index: 10, kind: input, shape index: {}]
  %s11 = inlined_call_operand.vmem [shape: f32[3,128,32], index: 11, kind: input, shape index: {}]
  %s12 = inlined_call_operand.vmem [shape: f32[3,1,32], index: 12, kind: input, shape index: {}]
  %s13 = inlined_call_operand.vmem [shape: f32[1,32], index: 13, kind: input, shape index: {}]
  %s14 = inlined_call_operand.vmem [shape: f32[1,32], index: 14, kind: input, shape index: {}]
  %s15 = inlined_call_operand.vmem [shape: f32[32,128], index: 15, kind: input, shape index: {}]
  %s16 = inlined_call_operand.vmem [shape: f32[1,128], index: 16, kind: input, shape index: {}]
  %s17 = inlined_call_operand.vmem [shape: f32[32,32], index: 17, kind: input, shape index: {}]
  %s18 = inlined_call_operand.vmem [shape: f32[32,128], index: 18, kind: output, shape index: {}]
  %s19 = sld [smem:[#allocation0]]
  $region82: #{transformer_forward.1} parent=0
    _
  %s21 = ssub.s32 1, %s19
  %s22 = scalar_select 0, %s21, %s19
  // Predicated region
  $region2: #{transformer_forward.1} parent=0 // pred_check
    _
  $region3: #{transformer_forward.1} parent=0 // pred_check_branch
    %24 = sbr.rel (0) target = $region5
  $region4: #{transformer_forward.1} parent=0 // pred_region
    _
  $region5: #{transformer_forward.1} parent=0 // pred_fallthru
    _
  // Predicated region
  $region6: #{transformer_forward.1} parent=0 // pred_check
    _
  $region7: #{transformer_forward.1} parent=0 // pred_check_branch
    %26 = sbr.rel (0) target = $region9
  $region8: #{transformer_forward.1} parent=0 // pred_region
    _
  $region9: #{transformer_forward.1} parent=0 // pred_fallthru
    _
  // Predicated region
  $region10: #{transformer_forward.1} parent=0 // pred_check
    _
  $region11: #{transformer_forward.1} parent=0 // pred_check_branch
    %28 = sbr.rel (0) target = $region13
  $region12: #{transformer_forward.1} parent=0 // pred_region
    _
  $region13: #{transformer_forward.1} parent=0 // pred_fallthru
    _
  // Predicated region
  $region14: #{transformer_forward.1} parent=0 // pred_check
    _
  $region15: #{transformer_forward.1} parent=0 // pred_check_branch
    %30 = sbr.rel (0) target = $region17
  $region16: #{transformer_forward.1} parent=0 // pred_region
    _
  $region17: #{transformer_forward.1} parent=0 // pred_fallthru
    _
  // Predicated region
  $region18: #{transformer_forward.1} parent=0 // pred_check
    _
  $region19: #{transformer_forward.1} parent=0 // pred_check_branch
    %32 = sbr.rel (0) target = $region21
  $region20: #{transformer_forward.1} parent=0 // pred_region
    _
  $region21: #{transformer_forward.1} parent=0 // pred_fallthru
    _
  // Predicated region
  $region22: #{transformer_forward.1} parent=0 // pred_check
    _
  $region23: #{transformer_forward.1} parent=0 // pred_check_branch
    %34 = sbr.rel (0) target = $region25
  $region24: #{transformer_forward.1} parent=0 // pred_region
    _
  $region25: #{transformer_forward.1} parent=0 // pred_fallthru
    _
  // Predicated region
  $region26: #{transformer_forward.1} parent=0 // pred_check
    _
  $region27: #{transformer_forward.1} parent=0 // pred_check_branch
    %36 = sbr.rel (0) target = $region29
  $region28: #{transformer_forward.1} parent=0 // pred_region
    _
  $region29: #{transformer_forward.1} parent=0 // pred_fallthru
    _
  // Predicated region
  $region30: #{transformer_forward.1} parent=0 // pred_check
    _
  $region31: #{transformer_forward.1} parent=0 // pred_check_branch
    %38 = sbr.rel (0) target = $region33
  $region32: #{transformer_forward.1} parent=0 // pred_region
    _
  $region33: #{transformer_forward.1} parent=0 // pred_fallthru
    _
  // Predicated region
  $region34: #{transformer_forward.1} parent=0 // pred_check
    _
  $region35: #{transformer_forward.1} parent=0 // pred_check_branch
    %40 = sbr.rel (0) target = $region37
  $region36: #{transformer_forward.1} parent=0 // pred_region
    _
  $region37: #{transformer_forward.1} parent=0 // pred_fallthru
    _
  // Predicated region
  $region38: #{transformer_forward.1} parent=0 // pred_check
    _
  $region39: #{transformer_forward.1} parent=0 // pred_check_branch
    %42 = sbr.rel (0) target = $region41
  $region40: #{transformer_forward.1} parent=0 // pred_region
    _
  $region41: #{transformer_forward.1} parent=0 // pred_fallthru
    _
  // Predicated region
  $region42: #{transformer_forward.1} parent=0 // pred_check
    _
  $region43: #{transformer_forward.1} parent=0 // pred_check_branch
    %44 = sbr.rel (0) target = $region45
  $region44: #{transformer_forward.1} parent=0 // pred_region
    _
  $region45: #{transformer_forward.1} parent=0 // pred_fallthru
    _
  // Predicated region
  $region46: #{transformer_forward.1} parent=0 // pred_check
    _
  $region47: #{transformer_forward.1} parent=0 // pred_check_branch
    %46 = sbr.rel (0) target = $region49
  $region48: #{transformer_forward.1} parent=0 // pred_region
    _
  $region49: #{transformer_forward.1} parent=0 // pred_fallthru
    _
  // Predicated region
  $region50: #{transformer_forward.1} parent=0 // pred_check
    _
  $region51: #{transformer_forward.1} parent=0 // pred_check_branch
    %48 = sbr.rel (0) target = $region53
  $region52: #{transformer_forward.1} parent=0 // pred_region
    _
  $region53: #{transformer_forward.1} parent=0 // pred_fallthru
    _
  // Predicated region
  $region54: #{transformer_forward.1} parent=0 // pred_check
    _
  $region55: #{transformer_forward.1} parent=0 // pred_check_branch
    %50 = sbr.rel (0) target = $region57
  $region56: #{transformer_forward.1} parent=0 // pred_region
    _
  $region57: #{transformer_forward.1} parent=0 // pred_fallthru
    _
  // Predicated region
  $region58: #{transformer_forward.1} parent=0 // pred_check
    _
  $region59: #{transformer_forward.1} parent=0 // pred_check_branch
    %52 = sbr.rel (0) target = $region61
  $region60: #{transformer_forward.1} parent=0 // pred_region
    _
  $region61: #{transformer_forward.1} parent=0 // pred_fallthru
    _
  // Predicated region
  $region62: #{transformer_forward.1} parent=0 // pred_check
    _
  $region63: #{transformer_forward.1} parent=0 // pred_check_branch
    %54 = sbr.rel (0) target = $region65
  $region64: #{transformer_forward.1} parent=0 // pred_region
    _
  $region65: #{transformer_forward.1} parent=0 // pred_fallthru
    _
  // Predicated region
  $region66: #{transformer_forward.1} parent=0 // pred_check
    _
  $region67: #{transformer_forward.1} parent=0 // pred_check_branch
    %56 = sbr.rel (0) target = $region69
  $region68: #{transformer_forward.1} parent=0 // pred_region
    _
  $region69: #{transformer_forward.1} parent=0 // pred_fallthru
    _
  // Predicated region
  $region70: #{transformer_forward.1} parent=0 // pred_check
    _
  $region71: #{transformer_forward.1} parent=0 // pred_check_branch
    %58 = sbr.rel (0) target = $region73
  $region72: #{transformer_forward.1} parent=0 // pred_region
    _
  $region73: #{transformer_forward.1} parent=0 // pred_fallthru
    _
  %v59 = vld [vmem:[%s17] sm:$0xff]
  %v60 = vld [vmem:[%s17 + $0x8] sm:$0xff]
  %v61 = vld [vmem:[%s17 + $0x10] sm:$0xff]
  %v62 = vld [vmem:[%s17 + $0x18] sm:$0xff]
  %v63 = vld [vmem:[%s0] sm:$0xff]
  %v64 = vld [vmem:[%s0 + $0x8] sm:$0xff]
  %v65 = vld [vmem:[%s0 + $0x10] sm:$0xff]
  %v66 = vld [vmem:[%s0 + $0x18] sm:$0xff]
  %v67 = vld [vmem:[%s0 + $0x20] sm:$0xff]
  %v68 = vld [vmem:[%s0 + $0x28] sm:$0xff]
  %v69 = vld [vmem:[%s1] sm:$0xff]
  %v70 = vld [vmem:[%s1 + $0x8] sm:$0xff]
  %v71 = vld [vmem:[%s1 + $0x10] sm:$0xff]
  %v72 = vld [vmem:[%s1 + $0x18] sm:$0xff]
  %v73 = vld [vmem:[%s2] sm:$0x1]
  %v75 = vlaneseq
  %v76 = vshrl.u32 %v75, 7
  %v77 = vsub.s32 0, %v76
  %v78 = vrot.slane %v73, %v77
  %vm80 = vcmask 261120
  %v82 = vsel %vm80, %v65, 0
  %v85 = vsel %vm80, %v66, 0
  %87 = vmatprep.subr.mxu0 0.0
  %v88 = vand.u32 %v69, 4294901760
  %89 = vmatpush1.msra.mxu0 %v88
  %90 = vmatprep.subr.mxu0 0.0
  %v91 = vand.u32 %v70, 4294901760
  %92 = vmatpush1.msra.mxu0 %v91
  %93 = vmatprep.subr.mxu0 0.0
  %v94 = vand.u32 %v71, 4294901760
  %95 = vmatpush1.msra.mxu0 %v94
  %96 = vmatprep.subr.mxu0 0.0
  %v97 = vand.u32 %v72, 4294901760
  %98 = vmatpush1.msra.mxu0 %v97
  %99 = vmatprep.subr.mxu0 0.0
  %100 = vmatpush1.msra.mxu0 0.0
  %101 = vmatprep.subr.mxu0 0.0
  %102 = vmatpush1.msra.mxu0 0.0
  %103 = vmatprep.subr.mxu0 0.0
  %104 = vmatpush1.msra.mxu0 0.0
  %105 = vmatprep.subr.mxu0 0.0
  %106 = vmatpush1.msra.mxu0 0.0
  %107 = vmatprep.subr.mxu0 0.0
  %108 = vmatpush1.msra.mxu0 0.0
  %109 = vmatprep.subr.mxu0 0.0
  %110 = vmatpush1.msra.mxu0 0.0
  %111 = vmatprep.subr.mxu0 0.0
  %112 = vmatpush1.msra.mxu0 0.0
  %113 = vmatprep.subr.mxu0 0.0
  %114 = vmatpush1.msra.mxu0 0.0
  %115 = vmatprep.subr.mxu0 0.0
  %116 = vmatpush1.msra.mxu0 0.0
  %117 = vmatprep.subr.mxu0 0.0
  %118 = vmatpush1.msra.mxu0 0.0
  %119 = vmatprep.subr.mxu0 0.0
  %120 = vmatpush1.msra.mxu0 0.0
  %121 = vmatprep.subr.mxu0 0.0
  %122 = vmatpush1.msra.mxu0 0.0
  %123 = vmatprep.subr.mxu0 0.0
  %124 = vmatpush1.msra.mxu0 0.0
  %125 = vmatprep.subr.mxu0 0.0
  %126 = vmatpush1.msra.mxu0 0.0
  %127 = vmatprep.subr.mxu0 0.0
  %128 = vmatpush1.msra.mxu0 0.0
  %129 = vmatprep.subr.mxu0 0.0
  %130 = vmatpush1.msra.mxu0 0.0
  %131 = vmatprep.subr.mxu0 0.0
  %132 = vmatpush1.msra.mxu0 0.0
  %133 = vmatprep.subr.mxu0 0.0
  %134 = vmatpush1.msra.mxu0 0.0
  %135 = vmatprep.subr.mxu0 0.0
  %136 = vmatpush1.msra.mxu0 0.0
  %137 = vmatprep.subr.mxu0 0.0
  %138 = vmatpush1.msra.mxu0 0.0
  %139 = vmatprep.subr.mxu0 0.0
  %140 = vmatpush1.msra.mxu0 0.0
  %141 = vmatprep.subr.mxu0 0.0
  %142 = vmatpush1.msra.mxu0 0.0
  %143 = vmatprep.subr.mxu0 0.0
  %144 = vmatpush1.msra.mxu0 0.0
  %145 = vmatprep.subr.mxu0 0.0
  %146 = vmatpush1.msra.mxu0 0.0
  %147 = vmatprep.subr.mxu0 0.0
  %148 = vmatpush1.msra.mxu0 0.0
  %149 = vmatprep.subr.mxu0 0.0
  %150 = vmatpush1.msra.mxu0 0.0
  %151 = vmatprep.subr.mxu0 0.0
  %152 = vmatpush1.msra.mxu0 0.0
  %153 = vmatprep.subr.mxu0 0.0
  %154 = vmatpush1.msra.mxu0 0.0
  %155 = vmatprep.mubr.f32.mxu0 0.0
  %v156 = vand.u32 %v82, 4294901760
  %v157 = vsub.f32 %v82, %v156
  %v158 = vand.u32 %v157, 4294901760
  %v159 = vsub.f32 %v157, %v158
  %v160 = vand.u32 %v159, 4294901760
  %161 = vmatmul.mubr.f32.gmra.mrb[0].mxu0 %v160
  %v162 = vpop.f32.mrb[0].mxu0
  %v163 = vadd.f32 %v78, %v162
  %v164 = vpop.f32.mrb[0].mxu0
  %165 = vmatprep.mubr.f32.mxu0 0.0
  %v166 = vand.u32 %v85, 4294901760
  %v167 = vsub.f32 %v85, %v166
  %v168 = vand.u32 %v167, 4294901760
  %v169 = vsub.f32 %v167, %v168
  %v170 = vand.u32 %v169, 4294901760
  %171 = vmatmul.mubr.f32.gmra.mrb[0].mxu0 %v170
  %v172 = vpop.f32.mrb[0].mxu0
  %v173 = vadd.f32 %v78, %v172
  %v174 = vpop.f32.mrb[0].mxu0
  %175 = vdwg.mxu0
  %176 = vmatprep.subr.mxu0 0.0
  %v177 = vand.u32 %v69, 4294901760
  %v178 = vsub.f32 %v69, %v177
  %v179 = vand.u32 %v178, 4294901760
  %v180 = vsub.f32 %v178, %v179
  %v181 = vand.u32 %v180, 4294901760
  %182 = vmatpush1.msra.mxu0 %v181
  %183 = vmatprep.subr.mxu0 0.0
  %v184 = vand.u32 %v70, 4294901760
  %v185 = vsub.f32 %v70, %v184
  %v186 = vand.u32 %v185, 4294901760
  %v187 = vsub.f32 %v185, %v186
  %v188 = vand.u32 %v187, 4294901760
  %189 = vmatpush1.msra.mxu0 %v188
  %190 = vmatprep.subr.mxu0 0.0
  %v191 = vand.u32 %v71, 4294901760
  %v192 = vsub.f32 %v71, %v191
  %v193 = vand.u32 %v192, 4294901760
  %v194 = vsub.f32 %v192, %v193
  %v195 = vand.u32 %v194, 4294901760
  %196 = vmatpush1.msra.mxu0 %v195
  %197 = vmatprep.subr.mxu0 0.0
  %v198 = vand.u32 %v72, 4294901760
  %v199 = vsub.f32 %v72, %v198
  %v200 = vand.u32 %v199, 4294901760
  %v201 = vsub.f32 %v199, %v200
  %v202 = vand.u32 %v201, 4294901760
  %203 = vmatpush1.msra.mxu0 %v202
  %204 = vmatprep.subr.mxu0 0.0
  %205 = vmatpush1.msra.mxu0 0.0
  %206 = vmatprep.subr.mxu0 0.0
  %207 = vmatpush1.msra.mxu0 0.0
  %208 = vmatprep.subr.mxu0 0.0
  %209 = vmatpush1.msra.mxu0 0.0
  %210 = vmatprep.subr.mxu0 0.0
  %211 = vmatpush1.msra.mxu0 0.0
  %212 = vmatprep.subr.mxu0 0.0
  %213 = vmatpush1.msra.mxu0 0.0
  %214 = vmatprep.subr.mxu0 0.0
  %215 = vmatpush1.msra.mxu0 0.0
  %216 = vmatprep.subr.mxu0 0.0
  %217 = vmatpush1.msra.mxu0 0.0
  %218 = vmatprep.subr.mxu0 0.0
  %219 = vmatpush1.msra.mxu0 0.0
  %220 = vmatprep.subr.mxu0 0.0
  %221 = vmatpush1.msra.mxu0 0.0
  %222 = vmatprep.subr.mxu0 0.0
  %223 = vmatpush1.msra.mxu0 0.0
  %224 = vmatprep.subr.mxu0 0.0
  %225 = vmatpush1.msra.mxu0 0.0
  %226 = vmatprep.subr.mxu0 0.0
  %227 = vmatpush1.msra.mxu0 0.0
  %228 = vmatprep.subr.mxu0 0.0
  %229 = vmatpush1.msra.mxu0 0.0
  %230 = vmatprep.subr.mxu0 0.0
  %231 = vmatpush1.msra.mxu0 0.0
  %232 = vmatprep.subr.mxu0 0.0
  %233 = vmatpush1.msra.mxu0 0.0
  %234 = vmatprep.subr.mxu0 0.0
  %235 = vmatpush1.msra.mxu0 0.0
  %236 = vmatprep.subr.mxu0 0.0
  %237 = vmatpush1.msra.mxu0 0.0
  %238 = vmatprep.subr.mxu0 0.0
  %239 = vmatpush1.msra.mxu0 0.0
  %240 = vmatprep.subr.mxu0 0.0
  %241 = vmatpush1.msra.mxu0 0.0
  %242 = vmatprep.subr.mxu0 0.0
  %243 = vmatpush1.msra.mxu0 0.0
  %244 = vmatprep.subr.mxu0 0.0
  %245 = vmatpush1.msra.mxu0 0.0
  %246 = vmatprep.subr.mxu0 0.0
  %247 = vmatpush1.msra.mxu0 0.0
  %248 = vmatprep.subr.mxu0 0.0
  %249 = vmatpush1.msra.mxu0 0.0
  %250 = vmatprep.subr.mxu0 0.0
  %251 = vmatpush1.msra.mxu0 0.0
  %252 = vmatprep.subr.mxu0 0.0
  %253 = vmatpush1.msra.mxu0 0.0
  %254 = vmatprep.subr.mxu0 0.0
  %255 = vmatpush1.msra.mxu0 0.0
  %256 = vmatprep.subr.mxu0 0.0
  %257 = vmatpush1.msra.mxu0 0.0
  %258 = vmatprep.subr.mxu0 0.0
  %259 = vmatpush1.msra.mxu0 0.0
  %260 = vmatprep.mubr.f32.mxu0 0.0
  %v261 = vand.u32 %v82, 4294901760
  %262 = vmatmul.mubr.f32.gmra.mrb[0].mxu0 %v261
  %v263 = vpop.f32.mrb[0].mxu0
  %v264 = vadd.f32 %v163, %v263
  %v265 = vpop.f32.mrb[0].mxu0
  %266 = vmatprep.mubr.f32.mxu0 0.0
  %v267 = vand.u32 %v85, 4294901760
  %268 = vmatmul.mubr.f32.gmra.mrb[0].mxu0 %v267
  %v269 = vpop.f32.mrb[0].mxu0
  %v270 = vadd.f32 %v173, %v269
  %v271 = vpop.f32.mrb[0].mxu0
  %272 = vdwg.mxu0
  %273 = vmatprep.subr.mxu0 0.0
  %v274 = vand.u32 %v69, 4294901760
  %v275 = vsub.f32 %v69, %v274
  %276 = vmatpush1.msra.mxu0 %v275
  %277 = vmatprep.subr.mxu0 0.0
  %v278 = vand.u32 %v70, 4294901760
  %v279 = vsub.f32 %v70, %v278
  %280 = vmatpush1.msra.mxu0 %v279
  %281 = vmatprep.subr.mxu0 0.0
  %v282 = vand.u32 %v71, 4294901760
  %v283 = vsub.f32 %v71, %v282
  %284 = vmatpush1.msra.mxu0 %v283
  %285 = vmatprep.subr.mxu0 0.0
  %v286 = vand.u32 %v72, 4294901760
  %v287 = vsub.f32 %v72, %v286
  %288 = vmatpush1.msra.mxu0 %v287
  %289 = vmatprep.subr.mxu0 0.0
  %290 = vmatpush1.msra.mxu0 0.0
  %291 = vmatprep.subr.mxu0 0.0
  %292 = vmatpush1.msra.mxu0 0.0
  %293 = vmatprep.subr.mxu0 0.0
  %294 = vmatpush1.msra.mxu0 0.0
  %295 = vmatprep.subr.mxu0 0.0
  %296 = vmatpush1.msra.mxu0 0.0
  %297 = vmatprep.subr.mxu0 0.0
  %298 = vmatpush1.msra.mxu0 0.0
  %299 = vmatprep.subr.mxu0 0.0
  %300 = vmatpush1.msra.mxu0 0.0
  %301 = vmatprep.subr.mxu0 0.0
  %302 = vmatpush1.msra.mxu0 0.0
  %303 = vmatprep.subr.mxu0 0.0
  %304 = vmatpush1.msra.mxu0 0.0
  %305 = vmatprep.subr.mxu0 0.0
  %306 = vmatpush1.msra.mxu0 0.0
  %307 = vmatprep.subr.mxu0 0.0
  %308 = vmatpush1.msra.mxu0 0.0
  %309 = vmatprep.subr.mxu0 0.0
  %310 = vmatpush1.msra.mxu0 0.0
  %311 = vmatprep.subr.mxu0 0.0
  %312 = vmatpush1.msra.mxu0 0.0
  %313 = vmatprep.subr.mxu0 0.0
  %314 = vmatpush1.msra.mxu0 0.0
  %315 = vmatprep.subr.mxu0 0.0
  %316 = vmatpush1.msra.mxu0 0.0
  %317 = vmatprep.subr.mxu0 0.0
  %318 = vmatpush1.msra.mxu0 0.0
  %319 = vmatprep.subr.mxu0 0.0
  %320 = vmatpush1.msra.mxu0 0.0
  %321 = vmatprep.subr.mxu0 0.0
  %322 = vmatpush1.msra.mxu0 0.0
  %323 = vmatprep.subr.mxu0 0.0
  %324 = vmatpush1.msra.mxu0 0.0
  %325 = vmatprep.subr.mxu0 0.0
  %326 = vmatpush1.msra.mxu0 0.0
  %327 = vmatprep.subr.mxu0 0.0
  %328 = vmatpush1.msra.mxu0 0.0
  %329 = vmatprep.subr.mxu0 0.0
  %330 = vmatpush1.msra.mxu0 0.0
  %331 = vmatprep.subr.mxu0 0.0
  %332 = vmatpush1.msra.mxu0 0.0
  %333 = vmatprep.subr.mxu0 0.0
  %334 = vmatpush1.msra.mxu0 0.0
  %335 = vmatprep.subr.mxu0 0.0
  %336 = vmatpush1.msra.mxu0 0.0
  %337 = vmatprep.subr.mxu0 0.0
  %338 = vmatpush1.msra.mxu0 0.0
  %339 = vmatprep.subr.mxu0 0.0
  %340 = vmatpush1.msra.mxu0 0.0
  %341 = vmatprep.subr.mxu0 0.0
  %342 = vmatpush1.msra.mxu0 0.0
  %343 = vmatprep.subr.mxu0 0.0
  %344 = vmatpush1.msra.mxu0 0.0
  %345 = vmatprep.mubr.f32.mxu0 0.0
  %v346 = vand.u32 %v82, 4294901760
  %v347 = vsub.f32 %v82, %v346
  %348 = vmatmul.mubr.f32.gmra.mrb[0].mxu0 %v347
  %v349 = vpop.f32.mrb[0].mxu0
  %v350 = vadd.f32 %v264, %v349
  %v351 = vpop.f32.mrb[0].mxu0
  %352 = vmatprep.mubr.f32.mxu0 0.0
  %v353 = vand.u32 %v85, 4294901760
  %v354 = vsub.f32 %v85, %v353
  %355 = vmatmul.mubr.f32.gmra.mrb[0].mxu0 %v354
  %v356 = vpop.f32.mrb[0].mxu0
  %v357 = vadd.f32 %v270, %v356
  %v358 = vpop.f32.mrb[0].mxu0
  %359 = vdwg.mxu0
  %360 = vmatprep.subr.mxu0 0.0
  %v361 = vand.u32 %v69, 4294901760
  %362 = vmatpush1.msra.mxu0 %v361
  %363 = vmatprep.subr.mxu0 0.0
  %v364 = vand.u32 %v70, 4294901760
  %365 = vmatpush1.msra.mxu0 %v364
  %366 = vmatprep.subr.mxu0 0.0
  %v367 = vand.u32 %v71, 4294901760
  %368 = vmatpush1.msra.mxu0 %v367
  %369 = vmatprep.subr.mxu0 0.0
  %v370 = vand.u32 %v72, 4294901760
  %371 = vmatpush1.msra.mxu0 %v370
  %372 = vmatprep.subr.mxu0 0.0
  %373 = vmatpush1.msra.mxu0 0.0
  %374 = vmatprep.subr.mxu0 0.0
  %375 = vmatpush1.msra.mxu0 0.0
  %376 = vmatprep.subr.mxu0 0.0
  %377 = vmatpush1.msra.mxu0 0.0
  %378 = vmatprep.subr.mxu0 0.0
  %379 = vmatpush1.msra.mxu0 0.0
  %380 = vmatprep.subr.mxu0 0.0
  %381 = vmatpush1.msra.mxu0 0.0
  %382 = vmatprep.subr.mxu0 0.0
  %383 = vmatpush1.msra.mxu0 0.0
  %384 = vmatprep.subr.mxu0 0.0
  %385 = vmatpush1.msra.mxu0 0.0
  %386 = vmatprep.subr.mxu0 0.0
  %387 = vmatpush1.msra.mxu0 0.0
  %388 = vmatprep.subr.mxu0 0.0
  %389 = vmatpush1.msra.mxu0 0.0
  %390 = vmatprep.subr.mxu0 0.0
  %391 = vmatpush1.msra.mxu0 0.0
  %392 = vmatprep.subr.mxu0 0.0
  %393 = vmatpush1.msra.mxu0 0.0
  %394 = vmatprep.subr.mxu0 0.0
  %395 = vmatpush1.msra.mxu0 0.0
  %396 = vmatprep.subr.mxu0 0.0
  %397 = vmatpush1.msra.mxu0 0.0
  %398 = vmatprep.subr.mxu0 0.0
  %399 = vmatpush1.msra.mxu0 0.0
  %400 = vmatprep.subr.mxu0 0.0
  %401 = vmatpush1.msra.mxu0 0.0
  %402 = vmatprep.subr.mxu0 0.0
  %403 = vmatpush1.msra.mxu0 0.0
  %404 = vmatprep.subr.mxu0 0.0
  %405 = vmatpush1.msra.mxu0 0.0
  %406 = vmatprep.subr.mxu0 0.0
  %407 = vmatpush1.msra.mxu0 0.0
  %408 = vmatprep.subr.mxu0 0.0
  %409 = vmatpush1.msra.mxu0 0.0
  %410 = vmatprep.subr.mxu0 0.0
  %411 = vmatpush1.msra.mxu0 0.0
  %412 = vmatprep.subr.mxu0 0.0
  %413 = vmatpush1.msra.mxu0 0.0
  %414 = vmatprep.subr.mxu0 0.0
  %415 = vmatpush1.msra.mxu0 0.0
  %416 = vmatprep.subr.mxu0 0.0
  %417 = vmatpush1.msra.mxu0 0.0
  %418 = vmatprep.subr.mxu0 0.0
  %419 = vmatpush1.msra.mxu0 0.0
  %420 = vmatprep.subr.mxu0 0.0
  %421 = vmatpush1.msra.mxu0 0.0
  %422 = vmatprep.subr.mxu0 0.0
  %423 = vmatpush1.msra.mxu0 0.0
  %424 = vmatprep.subr.mxu0 0.0
  %425 = vmatpush1.msra.mxu0 0.0
  %426 = vmatprep.subr.mxu0 0.0
  %427 = vmatpush1.msra.mxu0 0.0
  %428 = vmatprep.mubr.f32.mxu0 0.0
  %v429 = vand.u32 %v82, 4294901760
  %v430 = vsub.f32 %v82, %v429
  %v431 = vand.u32 %v430, 4294901760
  %432 = vmatmul.mubr.f32.gmra.mrb[0].mxu0 %v431
  %v433 = vpop.f32.mrb[0].mxu0
  %v434 = vadd.f32 %v350, %v433
  %v435 = vpop.f32.mrb[0].mxu0
  %436 = vmatprep.mubr.f32.mxu0 0.0
  %v437 = vand.u32 %v85, 4294901760
  %v438 = vsub.f32 %v85, %v437
  %v439 = vand.u32 %v438, 4294901760
  %440 = vmatmul.mubr.f32.gmra.mrb[0].mxu0 %v439
  %v441 = vpop.f32.mrb[0].mxu0
  %v442 = vadd.f32 %v357, %v441
  %v443 = vpop.f32.mrb[0].mxu0
  %444 = vdwg.mxu0
  %445 = vmatprep.subr.mxu0 0.0
  %v446 = vand.u32 %v69, 4294901760
  %v447 = vsub.f32 %v69, %v446
  %v448 = vand.u32 %v447, 4294901760
  %449 = vmatpush1.msra.mxu0 %v448
  %450 = vmatprep.subr.mxu0 0.0
  %v451 = vand.u32 %v70, 4294901760
  %v452 = vsub.f32 %v70, %v451
  %v453 = vand.u32 %v452, 4294901760
  %454 = vmatpush1.msra.mxu0 %v453
  %455 = vmatprep.subr.mxu0 0.0
  %v456 = vand.u32 %v71, 4294901760
  %v457 = vsub.f32 %v71, %v456
  %v458 = vand.u32 %v457, 4294901760
  %459 = vmatpush1.msra.mxu0 %v458
  %460 = vmatprep.subr.mxu0 0.0
  %v461 = vand.u32 %v72, 4294901760
  %v462 = vsub.f32 %v72, %v461
  %v463 = vand.u32 %v462, 4294901760
  %464 = vmatpush1.msra.mxu0 %v463
  %465 = vmatprep.subr.mxu0 0.0
  %466 = vmatpush1.msra.mxu0 0.0
  %467 = vmatprep.subr.mxu0 0.0
  %468 = vmatpush1.msra.mxu0 0.0
  %469 = vmatprep.subr.mxu0 0.0
  %470 = vmatpush1.msra.mxu0 0.0
  %471 = vmatprep.subr.mxu0 0.0
  %472 = vmatpush1.msra.mxu0 0.0
  %473 = vmatprep.subr.mxu0 0.0
  %474 = vmatpush1.msra.mxu0 0.0
  %475 = vmatprep.subr.mxu0 0.0
  %476 = vmatpush1.msra.mxu0 0.0
  %477 = vmatprep.subr.mxu0 0.0
  %478 = vmatpush1.msra.mxu0 0.0
  %479 = vmatprep.subr.mxu0 0.0
  %480 = vmatpush1.msra.mxu0 0.0
  %481 = vmatprep.subr.mxu0 0.0
  %482 = vmatpush1.msra.mxu0 0.0
  %483 = vmatprep.subr.mxu0 0.0
  %484 = vmatpush1.msra.mxu0 0.0
  %485 = vmatprep.subr.mxu0 0.0
  %486 = vmatpush1.msra.mxu0 0.0
  %487 = vmatprep.subr.mxu0 0.0
  %488 = vmatpush1.msra.mxu0 0.0
  %489 = vmatprep.subr.mxu0 0.0
  %490 = vmatpush1.msra.mxu0 0.0
  %491 = vmatprep.subr.mxu0 0.0
  %492 = vmatpush1.msra.mxu0 0.0
  %493 = vmatprep.subr.mxu0 0.0
  %494 = vmatpush1.msra.mxu0 0.0
  %495 = vmatprep.subr.mxu0 0.0
  %496 = vmatpush1.msra.mxu0 0.0
  %497 = vmatprep.subr.mxu0 0.0
  %498 = vmatpush1.msra.mxu0 0.0
  %499 = vmatprep.subr.mxu0 0.0
  %500 = vmatpush1.msra.mxu0 0.0
  %501 = vmatprep.subr.mxu0 0.0
  %502 = vmatpush1.msra.mxu0 0.0
  %503 = vmatprep.subr.mxu0 0.0
  %504 = vmatpush1.msra.mxu0 0.0
  %505 = vmatprep.subr.mxu0 0.0
  %506 = vmatpush1.msra.mxu0 0.0
  %507 = vmatprep.subr.mxu0 0.0
  %508 = vmatpush1.msra.mxu0 0.0
  %509 = vmatprep.subr.mxu0 0.0
  %510 = vmatpush1.msra.mxu0 0.0
  %511 = vmatprep.subr.mxu0 0.0
  %512 = vmatpush1.msra.mxu0 0.0
  %513 = vmatprep.subr.mxu0 0.0
  %514 = vmatpush1.msra.mxu0 0.0
  %515 = vmatprep.subr.mxu0 0.0
  %516 = vmatpush1.msra.mxu0 0.0
  %517 = vmatprep.subr.mxu0 0.0
  %518 = vmatpush1.msra.mxu0 0.0
  %519 = vmatprep.subr.mxu0 0.0
  %520 = vmatpush1.msra.mxu0 0.0
  %521 = vmatprep.mubr.f32.mxu0 0.0
  %v522 = vand.u32 %v82, 4294901760
  %523 = vmatmul.mubr.f32.gmra.mrb[0].mxu0 %v522
  %v524 = vpop.f32.mrb[0].mxu0
  %v525 = vadd.f32 %v434, %v524
  %v526 = vpop.f32.mrb[0].mxu0
  %527 = vmatprep.mubr.f32.mxu0 0.0
  %v528 = vand.u32 %v85, 4294901760
  %529 = vmatmul.mubr.f32.gmra.mrb[0].mxu0 %v528
  %v530 = vpop.f32.mrb[0].mxu0
  %v531 = vadd.f32 %v442, %v530
  %v532 = vpop.f32.mrb[0].mxu0
  %533 = vdwg.mxu0
  %534 = vmatprep.subr.mxu0 0.0
  %v535 = vand.u32 %v69, 4294901760
  %536 = vmatpush1.msra.mxu0 %v535
  %537 = vmatprep.subr.mxu0 0.0
  %v538 = vand.u32 %v70, 4294901760
  %539 = vmatpush1.msra.mxu0 %v538
  %540 = vmatprep.subr.mxu0 0.0
  %v541 = vand.u32 %v71, 4294901760
  %542 = vmatpush1.msra.mxu0 %v541
  %543 = vmatprep.subr.mxu0 0.0
  %v544 = vand.u32 %v72, 4294901760
  %545 = vmatpush1.msra.mxu0 %v544
  %546 = vmatprep.subr.mxu0 0.0
  %547 = vmatpush1.msra.mxu0 0.0
  %548 = vmatprep.subr.mxu0 0.0
  %549 = vmatpush1.msra.mxu0 0.0
  %550 = vmatprep.subr.mxu0 0.0
  %551 = vmatpush1.msra.mxu0 0.0
  %552 = vmatprep.subr.mxu0 0.0
  %553 = vmatpush1.msra.mxu0 0.0
  %554 = vmatprep.subr.mxu0 0.0
  %555 = vmatpush1.msra.mxu0 0.0
  %556 = vmatprep.subr.mxu0 0.0
  %557 = vmatpush1.msra.mxu0 0.0
  %558 = vmatprep.subr.mxu0 0.0
  %559 = vmatpush1.msra.mxu0 0.0
  %560 = vmatprep.subr.mxu0 0.0
  %561 = vmatpush1.msra.mxu0 0.0
  %562 = vmatprep.subr.mxu0 0.0
  %563 = vmatpush1.msra.mxu0 0.0
  %564 = vmatprep.subr.mxu0 0.0
  %565 = vmatpush1.msra.mxu0 0.0
  %566 = vmatprep.subr.mxu0 0.0
  %567 = vmatpush1.msra.mxu0 0.0
  %568 = vmatprep.subr.mxu0 0.0
  %569 = vmatpush1.msra.mxu0 0.0
  %570 = vmatprep.subr.mxu0 0.0
  %571 = vmatpush1.msra.mxu0 0.0
  %572 = vmatprep.subr.mxu0 0.0
  %573 = vmatpush1.msra.mxu0 0.0
  %574 = vmatprep.subr.mxu0 0.0
  %575 = vmatpush1.msra.mxu0 0.0
  %576 = vmatprep.subr.mxu0 0.0
  %577 = vmatpush1.msra.mxu0 0.0
  %578 = vmatprep.subr.mxu0 0.0
  %579 = vmatpush1.msra.mxu0 0.0
  %580 = vmatprep.subr.mxu0 0.0
  %581 = vmatpush1.msra.mxu0 0.0
  %582 = vmatprep.subr.mxu0 0.0
  %583 = vmatpush1.msra.mxu0 0.0
  %584 = vmatprep.subr.mxu0 0.0
  %585 = vmatpush1.msra.mxu0 0.0
  %586 = vmatprep.subr.mxu0 0.0
  %587 = vmatpush1.msra.mxu0 0.0
  %588 = vmatprep.subr.mxu0 0.0
  %589 = vmatpush1.msra.mxu0 0.0
  %590 = vmatprep.subr.mxu0 0.0
  %591 = vmatpush1.msra.mxu0 0.0
  %592 = vmatprep.subr.mxu0 0.0
  %593 = vmatpush1.msra.mxu0 0.0
  %594 = vmatprep.subr.mxu0 0.0
  %595 = vmatpush1.msra.mxu0 0.0
  %596 = vmatprep.subr.mxu0 0.0
  %597 = vmatpush1.msra.mxu0 0.0
  %598 = vmatprep.subr.mxu0 0.0
  %599 = vmatpush1.msra.mxu0 0.0
  %600 = vmatprep.subr.mxu0 0.0
  %601 = vmatpush1.msra.mxu0 0.0
  %602 = vmatprep.mubr.f32.mxu0 0.0
  %v603 = vand.u32 %v82, 4294901760
  %604 = vmatmul.mubr.f32.gmra.mrb[0].mxu0 %v603
  %v605 = vpop.f32.mrb[0].mxu0
  %v606 = vadd.f32 %v525, %v605
  %v607 = vpop.f32.mrb[0].mxu0
  %608 = vmatprep.mubr.f32.mxu0 0.0
  %v609 = vand.u32 %v85, 4294901760
  %610 = vmatmul.mubr.f32.gmra.mrb[0].mxu0 %v609
  %v611 = vpop.f32.mrb[0].mxu0
  %v612 = vadd.f32 %v531, %v611
  %v613 = vpop.f32.mrb[0].mxu0
  %614 = vdwg.mxu0
  %v615 = vtanh.pop %v606
  %v616 = vtanh.pop %v612
  %v617 = vadd.f32 %v615, %v67
  %v618 = vadd.f32 %v616, %v68
  %v619 = vld [vmem:[%s3] sm:$0x1]
  %v620 = vld [vmem:[%s4] sm:$0x1]
  %s621 = scalar_lea.vmem %s3, 1
  %v622 = vld [vmem:[%s621] sm:$0x1]
  %s623 = scalar_lea.vmem %s4, 1
  %v624 = vld [vmem:[%s623] sm:$0x1]
  %v625 = vsel %vm80, %v63, 0.0
  %626 = vadd.xlane.f32.xlu0 %v625
  %v627 = vpop.xlane.xlu0 %626
  %v628 = vsel %vm80, %v64, 0.0
  %629 = vadd.xlane.f32.xlu0 %v628
  %v630 = vpop.xlane.xlu0 %629
  %v631 = vsel %vm80, %v617, 0.0
  %632 = vadd.xlane.f32.xlu0 %v631
  %v633 = vpop.xlane.xlu0 %632
  %v634 = vsel %vm80, %v618, 0.0
  %635 = vadd.xlane.f32.xlu0 %v634
  %v636 = vpop.xlane.xlu0 %635
  %v637 = vrcp.pop 32.0
  %v638 = vmul.f32 %v627, %v637
  %v639 = vmul.f32 %v630, %v637
  %v640 = vmul.f32 %v633, %v637
  %v641 = vmul.f32 %v636, %v637
  %v642 = vsub.f32 %v63, %v638
  %v643 = vsub.f32 %v64, %v639
  %v644 = vsub.f32 %v617, %v640
  %v645 = vsub.f32 %v618, %v641
  %v646 = vmul.f32 %v642, %v642
  %v647 = vmul.f32 %v643, %v643
  %v648 = vmul.f32 %v644, %v644
  %v649 = vmul.f32 %v645, %v645
  %v650 = vsel %vm80, %v646, 0.0
  %651 = vadd.xlane.f32.xlu0 %v650
  %v652 = vpop.xlane.xlu0 %651
  %v653 = vsel %vm80, %v647, 0.0
  %654 = vadd.xlane.f32.xlu0 %v653
  %v655 = vpop.xlane.xlu0 %654
  %v656 = vsel %vm80, %v648, 0.0
  %657 = vadd.xlane.f32.xlu0 %v656
  %v658 = vpop.xlane.xlu0 %657
  %v659 = vsel %vm80, %v649, 0.0
  %660 = vadd.xlane.f32.xlu0 %v659
  %v661 = vpop.xlane.xlu0 %660
  %v662 = vmul.f32 %v652, %v637
  %v663 = vmul.f32 %v655, %v637
  %v664 = vmul.f32 %v658, %v637
  %v665 = vmul.f32 %v661, %v637
  %v666 = vadd.f32 %v662, 1e-05
  %v667 = vadd.f32 %v663, 1e-05
  %v668 = vadd.f32 %v664, 1e-05
  %v669 = vadd.f32 %v665, 1e-05
  %v670 = vrsqrt.pop %v666
  %v671 = vrsqrt.pop %v667
  %v672 = vrsqrt.pop %v668
  %v673 = vrsqrt.pop %v669
  %v674 = vmul.f32 %v642, %v670
  %v675 = vmul.f32 %v643, %v671
  %v676 = vmul.f32 %v644, %v672
  %v677 = vmul.f32 %v645, %v673
  %v679 = vlaneseq
  %v680 = vshrl.u32 %v679, 7
  %v681 = vsub.s32 0, %v680
  %v682 = vrot.slane %v619, %v681
  %v684 = vmul.f32 %v674, %v682
  %v685 = vmul.f32 %v675, %v682
  %v686 = vmul.f32 %v676, %v682
  %v687 = vmul.f32 %v677, %v682
  %v689 = vlaneseq
  %v690 = vshrl.u32 %v689, 7
  %v691 = vsub.s32 0, %v690
  %v692 = vrot.slane %v620, %v691
  %v694 = vadd.f32 %v684, %v692
  %v695 = vadd.f32 %v685, %v692
  %v696 = vadd.f32 %v686, %v692
  %v697 = vadd.f32 %v687, %v692
  %v698 = vld [vmem:[%s5] sm:$0xff]
  %v699 = vld [vmem:[%s5 + $0x8] sm:$0xff]
  %v700 = vld [vmem:[%s5 + $0x10] sm:$0xff]
  %v701 = vld [vmem:[%s5 + $0x18] sm:$0xff]
  %v702 = vld [vmem:[%s6] sm:$0x1]
  %v704 = vlaneseq
  %v705 = vshrl.u32 %v704, 7
  %v706 = vsub.s32 0, %v705
  %v707 = vrot.slane %v702, %v706
  %v710 = vsel %vm80, %v694, 0
  %v713 = vsel %vm80, %v695, 0
  %v716 = vsel %vm80, %v696, 0
  %v719 = vsel %vm80, %v697, 0
  %721 = vmatprep.subr.mxu0 0.0
  %v722 = vand.u32 %v698, 4294901760
  %723 = vmatpush1.msra.mxu0 %v722
  %724 = vmatprep.subr.mxu0 0.0
  %v725 = vand.u32 %v699, 4294901760
  %726 = vmatpush1.msra.mxu0 %v725
  %727 = vmatprep.subr.mxu0 0.0
  %v728 = vand.u32 %v700, 4294901760
  %729 = vmatpush1.msra.mxu0 %v728
  %730 = vmatprep.subr.mxu0 0.0
  %v731 = vand.u32 %v701, 4294901760
  %732 = vmatpush1.msra.mxu0 %v731
  %733 = vmatprep.subr.mxu0 0.0
  %734 = vmatpush1.msra.mxu0 0.0
  %735 = vmatprep.subr.mxu0 0.0
  %736 = vmatpush1.msra.mxu0 0.0
  %737 = vmatprep.subr.mxu0 0.0
  %738 = vmatpush1.msra.mxu0 0.0
  %739 = vmatprep.subr.mxu0 0.0
  %740 = vmatpush1.msra.mxu0 0.0
  %741 = vmatprep.subr.mxu0 0.0
  %742 = vmatpush1.msra.mxu0 0.0
  %743 = vmatprep.subr.mxu0 0.0
  %744 = vmatpush1.msra.mxu0 0.0
  %745 = vmatprep.subr.mxu0 0.0
  %746 = vmatpush1.msra.mxu0 0.0
  %747 = vmatprep.subr.mxu0 0.0
  %748 = vmatpush1.msra.mxu0 0.0
  %749 = vmatprep.subr.mxu0 0.0
  %750 = vmatpush1.msra.mxu0 0.0
  %751 = vmatprep.subr.mxu0 0.0
  %752 = vmatpush1.msra.mxu0 0.0
  %753 = vmatprep.subr.mxu0 0.0
  %754 = vmatpush1.msra.mxu0 0.0
  %755 = vmatprep.subr.mxu0 0.0
  %756 = vmatpush1.msra.mxu0 0.0
  %757 = vmatprep.subr.mxu0 0.0
  %758 = vmatpush1.msra.mxu0 0.0
  %759 = vmatprep.subr.mxu0 0.0
  %760 = vmatpush1.msra.mxu0 0.0
  %761 = vmatprep.subr.mxu0 0.0
  %762 = vmatpush1.msra.mxu0 0.0
  %763 = vmatprep.subr.mxu0 0.0
  %764 = vmatpush1.msra.mxu0 0.0
  %765 = vmatprep.subr.mxu0 0.0
  %766 = vmatpush1.msra.mxu0 0.0
  %767 = vmatprep.subr.mxu0 0.0
  %768 = vmatpush1.msra.mxu0 0.0
  %769 = vmatprep.subr.mxu0 0.0
  %770 = vmatpush1.msra.mxu0 0.0
  %771 = vmatprep.subr.mxu0 0.0
  %772 = vmatpush1.msra.mxu0 0.0
  %773 = vmatprep.subr.mxu0 0.0
  %774 = vmatpush1.msra.mxu0 0.0
  %775 = vmatprep.subr.mxu0 0.0
  %776 = vmatpush1.msra.mxu0 0.0
  %777 = vmatprep.subr.mxu0 0.0
  %778 = vmatpush1.msra.mxu0 0.0
  %779 = vmatprep.subr.mxu0 0.0
  %780 = vmatpush1.msra.mxu0 0.0
  %781 = vmatprep.subr.mxu0 0.0
  %782 = vmatpush1.msra.mxu0 0.0
  %783 = vmatprep.subr.mxu0 0.0
  %784 = vmatpush1.msra.mxu0 0.0
  %785 = vmatprep.subr.mxu0 0.0
  %786 = vmatpush1.msra.mxu0 0.0
  %787 = vmatprep.subr.mxu0 0.0
  %788 = vmatpush1.msra.mxu0 0.0
  %789 = vmatprep.mubr.f32.mxu0 0.0
  %v790 = vand.u32 %v710, 4294901760
  %v791 = vsub.f32 %v710, %v790
  %v792 = vand.u32 %v791, 4294901760
  %v793 = vsub.f32 %v791, %v792
  %v794 = vand.u32 %v793, 4294901760
  %795 = vmatmul.mubr.f32.gmra.mrb[0].mxu0 %v794
  %v796 = vpop.f32.mrb[0].mxu0
  %v797 = vadd.f32 %v707, %v796
  %v798 = vpop.f32.mrb[0].mxu0
  %799 = vmatprep.mubr.f32.mxu0 0.0
  %v800 = vand.u32 %v713, 4294901760
  %v801 = vsub.f32 %v713, %v800
  %v802 = vand.u32 %v801, 4294901760
  %v803 = vsub.f32 %v801, %v802
  %v804 = vand.u32 %v803, 4294901760
  %805 = vmatmul.mubr.f32.gmra.mrb[0].mxu0 %v804
  %v806 = vpop.f32.mrb[0].mxu0
  %v807 = vadd.f32 %v707, %v806
  %v808 = vpop.f32.mrb[0].mxu0
  %809 = vmatprep.mubr.f32.mxu0 0.0
  %v810 = vand.u32 %v716, 4294901760
  %v811 = vsub.f32 %v716, %v810
  %v812 = vand.u32 %v811, 4294901760
  %v813 = vsub.f32 %v811, %v812
  %v814 = vand.u32 %v813, 4294901760
  %815 = vmatmul.mubr.f32.gmra.mrb[0].mxu0 %v814
  %v816 = vpop.f32.mrb[0].mxu0
  %v817 = vadd.f32 %v707, %v816
  %v818 = vpop.f32.mrb[0].mxu0
  %819 = vmatprep.mubr.f32.mxu0 0.0
  %v820 = vand.u32 %v719, 4294901760
  %v821 = vsub.f32 %v719, %v820
  %v822 = vand.u32 %v821, 4294901760
  %v823 = vsub.f32 %v821, %v822
  %v824 = vand.u32 %v823, 4294901760
  %825 = vmatmul.mubr.f32.gmra.mrb[0].mxu0 %v824
  %v826 = vpop.f32.mrb[0].mxu0
  %v827 = vadd.f32 %v707, %v826
  %v828 = vpop.f32.mrb[0].mxu0
  %829 = vdwg.mxu0
  %830 = vmatprep.subr.mxu0 0.0
  %v831 = vand.u32 %v698, 4294901760
  %v832 = vsub.f32 %v698, %v831
  %v833 = vand.u32 %v832, 4294901760
  %v834 = vsub.f32 %v832, %v833
  %v835 = vand.u32 %v834, 4294901760
  %836 = vmatpush1.msra.mxu0 %v835
  %837 = vmatprep.subr.mxu0 0.0
  %v838 = vand.u32 %v699, 4294901760
  %v839 = vsub.f32 %v699, %v838
  %v840 = vand.u32 %v839, 4294901760
  %v841 = vsub.f32 %v839, %v840
  %v842 = vand.u32 %v841, 4294901760
  %843 = vmatpush1.msra.mxu0 %v842
  %844 = vmatprep.subr.mxu0 0.0
  %v845 = vand.u32 %v700, 4294901760
  %v846 = vsub.f32 %v700, %v845
  %v847 = vand.u32 %v846, 4294901760
  %v848 = vsub.f32 %v846, %v847
  %v849 = vand.u32 %v848, 4294901760
  %850 = vmatpush1.msra.mxu0 %v849
  %851 = vmatprep.subr.mxu0 0.0
  %v852 = vand.u32 %v701, 4294901760
  %v853 = vsub.f32 %v701, %v852
  %v854 = vand.u32 %v853, 4294901760
  %v855 = vsub.f32 %v853, %v854
  %v856 = vand.u32 %v855, 4294901760
  %857 = vmatpush1.msra.mxu0 %v856
  %858 = vmatprep.subr.mxu0 0.0
  %859 = vmatpush1.msra.mxu0 0.0
  %860 = vmatprep.subr.mxu0 0.0
  %861 = vmatpush1.msra.mxu0 0.0
  %862 = vmatprep.subr.mxu0 0.0
  %863 = vmatpush1.msra.mxu0 0.0
  %864 = vmatprep.subr.mxu0 0.0
  %865 = vmatpush1.msra.mxu0 0.0
  %866 = vmatprep.subr.mxu0 0.0
  %867 = vmatpush1.msra.mxu0 0.0
  %868 = vmatprep.subr.mxu0 0.0
  %869 = vmatpush1.msra.mxu0 0.0
  %870 = vmatprep.subr.mxu0 0.0
  %871 = vmatpush1.msra.mxu0 0.0
  %872 = vmatprep.subr.mxu0 0.0
  %873 = vmatpush1.msra.mxu0 0.0
  %874 = vmatprep.subr.mxu0 0.0
  %875 = vmatpush1.msra.mxu0 0.0
  %876 = vmatprep.subr.mxu0 0.0
  %877 = vmatpush1.msra.mxu0 0.0
  %878 = vmatprep.subr.mxu0 0.0
  %879 = vmatpush1.msra.mxu0 0.0
  %880 = vmatprep.subr.mxu0 0.0
  %881 = vmatpush1.msra.mxu0 0.0
  %882 = vmatprep.subr.mxu0 0.0
  %883 = vmatpush1.msra.mxu0 0.0
  %884 = vmatprep.subr.mxu0 0.0
  %885 = vmatpush1.msra.mxu0 0.0
  %886 = vmatprep.subr.mxu0 0.0
  %887 = vmatpush1.msra.mxu0 0.0
  %888 = vmatprep.subr.mxu0 0.0
  %889 = vmatpush1.msra.mxu0 0.0
  %890 = vmatprep.subr.mxu0 0.0
  %891 = vmatpush1.msra.mxu0 0.0
  %892 = vmatprep.subr.mxu0 0.0
  %893 = vmatpush1.msra.mxu0 0.0
  %894 = vmatprep.subr.mxu0 0.0
  %895 = vmatpush1.msra.mxu0 0.0
  %896 = vmatprep.subr.mxu0 0.0
  %897 = vmatpush1.msra.mxu0 0.0
  %898 = vmatprep.subr.mxu0 0.0
  %899 = vmatpush1.msra.mxu0 0.0
  %900 = vmatprep.subr.mxu0 0.0
  %901 = vmatpush1.msra.mxu0 0.0
  %902 = vmatprep.subr.mxu0 0.0
  %903 = vmatpush1.msra.mxu0 0.0
  %904 = vmatprep.subr.mxu0 0.0
  %905 = vmatpush1.msra.mxu0 0.0
  %906 = vmatprep.subr.mxu0 0.0
  %907 = vmatpush1.msra.mxu0 0.0
  %908 = vmatprep.subr.mxu0 0.0
  %909 = vmatpush1.msra.mxu0 0.0
  %910 = vmatprep.subr.mxu0 0.0
  %911 = vmatpush1.msra.mxu0 0.0
  %912 = vmatprep.subr.mxu0 0.0
  %913 = vmatpush1.msra.mxu0 0.0
  %914 = vmatprep.mubr.f32.mxu0 0.0
  %v915 = vand.u32 %v710, 4294901760
  %916 = vmatmul.mubr.f32.gmra.mrb[0].mxu0 %v915
  %v917 = vpop.f32.mrb[0].mxu0
  %v918 = vadd.f32 %v797, %v917
  %v919 = vpop.f32.mrb[0].mxu0
  %920 = vmatprep.mubr.f32.mxu0 0.0
  %v921 = vand.u32 %v713, 4294901760
  %922 = vmatmul.mubr.f32.gmra.mrb[0].mxu0 %v921
  %v923 = vpop.f32.mrb[0].mxu0
  %v924 = vadd.f32 %v807, %v923
  %v925 = vpop.f32.mrb[0].mxu0
  %926 = vmatprep.mubr.f32.mxu0 0.0
  %v927 = vand.u32 %v716, 4294901760
  %928 = vmatmul.mubr.f32.gmra.mrb[0].mxu0 %v927
  %v929 = vpop.f32.mrb[0].mxu0
  %v930 = vadd.f32 %v817, %v929
  %v931 = vpop.f32.mrb[0].mxu0
  %932 = vmatprep.mubr.f32.mxu0 0.0
  %v933 = vand.u32 %v719, 4294901760
  %934 = vmatmul.mubr.f32.gmra.mrb[0].mxu0 %v933
  %v935 = vpop.f32.mrb[0].mxu0
  %v936 = vadd.f32 %v827, %v935
  %v937 = vpop.f32.mrb[0].mxu0
  %938 = vdwg.mxu0
  %939 = vmatprep.subr.mxu0 0.0
  %v940 = vand.u32 %v698, 4294901760
  %v941 = vsub.f32 %v698, %v940
  %942 = vmatpush1.msra.mxu0 %v941
  %943 = vmatprep.subr.mxu0 0.0
  %v944 = vand.u32 %v699, 4294901760
  %v945 = vsub.f32 %v699, %v944
  %946 = vmatpush1.msra.mxu0 %v945
  %947 = vmatprep.subr.mxu0 0.0
  %v948 = vand.u32 %v700, 4294901760
  %v949 = vsub.f32 %v700, %v948
  %950 = vmatpush1.msra.mxu0 %v949
  %951 = vmatprep.subr.mxu0 0.0
  %v952 = vand.u32 %v701, 4294901760
  %v953 = vsub.f32 %v701, %v952
  %954 = vmatpush1.msra.mxu0 %v953
  %955 = vmatprep.subr.mxu0 0.0
  %956 = vmatpush1.msra.mxu0 0.0
  %957 = vmatprep.subr.mxu0 0.0
  %958 = vmatpush1.msra.mxu0 0.0
  %959 = vmatprep.subr.mxu0 0.0
  %960 = vmatpush1.msra.mxu0 0.0
  %961 = vmatprep.subr.mxu0 0.0
  %962 = vmatpush1.msra.mxu0 0.0
  %963 = vmatprep.subr.mxu0 0.0
  %964 = vmatpush1.msra.mxu0 0.0
  %965 = vmatprep.subr.mxu0 0.0
  %966 = vmatpush1.msra.mxu0 0.0
  %967 = vmatprep.subr.mxu0 0.0
  %968 = vmatpush1.msra.mxu0 0.0
  %969 = vmatprep.subr.mxu0 0.0
  %970 = vmatpush1.msra.mxu0 0.0
  %971 = vmatprep.subr.mxu0 0.0
  %972 = vmatpush1.msra.mxu0 0.0
  %973 = vmatprep.subr.mxu0 0.0
  %974 = vmatpush1.msra.mxu0 0.0
  %975 = vmatprep.subr.mxu0 0.0
  %976 = vmatpush1.msra.mxu0 0.0
  %977 = vmatprep.subr.mxu0 0.0
  %978 = vmatpush1.msra.mxu0 0.0
  %979 = vmatprep.subr.mxu0 0.0
  %980 = vmatpush1.msra.mxu0 0.0
  %981 = vmatprep.subr.mxu0 0.0
  %982 = vmatpush1.msra.mxu0 0.0
  %983 = vmatprep.subr.mxu0 0.0
  %984 = vmatpush1.msra.mxu0 0.0
  %985 = vmatprep.subr.mxu0 0.0
  %986 = vmatpush1.msra.mxu0 0.0
  %987 = vmatprep.subr.mxu0 0.0
  %988 = vmatpush1.msra.mxu0 0.0
  %989 = vmatprep.subr.mxu0 0.0
  %990 = vmatpush1.msra.mxu0 0.0
  %991 = vmatprep.subr.mxu0 0.0
  %992 = vmatpush1.msra.mxu0 0.0
  %993 = vmatprep.subr.mxu0 0.0
  %994 = vmatpush1.msra.mxu0 0.0
  %995 = vmatprep.subr.mxu0 0.0
  %996 = vmatpush1.msra.mxu0 0.0
  %997 = vmatprep.subr.mxu0 0.0
  %998 = vmatpush1.msra.mxu0 0.0
  %999 = vmatprep.subr.mxu0 0.0
  %1000 = vmatpush1.msra.mxu0 0.0
  %1001 = vmatprep.subr.mxu0 0.0
  %1002 = vmatpush1.msra.mxu0 0.0
  %1003 = vmatprep.subr.mxu0 0.0
  %1004 = vmatpush1.msra.mxu0 0.0
  %1005 = vmatprep.subr.mxu0 0.0
  %1006 = vmatpush1.msra.mxu0 0.0
  %1007 = vmatprep.subr.mxu0 0.0
  %1008 = vmatpush1.msra.mxu0 0.0
  %1009 = vmatprep.subr.mxu0 0.0
  %1010 = vmatpush1.msra.mxu0 0.0
  %1011 = vmatprep.mubr.f32.mxu0 0.0
  %v1012 = vand.u32 %v710, 4294901760
  %v1013 = vsub.f32 %v710, %v1012
  %1014 = vmatmul.mubr.f32.gmra.mrb[0].mxu0 %v1013
  %v1015 = vpop.f32.mrb[0].mxu0
  %v1016 = vadd.f32 %v918, %v1015
  %v1017 = vpop.f32.mrb[0].mxu0
  %1018 = vmatprep.mubr.f32.mxu0 0.0
  %v1019 = vand.u32 %v713, 4294901760
  %v1020 = vsub.f32 %v713, %v1019
  %1021 = vmatmul.mubr.f32.gmra.mrb[0].mxu0 %v1020
  %v1022 = vpop.f32.mrb[0].mxu0
  %v1023 = vadd.f32 %v924, %v1022
  %v1024 = vpop.f32.mrb[0].mxu0
  %1025 = vmatprep.mubr.f32.mxu0 0.0
  %v1026 = vand.u32 %v716, 4294901760
  %v1027 = vsub.f32 %v716, %v1026
  %1028 = vmatmul.mubr.f32.gmra.mrb[0].mxu0 %v1027
  %v1029 = vpop.f32.mrb[0].mxu0
  %v1030 = vadd.f32 %v930, %v1029
  %v1031 = vpop.f32.mrb[0].mxu0
  %1032 = vmatprep.mubr.f32.mxu0 0.0
  %v1033 = vand.u32 %v719, 4294901760
  %v1034 = vsub.f32 %v719, %v1033
  %1035 = vmatmul.mubr.f32.gmra.mrb[0].mxu0 %v1034
  %v1036 = vpop.f32.mrb[0].mxu0
  %v1037 = vadd.f32 %v936, %v1036
  %v1038 = vpop.f32.mrb[0].mxu0
  %1039 = vdwg.mxu0
  %1040 = vmatprep.subr.mxu0 0.0
  %v1041 = vand.u32 %v698, 4294901760
  %1042 = vmatpush1.msra.mxu0 %v1041
  %1043 = vmatprep.subr.mxu0 0.0
  %v1044 = vand.u32 %v699, 4294901760
  %1045 = vmatpush1.msra.mxu0 %v1044
  %1046 = vmatprep.subr.mxu0 0.0
  %v1047 = vand.u32 %v700, 4294901760
  %1048 = vmatpush1.msra.mxu0 %v1047
  %1049 = vmatprep.subr.mxu0 0.0
  %v1050 = vand.u32 %v701, 4294901760
  %1051 = vmatpush1.msra.mxu0 %v1050
  %1052 = vmatprep.subr.mxu0 0.0
  %1053 = vmatpush1.msra.mxu0 0.0
  %1054 = vmatprep.subr.mxu0 0.0
  %1055 = vmatpush1.msra.mxu0 0.0
  %1056 = vmatprep.subr.mxu0 0.0
  %1057 = vmatpush1.msra.mxu0 0.0
  %1058 = vmatprep.subr.mxu0 0.0
  %1059 = vmatpush1.msra.mxu0 0.0
  %1060 = vmatprep.subr.mxu0 0.0
  %1061 = vmatpush1.msra.mxu0 0.0
  %1062 = vmatprep.subr.mxu0 0.0
  %1063 = vmatpush1.msra.mxu0 0.0
  %1064 = vmatprep.subr.mxu0 0.0
  %1065 = vmatpush1.msra.mxu0 0.0
  %1066 = vmatprep.subr.mxu0 0.0
  %1067 = vmatpush1.msra.mxu0 0.0
  %1068 = vmatprep.subr.mxu0 0.0
  %1069 = vmatpush1.msra.mxu0 0.0
  %1070 = vmatprep.subr.mxu0 0.0
  %1071 = vmatpush1.msra.mxu0 0.0
  %1072 = vmatprep.subr.mxu0 0.0
  %1073 = vmatpush1.msra.mxu0 0.0
  %1074 = vmatprep.subr.mxu0 0.0
  %1075 = vmatpush1.msra.mxu0 0.0
  %1076 = vmatprep.subr.mxu0 0.0
  %1077 = vmatpush1.msra.mxu0 0.0
  %1078 = vmatprep.subr.mxu0 0.0
  %1079 = vmatpush1.msra.mxu0 0.0
  %1080 = vmatprep.subr.mxu0 0.0
  %1081 = vmatpush1.msra.mxu0 0.0
  %1082 = vmatprep.subr.mxu0 0.0
  %1083 = vmatpush1.msra.mxu0 0.0
  %1084 = vmatprep.subr.mxu0 0.0
  %1085 = vmatpush1.msra.mxu0 0.0
  %1086 = vmatprep.subr.mxu0 0.0
  %1087 = vmatpush1.msra.mxu0 0.0
  %1088 = vmatprep.subr.mxu0 0.0
  %1089 = vmatpush1.msra.mxu0 0.0
  %1090 = vmatprep.subr.mxu0 0.0
  %1091 = vmatpush1.msra.mxu0 0.0
  %1092 = vmatprep.subr.mxu0 0.0
  %1093 = vmatpush1.msra.mxu0 0.0
  %1094 = vmatprep.subr.mxu0 0.0
  %1095 = vmatpush1.msra.mxu0 0.0
  %1096 = vmatprep.subr.mxu0 0.0
  %1097 = vmatpush1.msra.mxu0 0.0
  %1098 = vmatprep.subr.mxu0 0.0
  %1099 = vmatpush1.msra.mxu0 0.0
  %1100 = vmatprep.subr.mxu0 0.0
  %1101 = vmatpush1.msra.mxu0 0.0
  %1102 = vmatprep.subr.mxu0 0.0
  %1103 = vmatpush1.msra.mxu0 0.0
  %1104 = vmatprep.subr.mxu0 0.0
  %1105 = vmatpush1.msra.mxu0 0.0
  %1106 = vmatprep.subr.mxu0 0.0
  %1107 = vmatpush1.msra.mxu0 0.0
  %1108 = vmatprep.mubr.f32.mxu0 0.0
  %v1109 = vand.u32 %v710, 4294901760
  %v1110 = vsub.f32 %v710, %v1109
  %v1111 = vand.u32 %v1110, 4294901760
  %1112 = vmatmul.mubr.f32.gmra.mrb[0].mxu0 %v1111
  %v1113 = vpop.f32.mrb[0].mxu0
  %v1114 = vadd.f32 %v1016, %v1113
  %v1115 = vpop.f32.mrb[0].mxu0
  %1116 = vmatprep.mubr.f32.mxu0 0.0
  %v1117 = vand.u32 %v713, 4294901760
  %v1118 = vsub.f32 %v713, %v1117
  %v1119 = vand.u32 %v1118, 4294901760
  %1120 = vmatmul.mubr.f32.gmra.mrb[0].mxu0 %v1119
  %v1121 = vpop.f32.mrb[0].mxu0
  %v1122 = vadd.f32 %v1023, %v1121
  %v1123 = vpop.f32.mrb[0].mxu0
  %1124 = vmatprep.mubr.f32.mxu0 0.0
  %v1125 = vand.u32 %v716, 4294901760
  %v1126 = vsub.f32 %v716, %v1125
  %v1127 = vand.u32 %v1126, 4294901760
  %1128 = vmatmul.mubr.f32.gmra.mrb[0].mxu0 %v1127
  %v1129 = vpop.f32.mrb[0].mxu0
  %v1130 = vadd.f32 %v1030, %v1129
  %v1131 = vpop.f32.mrb[0].mxu0
  %1132 = vmatprep.mubr.f32.mxu0 0.0
  %v1133 = vand.u32 %v719, 4294901760
  %v1134 = vsub.f32 %v719, %v1133
  %v1135 = vand.u32 %v1134, 4294901760
  %1136 = vmatmul.mubr.f32.gmra.mrb[0].mxu0 %v1135
  %v1137 = vpop.f32.mrb[0].mxu0
  %v1138 = vadd.f32 %v1037, %v1137
  %v1139 = vpop.f32.mrb[0].mxu0
  %1140 = vdwg.mxu0
  %1141 = vmatprep.subr.mxu0 0.0
  %v1142 = vand.u32 %v698, 4294901760
  %v1143 = vsub.f32 %v698, %v1142
  %v1144 = vand.u32 %v1143, 4294901760
  %1145 = vmatpush1.msra.mxu0 %v1144
  %1146 = vmatprep.subr.mxu0 0.0
  %v1147 = vand.u32 %v699, 4294901760
  %v1148 = vsub.f32 %v699, %v1147
  %v1149 = vand.u32 %v1148, 4294901760
  %1150 = vmatpush1.msra.mxu0 %v1149
  %1151 = vmatprep.subr.mxu0 0.0
  %v1152 = vand.u32 %v700, 4294901760
  %v1153 = vsub.f32 %v700, %v1152
  %v1154 = vand.u32 %v1153, 4294901760
  %1155 = vmatpush1.msra.mxu0 %v1154
  %1156 = vmatprep.subr.mxu0 0.0
  %v1157 = vand.u32 %v701, 4294901760
  %v1158 = vsub.f32 %v701, %v1157
  %v1159 = vand.u32 %v1158, 4294901760
  %1160 = vmatpush1.msra.mxu0 %v1159
  %1161 = vmatprep.subr.mxu0 0.0
  %1162 = vmatpush1.msra.mxu0 0.0
  %1163 = vmatprep.subr.mxu0 0.0
  %1164 = vmatpush1.msra.mxu0 0.0
  %1165 = vmatprep.subr.mxu0 0.0
  %1166 = vmatpush1.msra.mxu0 0.0
  %1167 = vmatprep.subr.mxu0 0.0
  %1168 = vmatpush1.msra.mxu0 0.0
  %1169 = vmatprep.subr.mxu0 0.0
  %1170 = vmatpush1.msra.mxu0 0.0
  %1171 = vmatprep.subr.mxu0 0.0
  %1172 = vmatpush1.msra.mxu0 0.0
  %1173 = vmatprep.subr.mxu0 0.0
  %1174 = vmatpush1.msra.mxu0 0.0
  %1175 = vmatprep.subr.mxu0 0.0
  %1176 = vmatpush1.msra.mxu0 0.0
  %1177 = vmatprep.subr.mxu0 0.0
  %1178 = vmatpush1.msra.mxu0 0.0
  %1179 = vmatprep.subr.mxu0 0.0
  %1180 = vmatpush1.msra.mxu0 0.0
  %1181 = vmatprep.subr.mxu0 0.0
  %1182 = vmatpush1.msra.mxu0 0.0
  %1183 = vmatprep.subr.mxu0 0.0
  %1184 = vmatpush1.msra.mxu0 0.0
  %1185 = vmatprep.subr.mxu0 0.0
  %1186 = vmatpush1.msra.mxu0 0.0
  %1187 = vmatprep.subr.mxu0 0.0
  %1188 = vmatpush1.msra.mxu0 0.0
  %1189 = vmatprep.subr.mxu0 0.0
  %1190 = vmatpush1.msra.mxu0 0.0
  %1191 = vmatprep.subr.mxu0 0.0
  %1192 = vmatpush1.msra.mxu0 0.0
  %1193 = vmatprep.subr.mxu0 0.0
  %1194 = vmatpush1.msra.mxu0 0.0
  %1195 = vmatprep.subr.mxu0 0.0
  %1196 = vmatpush1.msra.mxu0 0.0
  %1197 = vmatprep.subr.mxu0 0.0
  %1198 = vmatpush1.msra.mxu0 0.0
  %1199 = vmatprep.subr.mxu0 0.0
  %1200 = vmatpush1.msra.mxu0 0.0
  %1201 = vmatprep.subr.mxu0 0.0
  %1202 = vmatpush1.msra.mxu0 0.0
  %1203 = vmatprep.subr.mxu0 0.0
  %1204 = vmatpush1.msra.mxu0 0.0
  %1205 = vmatprep.subr.mxu0 0.0
  %1206 = vmatpush1.msra.mxu0 0.0
  %1207 = vmatprep.subr.mxu0 0.0
  %1208 = vmatpush1.msra.mxu0 0.0
  %1209 = vmatprep.subr.mxu0 0.0
  %1210 = vmatpush1.msra.mxu0 0.0
  %1211 = vmatprep.subr.mxu0 0.0
  %1212 = vmatpush1.msra.mxu0 0.0
  %1213 = vmatprep.subr.mxu0 0.0
  %1214 = vmatpush1.msra.mxu0 0.0
  %1215 = vmatprep.subr.mxu0 0.0
  %1216 = vmatpush1.msra.mxu0 0.0
  %1217 = vmatprep.mubr.f32.mxu0 0.0
  %v1218 = vand.u32 %v710, 4294901760
  %1219 = vmatmul.mubr.f32.gmra.mrb[0].mxu0 %v1218
  %v1220 = vpop.f32.mrb[0].mxu0
  %v1221 = vadd.f32 %v1114, %v1220
  %v1222 = vpop.f32.mrb[0].mxu0
  %1223 = vmatprep.mubr.f32.mxu0 0.0
  %v1224 = vand.u32 %v713, 4294901760
  %1225 = vmatmul.mubr.f32.gmra.mrb[0].mxu0 %v1224
  %v1226 = vpop.f32.mrb[0].mxu0
  %v1227 = vadd.f32 %v1122, %v1226
  %v1228 = vpop.f32.mrb[0].mxu0
  %1229 = vmatprep.mubr.f32.mxu0 0.0
  %v1230 = vand.u32 %v716, 4294901760
  %1231 = vmatmul.mubr.f32.gmra.mrb[0].mxu0 %v1230
  %v1232 = vpop.f32.mrb[0].mxu0
  %v1233 = vadd.f32 %v1130, %v1232
  %v1234 = vpop.f32.mrb[0].mxu0
  %1235 = vmatprep.mubr.f32.mxu0 0.0
  %v1236 = vand.u32 %v719, 4294901760
  %1237 = vmatmul.mubr.f32.gmra.mrb[0].mxu0 %v1236
  %v1238 = vpop.f32.mrb[0].mxu0
  %v1239 = vadd.f32 %v1138, %v1238
  %v1240 = vpop.f32.mrb[0].mxu0
  %1241 = vdwg.mxu0
  %1242 = vmatprep.subr.mxu0 0.0
  %v1243 = vand.u32 %v698, 4294901760
  %1244 = vmatpush1.msra.mxu0 %v1243
  %1245 = vmatprep.subr.mxu0 0.0
  %v1246 = vand.u32 %v699, 4294901760
  %1247 = vmatpush1.msra.mxu0 %v1246
  %1248 = vmatprep.subr.mxu0 0.0
  %v1249 = vand.u32 %v700, 4294901760
  %1250 = vmatpush1.msra.mxu0 %v1249
  %1251 = vmatprep.subr.mxu0 0.0
  %v1252 = vand.u32 %v701, 4294901760
  %1253 = vmatpush1.msra.mxu0 %v1252
  %1254 = vmatprep.subr.mxu0 0.0
  %1255 = vmatpush1.msra.mxu0 0.0
  %1256 = vmatprep.subr.mxu0 0.0
  %1257 = vmatpush1.msra.mxu0 0.0
  %1258 = vmatprep.subr.mxu0 0.0
  %1259 = vmatpush1.msra.mxu0 0.0
  %1260 = vmatprep.subr.mxu0 0.0
  %1261 = vmatpush1.msra.mxu0 0.0
  %1262 = vmatprep.subr.mxu0 0.0
  %1263 = vmatpush1.msra.mxu0 0.0
  %1264 = vmatprep.subr.mxu0 0.0
  %1265 = vmatpush1.msra.mxu0 0.0
  %1266 = vmatprep.subr.mxu0 0.0
  %1267 = vmatpush1.msra.mxu0 0.0
  %1268 = vmatprep.subr.mxu0 0.0
  %1269 = vmatpush1.msra.mxu0 0.0
  %1270 = vmatprep.subr.mxu0 0.0
  %1271 = vmatpush1.msra.mxu0 0.0
  %1272 = vmatprep.subr.mxu0 0.0
  %1273 = vmatpush1.msra.mxu0 0.0
  %1274 = vmatprep.subr.mxu0 0.0
  %1275 = vmatpush1.msra.mxu0 0.0
  %1276 = vmatprep.subr.mxu0 0.0
  %1277 = vmatpush1.msra.mxu0 0.0
  %1278 = vmatprep.subr.mxu0 0.0
  %1279 = vmatpush1.msra.mxu0 0.0
  %1280 = vmatprep.subr.mxu0 0.0
  %1281 = vmatpush1.msra.mxu0 0.0
  %1282 = vmatprep.subr.mxu0 0.0
  %1283 = vmatpush1.msra.mxu0 0.0
  %1284 = vmatprep.subr.mxu0 0.0
  %1285 = vmatpush1.msra.mxu0 0.0
  %1286 = vmatprep.subr.mxu0 0.0
  %1287 = vmatpush1.msra.mxu0 0.0
  %1288 = vmatprep.subr.mxu0 0.0
  %1289 = vmatpush1.msra.mxu0 0.0
  %1290 = vmatprep.subr.mxu0 0.0
  %1291 = vmatpush1.msra.mxu0 0.0
  %1292 = vmatprep.subr.mxu0 0.0
  %1293 = vmatpush1.msra.mxu0 0.0
  %1294 = vmatprep.subr.mxu0 0.0
  %1295 = vmatpush1.msra.mxu0 0.0
  %1296 = vmatprep.subr.mxu0 0.0
  %1297 = vmatpush1.msra.mxu0 0.0
  %1298 = vmatprep.subr.mxu0 0.0
  %1299 = vmatpush1.msra.mxu0 0.0
  %1300 = vmatprep.subr.mxu0 0.0
  %1301 = vmatpush1.msra.mxu0 0.0
  %1302 = vmatprep.subr.mxu0 0.0
  %1303 = vmatpush1.msra.mxu0 0.0
  %1304 = vmatprep.subr.mxu0 0.0
  %1305 = vmatpush1.msra.mxu0 0.0
  %1306 = vmatprep.subr.mxu0 0.0
  %1307 = vmatpush1.msra.mxu0 0.0
  %1308 = vmatprep.subr.mxu0 0.0
  %1309 = vmatpush1.msra.mxu0 0.0
  %1310 = vmatprep.mubr.f32.mxu0 0.0
  %v1311 = vand.u32 %v710, 4294901760
  %1312 = vmatmul.mubr.f32.gmra.mrb[0].mxu0 %v1311
  %v1313 = vpop.f32.mrb[0].mxu0
  %v1314 = vadd.f32 %v1221, %v1313
  %v1315 = vpop.f32.mrb[0].mxu0
  %1316 = vmatprep.mubr.f32.mxu0 0.0
  %v1317 = vand.u32 %v713, 4294901760
  %1318 = vmatmul.mubr.f32.gmra.mrb[0].mxu0 %v1317
  %v1319 = vpop.f32.mrb[0].mxu0
  %v1320 = vadd.f32 %v1227, %v1319
  %v1321 = vpop.f32.mrb[0].mxu0
  %1322 = vmatprep.mubr.f32.mxu0 0.0
  %v1323 = vand.u32 %v716, 4294901760
  %1324 = vmatmul.mubr.f32.gmra.mrb[0].mxu0 %v1323
  %v1325 = vpop.f32.mrb[0].mxu0
  %v1326 = vadd.f32 %v1233, %v1325
  %v1327 = vpop.f32.mrb[0].mxu0
  %1328 = vmatprep.mubr.f32.mxu0 0.0
  %v1329 = vand.u32 %v719, 4294901760
  %1330 = vmatmul.mubr.f32.gmra.mrb[0].mxu0 %v1329
  %v1331 = vpop.f32.mrb[0].mxu0
  %v1332 = vadd.f32 %v1239, %v1331
  %v1333 = vpop.f32.mrb[0].mxu0
  %1334 = vdwg.mxu0
  %1337 = vrot.lane.b32.xlu0 %v1314, 96
  %v1338 = vpop.permute.xlu0 %1337
  %1339 = vrot.lane.b32.xlu0 %v1320, 96
  %v1340 = vpop.permute.xlu0 %1339
  %v1343 = vmul.f32 %v1314, %v1338
  %v1344 = vmul.f32 %v1320, %v1340
  %1347 = vrot.lane.b32.xlu0 %v1326, 96
  %v1348 = vpop.permute.xlu0 %1347
  %1349 = vrot.lane.b32.xlu0 %v1332, 96
  %v1350 = vpop.permute.xlu0 %1349
  %v1353 = vmul.f32 %v1314, %v1348
  %v1354 = vmul.f32 %v1320, %v1350
  %v1355 = vmul.f32 %v1326, %v1338
  %v1356 = vmul.f32 %v1332, %v1340
  %v1357 = vmul.f32 %v1326, %v1348
  %v1358 = vmul.f32 %v1332, %v1350
  %v1360 = vsel %vm80, %v1343, 0
  %v1363 = vsel %vm80, %v1344, 0
  %v1366 = vsel %vm80, %v1353, 0
  %v1369 = vsel %vm80, %v1354, 0
  %v1372 = vsel %vm80, %v1355, 0
  %v1375 = vsel %vm80, %v1356, 0
  %v1378 = vsel %vm80, %v1357, 0
  %v1381 = vsel %vm80, %v1358, 0
  %1383 = vmatprep.subr.mxu0 0.0
  %v1384 = vand.u32 %v59, 4294901760
  %1385 = vmatpush1.msra.mxu0 %v1384
  %1386 = vmatprep.subr.mxu0 0.0
  %v1387 = vand.u32 %v60, 4294901760
  %1388 = vmatpush1.msra.mxu0 %v1387
  %1389 = vmatprep.subr.mxu0 0.0
  %v1390 = vand.u32 %v61, 4294901760
  %1391 = vmatpush1.msra.mxu0 %v1390
  %1392 = vmatprep.subr.mxu0 0.0
  %v1393 = vand.u32 %v62, 4294901760
  %1394 = vmatpush1.msra.mxu0 %v1393
  %1395 = vmatprep.subr.mxu0 0.0
  %1396 = vmatpush1.msra.mxu0 0.0
  %1397 = vmatprep.subr.mxu0 0.0
  %1398 = vmatpush1.msra.mxu0 0.0
  %1399 = vmatprep.subr.mxu0 0.0
  %1400 = vmatpush1.msra.mxu0 0.0
  %1401 = vmatprep.subr.mxu0 0.0
  %1402 = vmatpush1.msra.mxu0 0.0
  %1403 = vmatprep.subr.mxu0 0.0
  %1404 = vmatpush1.msra.mxu0 0.0
  %1405 = vmatprep.subr.mxu0 0.0
  %1406 = vmatpush1.msra.mxu0 0.0
  %1407 = vmatprep.subr.mxu0 0.0
  %1408 = vmatpush1.msra.mxu0 0.0
  %1409 = vmatprep.subr.mxu0 0.0
  %1410 = vmatpush1.msra.mxu0 0.0
  %1411 = vmatprep.subr.mxu0 0.0
  %1412 = vmatpush1.msra.mxu0 0.0
  %1413 = vmatprep.subr.mxu0 0.0
  %1414 = vmatpush1.msra.mxu0 0.0
  %1415 = vmatprep.subr.mxu0 0.0
  %1416 = vmatpush1.msra.mxu0 0.0
  %1417 = vmatprep.subr.mxu0 0.0
  %1418 = vmatpush1.msra.mxu0 0.0
  %1419 = vmatprep.subr.mxu0 0.0
  %1420 = vmatpush1.msra.mxu0 0.0
  %1421 = vmatprep.subr.mxu0 0.0
  %1422 = vmatpush1.msra.mxu0 0.0
  %1423 = vmatprep.subr.mxu0 0.0
  %1424 = vmatpush1.msra.mxu0 0.0
  %1425 = vmatprep.subr.mxu0 0.0
  %1426 = vmatpush1.msra.mxu0 0.0
  %1427 = vmatprep.subr.mxu0 0.0
  %1428 = vmatpush1.msra.mxu0 0.0
  %1429 = vmatprep.subr.mxu0 0.0
  %1430 = vmatpush1.msra.mxu0 0.0
  %1431 = vmatprep.subr.mxu0 0.0
  %1432 = vmatpush1.msra.mxu0 0.0
  %1433 = vmatprep.subr.mxu0 0.0
  %1434 = vmatpush1.msra.mxu0 0.0
  %1435 = vmatprep.subr.mxu0 0.0
  %1436 = vmatpush1.msra.mxu0 0.0
  %1437 = vmatprep.subr.mxu0 0.0
  %1438 = vmatpush1.msra.mxu0 0.0
  %1439 = vmatprep.subr.mxu0 0.0
  %1440 = vmatpush1.msra.mxu0 0.0
  %1441 = vmatprep.subr.mxu0 0.0
  %1442 = vmatpush1.msra.mxu0 0.0
  %1443 = vmatprep.subr.mxu0 0.0
  %1444 = vmatpush1.msra.mxu0 0.0
  %1445 = vmatprep.subr.mxu0 0.0
  %1446 = vmatpush1.msra.mxu0 0.0
  %1447 = vmatprep.subr.mxu0 0.0
  %1448 = vmatpush1.msra.mxu0 0.0
  %1449 = vmatprep.subr.mxu0 0.0
  %1450 = vmatpush1.msra.mxu0 0.0
  %1451 = vmatprep.mubr.f32.mxu0 0.0
  %v1452 = vand.u32 %v1360, 4294901760
  %v1453 = vsub.f32 %v1360, %v1452
  %v1454 = vand.u32 %v1453, 4294901760
  %v1455 = vsub.f32 %v1453, %v1454
  %v1456 = vand.u32 %v1455, 4294901760
  %1457 = vmatmul.mubr.f32.gmra.mrb[0].mxu0 %v1456
  %v1458 = vpop.f32.mrb[0].mxu0
  %v1459 = vadd.f32 0.0, %v1458
  %v1460 = vpop.f32.mrb[0].mxu0
  %1461 = vmatprep.mubr.f32.mxu0 0.0
  %v1462 = vand.u32 %v1363, 4294901760
  %v1463 = vsub.f32 %v1363, %v1462
  %v1464 = vand.u32 %v1463, 4294901760
  %v1465 = vsub.f32 %v1463, %v1464
  %v1466 = vand.u32 %v1465, 4294901760
  %1467 = vmatmul.mubr.f32.gmra.mrb[0].mxu0 %v1466
  %v1468 = vpop.f32.mrb[0].mxu0
  %v1469 = vadd.f32 0.0, %v1468
  %v1470 = vpop.f32.mrb[0].mxu0
  %1471 = vmatprep.mubr.f32.mxu0 0.0
  %v1472 = vand.u32 %v1366, 4294901760
  %v1473 = vsub.f32 %v1366, %v1472
  %v1474 = vand.u32 %v1473, 4294901760
  %v1475 = vsub.f32 %v1473, %v1474
  %v1476 = vand.u32 %v1475, 4294901760
  %1477 = vmatmul.mubr.f32.gmra.mrb[0].mxu0 %v1476
  %v1478 = vpop.f32.mrb[0].mxu0
  %v1479 = vadd.f32 0.0, %v1478
  %v1480 = vpop.f32.mrb[0].mxu0
  %1481 = vmatprep.mubr.f32.mxu0 0.0
  %v1482 = vand.u32 %v1369, 4294901760
  %v1483 = vsub.f32 %v1369, %v1482
  %v1484 = vand.u32 %v1483, 4294901760
  %v1485 = vsub.f32 %v1483, %v1484
  %v1486 = vand.u32 %v1485, 4294901760
  %1487 = vmatmul.mubr.f32.gmra.mrb[0].mxu0 %v1486
  %v1488 = vpop.f32.mrb[0].mxu0
  %v1489 = vadd.f32 0.0, %v1488
  %v1490 = vpop.f32.mrb[0].mxu0
  %1491 = vmatprep.mubr.f32.mxu0 0.0
  %v1492 = vand.u32 %v1372, 4294901760
  %v1493 = vsub.f32 %v1372, %v1492
  %v1494 = vand.u32 %v1493, 4294901760
  %v1495 = vsub.f32 %v1493, %v1494
  %v1496 = vand.u32 %v1495, 4294901760
  %1497 = vmatmul.mubr.f32.gmra.mrb[0].mxu0 %v1496
  %v1498 = vpop.f32.mrb[0].mxu0
  %v1499 = vadd.f32 0.0, %v1498
  %v1500 = vpop.f32.mrb[0].mxu0
  %1501 = vmatprep.mubr.f32.mxu0 0.0
  %v1502 = vand.u32 %v1375, 4294901760
  %v1503 = vsub.f32 %v1375, %v1502
  %v1504 = vand.u32 %v1503, 4294901760
  %v1505 = vsub.f32 %v1503, %v1504
  %v1506 = vand.u32 %v1505, 4294901760
  %1507 = vmatmul.mubr.f32.gmra.mrb[0].mxu0 %v1506
  %v1508 = vpop.f32.mrb[0].mxu0
  %v1509 = vadd.f32 0.0, %v1508
  %v1510 = vpop.f32.mrb[0].mxu0
  %1511 = vmatprep.mubr.f32.mxu0 0.0
  %v1512 = vand.u32 %v1378, 4294901760
  %v1513 = vsub.f32 %v1378, %v1512
  %v1514 = vand.u32 %v1513, 4294901760
  %v1515 = vsub.f32 %v1513, %v1514
  %v1516 = vand.u32 %v1515, 4294901760
  %1517 = vmatmul.mubr.f32.gmra.mrb[0].mxu0 %v1516
  %v1518 = vpop.f32.mrb[0].mxu0
  %v1519 = vadd.f32 0.0, %v1518
  %v1520 = vpop.f32.mrb[0].mxu0
  %1521 = vmatprep.mubr.f32.mxu0 0.0
  %v1522 = vand.u32 %v1381, 4294901760
  %v1523 = vsub.f32 %v1381, %v1522
  %v1524 = vand.u32 %v1523, 4294901760
  %v1525 = vsub.f32 %v1523, %v1524
  %v1526 = vand.u32 %v1525, 4294901760
  %1527 = vmatmul.mubr.f32.gmra.mrb[0].mxu0 %v1526
  %v1528 = vpop.f32.mrb[0].mxu0
  %v1529 = vadd.f32 0.0, %v1528
  %v1530 = vpop.f32.mrb[0].mxu0
  %1531 = vdwg.mxu0
  %1532 = vmatprep.subr.mxu0 0.0
  %v1533 = vand.u32 %v59, 4294901760
  %v1534 = vsub.f32 %v59, %v1533
  %v1535 = vand.u32 %v1534, 4294901760
  %v1536 = vsub.f32 %v1534, %v1535
  %v1537 = vand.u32 %v1536, 4294901760
  %1538 = vmatpush1.msra.mxu0 %v1537
  %1539 = vmatprep.subr.mxu0 0.0
  %v1540 = vand.u32 %v60, 4294901760
  %v1541 = vsub.f32 %v60, %v1540
  %v1542 = vand.u32 %v1541, 4294901760
  %v1543 = vsub.f32 %v1541, %v1542
  %v1544 = vand.u32 %v1543, 4294901760
  %1545 = vmatpush1.msra.mxu0 %v1544
  %1546 = vmatprep.subr.mxu0 0.0
  %v1547 = vand.u32 %v61, 4294901760
  %v1548 = vsub.f32 %v61, %v1547
  %v1549 = vand.u32 %v1548, 4294901760
  %v1550 = vsub.f32 %v1548, %v1549
  %v1551 = vand.u32 %v1550, 4294901760
  %1552 = vmatpush1.msra.mxu0 %v1551
  %1553 = vmatprep.subr.mxu0 0.0
  %v1554 = vand.u32 %v62, 4294901760
  %v1555 = vsub.f32 %v62, %v1554
  %v1556 = vand.u32 %v1555, 4294901760
  %v1557 = vsub.f32 %v1555, %v1556
  %v1558 = vand.u32 %v1557, 4294901760
  %1559 = vmatpush1.msra.mxu0 %v1558
  %1560 = vmatprep.subr.mxu0 0.0
  %1561 = vmatpush1.msra.mxu0 0.0
  %1562 = vmatprep.subr.mxu0 0.0
  %1563 = vmatpush1.msra.mxu0 0.0
  %1564 = vmatprep.subr.mxu0 0.0
  %1565 = vmatpush1.msra.mxu0 0.0
  %1566 = vmatprep.subr.mxu0 0.0
  %1567 = vmatpush1.msra.mxu0 0.0
  %1568 = vmatprep.subr.mxu0 0.0
  %1569 = vmatpush1.msra.mxu0 0.0
  %1570 = vmatprep.subr.mxu0 0.0
  %1571 = vmatpush1.msra.mxu0 0.0
  %1572 = vmatprep.subr.mxu0 0.0
  %1573 = vmatpush1.msra.mxu0 0.0
  %1574 = vmatprep.subr.mxu0 0.0
  %1575 = vmatpush1.msra.mxu0 0.0
  %1576 = vmatprep.subr.mxu0 0.0
  %1577 = vmatpush1.msra.mxu0 0.0
  %1578 = vmatprep.subr.mxu0 0.0
  %1579 = vmatpush1.msra.mxu0 0.0
  %1580 = vmatprep.subr.mxu0 0.0
  %1581 = vmatpush1.msra.mxu0 0.0
  %1582 = vmatprep.subr.mxu0 0.0
  %1583 = vmatpush1.msra.mxu0 0.0
  %1584 = vmatprep.subr.mxu0 0.0
  %1585 = vmatpush1.msra.mxu0 0.0
  %1586 = vmatprep.subr.mxu0 0.0
  %1587 = vmatpush1.msra.mxu0 0.0
  %1588 = vmatprep.subr.mxu0 0.0
  %1589 = vmatpush1.msra.mxu0 0.0
  %1590 = vmatprep.subr.mxu0 0.0
  %1591 = vmatpush1.msra.mxu0 0.0
  %1592 = vmatprep.subr.mxu0 0.0
  %1593 = vmatpush1.msra.mxu0 0.0
  %1594 = vmatprep.subr.mxu0 0.0
  %1595 = vmatpush1.msra.mxu0 0.0
  %1596 = vmatprep.subr.mxu0 0.0
  %1597 = vmatpush1.msra.mxu0 0.0
  %1598 = vmatprep.subr.mxu0 0.0
  %1599 = vmatpush1.msra.mxu0 0.0
  %1600 = vmatprep.subr.mxu0 0.0
  %1601 = vmatpush1.msra.mxu0 0.0
  %1602 = vmatprep.subr.mxu0 0.0
  %1603 = vmatpush1.msra.mxu0 0.0
  %1604 = vmatprep.subr.mxu0 0.0
  %1605 = vmatpush1.msra.mxu0 0.0
  %1606 = vmatprep.subr.mxu0 0.0
  %1607 = vmatpush1.msra.mxu0 0.0
  %1608 = vmatprep.subr.mxu0 0.0
  %1609 = vmatpush1.msra.mxu0 0.0
  %1610 = vmatprep.subr.mxu0 0.0
  %1611 = vmatpush1.msra.mxu0 0.0
  %1612 = vmatprep.subr.mxu0 0.0
  %1613 = vmatpush1.msra.mxu0 0.0
  %1614 = vmatprep.subr.mxu0 0.0
  %1615 = vmatpush1.msra.mxu0 0.0
  %1616 = vmatprep.mubr.f32.mxu0 0.0
  %v1617 = vand.u32 %v1360, 4294901760
  %1618 = vmatmul.mubr.f32.gmra.mrb[0].mxu0 %v1617
  %v1619 = vpop.f32.mrb[0].mxu0
  %v1620 = vadd.f32 %v1459, %v1619
  %v1621 = vpop.f32.mrb[0].mxu0
  %1622 = vmatprep.mubr.f32.mxu0 0.0
  %v1623 = vand.u32 %v1363, 4294901760
  %1624 = vmatmul.mubr.f32.gmra.mrb[0].mxu0 %v1623
  %v1625 = vpop.f32.mrb[0].mxu0
  %v1626 = vadd.f32 %v1469, %v1625
  %v1627 = vpop.f32.mrb[0].mxu0
  %1628 = vmatprep.mubr.f32.mxu0 0.0
  %v1629 = vand.u32 %v1366, 4294901760
  %1630 = vmatmul.mubr.f32.gmra.mrb[0].mxu0 %v1629
  %v1631 = vpop.f32.mrb[0].mxu0
  %v1632 = vadd.f32 %v1479, %v1631
  %v1633 = vpop.f32.mrb[0].mxu0
  %1634 = vmatprep.mubr.f32.mxu0 0.0
  %v1635 = vand.u32 %v1369, 4294901760
  %1636 = vmatmul.mubr.f32.gmra.mrb[0].mxu0 %v1635
  %v1637 = vpop.f32.mrb[0].mxu0
  %v1638 = vadd.f32 %v1489, %v1637
  %v1639 = vpop.f32.mrb[0].mxu0
  %1640 = vmatprep.mubr.f32.mxu0 0.0
  %v1641 = vand.u32 %v1372, 4294901760
  %1642 = vmatmul.mubr.f32.gmra.mrb[0].mxu0 %v1641
  %v1643 = vpop.f32.mrb[0].mxu0
  %v1644 = vadd.f32 %v1499, %v1643
  %v1645 = vpop.f32.mrb[0].mxu0
  %1646 = vmatprep.mubr.f32.mxu0 0.0
  %v1647 = vand.u32 %v1375, 4294901760
  %1648 = vmatmul.mubr.f32.gmra.mrb[0].mxu0 %v1647
  %v1649 = vpop.f32.mrb[0].mxu0
  %v1650 = vadd.f32 %v1509, %v1649
  %v1651 = vpop.f32.mrb[0].mxu0
  %1652 = vmatprep.mubr.f32.mxu0 0.0
  %v1653 = vand.u32 %v1378, 4294901760
  %1654 = vmatmul.mubr.f32.gmra.mrb[0].mxu0 %v1653
  %v1655 = vpop.f32.mrb[0].mxu0
  %v1656 = vadd.f32 %v1519, %v1655
  %v1657 = vpop.f32.mrb[0].mxu0
  %1658 = vmatprep.mubr.f32.mxu0 0.0
  %v1659 = vand.u32 %v1381, 4294901760
  %1660 = vmatmul.mubr.f32.gmra.mrb[0].mxu0 %v1659
  %v1661 = vpop.f32.mrb[0].mxu0
  %v1662 = vadd.f32 %v1529, %v1661
  %v1663 = vpop.f32.mrb[0].mxu0
  %1664 = vdwg.mxu0
  %1665 = vmatprep.subr.mxu0 0.0
  %v1666 = vand.u32 %v59, 4294901760
  %v1667 = vsub.f32 %v59, %v1666
  %1668 = vmatpush1.msra.mxu0 %v1667
  %1669 = vmatprep.subr.mxu0 0.0
  %v1670 = vand.u32 %v60, 4294901760
  %v1671 = vsub.f32 %v60, %v1670
  %1672 = vmatpush1.msra.mxu0 %v1671
  %1673 = vmatprep.subr.mxu0 0.0
  %v1674 = vand.u32 %v61, 4294901760
  %v1675 = vsub.f32 %v61, %v1674
  %1676 = vmatpush1.msra.mxu0 %v1675
  %1677 = vmatprep.subr.mxu0 0.0
  %v1678 = vand.u32 %v62, 4294901760
  %v1679 = vsub.f32 %v62, %v1678
  %1680 = vmatpush1.msra.mxu0 %v1679
  %1681 = vmatprep.subr.mxu0 0.0
  %1682 = vmatpush1.msra.mxu0 0.0
  %1683 = vmatprep.subr.mxu0 0.0
  %1684 = vmatpush1.msra.mxu0 0.0
  %1685 = vmatprep.subr.mxu0 0.0
  %1686 = vmatpush1.msra.mxu0 0.0
  %1687 = vmatprep.subr.mxu0 0.0
  %1688 = vmatpush1.msra.mxu0 0.0
  %1689 = vmatprep.subr.mxu0 0.0
  %1690 = vmatpush1.msra.mxu0 0.0
  %1691 = vmatprep.subr.mxu0 0.0
  %1692 = vmatpush1.msra.mxu0 0.0
  %1693 = vmatprep.subr.mxu0 0.0
  %1694 = vmatpush1.msra.mxu0 0.0
  %1695 = vmatprep.subr.mxu0 0.0
  %1696 = vmatpush1.msra.mxu0 0.0
  %1697 = vmatprep.subr.mxu0 0.0
  %1698 = vmatpush1.msra.mxu0 0.0
  %1699 = vmatprep.subr.mxu0 0.0
  %1700 = vmatpush1.msra.mxu0 0.0
  %1701 = vmatprep.subr.mxu0 0.0
  %1702 = vmatpush1.msra.mxu0 0.0
  %1703 = vmatprep.subr.mxu0 0.0
  %1704 = vmatpush1.msra.mxu0 0.0
  %1705 = vmatprep.subr.mxu0 0.0
  %1706 = vmatpush1.msra.mxu0 0.0
  %1707 = vmatprep.subr.mxu0 0.0
  %1708 = vmatpush1.msra.mxu0 0.0
  %1709 = vmatprep.subr.mxu0 0.0
  %1710 = vmatpush1.msra.mxu0 0.0
  %1711 = vmatprep.subr.mxu0 0.0
  %1712 = vmatpush1.msra.mxu0 0.0
  %1713 = vmatprep.subr.mxu0 0.0
  %1714 = vmatpush1.msra.mxu0 0.0
  %1715 = vmatprep.subr.mxu0 0.0
  %1716 = vmatpush1.msra.mxu0 0.0
  %1717 = vmatprep.subr.mxu0 0.0
  %1718 = vmatpush1.msra.mxu0 0.0
  %1719 = vmatprep.subr.mxu0 0.0
  %1720 = vmatpush1.msra.mxu0 0.0
  %1721 = vmatprep.subr.mxu0 0.0
  %1722 = vmatpush1.msra.mxu0 0.0
  %1723 = vmatprep.subr.mxu0 0.0
  %1724 = vmatpush1.msra.mxu0 0.0
  %1725 = vmatprep.subr.mxu0 0.0
  %1726 = vmatpush1.msra.mxu0 0.0
  %1727 = vmatprep.subr.mxu0 0.0
  %1728 = vmatpush1.msra.mxu0 0.0
  %1729 = vmatprep.subr.mxu0 0.0
  %1730 = vmatpush1.msra.mxu0 0.0
  %1731 = vmatprep.subr.mxu0 0.0
  %1732 = vmatpush1.msra.mxu0 0.0
  %1733 = vmatprep.subr.mxu0 0.0
  %1734 = vmatpush1.msra.mxu0 0.0
  %1735 = vmatprep.subr.mxu0 0.0
  %1736 = vmatpush1.msra.mxu0 0.0
  %1737 = vmatprep.mubr.f32.mxu0 0.0
  %v1738 = vand.u32 %v1360, 4294901760
  %v1739 = vsub.f32 %v1360, %v1738
  %1740 = vmatmul.mubr.f32.gmra.mrb[0].mxu0 %v1739
  %v1741 = vpop.f32.mrb[0].mxu0
  %v1742 = vadd.f32 %v1620, %v1741
  %v1743 = vpop.f32.mrb[0].mxu0
  %1744 = vmatprep.mubr.f32.mxu0 0.0
  %v1745 = vand.u32 %v1363, 4294901760
  %v1746 = vsub.f32 %v1363, %v1745
  %1747 = vmatmul.mubr.f32.gmra.mrb[0].mxu0 %v1746
  %v1748 = vpop.f32.mrb[0].mxu0
  %v1749 = vadd.f32 %v1626, %v1748
  %v1750 = vpop.f32.mrb[0].mxu0
  %1751 = vmatprep.mubr.f32.mxu0 0.0
  %v1752 = vand.u32 %v1366, 4294901760
  %v1753 = vsub.f32 %v1366, %v1752
  %1754 = vmatmul.mubr.f32.gmra.mrb[0].mxu0 %v1753
  %v1755 = vpop.f32.mrb[0].mxu0
  %v1756 = vadd.f32 %v1632, %v1755
  %v1757 = vpop.f32.mrb[0].mxu0
  %1758 = vmatprep.mubr.f32.mxu0 0.0
  %v1759 = vand.u32 %v1369, 4294901760
  %v1760 = vsub.f32 %v1369, %v1759
  %1761 = vmatmul.mubr.f32.gmra.mrb[0].mxu0 %v1760
  %v1762 = vpop.f32.mrb[0].mxu0
  %v1763 = vadd.f32 %v1638, %v1762
  %v1764 = vpop.f32.mrb[0].mxu0
  %1765 = vmatprep.mubr.f32.mxu0 0.0
  %v1766 = vand.u32 %v1372, 4294901760
  %v1767 = vsub.f32 %v1372, %v1766
  %1768 = vmatmul.mubr.f32.gmra.mrb[0].mxu0 %v1767
  %v1769 = vpop.f32.mrb[0].mxu0
  %v1770 = vadd.f32 %v1644, %v1769
  %v1771 = vpop.f32.mrb[0].mxu0
  %1772 = vmatprep.mubr.f32.mxu0 0.0
  %v1773 = vand.u32 %v1375, 4294901760
  %v1774 = vsub.f32 %v1375, %v1773
  %1775 = vmatmul.mubr.f32.gmra.mrb[0].mxu0 %v1774
  %v1776 = vpop.f32.mrb[0].mxu0
  %v1777 = vadd.f32 %v1650, %v1776
  %v1778 = vpop.f32.mrb[0].mxu0
  %1779 = vmatprep.mubr.f32.mxu0 0.0
  %v1780 = vand.u32 %v1378, 4294901760
  %v1781 = vsub.f32 %v1378, %v1780
  %1782 = vmatmul.mubr.f32.gmra.mrb[0].mxu0 %v1781
  %v1783 = vpop.f32.mrb[0].mxu0
  %v1784 = vadd.f32 %v1656, %v1783
  %v1785 = vpop.f32.mrb[0].mxu0
  %1786 = vmatprep.mubr.f32.mxu0 0.0
  %v1787 = vand.u32 %v1381, 4294901760
  %v1788 = vsub.f32 %v1381, %v1787
  %1789 = vmatmul.mubr.f32.gmra.mrb[0].mxu0 %v1788
  %v1790 = vpop.f32.mrb[0].mxu0
  %v1791 = vadd.f32 %v1662, %v1790
  %v1792 = vpop.f32.mrb[0].mxu0
  %1793 = vdwg.mxu0
  %1794 = vmatprep.subr.mxu0 0.0
  %v1795 = vand.u32 %v59, 4294901760
  %1796 = vmatpush1.msra.mxu0 %v1795
  %1797 = vmatprep.subr.mxu0 0.0
  %v1798 = vand.u32 %v60, 4294901760
  %1799 = vmatpush1.msra.mxu0 %v1798
  %1800 = vmatprep.subr.mxu0 0.0
  %v1801 = vand.u32 %v61, 4294901760
  %1802 = vmatpush1.msra.mxu0 %v1801
  %1803 = vmatprep.subr.mxu0 0.0
  %v1804 = vand.u32 %v62, 4294901760
  %1805 = vmatpush1.msra.mxu0 %v1804
  %1806 = vmatprep.subr.mxu0 0.0
  %1807 = vmatpush1.msra.mxu0 0.0
  %1808 = vmatprep.subr.mxu0 0.0
  %1809 = vmatpush1.msra.mxu0 0.0
  %1810 = vmatprep.subr.mxu0 0.0
  %1811 = vmatpush1.msra.mxu0 0.0
  %1812 = vmatprep.subr.mxu0 0.0
  %1813 = vmatpush1.msra.mxu0 0.0
  %1814 = vmatprep.subr.mxu0 0.0
  %1815 = vmatpush1.msra.mxu0 0.0
  %1816 = vmatprep.subr.mxu0 0.0
  %1817 = vmatpush1.msra.mxu0 0.0
  %1818 = vmatprep.subr.mxu0 0.0
  %1819 = vmatpush1.msra.mxu0 0.0
  %1820 = vmatprep.subr.mxu0 0.0
  %1821 = vmatpush1.msra.mxu0 0.0
  %1822 = vmatprep.subr.mxu0 0.0
  %1823 = vmatpush1.msra.mxu0 0.0
  %1824 = vmatprep.subr.mxu0 0.0
  %1825 = vmatpush1.msra.mxu0 0.0
  %1826 = vmatprep.subr.mxu0 0.0
  %1827 = vmatpush1.msra.mxu0 0.0
  %1828 = vmatprep.subr.mxu0 0.0
  %1829 = vmatpush1.msra.mxu0 0.0
  %1830 = vmatprep.subr.mxu0 0.0
  %1831 = vmatpush1.msra.mxu0 0.0
  %1832 = vmatprep.subr.mxu0 0.0
  %1833 = vmatpush1.msra.mxu0 0.0
  %1834 = vmatprep.subr.mxu0 0.0
  %1835 = vmatpush1.msra.mxu0 0.0
  %1836 = vmatprep.subr.mxu0 0.0
  %1837 = vmatpush1.msra.mxu0 0.0
  %1838 = vmatprep.subr.mxu0 0.0
  %1839 = vmatpush1.msra.mxu0 0.0
  %1840 = vmatprep.subr.mxu0 0.0
  %1841 = vmatpush1.msra.mxu0 0.0
  %1842 = vmatprep.subr.mxu0 0.0
  %1843 = vmatpush1.msra.mxu0 0.0
  %1844 = vmatprep.subr.mxu0 0.0
  %1845 = vmatpush1.msra.mxu0 0.0
  %1846 = vmatprep.subr.mxu0 0.0
  %1847 = vmatpush1.msra.mxu0 0.0
  %1848 = vmatprep.subr.mxu0 0.0
  %1849 = vmatpush1.msra.mxu0 0.0
  %1850 = vmatprep.subr.mxu0 0.0
  %1851 = vmatpush1.msra.mxu0 0.0
  %1852 = vmatprep.subr.mxu0 0.0
  %1853 = vmatpush1.msra.mxu0 0.0
  %1854 = vmatprep.subr.mxu0 0.0
  %1855 = vmatpush1.msra.mxu0 0.0
  %1856 = vmatprep.subr.mxu0 0.0
  %1857 = vmatpush1.msra.mxu0 0.0
  %1858 = vmatprep.subr.mxu0 0.0
  %1859 = vmatpush1.msra.mxu0 0.0
  %1860 = vmatprep.subr.mxu0 0.0
  %1861 = vmatpush1.msra.mxu0 0.0
  %1862 = vmatprep.mubr.f32.mxu0 0.0
  %v1863 = vand.u32 %v1360, 4294901760
  %v1864 = vsub.f32 %v1360, %v1863
  %v1865 = vand.u32 %v1864, 4294901760
  %1866 = vmatmul.mubr.f32.gmra.mrb[0].mxu0 %v1865
  %v1867 = vpop.f32.mrb[0].mxu0
  %v1868 = vadd.f32 %v1742, %v1867
  %v1869 = vpop.f32.mrb[0].mxu0
  %1870 = vmatprep.mubr.f32.mxu0 0.0
  %v1871 = vand.u32 %v1363, 4294901760
  %v1872 = vsub.f32 %v1363, %v1871
  %v1873 = vand.u32 %v1872, 4294901760
  %1874 = vmatmul.mubr.f32.gmra.mrb[0].mxu0 %v1873
  %v1875 = vpop.f32.mrb[0].mxu0
  %v1876 = vadd.f32 %v1749, %v1875
  %v1877 = vpop.f32.mrb[0].mxu0
  %1878 = vmatprep.mubr.f32.mxu0 0.0
  %v1879 = vand.u32 %v1366, 4294901760
  %v1880 = vsub.f32 %v1366, %v1879
  %v1881 = vand.u32 %v1880, 4294901760
  %1882 = vmatmul.mubr.f32.gmra.mrb[0].mxu0 %v1881
  %v1883 = vpop.f32.mrb[0].mxu0
  %v1884 = vadd.f32 %v1756, %v1883
  %v1885 = vpop.f32.mrb[0].mxu0
  %1886 = vmatprep.mubr.f32.mxu0 0.0
  %v1887 = vand.u32 %v1369, 4294901760
  %v1888 = vsub.f32 %v1369, %v1887
  %v1889 = vand.u32 %v1888, 4294901760
  %1890 = vmatmul.mubr.f32.gmra.mrb[0].mxu0 %v1889
  %v1891 = vpop.f32.mrb[0].mxu0
  %v1892 = vadd.f32 %v1763, %v1891
  %v1893 = vpop.f32.mrb[0].mxu0
  %1894 = vmatprep.mubr.f32.mxu0 0.0
  %v1895 = vand.u32 %v1372, 4294901760
  %v1896 = vsub.f32 %v1372, %v1895
  %v1897 = vand.u32 %v1896, 4294901760
  %1898 = vmatmul.mubr.f32.gmra.mrb[0].mxu0 %v1897
  %v1899 = vpop.f32.mrb[0].mxu0
  %v1900 = vadd.f32 %v1770, %v1899
  %v1901 = vpop.f32.mrb[0].mxu0
  %1902 = vmatprep.mubr.f32.mxu0 0.0
  %v1903 = vand.u32 %v1375, 4294901760
  %v1904 = vsub.f32 %v1375, %v1903
  %v1905 = vand.u32 %v1904, 4294901760
  %1906 = vmatmul.mubr.f32.gmra.mrb[0].mxu0 %v1905
  %v1907 = vpop.f32.mrb[0].mxu0
  %v1908 = vadd.f32 %v1777, %v1907
  %v1909 = vpop.f32.mrb[0].mxu0
  %1910 = vmatprep.mubr.f32.mxu0 0.0
  %v1911 = vand.u32 %v1378, 4294901760
  %v1912 = vsub.f32 %v1378, %v1911
  %v1913 = vand.u32 %v1912, 4294901760
  %1914 = vmatmul.mubr.f32.gmra.mrb[0].mxu0 %v1913
  %v1915 = vpop.f32.mrb[0].mxu0
  %v1916 = vadd.f32 %v1784, %v1915
  %v1917 = vpop.f32.mrb[0].mxu0
  %1918 = vmatprep.mubr.f32.mxu0 0.0
  %v1919 = vand.u32 %v1381, 4294901760
  %v1920 = vsub.f32 %v1381, %v1919
  %v1921 = vand.u32 %v1920, 4294901760
  %1922 = vmatmul.mubr.f32.gmra.mrb[0].mxu0 %v1921
  %v1923 = vpop.f32.mrb[0].mxu0
  %v1924 = vadd.f32 %v1791, %v1923
  %v1925 = vpop.f32.mrb[0].mxu0
  %1926 = vdwg.mxu0
  %1927 = vmatprep.subr.mxu0 0.0
  %v1928 = vand.u32 %v59, 4294901760
  %v1929 = vsub.f32 %v59, %v1928
  %v1930 = vand.u32 %v1929, 4294901760
  %1931 = vmatpush1.msra.mxu0 %v1930
  %1932 = vmatprep.subr.mxu0 0.0
  %v1933 = vand.u32 %v60, 4294901760
  %v1934 = vsub.f32 %v60, %v1933
  %v1935 = vand.u32 %v1934, 4294901760
  %1936 = vmatpush1.msra.mxu0 %v1935
  %1937 = vmatprep.subr.mxu0 0.0
  %v1938 = vand.u32 %v61, 4294901760
  %v1939 = vsub.f32 %v61, %v1938
  %v1940 = vand.u32 %v1939, 4294901760
  %1941 = vmatpush1.msra.mxu0 %v1940
  %1942 = vmatprep.subr.mxu0 0.0
  %v1943 = vand.u32 %v62, 4294901760
  %v1944 = vsub.f32 %v62, %v1943
  %v1945 = vand.u32 %v1944, 4294901760
  %1946 = vmatpush1.msra.mxu0 %v1945
  %1947 = vmatprep.subr.mxu0 0.0
  %1948 = vmatpush1.msra.mxu0 0.0
  %1949 = vmatprep.subr.mxu0 0.0
  %1950 = vmatpush1.msra.mxu0 0.0
  %1951 = vmatprep.subr.mxu0 0.0
  %1952 = vmatpush1.msra.mxu0 0.0
  %1953 = vmatprep.subr.mxu0 0.0
  %1954 = vmatpush1.msra.mxu0 0.0
  %1955 = vmatprep.subr.mxu0 0.0
  %1956 = vmatpush1.msra.mxu0 0.0
  %1957 = vmatprep.subr.mxu0 0.0
  %1958 = vmatpush1.msra.mxu0 0.0
  %1959 = vmatprep.subr.mxu0 0.0
  %1960 = vmatpush1.msra.mxu0 0.0
  %1961 = vmatprep.subr.mxu0 0.0
  %1962 = vmatpush1.msra.mxu0 0.0
  %1963 = vmatprep.subr.mxu0 0.0
  %1964 = vmatpush1.msra.mxu0 0.0
  %1965 = vmatprep.subr.mxu0 0.0
  %1966 = vmatpush1.msra.mxu0 0.0
  %1967 = vmatprep.subr.mxu0 0.0
  %1968 = vmatpush1.msra.mxu0 0.0
  %1969 = vmatprep.subr.mxu0 0.0
  %1970 = vmatpush1.msra.mxu0 0.0
  %1971 = vmatprep.subr.mxu0 0.0
  %1972 = vmatpush1.msra.mxu0 0.0
  %1973 = vmatprep.subr.mxu0 0.0
  %1974 = vmatpush1.msra.mxu0 0.0
  %1975 = vmatprep.subr.mxu0 0.0
  %1976 = vmatpush1.msra.mxu0 0.0
  %1977 = vmatprep.subr.mxu0 0.0
  %1978 = vmatpush1.msra.mxu0 0.0
  %1979 = vmatprep.subr.mxu0 0.0
  %1980 = vmatpush1.msra.mxu0 0.0
  %1981 = vmatprep.subr.mxu0 0.0
  %1982 = vmatpush1.msra.mxu0 0.0
  %1983 = vmatprep.subr.mxu0 0.0
  %1984 = vmatpush1.msra.mxu0 0.0
  %1985 = vmatprep.subr.mxu0 0.0
  %1986 = vmatpush1.msra.mxu0 0.0
  %1987 = vmatprep.subr.mxu0 0.0
  %1988 = vmatpush1.msra.mxu0 0.0
  %1989 = vmatprep.subr.mxu0 0.0
  %1990 = vmatpush1.msra.mxu0 0.0
  %1991 = vmatprep.subr.mxu0 0.0
  %1992 = vmatpush1.msra.mxu0 0.0
  %1993 = vmatprep.subr.mxu0 0.0
  %1994 = vmatpush1.msra.mxu0 0.0
  %1995 = vmatprep.subr.mxu0 0.0
  %1996 = vmatpush1.msra.mxu0 0.0
  %1997 = vmatprep.subr.mxu0 0.0
  %1998 = vmatpush1.msra.mxu0 0.0
  %1999 = vmatprep.subr.mxu0 0.0
  %2000 = vmatpush1.msra.mxu0 0.0
  %2001 = vmatprep.subr.mxu0 0.0
  %2002 = vmatpush1.msra.mxu0 0.0
  %2003 = vmatprep.mubr.f32.mxu0 0.0
  %v2004 = vand.u32 %v1360, 4294901760
  %2005 = vmatmul.mubr.f32.gmra.mrb[0].mxu0 %v2004
  %v2006 = vpop.f32.mrb[0].mxu0
  %v2007 = vadd.f32 %v1868, %v2006
  %v2008 = vpop.f32.mrb[0].mxu0
  %2009 = vmatprep.mubr.f32.mxu0 0.0
  %v2010 = vand.u32 %v1363, 4294901760
  %2011 = vmatmul.mubr.f32.gmra.mrb[0].mxu0 %v2010
  %v2012 = vpop.f32.mrb[0].mxu0
  %v2013 = vadd.f32 %v1876, %v2012
  %v2014 = vpop.f32.mrb[0].mxu0
  %2015 = vmatprep.mubr.f32.mxu0 0.0
  %v2016 = vand.u32 %v1366, 4294901760
  %2017 = vmatmul.mubr.f32.gmra.mrb[0].mxu0 %v2016
  %v2018 = vpop.f32.mrb[0].mxu0
  %v2019 = vadd.f32 %v1884, %v2018
  %v2020 = vpop.f32.mrb[0].mxu0
  %2021 = vmatprep.mubr.f32.mxu0 0.0
  %v2022 = vand.u32 %v1369, 4294901760
  %2023 = vmatmul.mubr.f32.gmra.mrb[0].mxu0 %v2022
  %v2024 = vpop.f32.mrb[0].mxu0
  %v2025 = vadd.f32 %v1892, %v2024
  %v2026 = vpop.f32.mrb[0].mxu0
  %2027 = vmatprep.mubr.f32.mxu0 0.0
  %v2028 = vand.u32 %v1372, 4294901760
  %2029 = vmatmul.mubr.f32.gmra.mrb[0].mxu0 %v2028
  %v2030 = vpop.f32.mrb[0].mxu0
  %v2031 = vadd.f32 %v1900, %v2030
  %v2032 = vpop.f32.mrb[0].mxu0
  %2033 = vmatprep.mubr.f32.mxu0 0.0
  %v2034 = vand.u32 %v1375, 4294901760
  %2035 = vmatmul.mubr.f32.gmra.mrb[0].mxu0 %v2034
  %v2036 = vpop.f32.mrb[0].mxu0
  %v2037 = vadd.f32 %v1908, %v2036
  %v2038 = vpop.f32.mrb[0].mxu0
  %2039 = vmatprep.mubr.f32.mxu0 0.0
  %v2040 = vand.u32 %v1378, 4294901760
  %2041 = vmatmul.mubr.f32.gmra.mrb[0].mxu0 %v2040
  %v2042 = vpop.f32.mrb[0].mxu0
  %v2043 = vadd.f32 %v1916, %v2042
  %v2044 = vpop.f32.mrb[0].mxu0
  %2045 = vmatprep.mubr.f32.mxu0 0.0
  %v2046 = vand.u32 %v1381, 4294901760
  %2047 = vmatmul.mubr.f32.gmra.mrb[0].mxu0 %v2046
  %v2048 = vpop.f32.mrb[0].mxu0
  %v2049 = vadd.f32 %v1924, %v2048
  %v2050 = vpop.f32.mrb[0].mxu0
  %2051 = vdwg.mxu0
  %2052 = vmatprep.subr.mxu0 0.0
  %v2053 = vand.u32 %v59, 4294901760
  %2054 = vmatpush1.msra.mxu0 %v2053
  %2055 = vmatprep.subr.mxu0 0.0
  %v2056 = vand.u32 %v60, 4294901760
  %2057 = vmatpush1.msra.mxu0 %v2056
  %2058 = vmatprep.subr.mxu0 0.0
  %v2059 = vand.u32 %v61, 4294901760
  %2060 = vmatpush1.msra.mxu0 %v2059
  %2061 = vmatprep.subr.mxu0 0.0
  %v2062 = vand.u32 %v62, 4294901760
  %2063 = vmatpush1.msra.mxu0 %v2062
  %2064 = vmatprep.subr.mxu0 0.0
  %2065 = vmatpush1.msra.mxu0 0.0
  %2066 = vmatprep.subr.mxu0 0.0
  %2067 = vmatpush1.msra.mxu0 0.0
  %2068 = vmatprep.subr.mxu0 0.0
  %2069 = vmatpush1.msra.mxu0 0.0
  %2070 = vmatprep.subr.mxu0 0.0
  %2071 = vmatpush1.msra.mxu0 0.0
  %2072 = vmatprep.subr.mxu0 0.0
  %2073 = vmatpush1.msra.mxu0 0.0
  %2074 = vmatprep.subr.mxu0 0.0
  %2075 = vmatpush1.msra.mxu0 0.0
  %2076 = vmatprep.subr.mxu0 0.0
  %2077 = vmatpush1.msra.mxu0 0.0
  %2078 = vmatprep.subr.mxu0 0.0
  %2079 = vmatpush1.msra.mxu0 0.0
  %2080 = vmatprep.subr.mxu0 0.0
  %2081 = vmatpush1.msra.mxu0 0.0
  %2082 = vmatprep.subr.mxu0 0.0
  %2083 = vmatpush1.msra.mxu0 0.0
  %2084 = vmatprep.subr.mxu0 0.0
  %2085 = vmatpush1.msra.mxu0 0.0
  %2086 = vmatprep.subr.mxu0 0.0
  %2087 = vmatpush1.msra.mxu0 0.0
  %2088 = vmatprep.subr.mxu0 0.0
  %2089 = vmatpush1.msra.mxu0 0.0
  %2090 = vmatprep.subr.mxu0 0.0
  %2091 = vmatpush1.msra.mxu0 0.0
  %2092 = vmatprep.subr.mxu0 0.0
  %2093 = vmatpush1.msra.mxu0 0.0
  %2094 = vmatprep.subr.mxu0 0.0
  %2095 = vmatpush1.msra.mxu0 0.0
  %2096 = vmatprep.subr.mxu0 0.0
  %2097 = vmatpush1.msra.mxu0 0.0
  %2098 = vmatprep.subr.mxu0 0.0
  %2099 = vmatpush1.msra.mxu0 0.0
  %2100 = vmatprep.subr.mxu0 0.0
  %2101 = vmatpush1.msra.mxu0 0.0
  %2102 = vmatprep.subr.mxu0 0.0
  %2103 = vmatpush1.msra.mxu0 0.0
  %2104 = vmatprep.subr.mxu0 0.0
  %2105 = vmatpush1.msra.mxu0 0.0
  %2106 = vmatprep.subr.mxu0 0.0
  %2107 = vmatpush1.msra.mxu0 0.0
  %2108 = vmatprep.subr.mxu0 0.0
  %2109 = vmatpush1.msra.mxu0 0.0
  %2110 = vmatprep.subr.mxu0 0.0
  %2111 = vmatpush1.msra.mxu0 0.0
  %2112 = vmatprep.subr.mxu0 0.0
  %2113 = vmatpush1.msra.mxu0 0.0
  %2114 = vmatprep.subr.mxu0 0.0
  %2115 = vmatpush1.msra.mxu0 0.0
  %2116 = vmatprep.subr.mxu0 0.0
  %2117 = vmatpush1.msra.mxu0 0.0
  %2118 = vmatprep.subr.mxu0 0.0
  %2119 = vmatpush1.msra.mxu0 0.0
  %2120 = vmatprep.mubr.f32.mxu0 0.0
  %v2121 = vand.u32 %v1360, 4294901760
  %2122 = vmatmul.mubr.f32.gmra.mrb[0].mxu0 %v2121
  %v2123 = vpop.f32.mrb[0].mxu0
  %v2124 = vadd.f32 %v2007, %v2123
  %v2125 = vpop.f32.mrb[0].mxu0
  %2126 = vmatprep.mubr.f32.mxu0 0.0
  %v2127 = vand.u32 %v1363, 4294901760
  %2128 = vmatmul.mubr.f32.gmra.mrb[0].mxu0 %v2127
  %v2129 = vpop.f32.mrb[0].mxu0
  %v2130 = vadd.f32 %v2013, %v2129
  %v2131 = vpop.f32.mrb[0].mxu0
  %2132 = vmatprep.mubr.f32.mxu0 0.0
  %v2133 = vand.u32 %v1366, 4294901760
  %2134 = vmatmul.mubr.f32.gmra.mrb[0].mxu0 %v2133
  %v2135 = vpop.f32.mrb[0].mxu0
  %v2136 = vadd.f32 %v2019, %v2135
  %v2137 = vpop.f32.mrb[0].mxu0
  %2138 = vmatprep.mubr.f32.mxu0 0.0
  %v2139 = vand.u32 %v1369, 4294901760
  %2140 = vmatmul.mubr.f32.gmra.mrb[0].mxu0 %v2139
  %v2141 = vpop.f32.mrb[0].mxu0
  %v2142 = vadd.f32 %v2025, %v2141
  %v2143 = vpop.f32.mrb[0].mxu0
  %2144 = vmatprep.mubr.f32.mxu0 0.0
  %v2145 = vand.u32 %v1372, 4294901760
  %2146 = vmatmul.mubr.f32.gmra.mrb[0].mxu0 %v2145
  %v2147 = vpop.f32.mrb[0].mxu0
  %v2148 = vadd.f32 %v2031, %v2147
  %v2149 = vpop.f32.mrb[0].mxu0
  %2150 = vmatprep.mubr.f32.mxu0 0.0
  %v2151 = vand.u32 %v1375, 4294901760
  %2152 = vmatmul.mubr.f32.gmra.mrb[0].mxu0 %v2151
  %v2153 = vpop.f32.mrb[0].mxu0
  %v2154 = vadd.f32 %v2037, %v2153
  %v2155 = vpop.f32.mrb[0].mxu0
  %2156 = vmatprep.mubr.f32.mxu0 0.0
  %v2157 = vand.u32 %v1378, 4294901760
  %2158 = vmatmul.mubr.f32.gmra.mrb[0].mxu0 %v2157
  %v2159 = vpop.f32.mrb[0].mxu0
  %v2160 = vadd.f32 %v2043, %v2159
  %v2161 = vpop.f32.mrb[0].mxu0
  %2162 = vmatprep.mubr.f32.mxu0 0.0
  %v2163 = vand.u32 %v1381, 4294901760
  %2164 = vmatmul.mubr.f32.gmra.mrb[0].mxu0 %v2163
  %v2165 = vpop.f32.mrb[0].mxu0
  %v2166 = vadd.f32 %v2049, %v2165
  %v2167 = vpop.f32.mrb[0].mxu0
  %2168 = vdwg.mxu0
  %v2169 = vmul.f32 %v2124, 0.25
  %v2170 = vmul.f32 %v2130, 0.25
  %v2171 = vmul.f32 %v2136, 0.25
  %v2172 = vmul.f32 %v2142, 0.25
  %v2173 = vmul.f32 %v2148, 0.25
  %v2174 = vmul.f32 %v2154, 0.25
  %v2175 = vmul.f32 %v2160, 0.25
  %v2176 = vmul.f32 %v2166, 0.25
  %v2177 = vmax.f32 %v2169, %v2171
  %v2178 = vmax.f32 %v2170, %v2172
  %v2179 = vsub.f32 %v2169, %v2177
  %v2180 = vsub.f32 %v2170, %v2178
  %v2181 = vmul.f32 %v2179, 1.442695
  %v2182 = vpow.pop %v2181
  %v2183 = vmul.f32 %v2180, 1.442695
  %v2184 = vpow.pop %v2183
  %v2185 = vsub.f32 %v2171, %v2177
  %v2186 = vsub.f32 %v2172, %v2178
  %v2187 = vmul.f32 %v2185, 1.442695
  %v2188 = vpow.pop %v2187
  %v2189 = vmul.f32 %v2186, 1.442695
  %v2190 = vpow.pop %v2189
  %v2191 = vadd.f32 %v2182, %v2188
  %v2192 = vadd.f32 %v2184, %v2190
  %v2193 = vrcp.pop %v2191
  %v2194 = vmul.f32 1.0, %v2193
  %v2195 = vrcp.pop %v2192
  %v2196 = vmul.f32 1.0, %v2195
  %v2197 = vmul.f32 %v2182, %v2194
  %v2198 = vmul.f32 %v2184, %v2196
  %v2199 = vmul.f32 %v2188, %v2194
  %v2200 = vmul.f32 %v2190, %v2196
  %v2201 = vmax.f32 %v2173, %v2175
  %v2202 = vmax.f32 %v2174, %v2176
  %v2203 = vsub.f32 %v2173, %v2201
  %v2204 = vsub.f32 %v2174, %v2202
  %v2205 = vmul.f32 %v2203, 1.442695
  %v2206 = vpow.pop %v2205
  %v2207 = vmul.f32 %v2204, 1.442695
  %v2208 = vpow.pop %v2207
  %v2209 = vsub.f32 %v2175, %v2201
  %v2210 = vsub.f32 %v2176, %v2202
  %v2211 = vmul.f32 %v2209, 1.442695
  %v2212 = vpow.pop %v2211
  %v2213 = vmul.f32 %v2210, 1.442695
  %v2214 = vpow.pop %v2213
  %v2215 = vadd.f32 %v2206, %v2212
  %v2216 = vadd.f32 %v2208, %v2214
  %v2217 = vrcp.pop %v2215
  %v2218 = vmul.f32 1.0, %v2217
  %v2219 = vrcp.pop %v2216
  %v2220 = vmul.f32 1.0, %v2219
  %v2221 = vmul.f32 %v2206, %v2218
  %v2222 = vmul.f32 %v2208, %v2220
  %v2223 = vmul.f32 %v2212, %v2218
  %v2224 = vmul.f32 %v2214, %v2220
  %2225 = vrot.lane.b32.xlu0 %v1314, 64
  %v2226 = vpop.permute.xlu0 %2225
  %2227 = vrot.lane.b32.xlu0 %v1320, 64
  %v2228 = vpop.permute.xlu0 %2227
  %v2231 = vmul.f32 %v2197, %v2226
  %v2232 = vmul.f32 %v2198, %v2228
  %2233 = vrot.lane.b32.xlu0 %v1326, 64
  %v2234 = vpop.permute.xlu0 %2233
  %2235 = vrot.lane.b32.xlu0 %v1332, 64
  %v2236 = vpop.permute.xlu0 %2235
  %v2239 = vmul.f32 %v2199, %v2234
  %v2240 = vmul.f32 %v2200, %v2236
  %v2241 = vadd.f32 %v2231, %v2239
  %v2242 = vadd.f32 %v2232, %v2240
  %v2243 = vmul.f32 %v2221, %v2226
  %v2244 = vmul.f32 %v2222, %v2228
  %v2245 = vmul.f32 %v2223, %v2234
  %v2246 = vmul.f32 %v2224, %v2236
  %v2247 = vadd.f32 %v2243, %v2245
  %v2248 = vadd.f32 %v2244, %v2246
  %v2249 = vld [vmem:[%s7] sm:$0xff]
  %v2250 = vld [vmem:[%s7 + $0x8] sm:$0xff]
  %v2251 = vld [vmem:[%s7 + $0x10] sm:$0xff]
  %v2252 = vld [vmem:[%s7 + $0x18] sm:$0xff]
  %v2253 = vld [vmem:[%s8] sm:$0x1]
  %v2255 = vlaneseq
  %v2256 = vshrl.u32 %v2255, 7
  %v2257 = vsub.s32 0, %v2256
  %v2258 = vrot.slane %v2253, %v2257
  %v2261 = vsel %vm80, %v2241, 0
  %v2264 = vsel %vm80, %v2242, 0
  %v2267 = vsel %vm80, %v2247, 0
  %v2270 = vsel %vm80, %v2248, 0
  %2272 = vmatprep.subr.mxu0 0.0
  %v2273 = vand.u32 %v2249, 4294901760
  %2274 = vmatpush1.msra.mxu0 %v2273
  %2275 = vmatprep.subr.mxu0 0.0
  %v2276 = vand.u32 %v2250, 4294901760
  %2277 = vmatpush1.msra.mxu0 %v2276
  %2278 = vmatprep.subr.mxu0 0.0
  %v2279 = vand.u32 %v2251, 4294901760
  %2280 = vmatpush1.msra.mxu0 %v2279
  %2281 = vmatprep.subr.mxu0 0.0
  %v2282 = vand.u32 %v2252, 4294901760
  %2283 = vmatpush1.msra.mxu0 %v2282
  %2284 = vmatprep.subr.mxu0 0.0
  %2285 = vmatpush1.msra.mxu0 0.0
  %2286 = vmatprep.subr.mxu0 0.0
  %2287 = vmatpush1.msra.mxu0 0.0
  %2288 = vmatprep.subr.mxu0 0.0
  %2289 = vmatpush1.msra.mxu0 0.0
  %2290 = vmatprep.subr.mxu0 0.0
  %2291 = vmatpush1.msra.mxu0 0.0
  %2292 = vmatprep.subr.mxu0 0.0
  %2293 = vmatpush1.msra.mxu0 0.0
  %2294 = vmatprep.subr.mxu0 0.0
  %2295 = vmatpush1.msra.mxu0 0.0
  %2296 = vmatprep.subr.mxu0 0.0
  %2297 = vmatpush1.msra.mxu0 0.0
  %2298 = vmatprep.subr.mxu0 0.0
  %2299 = vmatpush1.msra.mxu0 0.0
  %2300 = vmatprep.subr.mxu0 0.0
  %2301 = vmatpush1.msra.mxu0 0.0
  %2302 = vmatprep.subr.mxu0 0.0
  %2303 = vmatpush1.msra.mxu0 0.0
  %2304 = vmatprep.subr.mxu0 0.0
  %2305 = vmatpush1.msra.mxu0 0.0
  %2306 = vmatprep.subr.mxu0 0.0
  %2307 = vmatpush1.msra.mxu0 0.0
  %2308 = vmatprep.subr.mxu0 0.0
  %2309 = vmatpush1.msra.mxu0 0.0
  %2310 = vmatprep.subr.mxu0 0.0
  %2311 = vmatpush1.msra.mxu0 0.0
  %2312 = vmatprep.subr.mxu0 0.0
  %2313 = vmatpush1.msra.mxu0 0.0
  %2314 = vmatprep.subr.mxu0 0.0
  %2315 = vmatpush1.msra.mxu0 0.0
  %2316 = vmatprep.subr.mxu0 0.0
  %2317 = vmatpush1.msra.mxu0 0.0
  %2318 = vmatprep.subr.mxu0 0.0
  %2319 = vmatpush1.msra.mxu0 0.0
  %2320 = vmatprep.subr.mxu0 0.0
  %2321 = vmatpush1.msra.mxu0 0.0
  %2322 = vmatprep.subr.mxu0 0.0
  %2323 = vmatpush1.msra.mxu0 0.0
  %2324 = vmatprep.subr.mxu0 0.0
  %2325 = vmatpush1.msra.mxu0 0.0
  %2326 = vmatprep.subr.mxu0 0.0
  %2327 = vmatpush1.msra.mxu0 0.0
  %2328 = vmatprep.subr.mxu0 0.0
  %2329 = vmatpush1.msra.mxu0 0.0
  %2330 = vmatprep.subr.mxu0 0.0
  %2331 = vmatpush1.msra.mxu0 0.0
  %2332 = vmatprep.subr.mxu0 0.0
  %2333 = vmatpush1.msra.mxu0 0.0
  %2334 = vmatprep.subr.mxu0 0.0
  %2335 = vmatpush1.msra.mxu0 0.0
  %2336 = vmatprep.subr.mxu0 0.0
  %2337 = vmatpush1.msra.mxu0 0.0
  %2338 = vmatprep.subr.mxu0 0.0
  %2339 = vmatpush1.msra.mxu0 0.0
  %2340 = vmatprep.mubr.f32.mxu0 0.0
  %v2341 = vand.u32 %v2261, 4294901760
  %v2342 = vsub.f32 %v2261, %v2341
  %v2343 = vand.u32 %v2342, 4294901760
  %v2344 = vsub.f32 %v2342, %v2343
  %v2345 = vand.u32 %v2344, 4294901760
  %2346 = vmatmul.mubr.f32.gmra.mrb[0].mxu0 %v2345
  %v2347 = vpop.f32.mrb[0].mxu0
  %v2348 = vadd.f32 %v2258, %v2347
  %v2349 = vpop.f32.mrb[0].mxu0
  %2350 = vmatprep.mubr.f32.mxu0 0.0
  %v2351 = vand.u32 %v2264, 4294901760
  %v2352 = vsub.f32 %v2264, %v2351
  %v2353 = vand.u32 %v2352, 4294901760
  %v2354 = vsub.f32 %v2352, %v2353
  %v2355 = vand.u32 %v2354, 4294901760
  %2356 = vmatmul.mubr.f32.gmra.mrb[0].mxu0 %v2355
  %v2357 = vpop.f32.mrb[0].mxu0
  %v2358 = vadd.f32 %v2258, %v2357
  %v2359 = vpop.f32.mrb[0].mxu0
  %2360 = vmatprep.mubr.f32.mxu0 0.0
  %v2361 = vand.u32 %v2267, 4294901760
  %v2362 = vsub.f32 %v2267, %v2361
  %v2363 = vand.u32 %v2362, 4294901760
  %v2364 = vsub.f32 %v2362, %v2363
  %v2365 = vand.u32 %v2364, 4294901760
  %2366 = vmatmul.mubr.f32.gmra.mrb[0].mxu0 %v2365
  %v2367 = vpop.f32.mrb[0].mxu0
  %v2368 = vadd.f32 %v2258, %v2367
  %v2369 = vpop.f32.mrb[0].mxu0
  %2370 = vmatprep.mubr.f32.mxu0 0.0
  %v2371 = vand.u32 %v2270, 4294901760
  %v2372 = vsub.f32 %v2270, %v2371
  %v2373 = vand.u32 %v2372, 4294901760
  %v2374 = vsub.f32 %v2372, %v2373
  %v2375 = vand.u32 %v2374, 4294901760
  %2376 = vmatmul.mubr.f32.gmra.mrb[0].mxu0 %v2375
  %v2377 = vpop.f32.mrb[0].mxu0
  %v2378 = vadd.f32 %v2258, %v2377
  %v2379 = vpop.f32.mrb[0].mxu0
  %2380 = vdwg.mxu0
  %2381 = vmatprep.subr.mxu0 0.0
  %v2382 = vand.u32 %v2249, 4294901760
  %v2383 = vsub.f32 %v2249, %v2382
  %v2384 = vand.u32 %v2383, 4294901760
  %v2385 = vsub.f32 %v2383, %v2384
  %v2386 = vand.u32 %v2385, 4294901760
  %2387 = vmatpush1.msra.mxu0 %v2386
  %2388 = vmatprep.subr.mxu0 0.0
  %v2389 = vand.u32 %v2250, 4294901760
  %v2390 = vsub.f32 %v2250, %v2389
  %v2391 = vand.u32 %v2390, 4294901760
  %v2392 = vsub.f32 %v2390, %v2391
  %v2393 = vand.u32 %v2392, 4294901760
  %2394 = vmatpush1.msra.mxu0 %v2393
  %2395 = vmatprep.subr.mxu0 0.0
  %v2396 = vand.u32 %v2251, 4294901760
  %v2397 = vsub.f32 %v2251, %v2396
  %v2398 = vand.u32 %v2397, 4294901760
  %v2399 = vsub.f32 %v2397, %v2398
  %v2400 = vand.u32 %v2399, 4294901760
  %2401 = vmatpush1.msra.mxu0 %v2400
  %2402 = vmatprep.subr.mxu0 0.0
  %v2403 = vand.u32 %v2252, 4294901760
  %v2404 = vsub.f32 %v2252, %v2403
  %v2405 = vand.u32 %v2404, 4294901760
  %v2406 = vsub.f32 %v2404, %v2405
  %v2407 = vand.u32 %v2406, 4294901760
  %2408 = vmatpush1.msra.mxu0 %v2407
  %2409 = vmatprep.subr.mxu0 0.0
  %2410 = vmatpush1.msra.mxu0 0.0
  %2411 = vmatprep.subr.mxu0 0.0
  %2412 = vmatpush1.msra.mxu0 0.0
  %2413 = vmatprep.subr.mxu0 0.0
  %2414 = vmatpush1.msra.mxu0 0.0
  %2415 = vmatprep.subr.mxu0 0.0
  %2416 = vmatpush1.msra.mxu0 0.0
  %2417 = vmatprep.subr.mxu0 0.0
  %2418 = vmatpush1.msra.mxu0 0.0
  %2419 = vmatprep.subr.mxu0 0.0
  %2420 = vmatpush1.msra.mxu0 0.0
  %2421 = vmatprep.subr.mxu0 0.0
  %2422 = vmatpush1.msra.mxu0 0.0
  %2423 = vmatprep.subr.mxu0 0.0
  %2424 = vmatpush1.msra.mxu0 0.0
  %2425 = vmatprep.subr.mxu0 0.0
  %2426 = vmatpush1.msra.mxu0 0.0
  %2427 = vmatprep.subr.mxu0 0.0
  %2428 = vmatpush1.msra.mxu0 0.0
  %2429 = vmatprep.subr.mxu0 0.0
  %2430 = vmatpush1.msra.mxu0 0.0
  %2431 = vmatprep.subr.mxu0 0.0
  %2432 = vmatpush1.msra.mxu0 0.0
  %2433 = vmatprep.subr.mxu0 0.0
  %2434 = vmatpush1.msra.mxu0 0.0
  %2435 = vmatprep.subr.mxu0 0.0
  %2436 = vmatpush1.msra.mxu0 0.0
  %2437 = vmatprep.subr.mxu0 0.0
  %2438 = vmatpush1.msra.mxu0 0.0
  %2439 = vmatprep.subr.mxu0 0.0
  %2440 = vmatpush1.msra.mxu0 0.0
  %2441 = vmatprep.subr.mxu0 0.0
  %2442 = vmatpush1.msra.mxu0 0.0
  %2443 = vmatprep.subr.mxu0 0.0
  %2444 = vmatpush1.msra.mxu0 0.0
  %2445 = vmatprep.subr.mxu0 0.0
  %2446 = vmatpush1.msra.mxu0 0.0
  %2447 = vmatprep.subr.mxu0 0.0
  %2448 = vmatpush1.msra.mxu0 0.0
  %2449 = vmatprep.subr.mxu0 0.0
  %2450 = vmatpush1.msra.mxu0 0.0
  %2451 = vmatprep.subr.mxu0 0.0
  %2452 = vmatpush1.msra.mxu0 0.0
  %2453 = vmatprep.subr.mxu0 0.0
  %2454 = vmatpush1.msra.mxu0 0.0
  %2455 = vmatprep.subr.mxu0 0.0
  %2456 = vmatpush1.msra.mxu0 0.0
  %2457 = vmatprep.subr.mxu0 0.0
  %2458 = vmatpush1.msra.mxu0 0.0
  %2459 = vmatprep.subr.mxu0 0.0
  %2460 = vmatpush1.msra.mxu0 0.0
  %2461 = vmatprep.subr.mxu0 0.0
  %2462 = vmatpush1.msra.mxu0 0.0
  %2463 = vmatprep.subr.mxu0 0.0
  %2464 = vmatpush1.msra.mxu0 0.0
  %2465 = vmatprep.mubr.f32.mxu0 0.0
  %v2466 = vand.u32 %v2261, 4294901760
  %2467 = vmatmul.mubr.f32.gmra.mrb[0].mxu0 %v2466
  %v2468 = vpop.f32.mrb[0].mxu0
  %v2469 = vadd.f32 %v2348, %v2468
  %v2470 = vpop.f32.mrb[0].mxu0
  %2471 = vmatprep.mubr.f32.mxu0 0.0
  %v2472 = vand.u32 %v2264, 4294901760
  %2473 = vmatmul.mubr.f32.gmra.mrb[0].mxu0 %v2472
  %v2474 = vpop.f32.mrb[0].mxu0
  %v2475 = vadd.f32 %v2358, %v2474
  %v2476 = vpop.f32.mrb[0].mxu0
  %2477 = vmatprep.mubr.f32.mxu0 0.0
  %v2478 = vand.u32 %v2267, 4294901760
  %2479 = vmatmul.mubr.f32.gmra.mrb[0].mxu0 %v2478
  %v2480 = vpop.f32.mrb[0].mxu0
  %v2481 = vadd.f32 %v2368, %v2480
  %v2482 = vpop.f32.mrb[0].mxu0
  %2483 = vmatprep.mubr.f32.mxu0 0.0
  %v2484 = vand.u32 %v2270, 4294901760
  %2485 = vmatmul.mubr.f32.gmra.mrb[0].mxu0 %v2484
  %v2486 = vpop.f32.mrb[0].mxu0
  %v2487 = vadd.f32 %v2378, %v2486
  %v2488 = vpop.f32.mrb[0].mxu0
  %2489 = vdwg.mxu0
  %2490 = vmatprep.subr.mxu0 0.0
  %v2491 = vand.u32 %v2249, 4294901760
  %v2492 = vsub.f32 %v2249, %v2491
  %2493 = vmatpush1.msra.mxu0 %v2492
  %2494 = vmatprep.subr.mxu0 0.0
  %v2495 = vand.u32 %v2250, 4294901760
  %v2496 = vsub.f32 %v2250, %v2495
  %2497 = vmatpush1.msra.mxu0 %v2496
  %2498 = vmatprep.subr.mxu0 0.0
  %v2499 = vand.u32 %v2251, 4294901760
  %v2500 = vsub.f32 %v2251, %v2499
  %2501 = vmatpush1.msra.mxu0 %v2500
  %2502 = vmatprep.subr.mxu0 0.0
  %v2503 = vand.u32 %v2252, 4294901760
  %v2504 = vsub.f32 %v2252, %v2503
  %2505 = vmatpush1.msra.mxu0 %v2504
  %2506 = vmatprep.subr.mxu0 0.0
  %2507 = vmatpush1.msra.mxu0 0.0
  %2508 = vmatprep.subr.mxu0 0.0
  %2509 = vmatpush1.msra.mxu0 0.0
  %2510 = vmatprep.subr.mxu0 0.0
  %2511 = vmatpush1.msra.mxu0 0.0
  %2512 = vmatprep.subr.mxu0 0.0
  %2513 = vmatpush1.msra.mxu0 0.0
  %2514 = vmatprep.subr.mxu0 0.0
  %2515 = vmatpush1.msra.mxu0 0.0
  %2516 = vmatprep.subr.mxu0 0.0
  %2517 = vmatpush1.msra.mxu0 0.0
  %2518 = vmatprep.subr.mxu0 0.0
  %2519 = vmatpush1.msra.mxu0 0.0
  %2520 = vmatprep.subr.mxu0 0.0
  %2521 = vmatpush1.msra.mxu0 0.0
  %2522 = vmatprep.subr.mxu0 0.0
  %2523 = vmatpush1.msra.mxu0 0.0
  %2524 = vmatprep.subr.mxu0 0.0
  %2525 = vmatpush1.msra.mxu0 0.0
  %2526 = vmatprep.subr.mxu0 0.0
  %2527 = vmatpush1.msra.mxu0 0.0
  %2528 = vmatprep.subr.mxu0 0.0
  %2529 = vmatpush1.msra.mxu0 0.0
  %2530 = vmatprep.subr.mxu0 0.0
  %2531 = vmatpush1.msra.mxu0 0.0
  %2532 = vmatprep.subr.mxu0 0.0
  %2533 = vmatpush1.msra.mxu0 0.0
  %2534 = vmatprep.subr.mxu0 0.0
  %2535 = vmatpush1.msra.mxu0 0.0
  %2536 = vmatprep.subr.mxu0 0.0
  %2537 = vmatpush1.msra.mxu0 0.0
  %2538 = vmatprep.subr.mxu0 0.0
  %2539 = vmatpush1.msra.mxu0 0.0
  %2540 = vmatprep.subr.mxu0 0.0
  %2541 = vmatpush1.msra.mxu0 0.0
  %2542 = vmatprep.subr.mxu0 0.0
  %2543 = vmatpush1.msra.mxu0 0.0
  %2544 = vmatprep.subr.mxu0 0.0
  %2545 = vmatpush1.msra.mxu0 0.0
  %2546 = vmatprep.subr.mxu0 0.0
  %2547 = vmatpush1.msra.mxu0 0.0
  %2548 = vmatprep.subr.mxu0 0.0
  %2549 = vmatpush1.msra.mxu0 0.0
  %2550 = vmatprep.subr.mxu0 0.0
  %2551 = vmatpush1.msra.mxu0 0.0
  %2552 = vmatprep.subr.mxu0 0.0
  %2553 = vmatpush1.msra.mxu0 0.0
  %2554 = vmatprep.subr.mxu0 0.0
  %2555 = vmatpush1.msra.mxu0 0.0
  %2556 = vmatprep.subr.mxu0 0.0
  %2557 = vmatpush1.msra.mxu0 0.0
  %2558 = vmatprep.subr.mxu0 0.0
  %2559 = vmatpush1.msra.mxu0 0.0
  %2560 = vmatprep.subr.mxu0 0.0
  %2561 = vmatpush1.msra.mxu0 0.0
  %2562 = vmatprep.mubr.f32.mxu0 0.0
  %v2563 = vand.u32 %v2261, 4294901760
  %v2564 = vsub.f32 %v2261, %v2563
  %2565 = vmatmul.mubr.f32.gmra.mrb[0].mxu0 %v2564
  %v2566 = vpop.f32.mrb[0].mxu0
  %v2567 = vadd.f32 %v2469, %v2566
  %v2568 = vpop.f32.mrb[0].mxu0
  %2569 = vmatprep.mubr.f32.mxu0 0.0
  %v2570 = vand.u32 %v2264, 4294901760
  %v2571 = vsub.f32 %v2264, %v2570
  %2572 = vmatmul.mubr.f32.gmra.mrb[0].mxu0 %v2571
  %v2573 = vpop.f32.mrb[0].mxu0
  %v2574 = vadd.f32 %v2475, %v2573
  %v2575 = vpop.f32.mrb[0].mxu0
  %2576 = vmatprep.mubr.f32.mxu0 0.0
  %v2577 = vand.u32 %v2267, 4294901760
  %v2578 = vsub.f32 %v2267, %v2577
  %2579 = vmatmul.mubr.f32.gmra.mrb[0].mxu0 %v2578
  %v2580 = vpop.f32.mrb[0].mxu0
  %v2581 = vadd.f32 %v2481, %v2580
  %v2582 = vpop.f32.mrb[0].mxu0
  %2583 = vmatprep.mubr.f32.mxu0 0.0
  %v2584 = vand.u32 %v2270, 4294901760
  %v2585 = vsub.f32 %v2270, %v2584
  %2586 = vmatmul.mubr.f32.gmra.mrb[0].mxu0 %v2585
  %v2587 = vpop.f32.mrb[0].mxu0
  %v2588 = vadd.f32 %v2487, %v2587
  %v2589 = vpop.f32.mrb[0].mxu0
  %2590 = vdwg.mxu0
  %2591 = vmatprep.subr.mxu0 0.0
  %v2592 = vand.u32 %v2249, 4294901760
  %2593 = vmatpush1.msra.mxu0 %v2592
  %2594 = vmatprep.subr.mxu0 0.0
  %v2595 = vand.u32 %v2250, 4294901760
  %2596 = vmatpush1.msra.mxu0 %v2595
  %2597 = vmatprep.subr.mxu0 0.0
  %v2598 = vand.u32 %v2251, 4294901760
  %2599 = vmatpush1.msra.mxu0 %v2598
  %2600 = vmatprep.subr.mxu0 0.0
  %v2601 = vand.u32 %v2252, 4294901760
  %2602 = vmatpush1.msra.mxu0 %v2601
  %2603 = vmatprep.subr.mxu0 0.0
  %2604 = vmatpush1.msra.mxu0 0.0
  %2605 = vmatprep.subr.mxu0 0.0
  %2606 = vmatpush1.msra.mxu0 0.0
  %2607 = vmatprep.subr.mxu0 0.0
  %2608 = vmatpush1.msra.mxu0 0.0
  %2609 = vmatprep.subr.mxu0 0.0
  %2610 = vmatpush1.msra.mxu0 0.0
  %2611 = vmatprep.subr.mxu0 0.0
  %2612 = vmatpush1.msra.mxu0 0.0
  %2613 = vmatprep.subr.mxu0 0.0
  %2614 = vmatpush1.msra.mxu0 0.0
  %2615 = vmatprep.subr.mxu0 0.0
  %2616 = vmatpush1.msra.mxu0 0.0
  %2617 = vmatprep.subr.mxu0 0.0
  %2618 = vmatpush1.msra.mxu0 0.0
  %2619 = vmatprep.subr.mxu0 0.0
  %2620 = vmatpush1.msra.mxu0 0.0
  %2621 = vmatprep.subr.mxu0 0.0
  %2622 = vmatpush1.msra.mxu0 0.0
  %2623 = vmatprep.subr.mxu0 0.0
  %2624 = vmatpush1.msra.mxu0 0.0
  %2625 = vmatprep.subr.mxu0 0.0
  %2626 = vmatpush1.msra.mxu0 0.0
  %2627 = vmatprep.subr.mxu0 0.0
  %2628 = vmatpush1.msra.mxu0 0.0
  %2629 = vmatprep.subr.mxu0 0.0
  %2630 = vmatpush1.msra.mxu0 0.0
  %2631 = vmatprep.subr.mxu0 0.0
  %2632 = vmatpush1.msra.mxu0 0.0
  %2633 = vmatprep.subr.mxu0 0.0
  %2634 = vmatpush1.msra.mxu0 0.0
  %2635 = vmatprep.subr.mxu0 0.0
  %2636 = vmatpush1.msra.mxu0 0.0
  %2637 = vmatprep.subr.mxu0 0.0
  %2638 = vmatpush1.msra.mxu0 0.0
  %2639 = vmatprep.subr.mxu0 0.0
  %2640 = vmatpush1.msra.mxu0 0.0
  %2641 = vmatprep.subr.mxu0 0.0
  %2642 = vmatpush1.msra.mxu0 0.0
  %2643 = vmatprep.subr.mxu0 0.0
  %2644 = vmatpush1.msra.mxu0 0.0
  %2645 = vmatprep.subr.mxu0 0.0
  %2646 = vmatpush1.msra.mxu0 0.0
  %2647 = vmatprep.subr.mxu0 0.0
  %2648 = vmatpush1.msra.mxu0 0.0
  %2649 = vmatprep.subr.mxu0 0.0
  %2650 = vmatpush1.msra.mxu0 0.0
  %2651 = vmatprep.subr.mxu0 0.0
  %2652 = vmatpush1.msra.mxu0 0.0
  %2653 = vmatprep.subr.mxu0 0.0
  %2654 = vmatpush1.msra.mxu0 0.0
  %2655 = vmatprep.subr.mxu0 0.0
  %2656 = vmatpush1.msra.mxu0 0.0
  %2657 = vmatprep.subr.mxu0 0.0
  %2658 = vmatpush1.msra.mxu0 0.0
  %2659 = vmatprep.mubr.f32.mxu0 0.0
  %v2660 = vand.u32 %v2261, 4294901760
  %v2661 = vsub.f32 %v2261, %v2660
  %v2662 = vand.u32 %v2661, 4294901760
  %2663 = vmatmul.mubr.f32.gmra.mrb[0].mxu0 %v2662
  %v2664 = vpop.f32.mrb[0].mxu0
  %v2665 = vadd.f32 %v2567, %v2664
  %v2666 = vpop.f32.mrb[0].mxu0
  %2667 = vmatprep.mubr.f32.mxu0 0.0
  %v2668 = vand.u32 %v2264, 4294901760
  %v2669 = vsub.f32 %v2264, %v2668
  %v2670 = vand.u32 %v2669, 4294901760
  %2671 = vmatmul.mubr.f32.gmra.mrb[0].mxu0 %v2670
  %v2672 = vpop.f32.mrb[0].mxu0
  %v2673 = vadd.f32 %v2574, %v2672
  %v2674 = vpop.f32.mrb[0].mxu0
  %2675 = vmatprep.mubr.f32.mxu0 0.0
  %v2676 = vand.u32 %v2267, 4294901760
  %v2677 = vsub.f32 %v2267, %v2676
  %v2678 = vand.u32 %v2677, 4294901760
  %2679 = vmatmul.mubr.f32.gmra.mrb[0].mxu0 %v2678
  %v2680 = vpop.f32.mrb[0].mxu0
  %v2681 = vadd.f32 %v2581, %v2680
  %v2682 = vpop.f32.mrb[0].mxu0
  %2683 = vmatprep.mubr.f32.mxu0 0.0
  %v2684 = vand.u32 %v2270, 4294901760
  %v2685 = vsub.f32 %v2270, %v2684
  %v2686 = vand.u32 %v2685, 4294901760
  %2687 = vmatmul.mubr.f32.gmra.mrb[0].mxu0 %v2686
  %v2688 = vpop.f32.mrb[0].mxu0
  %v2689 = vadd.f32 %v2588, %v2688
  %v2690 = vpop.f32.mrb[0].mxu0
  %2691 = vdwg.mxu0
  %2692 = vmatprep.subr.mxu0 0.0
  %v2693 = vand.u32 %v2249, 4294901760
  %v2694 = vsub.f32 %v2249, %v2693
  %v2695 = vand.u32 %v2694, 4294901760
  %2696 = vmatpush1.msra.mxu0 %v2695
  %2697 = vmatprep.subr.mxu0 0.0
  %v2698 = vand.u32 %v2250, 4294901760
  %v2699 = vsub.f32 %v2250, %v2698
  %v2700 = vand.u32 %v2699, 4294901760
  %2701 = vmatpush1.msra.mxu0 %v2700
  %2702 = vmatprep.subr.mxu0 0.0
  %v2703 = vand.u32 %v2251, 4294901760
  %v2704 = vsub.f32 %v2251, %v2703
  %v2705 = vand.u32 %v2704, 4294901760
  %2706 = vmatpush1.msra.mxu0 %v2705
  %2707 = vmatprep.subr.mxu0 0.0
  %v2708 = vand.u32 %v2252, 4294901760
  %v2709 = vsub.f32 %v2252, %v2708
  %v2710 = vand.u32 %v2709, 4294901760
  %2711 = vmatpush1.msra.mxu0 %v2710
  %2712 = vmatprep.subr.mxu0 0.0
  %2713 = vmatpush1.msra.mxu0 0.0
  %2714 = vmatprep.subr.mxu0 0.0
  %2715 = vmatpush1.msra.mxu0 0.0
  %2716 = vmatprep.subr.mxu0 0.0
  %2717 = vmatpush1.msra.mxu0 0.0
  %2718 = vmatprep.subr.mxu0 0.0
  %2719 = vmatpush1.msra.mxu0 0.0
  %2720 = vmatprep.subr.mxu0 0.0
  %2721 = vmatpush1.msra.mxu0 0.0
  %2722 = vmatprep.subr.mxu0 0.0
  %2723 = vmatpush1.msra.mxu0 0.0
  %2724 = vmatprep.subr.mxu0 0.0
  %2725 = vmatpush1.msra.mxu0 0.0
  %2726 = vmatprep.subr.mxu0 0.0
  %2727 = vmatpush1.msra.mxu0 0.0
  %2728 = vmatprep.subr.mxu0 0.0
  %2729 = vmatpush1.msra.mxu0 0.0
  %2730 = vmatprep.subr.mxu0 0.0
  %2731 = vmatpush1.msra.mxu0 0.0
  %2732 = vmatprep.subr.mxu0 0.0
  %2733 = vmatpush1.msra.mxu0 0.0
  %2734 = vmatprep.subr.mxu0 0.0
  %2735 = vmatpush1.msra.mxu0 0.0
  %2736 = vmatprep.subr.mxu0 0.0
  %2737 = vmatpush1.msra.mxu0 0.0
  %2738 = vmatprep.subr.mxu0 0.0
  %2739 = vmatpush1.msra.mxu0 0.0
  %2740 = vmatprep.subr.mxu0 0.0
  %2741 = vmatpush1.msra.mxu0 0.0
  %2742 = vmatprep.subr.mxu0 0.0
  %2743 = vmatpush1.msra.mxu0 0.0
  %2744 = vmatprep.subr.mxu0 0.0
  %2745 = vmatpush1.msra.mxu0 0.0
  %2746 = vmatprep.subr.mxu0 0.0
  %2747 = vmatpush1.msra.mxu0 0.0
  %2748 = vmatprep.subr.mxu0 0.0
  %2749 = vmatpush1.msra.mxu0 0.0
  %2750 = vmatprep.subr.mxu0 0.0
  %2751 = vmatpush1.msra.mxu0 0.0
  %2752 = vmatprep.subr.mxu0 0.0
  %2753 = vmatpush1.msra.mxu0 0.0
  %2754 = vmatprep.subr.mxu0 0.0
  %2755 = vmatpush1.msra.mxu0 0.0
  %2756 = vmatprep.subr.mxu0 0.0
  %2757 = vmatpush1.msra.mxu0 0.0
  %2758 = vmatprep.subr.mxu0 0.0
  %2759 = vmatpush1.msra.mxu0 0.0
  %2760 = vmatprep.subr.mxu0 0.0
  %2761 = vmatpush1.msra.mxu0 0.0
  %2762 = vmatprep.subr.mxu0 0.0
  %2763 = vmatpush1.msra.mxu0 0.0
  %2764 = vmatprep.subr.mxu0 0.0
  %2765 = vmatpush1.msra.mxu0 0.0
  %2766 = vmatprep.subr.mxu0 0.0
  %2767 = vmatpush1.msra.mxu0 0.0
  %2768 = vmatprep.mubr.f32.mxu0 0.0
  %v2769 = vand.u32 %v2261, 4294901760
  %2770 = vmatmul.mubr.f32.gmra.mrb[0].mxu0 %v2769
  %v2771 = vpop.f32.mrb[0].mxu0
  %v2772 = vadd.f32 %v2665, %v2771
  %v2773 = vpop.f32.mrb[0].mxu0
  %2774 = vmatprep.mubr.f32.mxu0 0.0
  %v2775 = vand.u32 %v2264, 4294901760
  %2776 = vmatmul.mubr.f32.gmra.mrb[0].mxu0 %v2775
  %v2777 = vpop.f32.mrb[0].mxu0
  %v2778 = vadd.f32 %v2673, %v2777
  %v2779 = vpop.f32.mrb[0].mxu0
  %2780 = vmatprep.mubr.f32.mxu0 0.0
  %v2781 = vand.u32 %v2267, 4294901760
  %2782 = vmatmul.mubr.f32.gmra.mrb[0].mxu0 %v2781
  %v2783 = vpop.f32.mrb[0].mxu0
  %v2784 = vadd.f32 %v2681, %v2783
  %v2785 = vpop.f32.mrb[0].mxu0
  %2786 = vmatprep.mubr.f32.mxu0 0.0
  %v2787 = vand.u32 %v2270, 4294901760
  %2788 = vmatmul.mubr.f32.gmra.mrb[0].mxu0 %v2787
  %v2789 = vpop.f32.mrb[0].mxu0
  %v2790 = vadd.f32 %v2689, %v2789
  %v2791 = vpop.f32.mrb[0].mxu0
  %2792 = vdwg.mxu0
  %2793 = vmatprep.subr.mxu0 0.0
  %v2794 = vand.u32 %v2249, 4294901760
  %2795 = vmatpush1.msra.mxu0 %v2794
  %2796 = vmatprep.subr.mxu0 0.0
  %v2797 = vand.u32 %v2250, 4294901760
  %2798 = vmatpush1.msra.mxu0 %v2797
  %2799 = vmatprep.subr.mxu0 0.0
  %v2800 = vand.u32 %v2251, 4294901760
  %2801 = vmatpush1.msra.mxu0 %v2800
  %2802 = vmatprep.subr.mxu0 0.0
  %v2803 = vand.u32 %v2252, 4294901760
  %2804 = vmatpush1.msra.mxu0 %v2803
  %2805 = vmatprep.subr.mxu0 0.0
  %2806 = vmatpush1.msra.mxu0 0.0
  %2807 = vmatprep.subr.mxu0 0.0
  %2808 = vmatpush1.msra.mxu0 0.0
  %2809 = vmatprep.subr.mxu0 0.0
  %2810 = vmatpush1.msra.mxu0 0.0
  %2811 = vmatprep.subr.mxu0 0.0
  %2812 = vmatpush1.msra.mxu0 0.0
  %2813 = vmatprep.subr.mxu0 0.0
  %2814 = vmatpush1.msra.mxu0 0.0
  %2815 = vmatprep.subr.mxu0 0.0
  %2816 = vmatpush1.msra.mxu0 0.0
  %2817 = vmatprep.subr.mxu0 0.0
  %2818 = vmatpush1.msra.mxu0 0.0
  %2819 = vmatprep.subr.mxu0 0.0
  %2820 = vmatpush1.msra.mxu0 0.0
  %2821 = vmatprep.subr.mxu0 0.0
  %2822 = vmatpush1.msra.mxu0 0.0
  %2823 = vmatprep.subr.mxu0 0.0
  %2824 = vmatpush1.msra.mxu0 0.0
  %2825 = vmatprep.subr.mxu0 0.0
  %2826 = vmatpush1.msra.mxu0 0.0
  %2827 = vmatprep.subr.mxu0 0.0
  %2828 = vmatpush1.msra.mxu0 0.0
  %2829 = vmatprep.subr.mxu0 0.0
  %2830 = vmatpush1.msra.mxu0 0.0
  %2831 = vmatprep.subr.mxu0 0.0
  %2832 = vmatpush1.msra.mxu0 0.0
  %2833 = vmatprep.subr.mxu0 0.0
  %2834 = vmatpush1.msra.mxu0 0.0
  %2835 = vmatprep.subr.mxu0 0.0
  %2836 = vmatpush1.msra.mxu0 0.0
  %2837 = vmatprep.subr.mxu0 0.0
  %2838 = vmatpush1.msra.mxu0 0.0
  %2839 = vmatprep.subr.mxu0 0.0
  %2840 = vmatpush1.msra.mxu0 0.0
  %2841 = vmatprep.subr.mxu0 0.0
  %2842 = vmatpush1.msra.mxu0 0.0
  %2843 = vmatprep.subr.mxu0 0.0
  %2844 = vmatpush1.msra.mxu0 0.0
  %2845 = vmatprep.subr.mxu0 0.0
  %2846 = vmatpush1.msra.mxu0 0.0
  %2847 = vmatprep.subr.mxu0 0.0
  %2848 = vmatpush1.msra.mxu0 0.0
  %2849 = vmatprep.subr.mxu0 0.0
  %2850 = vmatpush1.msra.mxu0 0.0
  %2851 = vmatprep.subr.mxu0 0.0
  %2852 = vmatpush1.msra.mxu0 0.0
  %2853 = vmatprep.subr.mxu0 0.0
  %2854 = vmatpush1.msra.mxu0 0.0
  %2855 = vmatprep.subr.mxu0 0.0
  %2856 = vmatpush1.msra.mxu0 0.0
  %2857 = vmatprep.subr.mxu0 0.0
  %2858 = vmatpush1.msra.mxu0 0.0
  %2859 = vmatprep.subr.mxu0 0.0
  %2860 = vmatpush1.msra.mxu0 0.0
  %2861 = vmatprep.mubr.f32.mxu0 0.0
  %v2862 = vand.u32 %v2261, 4294901760
  %2863 = vmatmul.mubr.f32.gmra.mrb[0].mxu0 %v2862
  %v2864 = vpop.f32.mrb[0].mxu0
  %v2865 = vadd.f32 %v2772, %v2864
  %v2866 = vpop.f32.mrb[0].mxu0
  %2867 = vmatprep.mubr.f32.mxu0 0.0
  %v2868 = vand.u32 %v2264, 4294901760
  %2869 = vmatmul.mubr.f32.gmra.mrb[0].mxu0 %v2868
  %v2870 = vpop.f32.mrb[0].mxu0
  %v2871 = vadd.f32 %v2778, %v2870
  %v2872 = vpop.f32.mrb[0].mxu0
  %2873 = vmatprep.mubr.f32.mxu0 0.0
  %v2874 = vand.u32 %v2267, 4294901760
  %2875 = vmatmul.mubr.f32.gmra.mrb[0].mxu0 %v2874
  %v2876 = vpop.f32.mrb[0].mxu0
  %v2877 = vadd.f32 %v2784, %v2876
  %v2878 = vpop.f32.mrb[0].mxu0
  %2879 = vmatprep.mubr.f32.mxu0 0.0
  %v2880 = vand.u32 %v2270, 4294901760
  %2881 = vmatmul.mubr.f32.gmra.mrb[0].mxu0 %v2880
  %v2882 = vpop.f32.mrb[0].mxu0
  %v2883 = vadd.f32 %v2790, %v2882
  %v2884 = vpop.f32.mrb[0].mxu0
  %2885 = vdwg.mxu0
  %v2886 = vadd.f32 %v63, %v2865
  %v2887 = vadd.f32 %v64, %v2871
  %v2888 = vadd.f32 %v617, %v2877
  %v2889 = vadd.f32 %v618, %v2883
  %v2890 = vsel %vm80, %v2886, 0.0
  %2891 = vadd.xlane.f32.xlu0 %v2890
  %v2892 = vpop.xlane.xlu0 %2891
  %v2893 = vsel %vm80, %v2887, 0.0
  %2894 = vadd.xlane.f32.xlu0 %v2893
  %v2895 = vpop.xlane.xlu0 %2894
  %v2896 = vsel %vm80, %v2888, 0.0
  %2897 = vadd.xlane.f32.xlu0 %v2896
  %v2898 = vpop.xlane.xlu0 %2897
  %v2899 = vsel %vm80, %v2889, 0.0
  %2900 = vadd.xlane.f32.xlu0 %v2899
  %v2901 = vpop.xlane.xlu0 %2900
  %v2902 = vmul.f32 %v2892, %v637
  %v2903 = vmul.f32 %v2895, %v637
  %v2904 = vmul.f32 %v2898, %v637
  %v2905 = vmul.f32 %v2901, %v637
  %v2906 = vsub.f32 %v2886, %v2902
  %v2907 = vsub.f32 %v2887, %v2903
  %v2908 = vsub.f32 %v2888, %v2904
  %v2909 = vsub.f32 %v2889, %v2905
  %v2910 = vmul.f32 %v2906, %v2906
  %v2911 = vmul.f32 %v2907, %v2907
  %v2912 = vmul.f32 %v2908, %v2908
  %v2913 = vmul.f32 %v2909, %v2909
  %v2914 = vsel %vm80, %v2910, 0.0
  %2915 = vadd.xlane.f32.xlu0 %v2914
  %v2916 = vpop.xlane.xlu0 %2915
  %v2917 = vsel %vm80, %v2911, 0.0
  %2918 = vadd.xlane.f32.xlu0 %v2917
  %v2919 = vpop.xlane.xlu0 %2918
  %v2920 = vsel %vm80, %v2912, 0.0
  %2921 = vadd.xlane.f32.xlu0 %v2920
  %v2922 = vpop.xlane.xlu0 %2921
  %v2923 = vsel %vm80, %v2913, 0.0
  %2924 = vadd.xlane.f32.xlu0 %v2923
  %v2925 = vpop.xlane.xlu0 %2924
  %v2926 = vmul.f32 %v2916, %v637
  %v2927 = vmul.f32 %v2919, %v637
  %v2928 = vmul.f32 %v2922, %v637
  %v2929 = vmul.f32 %v2925, %v637
  %v2930 = vadd.f32 %v2926, 1e-05
  %v2931 = vadd.f32 %v2927, 1e-05
  %v2932 = vadd.f32 %v2928, 1e-05
  %v2933 = vadd.f32 %v2929, 1e-05
  %v2934 = vrsqrt.pop %v2930
  %v2935 = vrsqrt.pop %v2931
  %v2936 = vrsqrt.pop %v2932
  %v2937 = vrsqrt.pop %v2933
  %v2938 = vmul.f32 %v2906, %v2934
  %v2939 = vmul.f32 %v2907, %v2935
  %v2940 = vmul.f32 %v2908, %v2936
  %v2941 = vmul.f32 %v2909, %v2937
  %v2943 = vlaneseq
  %v2944 = vshrl.u32 %v2943, 7
  %v2945 = vsub.s32 0, %v2944
  %v2946 = vrot.slane %v622, %v2945
  %v2948 = vmul.f32 %v2938, %v2946
  %v2949 = vmul.f32 %v2939, %v2946
  %v2950 = vmul.f32 %v2940, %v2946
  %v2951 = vmul.f32 %v2941, %v2946
  %v2953 = vlaneseq
  %v2954 = vshrl.u32 %v2953, 7
  %v2955 = vsub.s32 0, %v2954
  %v2956 = vrot.slane %v624, %v2955
  %v2958 = vadd.f32 %v2948, %v2956
  %v2959 = vadd.f32 %v2949, %v2956
  %v2960 = vadd.f32 %v2950, %v2956
  %v2961 = vadd.f32 %v2951, %v2956
  %v2962 = vld [vmem:[%s9] sm:$0xff]
  %v2963 = vld [vmem:[%s9 + $0x8] sm:$0xff]
  %v2964 = vld [vmem:[%s9 + $0x10] sm:$0xff]
  %v2965 = vld [vmem:[%s9 + $0x18] sm:$0xff]
  %v2966 = vld [vmem:[%s10] sm:$0x1]
  %v2968 = vlaneseq
  %v2969 = vshrl.u32 %v2968, 7
  %v2970 = vsub.s32 0, %v2969
  %v2971 = vrot.slane %v2966, %v2970
  %v2974 = vsel %vm80, %v2958, 0
  %v2977 = vsel %vm80, %v2959, 0
  %v2980 = vsel %vm80, %v2960, 0
  %v2983 = vsel %vm80, %v2961, 0
  %2985 = vmatprep.subr.mxu0 0.0
  %v2986 = vand.u32 %v2962, 4294901760
  %2987 = vmatpush1.msra.mxu0 %v2986
  %2988 = vmatprep.subr.mxu0 0.0
  %v2989 = vand.u32 %v2963, 4294901760
  %2990 = vmatpush1.msra.mxu0 %v2989
  %2991 = vmatprep.subr.mxu0 0.0
  %v2992 = vand.u32 %v2964, 4294901760
  %2993 = vmatpush1.msra.mxu0 %v2992
  %2994 = vmatprep.subr.mxu0 0.0
  %v2995 = vand.u32 %v2965, 4294901760
  %2996 = vmatpush1.msra.mxu0 %v2995
  %2997 = vmatprep.subr.mxu0 0.0
  %2998 = vmatpush1.msra.mxu0 0.0
  %2999 = vmatprep.subr.mxu0 0.0
  %3000 = vmatpush1.msra.mxu0 0.0
  %3001 = vmatprep.subr.mxu0 0.0
  %3002 = vmatpush1.msra.mxu0 0.0
  %3003 = vmatprep.subr.mxu0 0.0
  %3004 = vmatpush1.msra.mxu0 0.0
  %3005 = vmatprep.subr.mxu0 0.0
  %3006 = vmatpush1.msra.mxu0 0.0
  %3007 = vmatprep.subr.mxu0 0.0
  %3008 = vmatpush1.msra.mxu0 0.0
  %3009 = vmatprep.subr.mxu0 0.0
  %3010 = vmatpush1.msra.mxu0 0.0
  %3011 = vmatprep.subr.mxu0 0.0
  %3012 = vmatpush1.msra.mxu0 0.0
  %3013 = vmatprep.subr.mxu0 0.0
  %3014 = vmatpush1.msra.mxu0 0.0
  %3015 = vmatprep.subr.mxu0 0.0
  %3016 = vmatpush1.msra.mxu0 0.0
  %3017 = vmatprep.subr.mxu0 0.0
  %3018 = vmatpush1.msra.mxu0 0.0
  %3019 = vmatprep.subr.mxu0 0.0
  %3020 = vmatpush1.msra.mxu0 0.0
  %3021 = vmatprep.subr.mxu0 0.0
  %3022 = vmatpush1.msra.mxu0 0.0
  %3023 = vmatprep.subr.mxu0 0.0
  %3024 = vmatpush1.msra.mxu0 0.0
  %3025 = vmatprep.subr.mxu0 0.0
  %3026 = vmatpush1.msra.mxu0 0.0
  %3027 = vmatprep.subr.mxu0 0.0
  %3028 = vmatpush1.msra.mxu0 0.0
  %3029 = vmatprep.subr.mxu0 0.0
  %3030 = vmatpush1.msra.mxu0 0.0
  %3031 = vmatprep.subr.mxu0 0.0
  %3032 = vmatpush1.msra.mxu0 0.0
  %3033 = vmatprep.subr.mxu0 0.0
  %3034 = vmatpush1.msra.mxu0 0.0
  %3035 = vmatprep.subr.mxu0 0.0
  %3036 = vmatpush1.msra.mxu0 0.0
  %3037 = vmatprep.subr.mxu0 0.0
  %3038 = vmatpush1.msra.mxu0 0.0
  %3039 = vmatprep.subr.mxu0 0.0
  %3040 = vmatpush1.msra.mxu0 0.0
  %3041 = vmatprep.subr.mxu0 0.0
  %3042 = vmatpush1.msra.mxu0 0.0
  %3043 = vmatprep.subr.mxu0 0.0
  %3044 = vmatpush1.msra.mxu0 0.0
  %3045 = vmatprep.subr.mxu0 0.0
  %3046 = vmatpush1.msra.mxu0 0.0
  %3047 = vmatprep.subr.mxu0 0.0
  %3048 = vmatpush1.msra.mxu0 0.0
  %3049 = vmatprep.subr.mxu0 0.0
  %3050 = vmatpush1.msra.mxu0 0.0
  %3051 = vmatprep.subr.mxu0 0.0
  %3052 = vmatpush1.msra.mxu0 0.0
  %3053 = vmatprep.mubr.f32.mxu0 0.0
  %v3054 = vand.u32 %v2974, 4294901760
  %v3055 = vsub.f32 %v2974, %v3054
  %v3056 = vand.u32 %v3055, 4294901760
  %v3057 = vsub.f32 %v3055, %v3056
  %v3058 = vand.u32 %v3057, 4294901760
  %3059 = vmatmul.mubr.f32.gmra.mrb[0].mxu0 %v3058
  %v3060 = vpop.f32.mrb[0].mxu0
  %v3061 = vadd.f32 %v2971, %v3060
  %v3062 = vpop.f32.mrb[0].mxu0
  %3063 = vmatprep.mubr.f32.mxu0 0.0
  %v3064 = vand.u32 %v2977, 4294901760
  %v3065 = vsub.f32 %v2977, %v3064
  %v3066 = vand.u32 %v3065, 4294901760
  %v3067 = vsub.f32 %v3065, %v3066
  %v3068 = vand.u32 %v3067, 4294901760
  %3069 = vmatmul.mubr.f32.gmra.mrb[0].mxu0 %v3068
  %v3070 = vpop.f32.mrb[0].mxu0
  %v3071 = vadd.f32 %v2971, %v3070
  %v3072 = vpop.f32.mrb[0].mxu0
  %3073 = vmatprep.mubr.f32.mxu0 0.0
  %v3074 = vand.u32 %v2980, 4294901760
  %v3075 = vsub.f32 %v2980, %v3074
  %v3076 = vand.u32 %v3075, 4294901760
  %v3077 = vsub.f32 %v3075, %v3076
  %v3078 = vand.u32 %v3077, 4294901760
  %3079 = vmatmul.mubr.f32.gmra.mrb[0].mxu0 %v3078
  %v3080 = vpop.f32.mrb[0].mxu0
  %v3081 = vadd.f32 %v2971, %v3080
  %v3082 = vpop.f32.mrb[0].mxu0
  %3083 = vmatprep.mubr.f32.mxu0 0.0
  %v3084 = vand.u32 %v2983, 4294901760
  %v3085 = vsub.f32 %v2983, %v3084
  %v3086 = vand.u32 %v3085, 4294901760
  %v3087 = vsub.f32 %v3085, %v3086
  %v3088 = vand.u32 %v3087, 4294901760
  %3089 = vmatmul.mubr.f32.gmra.mrb[0].mxu0 %v3088
  %v3090 = vpop.f32.mrb[0].mxu0
  %v3091 = vadd.f32 %v2971, %v3090
  %v3092 = vpop.f32.mrb[0].mxu0
  %3093 = vdwg.mxu0
  %3094 = vmatprep.subr.mxu0 0.0
  %v3095 = vand.u32 %v2962, 4294901760
  %v3096 = vsub.f32 %v2962, %v3095
  %v3097 = vand.u32 %v3096, 4294901760
  %v3098 = vsub.f32 %v3096, %v3097
  %v3099 = vand.u32 %v3098, 4294901760
  %3100 = vmatpush1.msra.mxu0 %v3099
  %3101 = vmatprep.subr.mxu0 0.0
  %v3102 = vand.u32 %v2963, 4294901760
  %v3103 = vsub.f32 %v2963, %v3102
  %v3104 = vand.u32 %v3103, 4294901760
  %v3105 = vsub.f32 %v3103, %v3104
  %v3106 = vand.u32 %v3105, 4294901760
  %3107 = vmatpush1.msra.mxu0 %v3106
  %3108 = vmatprep.subr.mxu0 0.0
  %v3109 = vand.u32 %v2964, 4294901760
  %v3110 = vsub.f32 %v2964, %v3109
  %v3111 = vand.u32 %v3110, 4294901760
  %v3112 = vsub.f32 %v3110, %v3111
  %v3113 = vand.u32 %v3112, 4294901760
  %3114 = vmatpush1.msra.mxu0 %v3113
  %3115 = vmatprep.subr.mxu0 0.0
  %v3116 = vand.u32 %v2965, 4294901760
  %v3117 = vsub.f32 %v2965, %v3116
  %v3118 = vand.u32 %v3117, 4294901760
  %v3119 = vsub.f32 %v3117, %v3118
  %v3120 = vand.u32 %v3119, 4294901760
  %3121 = vmatpush1.msra.mxu0 %v3120
  %3122 = vmatprep.subr.mxu0 0.0
  %3123 = vmatpush1.msra.mxu0 0.0
  %3124 = vmatprep.subr.mxu0 0.0
  %3125 = vmatpush1.msra.mxu0 0.0
  %3126 = vmatprep.subr.mxu0 0.0
  %3127 = vmatpush1.msra.mxu0 0.0
  %3128 = vmatprep.subr.mxu0 0.0
  %3129 = vmatpush1.msra.mxu0 0.0
  %3130 = vmatprep.subr.mxu0 0.0
  %3131 = vmatpush1.msra.mxu0 0.0
  %3132 = vmatprep.subr.mxu0 0.0
  %3133 = vmatpush1.msra.mxu0 0.0
  %3134 = vmatprep.subr.mxu0 0.0
  %3135 = vmatpush1.msra.mxu0 0.0
  %3136 = vmatprep.subr.mxu0 0.0
  %3137 = vmatpush1.msra.mxu0 0.0
  %3138 = vmatprep.subr.mxu0 0.0
  %3139 = vmatpush1.msra.mxu0 0.0
  %3140 = vmatprep.subr.mxu0 0.0
  %3141 = vmatpush1.msra.mxu0 0.0
  %3142 = vmatprep.subr.mxu0 0.0
  %3143 = vmatpush1.msra.mxu0 0.0
  %3144 = vmatprep.subr.mxu0 0.0
  %3145 = vmatpush1.msra.mxu0 0.0
  %3146 = vmatprep.subr.mxu0 0.0
  %3147 = vmatpush1.msra.mxu0 0.0
  %3148 = vmatprep.subr.mxu0 0.0
  %3149 = vmatpush1.msra.mxu0 0.0
  %3150 = vmatprep.subr.mxu0 0.0
  %3151 = vmatpush1.msra.mxu0 0.0
  %3152 = vmatprep.subr.mxu0 0.0
  %3153 = vmatpush1.msra.mxu0 0.0
  %3154 = vmatprep.subr.mxu0 0.0
  %3155 = vmatpush1.msra.mxu0 0.0
  %3156 = vmatprep.subr.mxu0 0.0
  %3157 = vmatpush1.msra.mxu0 0.0
  %3158 = vmatprep.subr.mxu0 0.0
  %3159 = vmatpush1.msra.mxu0 0.0
  %3160 = vmatprep.subr.mxu0 0.0
  %3161 = vmatpush1.msra.mxu0 0.0
  %3162 = vmatprep.subr.mxu0 0.0
  %3163 = vmatpush1.msra.mxu0 0.0
  %3164 = vmatprep.subr.mxu0 0.0
  %3165 = vmatpush1.msra.mxu0 0.0
  %3166 = vmatprep.subr.mxu0 0.0
  %3167 = vmatpush1.msra.mxu0 0.0
  %3168 = vmatprep.subr.mxu0 0.0
  %3169 = vmatpush1.msra.mxu0 0.0
  %3170 = vmatprep.subr.mxu0 0.0
  %3171 = vmatpush1.msra.mxu0 0.0
  %3172 = vmatprep.subr.mxu0 0.0
  %3173 = vmatpush1.msra.mxu0 0.0
  %3174 = vmatprep.subr.mxu0 0.0
  %3175 = vmatpush1.msra.mxu0 0.0
  %3176 = vmatprep.subr.mxu0 0.0
  %3177 = vmatpush1.msra.mxu0 0.0
  %3178 = vmatprep.mubr.f32.mxu0 0.0
  %v3179 = vand.u32 %v2974, 4294901760
  %3180 = vmatmul.mubr.f32.gmra.mrb[0].mxu0 %v3179
  %v3181 = vpop.f32.mrb[0].mxu0
  %v3182 = vadd.f32 %v3061, %v3181
  %v3183 = vpop.f32.mrb[0].mxu0
  %3184 = vmatprep.mubr.f32.mxu0 0.0
  %v3185 = vand.u32 %v2977, 4294901760
  %3186 = vmatmul.mubr.f32.gmra.mrb[0].mxu0 %v3185
  %v3187 = vpop.f32.mrb[0].mxu0
  %v3188 = vadd.f32 %v3071, %v3187
  %v3189 = vpop.f32.mrb[0].mxu0
  %3190 = vmatprep.mubr.f32.mxu0 0.0
  %v3191 = vand.u32 %v2980, 4294901760
  %3192 = vmatmul.mubr.f32.gmra.mrb[0].mxu0 %v3191
  %v3193 = vpop.f32.mrb[0].mxu0
  %v3194 = vadd.f32 %v3081, %v3193
  %v3195 = vpop.f32.mrb[0].mxu0
  %3196 = vmatprep.mubr.f32.mxu0 0.0
  %v3197 = vand.u32 %v2983, 4294901760
  %3198 = vmatmul.mubr.f32.gmra.mrb[0].mxu0 %v3197
  %v3199 = vpop.f32.mrb[0].mxu0
  %v3200 = vadd.f32 %v3091, %v3199
  %v3201 = vpop.f32.mrb[0].mxu0
  %3202 = vdwg.mxu0
  %3203 = vmatprep.subr.mxu0 0.0
  %v3204 = vand.u32 %v2962, 4294901760
  %v3205 = vsub.f32 %v2962, %v3204
  %3206 = vmatpush1.msra.mxu0 %v3205
  %3207 = vmatprep.subr.mxu0 0.0
  %v3208 = vand.u32 %v2963, 4294901760
  %v3209 = vsub.f32 %v2963, %v3208
  %3210 = vmatpush1.msra.mxu0 %v3209
  %3211 = vmatprep.subr.mxu0 0.0
  %v3212 = vand.u32 %v2964, 4294901760
  %v3213 = vsub.f32 %v2964, %v3212
  %3214 = vmatpush1.msra.mxu0 %v3213
  %3215 = vmatprep.subr.mxu0 0.0
  %v3216 = vand.u32 %v2965, 4294901760
  %v3217 = vsub.f32 %v2965, %v3216
  %3218 = vmatpush1.msra.mxu0 %v3217
  %3219 = vmatprep.subr.mxu0 0.0
  %3220 = vmatpush1.msra.mxu0 0.0
  %3221 = vmatprep.subr.mxu0 0.0
  %3222 = vmatpush1.msra.mxu0 0.0
  %3223 = vmatprep.subr.mxu0 0.0
  %3224 = vmatpush1.msra.mxu0 0.0
  %3225 = vmatprep.subr.mxu0 0.0
  %3226 = vmatpush1.msra.mxu0 0.0
  %3227 = vmatprep.subr.mxu0 0.0
  %3228 = vmatpush1.msra.mxu0 0.0
  %3229 = vmatprep.subr.mxu0 0.0
  %3230 = vmatpush1.msra.mxu0 0.0
  %3231 = vmatprep.subr.mxu0 0.0
  %3232 = vmatpush1.msra.mxu0 0.0
  %3233 = vmatprep.subr.mxu0 0.0
  %3234 = vmatpush1.msra.mxu0 0.0
  %3235 = vmatprep.subr.mxu0 0.0
  %3236 = vmatpush1.msra.mxu0 0.0
  %3237 = vmatprep.subr.mxu0 0.0
  %3238 = vmatpush1.msra.mxu0 0.0
  %3239 = vmatprep.subr.mxu0 0.0
  %3240 = vmatpush1.msra.mxu0 0.0
  %3241 = vmatprep.subr.mxu0 0.0
  %3242 = vmatpush1.msra.mxu0 0.0
  %3243 = vmatprep.subr.mxu0 0.0
  %3244 = vmatpush1.msra.mxu0 0.0
  %3245 = vmatprep.subr.mxu0 0.0
  %3246 = vmatpush1.msra.mxu0 0.0
  %3247 = vmatprep.subr.mxu0 0.0
  %3248 = vmatpush1.msra.mxu0 0.0
  %3249 = vmatprep.subr.mxu0 0.0
  %3250 = vmatpush1.msra.mxu0 0.0
  %3251 = vmatprep.subr.mxu0 0.0
  %3252 = vmatpush1.msra.mxu0 0.0
  %3253 = vmatprep.subr.mxu0 0.0
  %3254 = vmatpush1.msra.mxu0 0.0
  %3255 = vmatprep.subr.mxu0 0.0
  %3256 = vmatpush1.msra.mxu0 0.0
  %3257 = vmatprep.subr.mxu0 0.0
  %3258 = vmatpush1.msra.mxu0 0.0
  %3259 = vmatprep.subr.mxu0 0.0
  %3260 = vmatpush1.msra.mxu0 0.0
  %3261 = vmatprep.subr.mxu0 0.0
  %3262 = vmatpush1.msra.mxu0 0.0
  %3263 = vmatprep.subr.mxu0 0.0
  %3264 = vmatpush1.msra.mxu0 0.0
  %3265 = vmatprep.subr.mxu0 0.0
  %3266 = vmatpush1.msra.mxu0 0.0
  %3267 = vmatprep.subr.mxu0 0.0
  %3268 = vmatpush1.msra.mxu0 0.0
  %3269 = vmatprep.subr.mxu0 0.0
  %3270 = vmatpush1.msra.mxu0 0.0
  %3271 = vmatprep.subr.mxu0 0.0
  %3272 = vmatpush1.msra.mxu0 0.0
  %3273 = vmatprep.subr.mxu0 0.0
  %3274 = vmatpush1.msra.mxu0 0.0
  %3275 = vmatprep.mubr.f32.mxu0 0.0
  %v3276 = vand.u32 %v2974, 4294901760
  %v3277 = vsub.f32 %v2974, %v3276
  %3278 = vmatmul.mubr.f32.gmra.mrb[0].mxu0 %v3277
  %v3279 = vpop.f32.mrb[0].mxu0
  %v3280 = vadd.f32 %v3182, %v3279
  %v3281 = vpop.f32.mrb[0].mxu0
  %3282 = vmatprep.mubr.f32.mxu0 0.0
  %v3283 = vand.u32 %v2977, 4294901760
  %v3284 = vsub.f32 %v2977, %v3283
  %3285 = vmatmul.mubr.f32.gmra.mrb[0].mxu0 %v3284
  %v3286 = vpop.f32.mrb[0].mxu0
  %v3287 = vadd.f32 %v3188, %v3286
  %v3288 = vpop.f32.mrb[0].mxu0
  %3289 = vmatprep.mubr.f32.mxu0 0.0
  %v3290 = vand.u32 %v2980, 4294901760
  %v3291 = vsub.f32 %v2980, %v3290
  %3292 = vmatmul.mubr.f32.gmra.mrb[0].mxu0 %v3291
  %v3293 = vpop.f32.mrb[0].mxu0
  %v3294 = vadd.f32 %v3194, %v3293
  %v3295 = vpop.f32.mrb[0].mxu0
  %3296 = vmatprep.mubr.f32.mxu0 0.0
  %v3297 = vand.u32 %v2983, 4294901760
  %v3298 = vsub.f32 %v2983, %v3297
  %3299 = vmatmul.mubr.f32.gmra.mrb[0].mxu0 %v3298
  %v3300 = vpop.f32.mrb[0].mxu0
  %v3301 = vadd.f32 %v3200, %v3300
  %v3302 = vpop.f32.mrb[0].mxu0
  %3303 = vdwg.mxu0
  %3304 = vmatprep.subr.mxu0 0.0
  %v3305 = vand.u32 %v2962, 4294901760
  %3306 = vmatpush1.msra.mxu0 %v3305
  %3307 = vmatprep.subr.mxu0 0.0
  %v3308 = vand.u32 %v2963, 4294901760
  %3309 = vmatpush1.msra.mxu0 %v3308
  %3310 = vmatprep.subr.mxu0 0.0
  %v3311 = vand.u32 %v2964, 4294901760
  %3312 = vmatpush1.msra.mxu0 %v3311
  %3313 = vmatprep.subr.mxu0 0.0
  %v3314 = vand.u32 %v2965, 4294901760
  %3315 = vmatpush1.msra.mxu0 %v3314
  %3316 = vmatprep.subr.mxu0 0.0
  %3317 = vmatpush1.msra.mxu0 0.0
  %3318 = vmatprep.subr.mxu0 0.0
  %3319 = vmatpush1.msra.mxu0 0.0
  %3320 = vmatprep.subr.mxu0 0.0
  %3321 = vmatpush1.msra.mxu0 0.0
  %3322 = vmatprep.subr.mxu0 0.0
  %3323 = vmatpush1.msra.mxu0 0.0
  %3324 = vmatprep.subr.mxu0 0.0
  %3325 = vmatpush1.msra.mxu0 0.0
  %3326 = vmatprep.subr.mxu0 0.0
  %3327 = vmatpush1.msra.mxu0 0.0
  %3328 = vmatprep.subr.mxu0 0.0
  %3329 = vmatpush1.msra.mxu0 0.0
  %3330 = vmatprep.subr.mxu0 0.0
  %3331 = vmatpush1.msra.mxu0 0.0
  %3332 = vmatprep.subr.mxu0 0.0
  %3333 = vmatpush1.msra.mxu0 0.0
  %3334 = vmatprep.subr.mxu0 0.0
  %3335 = vmatpush1.msra.mxu0 0.0
  %3336 = vmatprep.subr.mxu0 0.0
  %3337 = vmatpush1.msra.mxu0 0.0
  %3338 = vmatprep.subr.mxu0 0.0
  %3339 = vmatpush1.msra.mxu0 0.0
  %3340 = vmatprep.subr.mxu0 0.0
  %3341 = vmatpush1.msra.mxu0 0.0
  %3342 = vmatprep.subr.mxu0 0.0
  %3343 = vmatpush1.msra.mxu0 0.0
  %3344 = vmatprep.subr.mxu0 0.0
  %3345 = vmatpush1.msra.mxu0 0.0
  %3346 = vmatprep.subr.mxu0 0.0
  %3347 = vmatpush1.msra.mxu0 0.0
  %3348 = vmatprep.subr.mxu0 0.0
  %3349 = vmatpush1.msra.mxu0 0.0
  %3350 = vmatprep.subr.mxu0 0.0
  %3351 = vmatpush1.msra.mxu0 0.0
  %3352 = vmatprep.subr.mxu0 0.0
  %3353 = vmatpush1.msra.mxu0 0.0
  %3354 = vmatprep.subr.mxu0 0.0
  %3355 = vmatpush1.msra.mxu0 0.0
  %3356 = vmatprep.subr.mxu0 0.0
  %3357 = vmatpush1.msra.mxu0 0.0
  %3358 = vmatprep.subr.mxu0 0.0
  %3359 = vmatpush1.msra.mxu0 0.0
  %3360 = vmatprep.subr.mxu0 0.0
  %3361 = vmatpush1.msra.mxu0 0.0
  %3362 = vmatprep.subr.mxu0 0.0
  %3363 = vmatpush1.msra.mxu0 0.0
  %3364 = vmatprep.subr.mxu0 0.0
  %3365 = vmatpush1.msra.mxu0 0.0
  %3366 = vmatprep.subr.mxu0 0.0
  %3367 = vmatpush1.msra.mxu0 0.0
  %3368 = vmatprep.subr.mxu0 0.0
  %3369 = vmatpush1.msra.mxu0 0.0
  %3370 = vmatprep.subr.mxu0 0.0
  %3371 = vmatpush1.msra.mxu0 0.0
  %3372 = vmatprep.mubr.f32.mxu0 0.0
  %v3373 = vand.u32 %v2974, 4294901760
  %v3374 = vsub.f32 %v2974, %v3373
  %v3375 = vand.u32 %v3374, 4294901760
  %3376 = vmatmul.mubr.f32.gmra.mrb[0].mxu0 %v3375
  %v3377 = vpop.f32.mrb[0].mxu0
  %v3378 = vadd.f32 %v3280, %v3377
  %v3379 = vpop.f32.mrb[0].mxu0
  %3380 = vmatprep.mubr.f32.mxu0 0.0
  %v3381 = vand.u32 %v2977, 4294901760
  %v3382 = vsub.f32 %v2977, %v3381
  %v3383 = vand.u32 %v3382, 4294901760
  %3384 = vmatmul.mubr.f32.gmra.mrb[0].mxu0 %v3383
  %v3385 = vpop.f32.mrb[0].mxu0
  %v3386 = vadd.f32 %v3287, %v3385
  %v3387 = vpop.f32.mrb[0].mxu0
  %3388 = vmatprep.mubr.f32.mxu0 0.0
  %v3389 = vand.u32 %v2980, 4294901760
  %v3390 = vsub.f32 %v2980, %v3389
  %v3391 = vand.u32 %v3390, 4294901760
  %3392 = vmatmul.mubr.f32.gmra.mrb[0].mxu0 %v3391
  %v3393 = vpop.f32.mrb[0].mxu0
  %v3394 = vadd.f32 %v3294, %v3393
  %v3395 = vpop.f32.mrb[0].mxu0
  %3396 = vmatprep.mubr.f32.mxu0 0.0
  %v3397 = vand.u32 %v2983, 4294901760
  %v3398 = vsub.f32 %v2983, %v3397
  %v3399 = vand.u32 %v3398, 4294901760
  %3400 = vmatmul.mubr.f32.gmra.mrb[0].mxu0 %v3399
  %v3401 = vpop.f32.mrb[0].mxu0
  %v3402 = vadd.f32 %v3301, %v3401
  %v3403 = vpop.f32.mrb[0].mxu0
  %3404 = vdwg.mxu0
  %3405 = vmatprep.subr.mxu0 0.0
  %v3406 = vand.u32 %v2962, 4294901760
  %v3407 = vsub.f32 %v2962, %v3406
  %v3408 = vand.u32 %v3407, 4294901760
  %3409 = vmatpush1.msra.mxu0 %v3408
  %3410 = vmatprep.subr.mxu0 0.0
  %v3411 = vand.u32 %v2963, 4294901760
  %v3412 = vsub.f32 %v2963, %v3411
  %v3413 = vand.u32 %v3412, 4294901760
  %3414 = vmatpush1.msra.mxu0 %v3413
  %3415 = vmatprep.subr.mxu0 0.0
  %v3416 = vand.u32 %v2964, 4294901760
  %v3417 = vsub.f32 %v2964, %v3416
  %v3418 = vand.u32 %v3417, 4294901760
  %3419 = vmatpush1.msra.mxu0 %v3418
  %3420 = vmatprep.subr.mxu0 0.0
  %v3421 = vand.u32 %v2965, 4294901760
  %v3422 = vsub.f32 %v2965, %v3421
  %v3423 = vand.u32 %v3422, 4294901760
  %3424 = vmatpush1.msra.mxu0 %v3423
  %3425 = vmatprep.subr.mxu0 0.0
  %3426 = vmatpush1.msra.mxu0 0.0
  %3427 = vmatprep.subr.mxu0 0.0
  %3428 = vmatpush1.msra.mxu0 0.0
  %3429 = vmatprep.subr.mxu0 0.0
  %3430 = vmatpush1.msra.mxu0 0.0
  %3431 = vmatprep.subr.mxu0 0.0
  %3432 = vmatpush1.msra.mxu0 0.0
  %3433 = vmatprep.subr.mxu0 0.0
  %3434 = vmatpush1.msra.mxu0 0.0
  %3435 = vmatprep.subr.mxu0 0.0
  %3436 = vmatpush1.msra.mxu0 0.0
  %3437 = vmatprep.subr.mxu0 0.0
  %3438 = vmatpush1.msra.mxu0 0.0
  %3439 = vmatprep.subr.mxu0 0.0
  %3440 = vmatpush1.msra.mxu0 0.0
  %3441 = vmatprep.subr.mxu0 0.0
  %3442 = vmatpush1.msra.mxu0 0.0
  %3443 = vmatprep.subr.mxu0 0.0
  %3444 = vmatpush1.msra.mxu0 0.0
  %3445 = vmatprep.subr.mxu0 0.0
  %3446 = vmatpush1.msra.mxu0 0.0
  %3447 = vmatprep.subr.mxu0 0.0
  %3448 = vmatpush1.msra.mxu0 0.0
  %3449 = vmatprep.subr.mxu0 0.0
  %3450 = vmatpush1.msra.mxu0 0.0
  %3451 = vmatprep.subr.mxu0 0.0
  %3452 = vmatpush1.msra.mxu0 0.0
  %3453 = vmatprep.subr.mxu0 0.0
  %3454 = vmatpush1.msra.mxu0 0.0
  %3455 = vmatprep.subr.mxu0 0.0
  %3456 = vmatpush1.msra.mxu0 0.0
  %3457 = vmatprep.subr.mxu0 0.0
  %3458 = vmatpush1.msra.mxu0 0.0
  %3459 = vmatprep.subr.mxu0 0.0
  %3460 = vmatpush1.msra.mxu0 0.0
  %3461 = vmatprep.subr.mxu0 0.0
  %3462 = vmatpush1.msra.mxu0 0.0
  %3463 = vmatprep.subr.mxu0 0.0
  %3464 = vmatpush1.msra.mxu0 0.0
  %3465 = vmatprep.subr.mxu0 0.0
  %3466 = vmatpush1.msra.mxu0 0.0
  %3467 = vmatprep.subr.mxu0 0.0
  %3468 = vmatpush1.msra.mxu0 0.0
  %3469 = vmatprep.subr.mxu0 0.0
  %3470 = vmatpush1.msra.mxu0 0.0
  %3471 = vmatprep.subr.mxu0 0.0
  %3472 = vmatpush1.msra.mxu0 0.0
  %3473 = vmatprep.subr.mxu0 0.0
  %3474 = vmatpush1.msra.mxu0 0.0
  %3475 = vmatprep.subr.mxu0 0.0
  %3476 = vmatpush1.msra.mxu0 0.0
  %3477 = vmatprep.subr.mxu0 0.0
  %3478 = vmatpush1.msra.mxu0 0.0
  %3479 = vmatprep.subr.mxu0 0.0
  %3480 = vmatpush1.msra.mxu0 0.0
  %3481 = vmatprep.mubr.f32.mxu0 0.0
  %v3482 = vand.u32 %v2974, 4294901760
  %3483 = vmatmul.mubr.f32.gmra.mrb[0].mxu0 %v3482
  %v3484 = vpop.f32.mrb[0].mxu0
  %v3485 = vadd.f32 %v3378, %v3484
  %v3486 = vpop.f32.mrb[0].mxu0
  %3487 = vmatprep.mubr.f32.mxu0 0.0
  %v3488 = vand.u32 %v2977, 4294901760
  %3489 = vmatmul.mubr.f32.gmra.mrb[0].mxu0 %v3488
  %v3490 = vpop.f32.mrb[0].mxu0
  %v3491 = vadd.f32 %v3386, %v3490
  %v3492 = vpop.f32.mrb[0].mxu0
  %3493 = vmatprep.mubr.f32.mxu0 0.0
  %v3494 = vand.u32 %v2980, 4294901760
  %3495 = vmatmul.mubr.f32.gmra.mrb[0].mxu0 %v3494
  %v3496 = vpop.f32.mrb[0].mxu0
  %v3497 = vadd.f32 %v3394, %v3496
  %v3498 = vpop.f32.mrb[0].mxu0
  %3499 = vmatprep.mubr.f32.mxu0 0.0
  %v3500 = vand.u32 %v2983, 4294901760
  %3501 = vmatmul.mubr.f32.gmra.mrb[0].mxu0 %v3500
  %v3502 = vpop.f32.mrb[0].mxu0
  %v3503 = vadd.f32 %v3402, %v3502
  %v3504 = vpop.f32.mrb[0].mxu0
  %3505 = vdwg.mxu0
  %3506 = vmatprep.subr.mxu0 0.0
  %v3507 = vand.u32 %v2962, 4294901760
  %3508 = vmatpush1.msra.mxu0 %v3507
  %3509 = vmatprep.subr.mxu0 0.0
  %v3510 = vand.u32 %v2963, 4294901760
  %3511 = vmatpush1.msra.mxu0 %v3510
  %3512 = vmatprep.subr.mxu0 0.0
  %v3513 = vand.u32 %v2964, 4294901760
  %3514 = vmatpush1.msra.mxu0 %v3513
  %3515 = vmatprep.subr.mxu0 0.0
  %v3516 = vand.u32 %v2965, 4294901760
  %3517 = vmatpush1.msra.mxu0 %v3516
  %3518 = vmatprep.subr.mxu0 0.0
  %3519 = vmatpush1.msra.mxu0 0.0
  %3520 = vmatprep.subr.mxu0 0.0
  %3521 = vmatpush1.msra.mxu0 0.0
  %3522 = vmatprep.subr.mxu0 0.0
  %3523 = vmatpush1.msra.mxu0 0.0
  %3524 = vmatprep.subr.mxu0 0.0
  %3525 = vmatpush1.msra.mxu0 0.0
  %3526 = vmatprep.subr.mxu0 0.0
  %3527 = vmatpush1.msra.mxu0 0.0
  %3528 = vmatprep.subr.mxu0 0.0
  %3529 = vmatpush1.msra.mxu0 0.0
  %3530 = vmatprep.subr.mxu0 0.0
  %3531 = vmatpush1.msra.mxu0 0.0
  %3532 = vmatprep.subr.mxu0 0.0
  %3533 = vmatpush1.msra.mxu0 0.0
  %3534 = vmatprep.subr.mxu0 0.0
  %3535 = vmatpush1.msra.mxu0 0.0
  %3536 = vmatprep.subr.mxu0 0.0
  %3537 = vmatpush1.msra.mxu0 0.0
  %3538 = vmatprep.subr.mxu0 0.0
  %3539 = vmatpush1.msra.mxu0 0.0
  %3540 = vmatprep.subr.mxu0 0.0
  %3541 = vmatpush1.msra.mxu0 0.0
  %3542 = vmatprep.subr.mxu0 0.0
  %3543 = vmatpush1.msra.mxu0 0.0
  %3544 = vmatprep.subr.mxu0 0.0
  %3545 = vmatpush1.msra.mxu0 0.0
  %3546 = vmatprep.subr.mxu0 0.0
  %3547 = vmatpush1.msra.mxu0 0.0
  %3548 = vmatprep.subr.mxu0 0.0
  %3549 = vmatpush1.msra.mxu0 0.0
  %3550 = vmatprep.subr.mxu0 0.0
  %3551 = vmatpush1.msra.mxu0 0.0
  %3552 = vmatprep.subr.mxu0 0.0
  %3553 = vmatpush1.msra.mxu0 0.0
  %3554 = vmatprep.subr.mxu0 0.0
  %3555 = vmatpush1.msra.mxu0 0.0
  %3556 = vmatprep.subr.mxu0 0.0
  %3557 = vmatpush1.msra.mxu0 0.0
  %3558 = vmatprep.subr.mxu0 0.0
  %3559 = vmatpush1.msra.mxu0 0.0
  %3560 = vmatprep.subr.mxu0 0.0
  %3561 = vmatpush1.msra.mxu0 0.0
  %3562 = vmatprep.subr.mxu0 0.0
  %3563 = vmatpush1.msra.mxu0 0.0
  %3564 = vmatprep.subr.mxu0 0.0
  %3565 = vmatpush1.msra.mxu0 0.0
  %3566 = vmatprep.subr.mxu0 0.0
  %3567 = vmatpush1.msra.mxu0 0.0
  %3568 = vmatprep.subr.mxu0 0.0
  %3569 = vmatpush1.msra.mxu0 0.0
  %3570 = vmatprep.subr.mxu0 0.0
  %3571 = vmatpush1.msra.mxu0 0.0
  %3572 = vmatprep.subr.mxu0 0.0
  %3573 = vmatpush1.msra.mxu0 0.0
  %3574 = vmatprep.mubr.f32.mxu0 0.0
  %v3575 = vand.u32 %v2974, 4294901760
  %3576 = vmatmul.mubr.f32.gmra.mrb[0].mxu0 %v3575
  %v3577 = vpop.f32.mrb[0].mxu0
  %v3578 = vadd.f32 %v3485, %v3577
  %v3579 = vpop.f32.mrb[0].mxu0
  %3580 = vmatprep.mubr.f32.mxu0 0.0
  %v3581 = vand.u32 %v2977, 4294901760
  %3582 = vmatmul.mubr.f32.gmra.mrb[0].mxu0 %v3581
  %v3583 = vpop.f32.mrb[0].mxu0
  %v3584 = vadd.f32 %v3491, %v3583
  %v3585 = vpop.f32.mrb[0].mxu0
  %3586 = vmatprep.mubr.f32.mxu0 0.0
  %v3587 = vand.u32 %v2980, 4294901760
  %3588 = vmatmul.mubr.f32.gmra.mrb[0].mxu0 %v3587
  %v3589 = vpop.f32.mrb[0].mxu0
  %v3590 = vadd.f32 %v3497, %v3589
  %v3591 = vpop.f32.mrb[0].mxu0
  %3592 = vmatprep.mubr.f32.mxu0 0.0
  %v3593 = vand.u32 %v2983, 4294901760
  %3594 = vmatmul.mubr.f32.gmra.mrb[0].mxu0 %v3593
  %v3595 = vpop.f32.mrb[0].mxu0
  %v3596 = vadd.f32 %v3503, %v3595
  %v3597 = vpop.f32.mrb[0].mxu0
  %3598 = vdwg.mxu0
  %v3599 = vmul.f32 %v3578, 0.5
  %v3600 = vmul.f32 %v3584, 0.5
  %v3601 = vmul.f32 %v3590, 0.5
  %v3602 = vmul.f32 %v3596, 0.5
  %v3603 = vmul.f32 %v3578, 0.70710677
  %v3604 = vmul.f32 %v3584, 0.70710677
  %v3605 = vmul.f32 %v3590, 0.70710677
  %v3606 = vmul.f32 %v3596, 0.70710677
  %v3607 = vand.u32 2147483647, %v3603
  %v3608 = vand.u32 2147483647, %v3604
  %v3609 = vand.u32 2147483647, %v3605
  %v3610 = vand.u32 2147483647, %v3606
  %v3611 = vmul.f32 %v3607, 0.3275911
  %v3612 = vmul.f32 %v3608, 0.3275911
  %v3613 = vmul.f32 %v3609, 0.3275911
  %v3614 = vmul.f32 %v3610, 0.3275911
  %v3615 = vadd.f32 %v3611, 1.0
  %v3616 = vadd.f32 %v3612, 1.0
  %v3617 = vadd.f32 %v3613, 1.0
  %v3618 = vadd.f32 %v3614, 1.0
  %v3619 = vrcp.pop %v3615
  %v3620 = vmul.f32 1.0, %v3619
  %v3621 = vrcp.pop %v3616
  %v3622 = vmul.f32 1.0, %v3621
  %v3623 = vrcp.pop %v3617
  %v3624 = vmul.f32 1.0, %v3623
  %v3625 = vrcp.pop %v3618
  %v3626 = vmul.f32 1.0, %v3625
  %v3627 = vmul.f32 %v3620, 1.0614054
  %v3628 = vmul.f32 %v3622, 1.0614054
  %v3629 = vmul.f32 %v3624, 1.0614054
  %v3630 = vmul.f32 %v3626, 1.0614054
  %v3631 = vadd.f32 %v3627, -1.4531521
  %v3632 = vadd.f32 %v3628, -1.4531521
  %v3633 = vadd.f32 %v3629, -1.4531521
  %v3634 = vadd.f32 %v3630, -1.4531521
  %v3635 = vmul.f32 %v3620, %v3631
  %v3636 = vmul.f32 %v3622, %v3632
  %v3637 = vmul.f32 %v3624, %v3633
  %v3638 = vmul.f32 %v3626, %v3634
  %v3639 = vadd.f32 %v3635, 1.4214138
  %v3640 = vadd.f32 %v3636, 1.4214138
  %v3641 = vadd.f32 %v3637, 1.4214138
  %v3642 = vadd.f32 %v3638, 1.4214138
  %v3643 = vmul.f32 %v3620, %v3639
  %v3644 = vmul.f32 %v3622, %v3640
  %v3645 = vmul.f32 %v3624, %v3641
  %v3646 = vmul.f32 %v3626, %v3642
  %v3647 = vadd.f32 %v3643, -0.28449672
  %v3648 = vadd.f32 %v3644, -0.28449672
  %v3649 = vadd.f32 %v3645, -0.28449672
  %v3650 = vadd.f32 %v3646, -0.28449672
  %v3651 = vmul.f32 %v3620, %v3647
  %v3652 = vmul.f32 %v3622, %v3648
  %v3653 = vmul.f32 %v3624, %v3649
  %v3654 = vmul.f32 %v3626, %v3650
  %v3655 = vadd.f32 %v3651, 0.2548296
  %v3656 = vadd.f32 %v3652, 0.2548296
  %v3657 = vadd.f32 %v3653, 0.2548296
  %v3658 = vadd.f32 %v3654, 0.2548296
  %v3659 = vmul.f32 %v3620, %v3655
  %v3660 = vmul.f32 %v3622, %v3656
  %v3661 = vmul.f32 %v3624, %v3657
  %v3662 = vmul.f32 %v3626, %v3658
  %v3663 = vsub.f32 0.0, %v3607
  %v3664 = vsub.f32 0.0, %v3608
  %v3665 = vsub.f32 0.0, %v3609
  %v3666 = vsub.f32 0.0, %v3610
  %v3667 = vmul.f32 %v3663, %v3607
  %v3668 = vmul.f32 %v3664, %v3608
  %v3669 = vmul.f32 %v3665, %v3609
  %v3670 = vmul.f32 %v3666, %v3610
  %v3671 = vmul.f32 %v3667, 1.442695
  %v3672 = vpow.pop %v3671
  %v3673 = vmul.f32 %v3668, 1.442695
  %v3674 = vpow.pop %v3673
  %v3675 = vmul.f32 %v3669, 1.442695
  %v3676 = vpow.pop %v3675
  %v3677 = vmul.f32 %v3670, 1.442695
  %v3678 = vpow.pop %v3677
  %v3679 = vmul.f32 %v3659, %v3672
  %v3680 = vmul.f32 %v3660, %v3674
  %v3681 = vmul.f32 %v3661, %v3676
  %v3682 = vmul.f32 %v3662, %v3678
  %v3683 = vsub.f32 1.0, %v3679
  %v3684 = vsub.f32 1.0, %v3680
  %v3685 = vsub.f32 1.0, %v3681
  %v3686 = vsub.f32 1.0, %v3682
  %vm3687 = vcmp.ge.f32.partialorder %v3603, 0.0
  %vm3688 = vcmp.ge.f32.partialorder %v3604, 0.0
  %vm3689 = vcmp.ge.f32.partialorder %v3605, 0.0
  %vm3690 = vcmp.ge.f32.partialorder %v3606, 0.0
  %v3691 = vsub.f32 0.0, %v3683
  %v3692 = vsub.f32 0.0, %v3684
  %v3693 = vsub.f32 0.0, %v3685
  %v3694 = vsub.f32 0.0, %v3686
  %v3695 = vsel %vm3687, %v3683, %v3691
  %v3696 = vsel %vm3688, %v3684, %v3692
  %v3697 = vsel %vm3689, %v3685, %v3693
  %v3698 = vsel %vm3690, %v3686, %v3694
  %v3699 = vadd.f32 %v3695, 1.0
  %v3700 = vadd.f32 %v3696, 1.0
  %v3701 = vadd.f32 %v3697, 1.0
  %v3702 = vadd.f32 %v3698, 1.0
  %v3703 = vmul.f32 %v3599, %v3699
  %v3704 = vmul.f32 %v3600, %v3700
  %v3705 = vmul.f32 %v3601, %v3701
  %v3706 = vmul.f32 %v3602, %v3702
  %v3707 = vld [vmem:[%s11] sm:$0xff]
  %v3708 = vld [vmem:[%s11 + $0x8] sm:$0xff]
  %v3709 = vld [vmem:[%s11 + $0x10] sm:$0xff]
  %v3710 = vld [vmem:[%s11 + $0x18] sm:$0xff]
  %v3711 = vld [vmem:[%s11 + $0x20] sm:$0xff]
  %v3712 = vld [vmem:[%s11 + $0x28] sm:$0xff]
  %v3713 = vld [vmem:[%s11 + $0x30] sm:$0xff]
  %v3714 = vld [vmem:[%s11 + $0x38] sm:$0xff]
  %v3715 = vld [vmem:[%s11 + $0x40] sm:$0xff]
  %v3716 = vld [vmem:[%s11 + $0x48] sm:$0xff]
  %v3717 = vld [vmem:[%s11 + $0x50] sm:$0xff]
  %v3718 = vld [vmem:[%s11 + $0x58] sm:$0xff]
  %v3719 = vld [vmem:[%s11 + $0x60] sm:$0xff]
  %v3720 = vld [vmem:[%s11 + $0x68] sm:$0xff]
  %v3721 = vld [vmem:[%s11 + $0x70] sm:$0xff]
  %v3722 = vld [vmem:[%s11 + $0x78] sm:$0xff]
  %v3723 = vld [vmem:[%s12] sm:$0x1]
  %v3725 = vlaneseq
  %v3726 = vshrl.u32 %v3725, 7
  %v3727 = vsub.s32 0, %v3726
  %v3728 = vrot.slane %v3723, %v3727
  %3730 = vmatprep.subr.mxu0 0.0
  %v3731 = vand.u32 %v3707, 4294901760
  %3732 = vmatpush1.msra.mxu0 %v3731
  %3733 = vmatprep.subr.mxu0 0.0
  %v3734 = vand.u32 %v3708, 4294901760
  %3735 = vmatpush1.msra.mxu0 %v3734
  %3736 = vmatprep.subr.mxu0 0.0
  %v3737 = vand.u32 %v3709, 4294901760
  %3738 = vmatpush1.msra.mxu0 %v3737
  %3739 = vmatprep.subr.mxu0 0.0
  %v3740 = vand.u32 %v3710, 4294901760
  %3741 = vmatpush1.msra.mxu0 %v3740
  %3742 = vmatprep.subr.mxu0 0.0
  %v3743 = vand.u32 %v3711, 4294901760
  %3744 = vmatpush1.msra.mxu0 %v3743
  %3745 = vmatprep.subr.mxu0 0.0
  %v3746 = vand.u32 %v3712, 4294901760
  %3747 = vmatpush1.msra.mxu0 %v3746
  %3748 = vmatprep.subr.mxu0 0.0
  %v3749 = vand.u32 %v3713, 4294901760
  %3750 = vmatpush1.msra.mxu0 %v3749
  %3751 = vmatprep.subr.mxu0 0.0
  %v3752 = vand.u32 %v3714, 4294901760
  %3753 = vmatpush1.msra.mxu0 %v3752
  %3754 = vmatprep.subr.mxu0 0.0
  %v3755 = vand.u32 %v3715, 4294901760
  %3756 = vmatpush1.msra.mxu0 %v3755
  %3757 = vmatprep.subr.mxu0 0.0
  %v3758 = vand.u32 %v3716, 4294901760
  %3759 = vmatpush1.msra.mxu0 %v3758
  %3760 = vmatprep.subr.mxu0 0.0
  %v3761 = vand.u32 %v3717, 4294901760
  %3762 = vmatpush1.msra.mxu0 %v3761
  %3763 = vmatprep.subr.mxu0 0.0
  %v3764 = vand.u32 %v3718, 4294901760
  %3765 = vmatpush1.msra.mxu0 %v3764
  %3766 = vmatprep.subr.mxu0 0.0
  %v3767 = vand.u32 %v3719, 4294901760
  %3768 = vmatpush1.msra.mxu0 %v3767
  %3769 = vmatprep.subr.mxu0 0.0
  %v3770 = vand.u32 %v3720, 4294901760
  %3771 = vmatpush1.msra.mxu0 %v3770
  %3772 = vmatprep.subr.mxu0 0.0
  %v3773 = vand.u32 %v3721, 4294901760
  %3774 = vmatpush1.msra.mxu0 %v3773
  %3775 = vmatprep.subr.mxu0 0.0
  %v3776 = vand.u32 %v3722, 4294901760
  %3777 = vmatpush1.msra.mxu0 %v3776
  %3778 = vmatprep.subr.mxu0 0.0
  %3779 = vmatpush1.msra.mxu0 0.0
  %3780 = vmatprep.subr.mxu0 0.0
  %3781 = vmatpush1.msra.mxu0 0.0
  %3782 = vmatprep.subr.mxu0 0.0
  %3783 = vmatpush1.msra.mxu0 0.0
  %3784 = vmatprep.subr.mxu0 0.0
  %3785 = vmatpush1.msra.mxu0 0.0
  %3786 = vmatprep.subr.mxu0 0.0
  %3787 = vmatpush1.msra.mxu0 0.0
  %3788 = vmatprep.subr.mxu0 0.0
  %3789 = vmatpush1.msra.mxu0 0.0
  %3790 = vmatprep.subr.mxu0 0.0
  %3791 = vmatpush1.msra.mxu0 0.0
  %3792 = vmatprep.subr.mxu0 0.0
  %3793 = vmatpush1.msra.mxu0 0.0
  %3794 = vmatprep.subr.mxu0 0.0
  %3795 = vmatpush1.msra.mxu0 0.0
  %3796 = vmatprep.subr.mxu0 0.0
  %3797 = vmatpush1.msra.mxu0 0.0
  %3798 = vmatprep.subr.mxu0 0.0
  %3799 = vmatpush1.msra.mxu0 0.0
  %3800 = vmatprep.subr.mxu0 0.0
  %3801 = vmatpush1.msra.mxu0 0.0
  %3802 = vmatprep.subr.mxu0 0.0
  %3803 = vmatpush1.msra.mxu0 0.0
  %3804 = vmatprep.subr.mxu0 0.0
  %3805 = vmatpush1.msra.mxu0 0.0
  %3806 = vmatprep.subr.mxu0 0.0
  %3807 = vmatpush1.msra.mxu0 0.0
  %3808 = vmatprep.subr.mxu0 0.0
  %3809 = vmatpush1.msra.mxu0 0.0
  %3810 = vmatprep.mubr.f32.mxu0 0.0
  %v3811 = vand.u32 %v3703, 4294901760
  %v3812 = vsub.f32 %v3703, %v3811
  %v3813 = vand.u32 %v3812, 4294901760
  %v3814 = vsub.f32 %v3812, %v3813
  %v3815 = vand.u32 %v3814, 4294901760
  %3816 = vmatmul.mubr.f32.gmra.mrb[0].mxu0 %v3815
  %v3817 = vpop.f32.mrb[0].mxu0
  %v3818 = vadd.f32 %v3728, %v3817
  %v3819 = vpop.f32.mrb[0].mxu0
  %3820 = vmatprep.mubr.f32.mxu0 0.0
  %v3821 = vand.u32 %v3704, 4294901760
  %v3822 = vsub.f32 %v3704, %v3821
  %v3823 = vand.u32 %v3822, 4294901760
  %v3824 = vsub.f32 %v3822, %v3823
  %v3825 = vand.u32 %v3824, 4294901760
  %3826 = vmatmul.mubr.f32.gmra.mrb[0].mxu0 %v3825
  %v3827 = vpop.f32.mrb[0].mxu0
  %v3828 = vadd.f32 %v3728, %v3827
  %v3829 = vpop.f32.mrb[0].mxu0
  %3830 = vmatprep.mubr.f32.mxu0 0.0
  %v3831 = vand.u32 %v3705, 4294901760
  %v3832 = vsub.f32 %v3705, %v3831
  %v3833 = vand.u32 %v3832, 4294901760
  %v3834 = vsub.f32 %v3832, %v3833
  %v3835 = vand.u32 %v3834, 4294901760
  %3836 = vmatmul.mubr.f32.gmra.mrb[0].mxu0 %v3835
  %v3837 = vpop.f32.mrb[0].mxu0
  %v3838 = vadd.f32 %v3728, %v3837
  %v3839 = vpop.f32.mrb[0].mxu0
  %3840 = vmatprep.mubr.f32.mxu0 0.0
  %v3841 = vand.u32 %v3706, 4294901760
  %v3842 = vsub.f32 %v3706, %v3841
  %v3843 = vand.u32 %v3842, 4294901760
  %v3844 = vsub.f32 %v3842, %v3843
  %v3845 = vand.u32 %v3844, 4294901760
  %3846 = vmatmul.mubr.f32.gmra.mrb[0].mxu0 %v3845
  %v3847 = vpop.f32.mrb[0].mxu0
  %v3848 = vadd.f32 %v3728, %v3847
  %v3849 = vpop.f32.mrb[0].mxu0
  %3850 = vdwg.mxu0
  %3851 = vmatprep.subr.mxu0 0.0
  %v3852 = vand.u32 %v3707, 4294901760
  %v3853 = vsub.f32 %v3707, %v3852
  %v3854 = vand.u32 %v3853, 4294901760
  %v3855 = vsub.f32 %v3853, %v3854
  %v3856 = vand.u32 %v3855, 4294901760
  %3857 = vmatpush1.msra.mxu0 %v3856
  %3858 = vmatprep.subr.mxu0 0.0
  %v3859 = vand.u32 %v3708, 4294901760
  %v3860 = vsub.f32 %v3708, %v3859
  %v3861 = vand.u32 %v3860, 4294901760
  %v3862 = vsub.f32 %v3860, %v3861
  %v3863 = vand.u32 %v3862, 4294901760
  %3864 = vmatpush1.msra.mxu0 %v3863
  %3865 = vmatprep.subr.mxu0 0.0
  %v3866 = vand.u32 %v3709, 4294901760
  %v3867 = vsub.f32 %v3709, %v3866
  %v3868 = vand.u32 %v3867, 4294901760
  %v3869 = vsub.f32 %v3867, %v3868
  %v3870 = vand.u32 %v3869, 4294901760
  %3871 = vmatpush1.msra.mxu0 %v3870
  %3872 = vmatprep.subr.mxu0 0.0
  %v3873 = vand.u32 %v3710, 4294901760
  %v3874 = vsub.f32 %v3710, %v3873
  %v3875 = vand.u32 %v3874, 4294901760
  %v3876 = vsub.f32 %v3874, %v3875
  %v3877 = vand.u32 %v3876, 4294901760
  %3878 = vmatpush1.msra.mxu0 %v3877
  %3879 = vmatprep.subr.mxu0 0.0
  %v3880 = vand.u32 %v3711, 4294901760
  %v3881 = vsub.f32 %v3711, %v3880
  %v3882 = vand.u32 %v3881, 4294901760
  %v3883 = vsub.f32 %v3881, %v3882
  %v3884 = vand.u32 %v3883, 4294901760
  %3885 = vmatpush1.msra.mxu0 %v3884
  %3886 = vmatprep.subr.mxu0 0.0
  %v3887 = vand.u32 %v3712, 4294901760
  %v3888 = vsub.f32 %v3712, %v3887
  %v3889 = vand.u32 %v3888, 4294901760
  %v3890 = vsub.f32 %v3888, %v3889
  %v3891 = vand.u32 %v3890, 4294901760
  %3892 = vmatpush1.msra.mxu0 %v3891
  %3893 = vmatprep.subr.mxu0 0.0
  %v3894 = vand.u32 %v3713, 4294901760
  %v3895 = vsub.f32 %v3713, %v3894
  %v3896 = vand.u32 %v3895, 4294901760
  %v3897 = vsub.f32 %v3895, %v3896
  %v3898 = vand.u32 %v3897, 4294901760
  %3899 = vmatpush1.msra.mxu0 %v3898
  %3900 = vmatprep.subr.mxu0 0.0
  %v3901 = vand.u32 %v3714, 4294901760
  %v3902 = vsub.f32 %v3714, %v3901
  %v3903 = vand.u32 %v3902, 4294901760
  %v3904 = vsub.f32 %v3902, %v3903
  %v3905 = vand.u32 %v3904, 4294901760
  %3906 = vmatpush1.msra.mxu0 %v3905
  %3907 = vmatprep.subr.mxu0 0.0
  %v3908 = vand.u32 %v3715, 4294901760
  %v3909 = vsub.f32 %v3715, %v3908
  %v3910 = vand.u32 %v3909, 4294901760
  %v3911 = vsub.f32 %v3909, %v3910
  %v3912 = vand.u32 %v3911, 4294901760
  %3913 = vmatpush1.msra.mxu0 %v3912
  %3914 = vmatprep.subr.mxu0 0.0
  %v3915 = vand.u32 %v3716, 4294901760
  %v3916 = vsub.f32 %v3716, %v3915
  %v3917 = vand.u32 %v3916, 4294901760
  %v3918 = vsub.f32 %v3916, %v3917
  %v3919 = vand.u32 %v3918, 4294901760
  %3920 = vmatpush1.msra.mxu0 %v3919
  %3921 = vmatprep.subr.mxu0 0.0
  %v3922 = vand.u32 %v3717, 4294901760
  %v3923 = vsub.f32 %v3717, %v3922
  %v3924 = vand.u32 %v3923, 4294901760
  %v3925 = vsub.f32 %v3923, %v3924
  %v3926 = vand.u32 %v3925, 4294901760
  %3927 = vmatpush1.msra.mxu0 %v3926
  %3928 = vmatprep.subr.mxu0 0.0
  %v3929 = vand.u32 %v3718, 4294901760
  %v3930 = vsub.f32 %v3718, %v3929
  %v3931 = vand.u32 %v3930, 4294901760
  %v3932 = vsub.f32 %v3930, %v3931
  %v3933 = vand.u32 %v3932, 4294901760
  %3934 = vmatpush1.msra.mxu0 %v3933
  %3935 = vmatprep.subr.mxu0 0.0
  %v3936 = vand.u32 %v3719, 4294901760
  %v3937 = vsub.f32 %v3719, %v3936
  %v3938 = vand.u32 %v3937, 4294901760
  %v3939 = vsub.f32 %v3937, %v3938
  %v3940 = vand.u32 %v3939, 4294901760
  %3941 = vmatpush1.msra.mxu0 %v3940
  %3942 = vmatprep.subr.mxu0 0.0
  %v3943 = vand.u32 %v3720, 4294901760
  %v3944 = vsub.f32 %v3720, %v3943
  %v3945 = vand.u32 %v3944, 4294901760
  %v3946 = vsub.f32 %v3944, %v3945
  %v3947 = vand.u32 %v3946, 4294901760
  %3948 = vmatpush1.msra.mxu0 %v3947
  %3949 = vmatprep.subr.mxu0 0.0
  %v3950 = vand.u32 %v3721, 4294901760
  %v3951 = vsub.f32 %v3721, %v3950
  %v3952 = vand.u32 %v3951, 4294901760
  %v3953 = vsub.f32 %v3951, %v3952
  %v3954 = vand.u32 %v3953, 4294901760
  %3955 = vmatpush1.msra.mxu0 %v3954
  %3956 = vmatprep.subr.mxu0 0.0
  %v3957 = vand.u32 %v3722, 4294901760
  %v3958 = vsub.f32 %v3722, %v3957
  %v3959 = vand.u32 %v3958, 4294901760
  %v3960 = vsub.f32 %v3958, %v3959
  %v3961 = vand.u32 %v3960, 4294901760
  %3962 = vmatpush1.msra.mxu0 %v3961
  %3963 = vmatprep.subr.mxu0 0.0
  %3964 = vmatpush1.msra.mxu0 0.0
  %3965 = vmatprep.subr.mxu0 0.0
  %3966 = vmatpush1.msra.mxu0 0.0
  %3967 = vmatprep.subr.mxu0 0.0
  %3968 = vmatpush1.msra.mxu0 0.0
  %3969 = vmatprep.subr.mxu0 0.0
  %3970 = vmatpush1.msra.mxu0 0.0
  %3971 = vmatprep.subr.mxu0 0.0
  %3972 = vmatpush1.msra.mxu0 0.0
  %3973 = vmatprep.subr.mxu0 0.0
  %3974 = vmatpush1.msra.mxu0 0.0
  %3975 = vmatprep.subr.mxu0 0.0
  %3976 = vmatpush1.msra.mxu0 0.0
  %3977 = vmatprep.subr.mxu0 0.0
  %3978 = vmatpush1.msra.mxu0 0.0
  %3979 = vmatprep.subr.mxu0 0.0
  %3980 = vmatpush1.msra.mxu0 0.0
  %3981 = vmatprep.subr.mxu0 0.0
  %3982 = vmatpush1.msra.mxu0 0.0
  %3983 = vmatprep.subr.mxu0 0.0
  %3984 = vmatpush1.msra.mxu0 0.0
  %3985 = vmatprep.subr.mxu0 0.0
  %3986 = vmatpush1.msra.mxu0 0.0
  %3987 = vmatprep.subr.mxu0 0.0
  %3988 = vmatpush1.msra.mxu0 0.0
  %3989 = vmatprep.subr.mxu0 0.0
  %3990 = vmatpush1.msra.mxu0 0.0
  %3991 = vmatprep.subr.mxu0 0.0
  %3992 = vmatpush1.msra.mxu0 0.0
  %3993 = vmatprep.subr.mxu0 0.0
  %3994 = vmatpush1.msra.mxu0 0.0
  %3995 = vmatprep.mubr.f32.mxu0 0.0
  %v3996 = vand.u32 %v3703, 4294901760
  %3997 = vmatmul.mubr.f32.gmra.mrb[0].mxu0 %v3996
  %v3998 = vpop.f32.mrb[0].mxu0
  %v3999 = vadd.f32 %v3818, %v3998
  %v4000 = vpop.f32.mrb[0].mxu0
  %4001 = vmatprep.mubr.f32.mxu0 0.0
  %v4002 = vand.u32 %v3704, 4294901760
  %4003 = vmatmul.mubr.f32.gmra.mrb[0].mxu0 %v4002
  %v4004 = vpop.f32.mrb[0].mxu0
  %v4005 = vadd.f32 %v3828, %v4004
  %v4006 = vpop.f32.mrb[0].mxu0
  %4007 = vmatprep.mubr.f32.mxu0 0.0
  %v4008 = vand.u32 %v3705, 4294901760
  %4009 = vmatmul.mubr.f32.gmra.mrb[0].mxu0 %v4008
  %v4010 = vpop.f32.mrb[0].mxu0
  %v4011 = vadd.f32 %v3838, %v4010
  %v4012 = vpop.f32.mrb[0].mxu0
  %4013 = vmatprep.mubr.f32.mxu0 0.0
  %v4014 = vand.u32 %v3706, 4294901760
  %4015 = vmatmul.mubr.f32.gmra.mrb[0].mxu0 %v4014
  %v4016 = vpop.f32.mrb[0].mxu0
  %v4017 = vadd.f32 %v3848, %v4016
  %v4018 = vpop.f32.mrb[0].mxu0
  %4019 = vdwg.mxu0
  %4020 = vmatprep.subr.mxu0 0.0
  %v4021 = vand.u32 %v3707, 4294901760
  %v4022 = vsub.f32 %v3707, %v4021
  %4023 = vmatpush1.msra.mxu0 %v4022
  %4024 = vmatprep.subr.mxu0 0.0
  %v4025 = vand.u32 %v3708, 4294901760
  %v4026 = vsub.f32 %v3708, %v4025
  %4027 = vmatpush1.msra.mxu0 %v4026
  %4028 = vmatprep.subr.mxu0 0.0
  %v4029 = vand.u32 %v3709, 4294901760
  %v4030 = vsub.f32 %v3709, %v4029
  %4031 = vmatpush1.msra.mxu0 %v4030
  %4032 = vmatprep.subr.mxu0 0.0
  %v4033 = vand.u32 %v3710, 4294901760
  %v4034 = vsub.f32 %v3710, %v4033
  %4035 = vmatpush1.msra.mxu0 %v4034
  %4036 = vmatprep.subr.mxu0 0.0
  %v4037 = vand.u32 %v3711, 4294901760
  %v4038 = vsub.f32 %v3711, %v4037
  %4039 = vmatpush1.msra.mxu0 %v4038
  %4040 = vmatprep.subr.mxu0 0.0
  %v4041 = vand.u32 %v3712, 4294901760
  %v4042 = vsub.f32 %v3712, %v4041
  %4043 = vmatpush1.msra.mxu0 %v4042
  %4044 = vmatprep.subr.mxu0 0.0
  %v4045 = vand.u32 %v3713, 4294901760
  %v4046 = vsub.f32 %v3713, %v4045
  %4047 = vmatpush1.msra.mxu0 %v4046
  %4048 = vmatprep.subr.mxu0 0.0
  %v4049 = vand.u32 %v3714, 4294901760
  %v4050 = vsub.f32 %v3714, %v4049
  %4051 = vmatpush1.msra.mxu0 %v4050
  %4052 = vmatprep.subr.mxu0 0.0
  %v4053 = vand.u32 %v3715, 4294901760
  %v4054 = vsub.f32 %v3715, %v4053
  %4055 = vmatpush1.msra.mxu0 %v4054
  %4056 = vmatprep.subr.mxu0 0.0
  %v4057 = vand.u32 %v3716, 4294901760
  %v4058 = vsub.f32 %v3716, %v4057
  %4059 = vmatpush1.msra.mxu0 %v4058
  %4060 = vmatprep.subr.mxu0 0.0
  %v4061 = vand.u32 %v3717, 4294901760
  %v4062 = vsub.f32 %v3717, %v4061
  %4063 = vmatpush1.msra.mxu0 %v4062
  %4064 = vmatprep.subr.mxu0 0.0
  %v4065 = vand.u32 %v3718, 4294901760
  %v4066 = vsub.f32 %v3718, %v4065
  %4067 = vmatpush1.msra.mxu0 %v4066
  %4068 = vmatprep.subr.mxu0 0.0
  %v4069 = vand.u32 %v3719, 4294901760
  %v4070 = vsub.f32 %v3719, %v4069
  %4071 = vmatpush1.msra.mxu0 %v4070
  %4072 = vmatprep.subr.mxu0 0.0
  %v4073 = vand.u32 %v3720, 4294901760
  %v4074 = vsub.f32 %v3720, %v4073
  %4075 = vmatpush1.msra.mxu0 %v4074
  %4076 = vmatprep.subr.mxu0 0.0
  %v4077 = vand.u32 %v3721, 4294901760
  %v4078 = vsub.f32 %v3721, %v4077
  %4079 = vmatpush1.msra.mxu0 %v4078
  %4080 = vmatprep.subr.mxu0 0.0
  %v4081 = vand.u32 %v3722, 4294901760
  %v4082 = vsub.f32 %v3722, %v4081
  %4083 = vmatpush1.msra.mxu0 %v4082
  %4084 = vmatprep.subr.mxu0 0.0
  %4085 = vmatpush1.msra.mxu0 0.0
  %4086 = vmatprep.subr.mxu0 0.0
  %4087 = vmatpush1.msra.mxu0 0.0
  %4088 = vmatprep.subr.mxu0 0.0
  %4089 = vmatpush1.msra.mxu0 0.0
  %4090 = vmatprep.subr.mxu0 0.0
  %4091 = vmatpush1.msra.mxu0 0.0
  %4092 = vmatprep.subr.mxu0 0.0
  %4093 = vmatpush1.msra.mxu0 0.0
  %4094 = vmatprep.subr.mxu0 0.0
  %4095 = vmatpush1.msra.mxu0 0.0
  %4096 = vmatprep.subr.mxu0 0.0
  %4097 = vmatpush1.msra.mxu0 0.0
  %4098 = vmatprep.subr.mxu0 0.0
  %4099 = vmatpush1.msra.mxu0 0.0
  %4100 = vmatprep.subr.mxu0 0.0
  %4101 = vmatpush1.msra.mxu0 0.0
  %4102 = vmatprep.subr.mxu0 0.0
  %4103 = vmatpush1.msra.mxu0 0.0
  %4104 = vmatprep.subr.mxu0 0.0
  %4105 = vmatpush1.msra.mxu0 0.0
  %4106 = vmatprep.subr.mxu0 0.0
  %4107 = vmatpush1.msra.mxu0 0.0
  %4108 = vmatprep.subr.mxu0 0.0
  %4109 = vmatpush1.msra.mxu0 0.0
  %4110 = vmatprep.subr.mxu0 0.0
  %4111 = vmatpush1.msra.mxu0 0.0
  %4112 = vmatprep.subr.mxu0 0.0
  %4113 = vmatpush1.msra.mxu0 0.0
  %4114 = vmatprep.subr.mxu0 0.0
  %4115 = vmatpush1.msra.mxu0 0.0
  %4116 = vmatprep.mubr.f32.mxu0 0.0
  %v4117 = vand.u32 %v3703, 4294901760
  %v4118 = vsub.f32 %v3703, %v4117
  %4119 = vmatmul.mubr.f32.gmra.mrb[0].mxu0 %v4118
  %v4120 = vpop.f32.mrb[0].mxu0
  %v4121 = vadd.f32 %v3999, %v4120
  %v4122 = vpop.f32.mrb[0].mxu0
  %4123 = vmatprep.mubr.f32.mxu0 0.0
  %v4124 = vand.u32 %v3704, 4294901760
  %v4125 = vsub.f32 %v3704, %v4124
  %4126 = vmatmul.mubr.f32.gmra.mrb[0].mxu0 %v4125
  %v4127 = vpop.f32.mrb[0].mxu0
  %v4128 = vadd.f32 %v4005, %v4127
  %v4129 = vpop.f32.mrb[0].mxu0
  %4130 = vmatprep.mubr.f32.mxu0 0.0
  %v4131 = vand.u32 %v3705, 4294901760
  %v4132 = vsub.f32 %v3705, %v4131
  %4133 = vmatmul.mubr.f32.gmra.mrb[0].mxu0 %v4132
  %v4134 = vpop.f32.mrb[0].mxu0
  %v4135 = vadd.f32 %v4011, %v4134
  %v4136 = vpop.f32.mrb[0].mxu0
  %4137 = vmatprep.mubr.f32.mxu0 0.0
  %v4138 = vand.u32 %v3706, 4294901760
  %v4139 = vsub.f32 %v3706, %v4138
  %4140 = vmatmul.mubr.f32.gmra.mrb[0].mxu0 %v4139
  %v4141 = vpop.f32.mrb[0].mxu0
  %v4142 = vadd.f32 %v4017, %v4141
  %v4143 = vpop.f32.mrb[0].mxu0
  %4144 = vdwg.mxu0
  %4145 = vmatprep.subr.mxu0 0.0
  %v4146 = vand.u32 %v3707, 4294901760
  %4147 = vmatpush1.msra.mxu0 %v4146
  %4148 = vmatprep.subr.mxu0 0.0
  %v4149 = vand.u32 %v3708, 4294901760
  %4150 = vmatpush1.msra.mxu0 %v4149
  %4151 = vmatprep.subr.mxu0 0.0
  %v4152 = vand.u32 %v3709, 4294901760
  %4153 = vmatpush1.msra.mxu0 %v4152
  %4154 = vmatprep.subr.mxu0 0.0
  %v4155 = vand.u32 %v3710, 4294901760
  %4156 = vmatpush1.msra.mxu0 %v4155
  %4157 = vmatprep.subr.mxu0 0.0
  %v4158 = vand.u32 %v3711, 4294901760
  %4159 = vmatpush1.msra.mxu0 %v4158
  %4160 = vmatprep.subr.mxu0 0.0
  %v4161 = vand.u32 %v3712, 4294901760
  %4162 = vmatpush1.msra.mxu0 %v4161
  %4163 = vmatprep.subr.mxu0 0.0
  %v4164 = vand.u32 %v3713, 4294901760
  %4165 = vmatpush1.msra.mxu0 %v4164
  %4166 = vmatprep.subr.mxu0 0.0
  %v4167 = vand.u32 %v3714, 4294901760
  %4168 = vmatpush1.msra.mxu0 %v4167
  %4169 = vmatprep.subr.mxu0 0.0
  %v4170 = vand.u32 %v3715, 4294901760
  %4171 = vmatpush1.msra.mxu0 %v4170
  %4172 = vmatprep.subr.mxu0 0.0
  %v4173 = vand.u32 %v3716, 4294901760
  %4174 = vmatpush1.msra.mxu0 %v4173
  %4175 = vmatprep.subr.mxu0 0.0
  %v4176 = vand.u32 %v3717, 4294901760
  %4177 = vmatpush1.msra.mxu0 %v4176
  %4178 = vmatprep.subr.mxu0 0.0
  %v4179 = vand.u32 %v3718, 4294901760
  %4180 = vmatpush1.msra.mxu0 %v4179
  %4181 = vmatprep.subr.mxu0 0.0
  %v4182 = vand.u32 %v3719, 4294901760
  %4183 = vmatpush1.msra.mxu0 %v4182
  %4184 = vmatprep.subr.mxu0 0.0
  %v4185 = vand.u32 %v3720, 4294901760
  %4186 = vmatpush1.msra.mxu0 %v4185
  %4187 = vmatprep.subr.mxu0 0.0
  %v4188 = vand.u32 %v3721, 4294901760
  %4189 = vmatpush1.msra.mxu0 %v4188
  %4190 = vmatprep.subr.mxu0 0.0
  %v4191 = vand.u32 %v3722, 4294901760
  %4192 = vmatpush1.msra.mxu0 %v4191
  %4193 = vmatprep.subr.mxu0 0.0
  %4194 = vmatpush1.msra.mxu0 0.0
  %4195 = vmatprep.subr.mxu0 0.0
  %4196 = vmatpush1.msra.mxu0 0.0
  %4197 = vmatprep.subr.mxu0 0.0
  %4198 = vmatpush1.msra.mxu0 0.0
  %4199 = vmatprep.subr.mxu0 0.0
  %4200 = vmatpush1.msra.mxu0 0.0
  %4201 = vmatprep.subr.mxu0 0.0
  %4202 = vmatpush1.msra.mxu0 0.0
  %4203 = vmatprep.subr.mxu0 0.0
  %4204 = vmatpush1.msra.mxu0 0.0
  %4205 = vmatprep.subr.mxu0 0.0
  %4206 = vmatpush1.msra.mxu0 0.0
  %4207 = vmatprep.subr.mxu0 0.0
  %4208 = vmatpush1.msra.mxu0 0.0
  %4209 = vmatprep.subr.mxu0 0.0
  %4210 = vmatpush1.msra.mxu0 0.0
  %4211 = vmatprep.subr.mxu0 0.0
  %4212 = vmatpush1.msra.mxu0 0.0
  %4213 = vmatprep.subr.mxu0 0.0
  %4214 = vmatpush1.msra.mxu0 0.0
  %4215 = vmatprep.subr.mxu0 0.0
  %4216 = vmatpush1.msra.mxu0 0.0
  %4217 = vmatprep.subr.mxu0 0.0
  %4218 = vmatpush1.msra.mxu0 0.0
  %4219 = vmatprep.subr.mxu0 0.0
  %4220 = vmatpush1.msra.mxu0 0.0
  %4221 = vmatprep.subr.mxu0 0.0
  %4222 = vmatpush1.msra.mxu0 0.0
  %4223 = vmatprep.subr.mxu0 0.0
  %4224 = vmatpush1.msra.mxu0 0.0
  %4225 = vmatprep.mubr.f32.mxu0 0.0
  %v4226 = vand.u32 %v3703, 4294901760
  %v4227 = vsub.f32 %v3703, %v4226
  %v4228 = vand.u32 %v4227, 4294901760
  %4229 = vmatmul.mubr.f32.gmra.mrb[0].mxu0 %v4228
  %v4230 = vpop.f32.mrb[0].mxu0
  %v4231 = vadd.f32 %v4121, %v4230
  %v4232 = vpop.f32.mrb[0].mxu0
  %4233 = vmatprep.mubr.f32.mxu0 0.0
  %v4234 = vand.u32 %v3704, 4294901760
  %v4235 = vsub.f32 %v3704, %v4234
  %v4236 = vand.u32 %v4235, 4294901760
  %4237 = vmatmul.mubr.f32.gmra.mrb[0].mxu0 %v4236
  %v4238 = vpop.f32.mrb[0].mxu0
  %v4239 = vadd.f32 %v4128, %v4238
  %v4240 = vpop.f32.mrb[0].mxu0
  %4241 = vmatprep.mubr.f32.mxu0 0.0
  %v4242 = vand.u32 %v3705, 4294901760
  %v4243 = vsub.f32 %v3705, %v4242
  %v4244 = vand.u32 %v4243, 4294901760
  %4245 = vmatmul.mubr.f32.gmra.mrb[0].mxu0 %v4244
  %v4246 = vpop.f32.mrb[0].mxu0
  %v4247 = vadd.f32 %v4135, %v4246
  %v4248 = vpop.f32.mrb[0].mxu0
  %4249 = vmatprep.mubr.f32.mxu0 0.0
  %v4250 = vand.u32 %v3706, 4294901760
  %v4251 = vsub.f32 %v3706, %v4250
  %v4252 = vand.u32 %v4251, 4294901760
  %4253 = vmatmul.mubr.f32.gmra.mrb[0].mxu0 %v4252
  %v4254 = vpop.f32.mrb[0].mxu0
  %v4255 = vadd.f32 %v4142, %v4254
  %v4256 = vpop.f32.mrb[0].mxu0
  %4257 = vdwg.mxu0
  %4258 = vmatprep.subr.mxu0 0.0
  %v4259 = vand.u32 %v3707, 4294901760
  %v4260 = vsub.f32 %v3707, %v4259
  %v4261 = vand.u32 %v4260, 4294901760
  %4262 = vmatpush1.msra.mxu0 %v4261
  %4263 = vmatprep.subr.mxu0 0.0
  %v4264 = vand.u32 %v3708, 4294901760
  %v4265 = vsub.f32 %v3708, %v4264
  %v4266 = vand.u32 %v4265, 4294901760
  %4267 = vmatpush1.msra.mxu0 %v4266
  %4268 = vmatprep.subr.mxu0 0.0
  %v4269 = vand.u32 %v3709, 4294901760
  %v4270 = vsub.f32 %v3709, %v4269
  %v4271 = vand.u32 %v4270, 4294901760
  %4272 = vmatpush1.msra.mxu0 %v4271
  %4273 = vmatprep.subr.mxu0 0.0
  %v4274 = vand.u32 %v3710, 4294901760
  %v4275 = vsub.f32 %v3710, %v4274
  %v4276 = vand.u32 %v4275, 4294901760
  %4277 = vmatpush1.msra.mxu0 %v4276
  %4278 = vmatprep.subr.mxu0 0.0
  %v4279 = vand.u32 %v3711, 4294901760
  %v4280 = vsub.f32 %v3711, %v4279
  %v4281 = vand.u32 %v4280, 4294901760
  %4282 = vmatpush1.msra.mxu0 %v4281
  %4283 = vmatprep.subr.mxu0 0.0
  %v4284 = vand.u32 %v3712, 4294901760
  %v4285 = vsub.f32 %v3712, %v4284
  %v4286 = vand.u32 %v4285, 4294901760
  %4287 = vmatpush1.msra.mxu0 %v4286
  %4288 = vmatprep.subr.mxu0 0.0
  %v4289 = vand.u32 %v3713, 4294901760
  %v4290 = vsub.f32 %v3713, %v4289
  %v4291 = vand.u32 %v4290, 4294901760
  %4292 = vmatpush1.msra.mxu0 %v4291
  %4293 = vmatprep.subr.mxu0 0.0
  %v4294 = vand.u32 %v3714, 4294901760
  %v4295 = vsub.f32 %v3714, %v4294
  %v4296 = vand.u32 %v4295, 4294901760
  %4297 = vmatpush1.msra.mxu0 %v4296
  %4298 = vmatprep.subr.mxu0 0.0
  %v4299 = vand.u32 %v3715, 4294901760
  %v4300 = vsub.f32 %v3715, %v4299
  %v4301 = vand.u32 %v4300, 4294901760
  %4302 = vmatpush1.msra.mxu0 %v4301
  %4303 = vmatprep.subr.mxu0 0.0
  %v4304 = vand.u32 %v3716, 4294901760
  %v4305 = vsub.f32 %v3716, %v4304
  %v4306 = vand.u32 %v4305, 4294901760
  %4307 = vmatpush1.msra.mxu0 %v4306
  %4308 = vmatprep.subr.mxu0 0.0
  %v4309 = vand.u32 %v3717, 4294901760
  %v4310 = vsub.f32 %v3717, %v4309
  %v4311 = vand.u32 %v4310, 4294901760
  %4312 = vmatpush1.msra.mxu0 %v4311
  %4313 = vmatprep.subr.mxu0 0.0
  %v4314 = vand.u32 %v3718, 4294901760
  %v4315 = vsub.f32 %v3718, %v4314
  %v4316 = vand.u32 %v4315, 4294901760
  %4317 = vmatpush1.msra.mxu0 %v4316
  %4318 = vmatprep.subr.mxu0 0.0
  %v4319 = vand.u32 %v3719, 4294901760
  %v4320 = vsub.f32 %v3719, %v4319
  %v4321 = vand.u32 %v4320, 4294901760
  %4322 = vmatpush1.msra.mxu0 %v4321
  %4323 = vmatprep.subr.mxu0 0.0
  %v4324 = vand.u32 %v3720, 4294901760
  %v4325 = vsub.f32 %v3720, %v4324
  %v4326 = vand.u32 %v4325, 4294901760
  %4327 = vmatpush1.msra.mxu0 %v4326
  %4328 = vmatprep.subr.mxu0 0.0
  %v4329 = vand.u32 %v3721, 4294901760
  %v4330 = vsub.f32 %v3721, %v4329
  %v4331 = vand.u32 %v4330, 4294901760
  %4332 = vmatpush1.msra.mxu0 %v4331
  %4333 = vmatprep.subr.mxu0 0.0
  %v4334 = vand.u32 %v3722, 4294901760
  %v4335 = vsub.f32 %v3722, %v4334
  %v4336 = vand.u32 %v4335, 4294901760
  %4337 = vmatpush1.msra.mxu0 %v4336
  %4338 = vmatprep.subr.mxu0 0.0
  %4339 = vmatpush1.msra.mxu0 0.0
  %4340 = vmatprep.subr.mxu0 0.0
  %4341 = vmatpush1.msra.mxu0 0.0
  %4342 = vmatprep.subr.mxu0 0.0
  %4343 = vmatpush1.msra.mxu0 0.0
  %4344 = vmatprep.subr.mxu0 0.0
  %4345 = vmatpush1.msra.mxu0 0.0
  %4346 = vmatprep.subr.mxu0 0.0
  %4347 = vmatpush1.msra.mxu0 0.0
  %4348 = vmatprep.subr.mxu0 0.0
  %4349 = vmatpush1.msra.mxu0 0.0
  %4350 = vmatprep.subr.mxu0 0.0
  %4351 = vmatpush1.msra.mxu0 0.0
  %4352 = vmatprep.subr.mxu0 0.0
  %4353 = vmatpush1.msra.mxu0 0.0
  %4354 = vmatprep.subr.mxu0 0.0
  %4355 = vmatpush1.msra.mxu0 0.0
  %4356 = vmatprep.subr.mxu0 0.0
  %4357 = vmatpush1.msra.mxu0 0.0
  %4358 = vmatprep.subr.mxu0 0.0
  %4359 = vmatpush1.msra.mxu0 0.0
  %4360 = vmatprep.subr.mxu0 0.0
  %4361 = vmatpush1.msra.mxu0 0.0
  %4362 = vmatprep.subr.mxu0 0.0
  %4363 = vmatpush1.msra.mxu0 0.0
  %4364 = vmatprep.subr.mxu0 0.0
  %4365 = vmatpush1.msra.mxu0 0.0
  %4366 = vmatprep.subr.mxu0 0.0
  %4367 = vmatpush1.msra.mxu0 0.0
  %4368 = vmatprep.subr.mxu0 0.0
  %4369 = vmatpush1.msra.mxu0 0.0
  %4370 = vmatprep.mubr.f32.mxu0 0.0
  %v4371 = vand.u32 %v3703, 4294901760
  %4372 = vmatmul.mubr.f32.gmra.mrb[0].mxu0 %v4371
  %v4373 = vpop.f32.mrb[0].mxu0
  %v4374 = vadd.f32 %v4231, %v4373
  %v4375 = vpop.f32.mrb[0].mxu0
  %4376 = vmatprep.mubr.f32.mxu0 0.0
  %v4377 = vand.u32 %v3704, 4294901760
  %4378 = vmatmul.mubr.f32.gmra.mrb[0].mxu0 %v4377
  %v4379 = vpop.f32.mrb[0].mxu0
  %v4380 = vadd.f32 %v4239, %v4379
  %v4381 = vpop.f32.mrb[0].mxu0
  %4382 = vmatprep.mubr.f32.mxu0 0.0
  %v4383 = vand.u32 %v3705, 4294901760
  %4384 = vmatmul.mubr.f32.gmra.mrb[0].mxu0 %v4383
  %v4385 = vpop.f32.mrb[0].mxu0
  %v4386 = vadd.f32 %v4247, %v4385
  %v4387 = vpop.f32.mrb[0].mxu0
  %4388 = vmatprep.mubr.f32.mxu0 0.0
  %v4389 = vand.u32 %v3706, 4294901760
  %4390 = vmatmul.mubr.f32.gmra.mrb[0].mxu0 %v4389
  %v4391 = vpop.f32.mrb[0].mxu0
  %v4392 = vadd.f32 %v4255, %v4391
  %v4393 = vpop.f32.mrb[0].mxu0
  %4394 = vdwg.mxu0
  %4395 = vmatprep.subr.mxu0 0.0
  %v4396 = vand.u32 %v3707, 4294901760
  %4397 = vmatpush1.msra.mxu0 %v4396
  %4398 = vmatprep.subr.mxu0 0.0
  %v4399 = vand.u32 %v3708, 4294901760
  %4400 = vmatpush1.msra.mxu0 %v4399
  %4401 = vmatprep.subr.mxu0 0.0
  %v4402 = vand.u32 %v3709, 4294901760
  %4403 = vmatpush1.msra.mxu0 %v4402
  %4404 = vmatprep.subr.mxu0 0.0
  %v4405 = vand.u32 %v3710, 4294901760
  %4406 = vmatpush1.msra.mxu0 %v4405
  %4407 = vmatprep.subr.mxu0 0.0
  %v4408 = vand.u32 %v3711, 4294901760
  %4409 = vmatpush1.msra.mxu0 %v4408
  %4410 = vmatprep.subr.mxu0 0.0
  %v4411 = vand.u32 %v3712, 4294901760
  %4412 = vmatpush1.msra.mxu0 %v4411
  %4413 = vmatprep.subr.mxu0 0.0
  %v4414 = vand.u32 %v3713, 4294901760
  %4415 = vmatpush1.msra.mxu0 %v4414
  %4416 = vmatprep.subr.mxu0 0.0
  %v4417 = vand.u32 %v3714, 4294901760
  %4418 = vmatpush1.msra.mxu0 %v4417
  %4419 = vmatprep.subr.mxu0 0.0
  %v4420 = vand.u32 %v3715, 4294901760
  %4421 = vmatpush1.msra.mxu0 %v4420
  %4422 = vmatprep.subr.mxu0 0.0
  %v4423 = vand.u32 %v3716, 4294901760
  %4424 = vmatpush1.msra.mxu0 %v4423
  %4425 = vmatprep.subr.mxu0 0.0
  %v4426 = vand.u32 %v3717, 4294901760
  %4427 = vmatpush1.msra.mxu0 %v4426
  %4428 = vmatprep.subr.mxu0 0.0
  %v4429 = vand.u32 %v3718, 4294901760
  %4430 = vmatpush1.msra.mxu0 %v4429
  %4431 = vmatprep.subr.mxu0 0.0
  %v4432 = vand.u32 %v3719, 4294901760
  %4433 = vmatpush1.msra.mxu0 %v4432
  %4434 = vmatprep.subr.mxu0 0.0
  %v4435 = vand.u32 %v3720, 4294901760
  %4436 = vmatpush1.msra.mxu0 %v4435
  %4437 = vmatprep.subr.mxu0 0.0
  %v4438 = vand.u32 %v3721, 4294901760
  %4439 = vmatpush1.msra.mxu0 %v4438
  %4440 = vmatprep.subr.mxu0 0.0
  %v4441 = vand.u32 %v3722, 4294901760
  %4442 = vmatpush1.msra.mxu0 %v4441
  %4443 = vmatprep.subr.mxu0 0.0
  %4444 = vmatpush1.msra.mxu0 0.0
  %4445 = vmatprep.subr.mxu0 0.0
  %4446 = vmatpush1.msra.mxu0 0.0
  %4447 = vmatprep.subr.mxu0 0.0
  %4448 = vmatpush1.msra.mxu0 0.0
  %4449 = vmatprep.subr.mxu0 0.0
  %4450 = vmatpush1.msra.mxu0 0.0
  %4451 = vmatprep.subr.mxu0 0.0
  %4452 = vmatpush1.msra.mxu0 0.0
  %4453 = vmatprep.subr.mxu0 0.0
  %4454 = vmatpush1.msra.mxu0 0.0
  %4455 = vmatprep.subr.mxu0 0.0
  %4456 = vmatpush1.msra.mxu0 0.0
  %4457 = vmatprep.subr.mxu0 0.0
  %4458 = vmatpush1.msra.mxu0 0.0
  %4459 = vmatprep.subr.mxu0 0.0
  %4460 = vmatpush1.msra.mxu0 0.0
  %4461 = vmatprep.subr.mxu0 0.0
  %4462 = vmatpush1.msra.mxu0 0.0
  %4463 = vmatprep.subr.mxu0 0.0
  %4464 = vmatpush1.msra.mxu0 0.0
  %4465 = vmatprep.subr.mxu0 0.0
  %4466 = vmatpush1.msra.mxu0 0.0
  %4467 = vmatprep.subr.mxu0 0.0
  %4468 = vmatpush1.msra.mxu0 0.0
  %4469 = vmatprep.subr.mxu0 0.0
  %4470 = vmatpush1.msra.mxu0 0.0
  %4471 = vmatprep.subr.mxu0 0.0
  %4472 = vmatpush1.msra.mxu0 0.0
  %4473 = vmatprep.subr.mxu0 0.0
  %4474 = vmatpush1.msra.mxu0 0.0
  %4475 = vmatprep.mubr.f32.mxu0 0.0
  %v4476 = vand.u32 %v3703, 4294901760
  %4477 = vmatmul.mubr.f32.gmra.mrb[0].mxu0 %v4476
  %v4478 = vpop.f32.mrb[0].mxu0
  %v4479 = vadd.f32 %v4374, %v4478
  %v4480 = vpop.f32.mrb[0].mxu0
  %4481 = vmatprep.mubr.f32.mxu0 0.0
  %v4482 = vand.u32 %v3704, 4294901760
  %4483 = vmatmul.mubr.f32.gmra.mrb[0].mxu0 %v4482
  %v4484 = vpop.f32.mrb[0].mxu0
  %v4485 = vadd.f32 %v4380, %v4484
  %v4486 = vpop.f32.mrb[0].mxu0
  %4487 = vmatprep.mubr.f32.mxu0 0.0
  %v4488 = vand.u32 %v3705, 4294901760
  %4489 = vmatmul.mubr.f32.gmra.mrb[0].mxu0 %v4488
  %v4490 = vpop.f32.mrb[0].mxu0
  %v4491 = vadd.f32 %v4386, %v4490
  %v4492 = vpop.f32.mrb[0].mxu0
  %4493 = vmatprep.mubr.f32.mxu0 0.0
  %v4494 = vand.u32 %v3706, 4294901760
  %4495 = vmatmul.mubr.f32.gmra.mrb[0].mxu0 %v4494
  %v4496 = vpop.f32.mrb[0].mxu0
  %v4497 = vadd.f32 %v4392, %v4496
  %v4498 = vpop.f32.mrb[0].mxu0
  %4499 = vdwg.mxu0
  %v4500 = vadd.f32 %v2886, %v4479
  %v4501 = vadd.f32 %v2887, %v4485
  %v4502 = vadd.f32 %v2888, %v4491
  %v4503 = vadd.f32 %v2889, %v4497
  %s4504 = scalar_lea.vmem %s3, 2
  %v4505 = vld [vmem:[%s4504] sm:$0x1]
  %s4506 = scalar_lea.vmem %s4, 2
  %v4507 = vld [vmem:[%s4506] sm:$0x1]
  %s4508 = scalar_lea.vmem %s3, 3
  %v4509 = vld [vmem:[%s4508] sm:$0x1]
  %s4510 = scalar_lea.vmem %s4, 3
  %v4511 = vld [vmem:[%s4510] sm:$0x1]
  %v4512 = vsel %vm80, %v4500, 0.0
  %4513 = vadd.xlane.f32.xlu0 %v4512
  %v4514 = vpop.xlane.xlu0 %4513
  %v4515 = vsel %vm80, %v4501, 0.0
  %4516 = vadd.xlane.f32.xlu0 %v4515
  %v4517 = vpop.xlane.xlu0 %4516
  %v4518 = vsel %vm80, %v4502, 0.0
  %4519 = vadd.xlane.f32.xlu0 %v4518
  %v4520 = vpop.xlane.xlu0 %4519
  %v4521 = vsel %vm80, %v4503, 0.0
  %4522 = vadd.xlane.f32.xlu0 %v4521
  %v4523 = vpop.xlane.xlu0 %4522
  %v4524 = vmul.f32 %v4514, %v637
  %v4525 = vmul.f32 %v4517, %v637
  %v4526 = vmul.f32 %v4520, %v637
  %v4527 = vmul.f32 %v4523, %v637
  %v4528 = vsub.f32 %v4500, %v4524
  %v4529 = vsub.f32 %v4501, %v4525
  %v4530 = vsub.f32 %v4502, %v4526
  %v4531 = vsub.f32 %v4503, %v4527
  %v4532 = vmul.f32 %v4528, %v4528
  %v4533 = vmul.f32 %v4529, %v4529
  %v4534 = vmul.f32 %v4530, %v4530
  %v4535 = vmul.f32 %v4531, %v4531
  %v4536 = vsel %vm80, %v4532, 0.0
  %4537 = vadd.xlane.f32.xlu0 %v4536
  %v4538 = vpop.xlane.xlu0 %4537
  %v4539 = vsel %vm80, %v4533, 0.0
  %4540 = vadd.xlane.f32.xlu0 %v4539
  %v4541 = vpop.xlane.xlu0 %4540
  %v4542 = vsel %vm80, %v4534, 0.0
  %4543 = vadd.xlane.f32.xlu0 %v4542
  %v4544 = vpop.xlane.xlu0 %4543
  %v4545 = vsel %vm80, %v4535, 0.0
  %4546 = vadd.xlane.f32.xlu0 %v4545
  %v4547 = vpop.xlane.xlu0 %4546
  %v4548 = vmul.f32 %v4538, %v637
  %v4549 = vmul.f32 %v4541, %v637
  %v4550 = vmul.f32 %v4544, %v637
  %v4551 = vmul.f32 %v4547, %v637
  %v4552 = vadd.f32 %v4548, 1e-05
  %v4553 = vadd.f32 %v4549, 1e-05
  %v4554 = vadd.f32 %v4550, 1e-05
  %v4555 = vadd.f32 %v4551, 1e-05
  %v4556 = vrsqrt.pop %v4552
  %v4557 = vrsqrt.pop %v4553
  %v4558 = vrsqrt.pop %v4554
  %v4559 = vrsqrt.pop %v4555
  %v4560 = vmul.f32 %v4528, %v4556
  %v4561 = vmul.f32 %v4529, %v4557
  %v4562 = vmul.f32 %v4530, %v4558
  %v4563 = vmul.f32 %v4531, %v4559
  %v4565 = vlaneseq
  %v4566 = vshrl.u32 %v4565, 7
  %v4567 = vsub.s32 0, %v4566
  %v4568 = vrot.slane %v4505, %v4567
  %v4570 = vmul.f32 %v4560, %v4568
  %v4571 = vmul.f32 %v4561, %v4568
  %v4572 = vmul.f32 %v4562, %v4568
  %v4573 = vmul.f32 %v4563, %v4568
  %v4575 = vlaneseq
  %v4576 = vshrl.u32 %v4575, 7
  %v4577 = vsub.s32 0, %v4576
  %v4578 = vrot.slane %v4507, %v4577
  %v4580 = vadd.f32 %v4570, %v4578
  %v4581 = vadd.f32 %v4571, %v4578
  %v4582 = vadd.f32 %v4572, %v4578
  %v4583 = vadd.f32 %v4573, %v4578
  %s4584 = scalar_lea.vmem %s5, 32
  %v4585 = vld [vmem:[%s4584] sm:$0xff]
  %v4586 = vld [vmem:[%s4584 + $0x8] sm:$0xff]
  %v4587 = vld [vmem:[%s4584 + $0x10] sm:$0xff]
  %v4588 = vld [vmem:[%s4584 + $0x18] sm:$0xff]
  %s4589 = scalar_lea.vmem %s6, 1
  %v4590 = vld [vmem:[%s4589] sm:$0x1]
  %v4592 = vlaneseq
  %v4593 = vshrl.u32 %v4592, 7
  %v4594 = vsub.s32 0, %v4593
  %v4595 = vrot.slane %v4590, %v4594
  %v4598 = vsel %vm80, %v4580, 0
  %v4601 = vsel %vm80, %v4581, 0
  %v4604 = vsel %vm80, %v4582, 0
  %v4607 = vsel %vm80, %v4583, 0
  %4609 = vmatprep.subr.mxu0 0.0
  %v4610 = vand.u32 %v4585, 4294901760
  %4611 = vmatpush1.msra.mxu0 %v4610
  %4612 = vmatprep.subr.mxu0 0.0
  %v4613 = vand.u32 %v4586, 4294901760
  %4614 = vmatpush1.msra.mxu0 %v4613
  %4615 = vmatprep.subr.mxu0 0.0
  %v4616 = vand.u32 %v4587, 4294901760
  %4617 = vmatpush1.msra.mxu0 %v4616
  %4618 = vmatprep.subr.mxu0 0.0
  %v4619 = vand.u32 %v4588, 4294901760
  %4620 = vmatpush1.msra.mxu0 %v4619
  %4621 = vmatprep.subr.mxu0 0.0
  %4622 = vmatpush1.msra.mxu0 0.0
  %4623 = vmatprep.subr.mxu0 0.0
  %4624 = vmatpush1.msra.mxu0 0.0
  %4625 = vmatprep.subr.mxu0 0.0
  %4626 = vmatpush1.msra.mxu0 0.0
  %4627 = vmatprep.subr.mxu0 0.0
  %4628 = vmatpush1.msra.mxu0 0.0
  %4629 = vmatprep.subr.mxu0 0.0
  %4630 = vmatpush1.msra.mxu0 0.0
  %4631 = vmatprep.subr.mxu0 0.0
  %4632 = vmatpush1.msra.mxu0 0.0
  %4633 = vmatprep.subr.mxu0 0.0
  %4634 = vmatpush1.msra.mxu0 0.0
  %4635 = vmatprep.subr.mxu0 0.0
  %4636 = vmatpush1.msra.mxu0 0.0
  %4637 = vmatprep.subr.mxu0 0.0
  %4638 = vmatpush1.msra.mxu0 0.0
  %4639 = vmatprep.subr.mxu0 0.0
  %4640 = vmatpush1.msra.mxu0 0.0
  %4641 = vmatprep.subr.mxu0 0.0
  %4642 = vmatpush1.msra.mxu0 0.0
  %4643 = vmatprep.subr.mxu0 0.0
  %4644 = vmatpush1.msra.mxu0 0.0
  %4645 = vmatprep.subr.mxu0 0.0
  %4646 = vmatpush1.msra.mxu0 0.0
  %4647 = vmatprep.subr.mxu0 0.0
  %4648 = vmatpush1.msra.mxu0 0.0
  %4649 = vmatprep.subr.mxu0 0.0
  %4650 = vmatpush1.msra.mxu0 0.0
  %4651 = vmatprep.subr.mxu0 0.0
  %4652 = vmatpush1.msra.mxu0 0.0
  %4653 = vmatprep.subr.mxu0 0.0
  %4654 = vmatpush1.msra.mxu0 0.0
  %4655 = vmatprep.subr.mxu0 0.0
  %4656 = vmatpush1.msra.mxu0 0.0
  %4657 = vmatprep.subr.mxu0 0.0
  %4658 = vmatpush1.msra.mxu0 0.0
  %4659 = vmatprep.subr.mxu0 0.0
  %4660 = vmatpush1.msra.mxu0 0.0
  %4661 = vmatprep.subr.mxu0 0.0
  %4662 = vmatpush1.msra.mxu0 0.0
  %4663 = vmatprep.subr.mxu0 0.0
  %4664 = vmatpush1.msra.mxu0 0.0
  %4665 = vmatprep.subr.mxu0 0.0
  %4666 = vmatpush1.msra.mxu0 0.0
  %4667 = vmatprep.subr.mxu0 0.0
  %4668 = vmatpush1.msra.mxu0 0.0
  %4669 = vmatprep.subr.mxu0 0.0
  %4670 = vmatpush1.msra.mxu0 0.0
  %4671 = vmatprep.subr.mxu0 0.0
  %4672 = vmatpush1.msra.mxu0 0.0
  %4673 = vmatprep.subr.mxu0 0.0
  %4674 = vmatpush1.msra.mxu0 0.0
  %4675 = vmatprep.subr.mxu0 0.0
  %4676 = vmatpush1.msra.mxu0 0.0
  %4677 = vmatprep.mubr.f32.mxu0 0.0
  %v4678 = vand.u32 %v4598, 4294901760
  %v4679 = vsub.f32 %v4598, %v4678
  %v4680 = vand.u32 %v4679, 4294901760
  %v4681 = vsub.f32 %v4679, %v4680
  %v4682 = vand.u32 %v4681, 4294901760
  %4683 = vmatmul.mubr.f32.gmra.mrb[0].mxu0 %v4682
  %v4684 = vpop.f32.mrb[0].mxu0
  %v4685 = vadd.f32 %v4595, %v4684
  %v4686 = vpop.f32.mrb[0].mxu0
  %4687 = vmatprep.mubr.f32.mxu0 0.0
  %v4688 = vand.u32 %v4601, 4294901760
  %v4689 = vsub.f32 %v4601, %v4688
  %v4690 = vand.u32 %v4689, 4294901760
  %v4691 = vsub.f32 %v4689, %v4690
  %v4692 = vand.u32 %v4691, 4294901760
  %4693 = vmatmul.mubr.f32.gmra.mrb[0].mxu0 %v4692
  %v4694 = vpop.f32.mrb[0].mxu0
  %v4695 = vadd.f32 %v4595, %v4694
  %v4696 = vpop.f32.mrb[0].mxu0
  %4697 = vmatprep.mubr.f32.mxu0 0.0
  %v4698 = vand.u32 %v4604, 4294901760
  %v4699 = vsub.f32 %v4604, %v4698
  %v4700 = vand.u32 %v4699, 4294901760
  %v4701 = vsub.f32 %v4699, %v4700
  %v4702 = vand.u32 %v4701, 4294901760
  %4703 = vmatmul.mubr.f32.gmra.mrb[0].mxu0 %v4702
  %v4704 = vpop.f32.mrb[0].mxu0
  %v4705 = vadd.f32 %v4595, %v4704
  %v4706 = vpop.f32.mrb[0].mxu0
  %4707 = vmatprep.mubr.f32.mxu0 0.0
  %v4708 = vand.u32 %v4607, 4294901760
  %v4709 = vsub.f32 %v4607, %v4708
  %v4710 = vand.u32 %v4709, 4294901760
  %v4711 = vsub.f32 %v4709, %v4710
  %v4712 = vand.u32 %v4711, 4294901760
  %4713 = vmatmul.mubr.f32.gmra.mrb[0].mxu0 %v4712
  %v4714 = vpop.f32.mrb[0].mxu0
  %v4715 = vadd.f32 %v4595, %v4714
  %v4716 = vpop.f32.mrb[0].mxu0
  %4717 = vdwg.mxu0
  %4718 = vmatprep.subr.mxu0 0.0
  %v4719 = vand.u32 %v4585, 4294901760
  %v4720 = vsub.f32 %v4585, %v4719
  %v4721 = vand.u32 %v4720, 4294901760
  %v4722 = vsub.f32 %v4720, %v4721
  %v4723 = vand.u32 %v4722, 4294901760
  %4724 = vmatpush1.msra.mxu0 %v4723
  %4725 = vmatprep.subr.mxu0 0.0
  %v4726 = vand.u32 %v4586, 4294901760
  %v4727 = vsub.f32 %v4586, %v4726
  %v4728 = vand.u32 %v4727, 4294901760
  %v4729 = vsub.f32 %v4727, %v4728
  %v4730 = vand.u32 %v4729, 4294901760
  %4731 = vmatpush1.msra.mxu0 %v4730
  %4732 = vmatprep.subr.mxu0 0.0
  %v4733 = vand.u32 %v4587, 4294901760
  %v4734 = vsub.f32 %v4587, %v4733
  %v4735 = vand.u32 %v4734, 4294901760
  %v4736 = vsub.f32 %v4734, %v4735
  %v4737 = vand.u32 %v4736, 4294901760
  %4738 = vmatpush1.msra.mxu0 %v4737
  %4739 = vmatprep.subr.mxu0 0.0
  %v4740 = vand.u32 %v4588, 4294901760
  %v4741 = vsub.f32 %v4588, %v4740
  %v4742 = vand.u32 %v4741, 4294901760
  %v4743 = vsub.f32 %v4741, %v4742
  %v4744 = vand.u32 %v4743, 4294901760
  %4745 = vmatpush1.msra.mxu0 %v4744
  %4746 = vmatprep.subr.mxu0 0.0
  %4747 = vmatpush1.msra.mxu0 0.0
  %4748 = vmatprep.subr.mxu0 0.0
  %4749 = vmatpush1.msra.mxu0 0.0
  %4750 = vmatprep.subr.mxu0 0.0
  %4751 = vmatpush1.msra.mxu0 0.0
  %4752 = vmatprep.subr.mxu0 0.0
  %4753 = vmatpush1.msra.mxu0 0.0
  %4754 = vmatprep.subr.mxu0 0.0
  %4755 = vmatpush1.msra.mxu0 0.0
  %4756 = vmatprep.subr.mxu0 0.0
  %4757 = vmatpush1.msra.mxu0 0.0
  %4758 = vmatprep.subr.mxu0 0.0
  %4759 = vmatpush1.msra.mxu0 0.0
  %4760 = vmatprep.subr.mxu0 0.0
  %4761 = vmatpush1.msra.mxu0 0.0
  %4762 = vmatprep.subr.mxu0 0.0
  %4763 = vmatpush1.msra.mxu0 0.0
  %4764 = vmatprep.subr.mxu0 0.0
  %4765 = vmatpush1.msra.mxu0 0.0
  %4766 = vmatprep.subr.mxu0 0.0
  %4767 = vmatpush1.msra.mxu0 0.0
  %4768 = vmatprep.subr.mxu0 0.0
  %4769 = vmatpush1.msra.mxu0 0.0
  %4770 = vmatprep.subr.mxu0 0.0
  %4771 = vmatpush1.msra.mxu0 0.0
  %4772 = vmatprep.subr.mxu0 0.0
  %4773 = vmatpush1.msra.mxu0 0.0
  %4774 = vmatprep.subr.mxu0 0.0
  %4775 = vmatpush1.msra.mxu0 0.0
  %4776 = vmatprep.subr.mxu0 0.0
  %4777 = vmatpush1.msra.mxu0 0.0
  %4778 = vmatprep.subr.mxu0 0.0
  %4779 = vmatpush1.msra.mxu0 0.0
  %4780 = vmatprep.subr.mxu0 0.0
  %4781 = vmatpush1.msra.mxu0 0.0
  %4782 = vmatprep.subr.mxu0 0.0
  %4783 = vmatpush1.msra.mxu0 0.0
  %4784 = vmatprep.subr.mxu0 0.0
  %4785 = vmatpush1.msra.mxu0 0.0
  %4786 = vmatprep.subr.mxu0 0.0
  %4787 = vmatpush1.msra.mxu0 0.0
  %4788 = vmatprep.subr.mxu0 0.0
  %4789 = vmatpush1.msra.mxu0 0.0
  %4790 = vmatprep.subr.mxu0 0.0
  %4791 = vmatpush1.msra.mxu0 0.0
  %4792 = vmatprep.subr.mxu0 0.0
  %4793 = vmatpush1.msra.mxu0 0.0
  %4794 = vmatprep.subr.mxu0 0.0
  %4795 = vmatpush1.msra.mxu0 0.0
  %4796 = vmatprep.subr.mxu0 0.0
  %4797 = vmatpush1.msra.mxu0 0.0
  %4798 = vmatprep.subr.mxu0 0.0
  %4799 = vmatpush1.msra.mxu0 0.0
  %4800 = vmatprep.subr.mxu0 0.0
  %4801 = vmatpush1.msra.mxu0 0.0
  %4802 = vmatprep.mubr.f32.mxu0 0.0
  %v4803 = vand.u32 %v4598, 4294901760
  %4804 = vmatmul.mubr.f32.gmra.mrb[0].mxu0 %v4803
  %v4805 = vpop.f32.mrb[0].mxu0
  %v4806 = vadd.f32 %v4685, %v4805
  %v4807 = vpop.f32.mrb[0].mxu0
  %4808 = vmatprep.mubr.f32.mxu0 0.0
  %v4809 = vand.u32 %v4601, 4294901760
  %4810 = vmatmul.mubr.f32.gmra.mrb[0].mxu0 %v4809
  %v4811 = vpop.f32.mrb[0].mxu0
  %v4812 = vadd.f32 %v4695, %v4811
  %v4813 = vpop.f32.mrb[0].mxu0
  %4814 = vmatprep.mubr.f32.mxu0 0.0
  %v4815 = vand.u32 %v4604, 4294901760
  %4816 = vmatmul.mubr.f32.gmra.mrb[0].mxu0 %v4815
  %v4817 = vpop.f32.mrb[0].mxu0
  %v4818 = vadd.f32 %v4705, %v4817
  %v4819 = vpop.f32.mrb[0].mxu0
  %4820 = vmatprep.mubr.f32.mxu0 0.0
  %v4821 = vand.u32 %v4607, 4294901760
  %4822 = vmatmul.mubr.f32.gmra.mrb[0].mxu0 %v4821
  %v4823 = vpop.f32.mrb[0].mxu0
  %v4824 = vadd.f32 %v4715, %v4823
  %v4825 = vpop.f32.mrb[0].mxu0
  %4826 = vdwg.mxu0
  %4827 = vmatprep.subr.mxu0 0.0
  %v4828 = vand.u32 %v4585, 4294901760
  %v4829 = vsub.f32 %v4585, %v4828
  %4830 = vmatpush1.msra.mxu0 %v4829
  %4831 = vmatprep.subr.mxu0 0.0
  %v4832 = vand.u32 %v4586, 4294901760
  %v4833 = vsub.f32 %v4586, %v4832
  %4834 = vmatpush1.msra.mxu0 %v4833
  %4835 = vmatprep.subr.mxu0 0.0
  %v4836 = vand.u32 %v4587, 4294901760
  %v4837 = vsub.f32 %v4587, %v4836
  %4838 = vmatpush1.msra.mxu0 %v4837
  %4839 = vmatprep.subr.mxu0 0.0
  %v4840 = vand.u32 %v4588, 4294901760
  %v4841 = vsub.f32 %v4588, %v4840
  %4842 = vmatpush1.msra.mxu0 %v4841
  %4843 = vmatprep.subr.mxu0 0.0
  %4844 = vmatpush1.msra.mxu0 0.0
  %4845 = vmatprep.subr.mxu0 0.0
  %4846 = vmatpush1.msra.mxu0 0.0
  %4847 = vmatprep.subr.mxu0 0.0
  %4848 = vmatpush1.msra.mxu0 0.0
  %4849 = vmatprep.subr.mxu0 0.0
  %4850 = vmatpush1.msra.mxu0 0.0
  %4851 = vmatprep.subr.mxu0 0.0
  %4852 = vmatpush1.msra.mxu0 0.0
  %4853 = vmatprep.subr.mxu0 0.0
  %4854 = vmatpush1.msra.mxu0 0.0
  %4855 = vmatprep.subr.mxu0 0.0
  %4856 = vmatpush1.msra.mxu0 0.0
  %4857 = vmatprep.subr.mxu0 0.0
  %4858 = vmatpush1.msra.mxu0 0.0
  %4859 = vmatprep.subr.mxu0 0.0
  %4860 = vmatpush1.msra.mxu0 0.0
  %4861 = vmatprep.subr.mxu0 0.0
  %4862 = vmatpush1.msra.mxu0 0.0
  %4863 = vmatprep.subr.mxu0 0.0
  %4864 = vmatpush1.msra.mxu0 0.0
  %4865 = vmatprep.subr.mxu0 0.0
  %4866 = vmatpush1.msra.mxu0 0.0
  %4867 = vmatprep.subr.mxu0 0.0
  %4868 = vmatpush1.msra.mxu0 0.0
  %4869 = vmatprep.subr.mxu0 0.0
  %4870 = vmatpush1.msra.mxu0 0.0
  %4871 = vmatprep.subr.mxu0 0.0
  %4872 = vmatpush1.msra.mxu0 0.0
  %4873 = vmatprep.subr.mxu0 0.0
  %4874 = vmatpush1.msra.mxu0 0.0
  %4875 = vmatprep.subr.mxu0 0.0
  %4876 = vmatpush1.msra.mxu0 0.0
  %4877 = vmatprep.subr.mxu0 0.0
  %4878 = vmatpush1.msra.mxu0 0.0
  %4879 = vmatprep.subr.mxu0 0.0
  %4880 = vmatpush1.msra.mxu0 0.0
  %4881 = vmatprep.subr.mxu0 0.0
  %4882 = vmatpush1.msra.mxu0 0.0
  %4883 = vmatprep.subr.mxu0 0.0
  %4884 = vmatpush1.msra.mxu0 0.0
  %4885 = vmatprep.subr.mxu0 0.0
  %4886 = vmatpush1.msra.mxu0 0.0
  %4887 = vmatprep.subr.mxu0 0.0
  %4888 = vmatpush1.msra.mxu0 0.0
  %4889 = vmatprep.subr.mxu0 0.0
  %4890 = vmatpush1.msra.mxu0 0.0
  %4891 = vmatprep.subr.mxu0 0.0
  %4892 = vmatpush1.msra.mxu0 0.0
  %4893 = vmatprep.subr.mxu0 0.0
  %4894 = vmatpush1.msra.mxu0 0.0
  %4895 = vmatprep.subr.mxu0 0.0
  %4896 = vmatpush1.msra.mxu0 0.0
  %4897 = vmatprep.subr.mxu0 0.0
  %4898 = vmatpush1.msra.mxu0 0.0
  %4899 = vmatprep.mubr.f32.mxu0 0.0
  %v4900 = vand.u32 %v4598, 4294901760
  %v4901 = vsub.f32 %v4598, %v4900
  %4902 = vmatmul.mubr.f32.gmra.mrb[0].mxu0 %v4901
  %v4903 = vpop.f32.mrb[0].mxu0
  %v4904 = vadd.f32 %v4806, %v4903
  %v4905 = vpop.f32.mrb[0].mxu0
  %4906 = vmatprep.mubr.f32.mxu0 0.0
  %v4907 = vand.u32 %v4601, 4294901760
  %v4908 = vsub.f32 %v4601, %v4907
  %4909 = vmatmul.mubr.f32.gmra.mrb[0].mxu0 %v4908
  %v4910 = vpop.f32.mrb[0].mxu0
  %v4911 = vadd.f32 %v4812, %v4910
  %v4912 = vpop.f32.mrb[0].mxu0
  %4913 = vmatprep.mubr.f32.mxu0 0.0
  %v4914 = vand.u32 %v4604, 4294901760
  %v4915 = vsub.f32 %v4604, %v4914
  %4916 = vmatmul.mubr.f32.gmra.mrb[0].mxu0 %v4915
  %v4917 = vpop.f32.mrb[0].mxu0
  %v4918 = vadd.f32 %v4818, %v4917
  %v4919 = vpop.f32.mrb[0].mxu0
  %4920 = vmatprep.mubr.f32.mxu0 0.0
  %v4921 = vand.u32 %v4607, 4294901760
  %v4922 = vsub.f32 %v4607, %v4921
  %4923 = vmatmul.mubr.f32.gmra.mrb[0].mxu0 %v4922
  %v4924 = vpop.f32.mrb[0].mxu0
  %v4925 = vadd.f32 %v4824, %v4924
  %v4926 = vpop.f32.mrb[0].mxu0
  %4927 = vdwg.mxu0
  %4928 = vmatprep.subr.mxu0 0.0
  %v4929 = vand.u32 %v4585, 4294901760
  %4930 = vmatpush1.msra.mxu0 %v4929
  %4931 = vmatprep.subr.mxu0 0.0
  %v4932 = vand.u32 %v4586, 4294901760
  %4933 = vmatpush1.msra.mxu0 %v4932
  %4934 = vmatprep.subr.mxu0 0.0
  %v4935 = vand.u32 %v4587, 4294901760
  %4936 = vmatpush1.msra.mxu0 %v4935
  %4937 = vmatprep.subr.mxu0 0.0
  %v4938 = vand.u32 %v4588, 4294901760
  %4939 = vmatpush1.msra.mxu0 %v4938
  %4940 = vmatprep.subr.mxu0 0.0
  %4941 = vmatpush1.msra.mxu0 0.0
  %4942 = vmatprep.subr.mxu0 0.0
  %4943 = vmatpush1.msra.mxu0 0.0
  %4944 = vmatprep.subr.mxu0 0.0
  %4945 = vmatpush1.msra.mxu0 0.0
  %4946 = vmatprep.subr.mxu0 0.0
  %4947 = vmatpush1.msra.mxu0 0.0
  %4948 = vmatprep.subr.mxu0 0.0
  %4949 = vmatpush1.msra.mxu0 0.0
  %4950 = vmatprep.subr.mxu0 0.0
  %4951 = vmatpush1.msra.mxu0 0.0
  %4952 = vmatprep.subr.mxu0 0.0
  %4953 = vmatpush1.msra.mxu0 0.0
  %4954 = vmatprep.subr.mxu0 0.0
  %4955 = vmatpush1.msra.mxu0 0.0
  %4956 = vmatprep.subr.mxu0 0.0
  %4957 = vmatpush1.msra.mxu0 0.0
  %4958 = vmatprep.subr.mxu0 0.0
  %4959 = vmatpush1.msra.mxu0 0.0
  %4960 = vmatprep.subr.mxu0 0.0
  %4961 = vmatpush1.msra.mxu0 0.0
  %4962 = vmatprep.subr.mxu0 0.0
  %4963 = vmatpush1.msra.mxu0 0.0
  %4964 = vmatprep.subr.mxu0 0.0
  %4965 = vmatpush1.msra.mxu0 0.0
  %4966 = vmatprep.subr.mxu0 0.0
  %4967 = vmatpush1.msra.mxu0 0.0
  %4968 = vmatprep.subr.mxu0 0.0
  %4969 = vmatpush1.msra.mxu0 0.0
  %4970 = vmatprep.subr.mxu0 0.0
  %4971 = vmatpush1.msra.mxu0 0.0
  %4972 = vmatprep.subr.mxu0 0.0
  %4973 = vmatpush1.msra.mxu0 0.0
  %4974 = vmatprep.subr.mxu0 0.0
  %4975 = vmatpush1.msra.mxu0 0.0
  %4976 = vmatprep.subr.mxu0 0.0
  %4977 = vmatpush1.msra.mxu0 0.0
  %4978 = vmatprep.subr.mxu0 0.0
  %4979 = vmatpush1.msra.mxu0 0.0
  %4980 = vmatprep.subr.mxu0 0.0
  %4981 = vmatpush1.msra.mxu0 0.0
  %4982 = vmatprep.subr.mxu0 0.0
  %4983 = vmatpush1.msra.mxu0 0.0
  %4984 = vmatprep.subr.mxu0 0.0
  %4985 = vmatpush1.msra.mxu0 0.0
  %4986 = vmatprep.subr.mxu0 0.0
  %4987 = vmatpush1.msra.mxu0 0.0
  %4988 = vmatprep.subr.mxu0 0.0
  %4989 = vmatpush1.msra.mxu0 0.0
  %4990 = vmatprep.subr.mxu0 0.0
  %4991 = vmatpush1.msra.mxu0 0.0
  %4992 = vmatprep.subr.mxu0 0.0
  %4993 = vmatpush1.msra.mxu0 0.0
  %4994 = vmatprep.subr.mxu0 0.0
  %4995 = vmatpush1.msra.mxu0 0.0
  %4996 = vmatprep.mubr.f32.mxu0 0.0
  %v4997 = vand.u32 %v4598, 4294901760
  %v4998 = vsub.f32 %v4598, %v4997
  %v4999 = vand.u32 %v4998, 4294901760
  %5000 = vmatmul.mubr.f32.gmra.mrb[0].mxu0 %v4999
  %v5001 = vpop.f32.mrb[0].mxu0
  %v5002 = vadd.f32 %v4904, %v5001
  %v5003 = vpop.f32.mrb[0].mxu0
  %5004 = vmatprep.mubr.f32.mxu0 0.0
  %v5005 = vand.u32 %v4601, 4294901760
  %v5006 = vsub.f32 %v4601, %v5005
  %v5007 = vand.u32 %v5006, 4294901760
  %5008 = vmatmul.mubr.f32.gmra.mrb[0].mxu0 %v5007
  %v5009 = vpop.f32.mrb[0].mxu0
  %v5010 = vadd.f32 %v4911, %v5009
  %v5011 = vpop.f32.mrb[0].mxu0
  %5012 = vmatprep.mubr.f32.mxu0 0.0
  %v5013 = vand.u32 %v4604, 4294901760
  %v5014 = vsub.f32 %v4604, %v5013
  %v5015 = vand.u32 %v5014, 4294901760
  %5016 = vmatmul.mubr.f32.gmra.mrb[0].mxu0 %v5015
  %v5017 = vpop.f32.mrb[0].mxu0
  %v5018 = vadd.f32 %v4918, %v5017
  %v5019 = vpop.f32.mrb[0].mxu0
  %5020 = vmatprep.mubr.f32.mxu0 0.0
  %v5021 = vand.u32 %v4607, 4294901760
  %v5022 = vsub.f32 %v4607, %v5021
  %v5023 = vand.u32 %v5022, 4294901760
  %5024 = vmatmul.mubr.f32.gmra.mrb[0].mxu0 %v5023
  %v5025 = vpop.f32.mrb[0].mxu0
  %v5026 = vadd.f32 %v4925, %v5025
  %v5027 = vpop.f32.mrb[0].mxu0
  %5028 = vdwg.mxu0
  %5029 = vmatprep.subr.mxu0 0.0
  %v5030 = vand.u32 %v4585, 4294901760
  %v5031 = vsub.f32 %v4585, %v5030
  %v5032 = vand.u32 %v5031, 4294901760
  %5033 = vmatpush1.msra.mxu0 %v5032
  %5034 = vmatprep.subr.mxu0 0.0
  %v5035 = vand.u32 %v4586, 4294901760
  %v5036 = vsub.f32 %v4586, %v5035
  %v5037 = vand.u32 %v5036, 4294901760
  %5038 = vmatpush1.msra.mxu0 %v5037
  %5039 = vmatprep.subr.mxu0 0.0
  %v5040 = vand.u32 %v4587, 4294901760
  %v5041 = vsub.f32 %v4587, %v5040
  %v5042 = vand.u32 %v5041, 4294901760
  %5043 = vmatpush1.msra.mxu0 %v5042
  %5044 = vmatprep.subr.mxu0 0.0
  %v5045 = vand.u32 %v4588, 4294901760
  %v5046 = vsub.f32 %v4588, %v5045
  %v5047 = vand.u32 %v5046, 4294901760
  %5048 = vmatpush1.msra.mxu0 %v5047
  %5049 = vmatprep.subr.mxu0 0.0
  %5050 = vmatpush1.msra.mxu0 0.0
  %5051 = vmatprep.subr.mxu0 0.0
  %5052 = vmatpush1.msra.mxu0 0.0
  %5053 = vmatprep.subr.mxu0 0.0
  %5054 = vmatpush1.msra.mxu0 0.0
  %5055 = vmatprep.subr.mxu0 0.0
  %5056 = vmatpush1.msra.mxu0 0.0
  %5057 = vmatprep.subr.mxu0 0.0
  %5058 = vmatpush1.msra.mxu0 0.0
  %5059 = vmatprep.subr.mxu0 0.0
  %5060 = vmatpush1.msra.mxu0 0.0
  %5061 = vmatprep.subr.mxu0 0.0
  %5062 = vmatpush1.msra.mxu0 0.0
  %5063 = vmatprep.subr.mxu0 0.0
  %5064 = vmatpush1.msra.mxu0 0.0
  %5065 = vmatprep.subr.mxu0 0.0
  %5066 = vmatpush1.msra.mxu0 0.0
  %5067 = vmatprep.subr.mxu0 0.0
  %5068 = vmatpush1.msra.mxu0 0.0
  %5069 = vmatprep.subr.mxu0 0.0
  %5070 = vmatpush1.msra.mxu0 0.0
  %5071 = vmatprep.subr.mxu0 0.0
  %5072 = vmatpush1.msra.mxu0 0.0
  %5073 = vmatprep.subr.mxu0 0.0
  %5074 = vmatpush1.msra.mxu0 0.0
  %5075 = vmatprep.subr.mxu0 0.0
  %5076 = vmatpush1.msra.mxu0 0.0
  %5077 = vmatprep.subr.mxu0 0.0
  %5078 = vmatpush1.msra.mxu0 0.0
  %5079 = vmatprep.subr.mxu0 0.0
  %5080 = vmatpush1.msra.mxu0 0.0
  %5081 = vmatprep.subr.mxu0 0.0
  %5082 = vmatpush1.msra.mxu0 0.0
  %5083 = vmatprep.subr.mxu0 0.0
  %5084 = vmatpush1.msra.mxu0 0.0
  %5085 = vmatprep.subr.mxu0 0.0
  %5086 = vmatpush1.msra.mxu0 0.0
  %5087 = vmatprep.subr.mxu0 0.0
  %5088 = vmatpush1.msra.mxu0 0.0
  %5089 = vmatprep.subr.mxu0 0.0
  %5090 = vmatpush1.msra.mxu0 0.0
  %5091 = vmatprep.subr.mxu0 0.0
  %5092 = vmatpush1.msra.mxu0 0.0
  %5093 = vmatprep.subr.mxu0 0.0
  %5094 = vmatpush1.msra.mxu0 0.0
  %5095 = vmatprep.subr.mxu0 0.0
  %5096 = vmatpush1.msra.mxu0 0.0
  %5097 = vmatprep.subr.mxu0 0.0
  %5098 = vmatpush1.msra.mxu0 0.0
  %5099 = vmatprep.subr.mxu0 0.0
  %5100 = vmatpush1.msra.mxu0 0.0
  %5101 = vmatprep.subr.mxu0 0.0
  %5102 = vmatpush1.msra.mxu0 0.0
  %5103 = vmatprep.subr.mxu0 0.0
  %5104 = vmatpush1.msra.mxu0 0.0
  %5105 = vmatprep.mubr.f32.mxu0 0.0
  %v5106 = vand.u32 %v4598, 4294901760
  %5107 = vmatmul.mubr.f32.gmra.mrb[0].mxu0 %v5106
  %v5108 = vpop.f32.mrb[0].mxu0
  %v5109 = vadd.f32 %v5002, %v5108
  %v5110 = vpop.f32.mrb[0].mxu0
  %5111 = vmatprep.mubr.f32.mxu0 0.0
  %v5112 = vand.u32 %v4601, 4294901760
  %5113 = vmatmul.mubr.f32.gmra.mrb[0].mxu0 %v5112
  %v5114 = vpop.f32.mrb[0].mxu0
  %v5115 = vadd.f32 %v5010, %v5114
  %v5116 = vpop.f32.mrb[0].mxu0
  %5117 = vmatprep.mubr.f32.mxu0 0.0
  %v5118 = vand.u32 %v4604, 4294901760
  %5119 = vmatmul.mubr.f32.gmra.mrb[0].mxu0 %v5118
  %v5120 = vpop.f32.mrb[0].mxu0
  %v5121 = vadd.f32 %v5018, %v5120
  %v5122 = vpop.f32.mrb[0].mxu0
  %5123 = vmatprep.mubr.f32.mxu0 0.0
  %v5124 = vand.u32 %v4607, 4294901760
  %5125 = vmatmul.mubr.f32.gmra.mrb[0].mxu0 %v5124
  %v5126 = vpop.f32.mrb[0].mxu0
  %v5127 = vadd.f32 %v5026, %v5126
  %v5128 = vpop.f32.mrb[0].mxu0
  %5129 = vdwg.mxu0
  %5130 = vmatprep.subr.mxu0 0.0
  %v5131 = vand.u32 %v4585, 4294901760
  %5132 = vmatpush1.msra.mxu0 %v5131
  %5133 = vmatprep.subr.mxu0 0.0
  %v5134 = vand.u32 %v4586, 4294901760
  %5135 = vmatpush1.msra.mxu0 %v5134
  %5136 = vmatprep.subr.mxu0 0.0
  %v5137 = vand.u32 %v4587, 4294901760
  %5138 = vmatpush1.msra.mxu0 %v5137
  %5139 = vmatprep.subr.mxu0 0.0
  %v5140 = vand.u32 %v4588, 4294901760
  %5141 = vmatpush1.msra.mxu0 %v5140
  %5142 = vmatprep.subr.mxu0 0.0
  %5143 = vmatpush1.msra.mxu0 0.0
  %5144 = vmatprep.subr.mxu0 0.0
  %5145 = vmatpush1.msra.mxu0 0.0
  %5146 = vmatprep.subr.mxu0 0.0
  %5147 = vmatpush1.msra.mxu0 0.0
  %5148 = vmatprep.subr.mxu0 0.0
  %5149 = vmatpush1.msra.mxu0 0.0
  %5150 = vmatprep.subr.mxu0 0.0
  %5151 = vmatpush1.msra.mxu0 0.0
  %5152 = vmatprep.subr.mxu0 0.0
  %5153 = vmatpush1.msra.mxu0 0.0
  %5154 = vmatprep.subr.mxu0 0.0
  %5155 = vmatpush1.msra.mxu0 0.0
  %5156 = vmatprep.subr.mxu0 0.0
  %5157 = vmatpush1.msra.mxu0 0.0
  %5158 = vmatprep.subr.mxu0 0.0
  %5159 = vmatpush1.msra.mxu0 0.0
  %5160 = vmatprep.subr.mxu0 0.0
  %5161 = vmatpush1.msra.mxu0 0.0
  %5162 = vmatprep.subr.mxu0 0.0
  %5163 = vmatpush1.msra.mxu0 0.0
  %5164 = vmatprep.subr.mxu0 0.0
  %5165 = vmatpush1.msra.mxu0 0.0
  %5166 = vmatprep.subr.mxu0 0.0
  %5167 = vmatpush1.msra.mxu0 0.0
  %5168 = vmatprep.subr.mxu0 0.0
  %5169 = vmatpush1.msra.mxu0 0.0
  %5170 = vmatprep.subr.mxu0 0.0
  %5171 = vmatpush1.msra.mxu0 0.0
  %5172 = vmatprep.subr.mxu0 0.0
  %5173 = vmatpush1.msra.mxu0 0.0
  %5174 = vmatprep.subr.mxu0 0.0
  %5175 = vmatpush1.msra.mxu0 0.0
  %5176 = vmatprep.subr.mxu0 0.0
  %5177 = vmatpush1.msra.mxu0 0.0
  %5178 = vmatprep.subr.mxu0 0.0
  %5179 = vmatpush1.msra.mxu0 0.0
  %5180 = vmatprep.subr.mxu0 0.0
  %5181 = vmatpush1.msra.mxu0 0.0
  %5182 = vmatprep.subr.mxu0 0.0
  %5183 = vmatpush1.msra.mxu0 0.0
  %5184 = vmatprep.subr.mxu0 0.0
  %5185 = vmatpush1.msra.mxu0 0.0
  %5186 = vmatprep.subr.mxu0 0.0
  %5187 = vmatpush1.msra.mxu0 0.0
  %5188 = vmatprep.subr.mxu0 0.0
  %5189 = vmatpush1.msra.mxu0 0.0
  %5190 = vmatprep.subr.mxu0 0.0
  %5191 = vmatpush1.msra.mxu0 0.0
  %5192 = vmatprep.subr.mxu0 0.0
  %5193 = vmatpush1.msra.mxu0 0.0
  %5194 = vmatprep.subr.mxu0 0.0
  %5195 = vmatpush1.msra.mxu0 0.0
  %5196 = vmatprep.subr.mxu0 0.0
  %5197 = vmatpush1.msra.mxu0 0.0
  %5198 = vmatprep.mubr.f32.mxu0 0.0
  %v5199 = vand.u32 %v4598, 4294901760
  %5200 = vmatmul.mubr.f32.gmra.mrb[0].mxu0 %v5199
  %v5201 = vpop.f32.mrb[0].mxu0
  %v5202 = vadd.f32 %v5109, %v5201
  %v5203 = vpop.f32.mrb[0].mxu0
  %5204 = vmatprep.mubr.f32.mxu0 0.0
  %v5205 = vand.u32 %v4601, 4294901760
  %5206 = vmatmul.mubr.f32.gmra.mrb[0].mxu0 %v5205
  %v5207 = vpop.f32.mrb[0].mxu0
  %v5208 = vadd.f32 %v5115, %v5207
  %v5209 = vpop.f32.mrb[0].mxu0
  %5210 = vmatprep.mubr.f32.mxu0 0.0
  %v5211 = vand.u32 %v4604, 4294901760
  %5212 = vmatmul.mubr.f32.gmra.mrb[0].mxu0 %v5211
  %v5213 = vpop.f32.mrb[0].mxu0
  %v5214 = vadd.f32 %v5121, %v5213
  %v5215 = vpop.f32.mrb[0].mxu0
  %5216 = vmatprep.mubr.f32.mxu0 0.0
  %v5217 = vand.u32 %v4607, 4294901760
  %5218 = vmatmul.mubr.f32.gmra.mrb[0].mxu0 %v5217
  %v5219 = vpop.f32.mrb[0].mxu0
  %v5220 = vadd.f32 %v5127, %v5219
  %v5221 = vpop.f32.mrb[0].mxu0
  %5222 = vdwg.mxu0
  %5225 = vrot.lane.b32.xlu0 %v5202, 96
  %v5226 = vpop.permute.xlu0 %5225
  %5227 = vrot.lane.b32.xlu0 %v5208, 96
  %v5228 = vpop.permute.xlu0 %5227
  %v5231 = vmul.f32 %v5202, %v5226
  %v5232 = vmul.f32 %v5208, %v5228
  %5235 = vrot.lane.b32.xlu0 %v5214, 96
  %v5236 = vpop.permute.xlu0 %5235
  %5237 = vrot.lane.b32.xlu0 %v5220, 96
  %v5238 = vpop.permute.xlu0 %5237
  %v5241 = vmul.f32 %v5202, %v5236
  %v5242 = vmul.f32 %v5208, %v5238
  %v5244 = vsel %vm80, %v5231, 0
  %v5247 = vsel %vm80, %v5232, 0
  %v5250 = vsel %vm80, %v5241, 0
  %v5253 = vsel %vm80, %v5242, 0
  %5255 = vmatprep.subr.mxu0 0.0
  %v5256 = vand.u32 %v59, 4294901760
  %5257 = vmatpush1.msra.mxu0 %v5256
  %5258 = vmatprep.subr.mxu0 0.0
  %v5259 = vand.u32 %v60, 4294901760
  %5260 = vmatpush1.msra.mxu0 %v5259
  %5261 = vmatprep.subr.mxu0 0.0
  %v5262 = vand.u32 %v61, 4294901760
  %5263 = vmatpush1.msra.mxu0 %v5262
  %5264 = vmatprep.subr.mxu0 0.0
  %v5265 = vand.u32 %v62, 4294901760
  %5266 = vmatpush1.msra.mxu0 %v5265
  %5267 = vmatprep.subr.mxu0 0.0
  %5268 = vmatpush1.msra.mxu0 0.0
  %5269 = vmatprep.subr.mxu0 0.0
  %5270 = vmatpush1.msra.mxu0 0.0
  %5271 = vmatprep.subr.mxu0 0.0
  %5272 = vmatpush1.msra.mxu0 0.0
  %5273 = vmatprep.subr.mxu0 0.0
  %5274 = vmatpush1.msra.mxu0 0.0
  %5275 = vmatprep.subr.mxu0 0.0
  %5276 = vmatpush1.msra.mxu0 0.0
  %5277 = vmatprep.subr.mxu0 0.0
  %5278 = vmatpush1.msra.mxu0 0.0
  %5279 = vmatprep.subr.mxu0 0.0
  %5280 = vmatpush1.msra.mxu0 0.0
  %5281 = vmatprep.subr.mxu0 0.0
  %5282 = vmatpush1.msra.mxu0 0.0
  %5283 = vmatprep.subr.mxu0 0.0
  %5284 = vmatpush1.msra.mxu0 0.0
  %5285 = vmatprep.subr.mxu0 0.0
  %5286 = vmatpush1.msra.mxu0 0.0
  %5287 = vmatprep.subr.mxu0 0.0
  %5288 = vmatpush1.msra.mxu0 0.0
  %5289 = vmatprep.subr.mxu0 0.0
  %5290 = vmatpush1.msra.mxu0 0.0
  %5291 = vmatprep.subr.mxu0 0.0
  %5292 = vmatpush1.msra.mxu0 0.0
  %5293 = vmatprep.subr.mxu0 0.0
  %5294 = vmatpush1.msra.mxu0 0.0
  %5295 = vmatprep.subr.mxu0 0.0
  %5296 = vmatpush1.msra.mxu0 0.0
  %5297 = vmatprep.subr.mxu0 0.0
  %5298 = vmatpush1.msra.mxu0 0.0
  %5299 = vmatprep.subr.mxu0 0.0
  %5300 = vmatpush1.msra.mxu0 0.0
  %5301 = vmatprep.subr.mxu0 0.0
  %5302 = vmatpush1.msra.mxu0 0.0
  %5303 = vmatprep.subr.mxu0 0.0
  %5304 = vmatpush1.msra.mxu0 0.0
  %5305 = vmatprep.subr.mxu0 0.0
  %5306 = vmatpush1.msra.mxu0 0.0
  %5307 = vmatprep.subr.mxu0 0.0
  %5308 = vmatpush1.msra.mxu0 0.0
  %5309 = vmatprep.subr.mxu0 0.0
  %5310 = vmatpush1.msra.mxu0 0.0
  %5311 = vmatprep.subr.mxu0 0.0
  %5312 = vmatpush1.msra.mxu0 0.0
  %5313 = vmatprep.subr.mxu0 0.0
  %5314 = vmatpush1.msra.mxu0 0.0
  %5315 = vmatprep.subr.mxu0 0.0
  %5316 = vmatpush1.msra.mxu0 0.0
  %5317 = vmatprep.subr.mxu0 0.0
  %5318 = vmatpush1.msra.mxu0 0.0
  %5319 = vmatprep.subr.mxu0 0.0
  %5320 = vmatpush1.msra.mxu0 0.0
  %5321 = vmatprep.subr.mxu0 0.0
  %5322 = vmatpush1.msra.mxu0 0.0
  %5323 = vmatprep.mubr.f32.mxu0 0.0
  %v5324 = vand.u32 %v5244, 4294901760
  %v5325 = vsub.f32 %v5244, %v5324
  %v5326 = vand.u32 %v5325, 4294901760
  %v5327 = vsub.f32 %v5325, %v5326
  %v5328 = vand.u32 %v5327, 4294901760
  %5329 = vmatmul.mubr.f32.gmra.mrb[0].mxu0 %v5328
  %v5330 = vpop.f32.mrb[0].mxu0
  %v5331 = vadd.f32 0.0, %v5330
  %v5332 = vpop.f32.mrb[0].mxu0
  %5333 = vmatprep.mubr.f32.mxu0 0.0
  %v5334 = vand.u32 %v5247, 4294901760
  %v5335 = vsub.f32 %v5247, %v5334
  %v5336 = vand.u32 %v5335, 4294901760
  %v5337 = vsub.f32 %v5335, %v5336
  %v5338 = vand.u32 %v5337, 4294901760
  %5339 = vmatmul.mubr.f32.gmra.mrb[0].mxu0 %v5338
  %v5340 = vpop.f32.mrb[0].mxu0
  %v5341 = vadd.f32 0.0, %v5340
  %v5342 = vpop.f32.mrb[0].mxu0
  %5343 = vmatprep.mubr.f32.mxu0 0.0
  %v5344 = vand.u32 %v5250, 4294901760
  %v5345 = vsub.f32 %v5250, %v5344
  %v5346 = vand.u32 %v5345, 4294901760
  %v5347 = vsub.f32 %v5345, %v5346
  %v5348 = vand.u32 %v5347, 4294901760
  %5349 = vmatmul.mubr.f32.gmra.mrb[0].mxu0 %v5348
  %v5350 = vpop.f32.mrb[0].mxu0
  %v5351 = vadd.f32 0.0, %v5350
  %v5352 = vpop.f32.mrb[0].mxu0
  %5353 = vmatprep.mubr.f32.mxu0 0.0
  %v5354 = vand.u32 %v5253, 4294901760
  %v5355 = vsub.f32 %v5253, %v5354
  %v5356 = vand.u32 %v5355, 4294901760
  %v5357 = vsub.f32 %v5355, %v5356
  %v5358 = vand.u32 %v5357, 4294901760
  %5359 = vmatmul.mubr.f32.gmra.mrb[0].mxu0 %v5358
  %v5360 = vpop.f32.mrb[0].mxu0
  %v5361 = vadd.f32 0.0, %v5360
  %v5362 = vpop.f32.mrb[0].mxu0
  %5363 = vdwg.mxu0
  %5364 = vmatprep.subr.mxu0 0.0
  %v5365 = vand.u32 %v59, 4294901760
  %v5366 = vsub.f32 %v59, %v5365
  %v5367 = vand.u32 %v5366, 4294901760
  %v5368 = vsub.f32 %v5366, %v5367
  %v5369 = vand.u32 %v5368, 4294901760
  %5370 = vmatpush1.msra.mxu0 %v5369
  %5371 = vmatprep.subr.mxu0 0.0
  %v5372 = vand.u32 %v60, 4294901760
  %v5373 = vsub.f32 %v60, %v5372
  %v5374 = vand.u32 %v5373, 4294901760
  %v5375 = vsub.f32 %v5373, %v5374
  %v5376 = vand.u32 %v5375, 4294901760
  %5377 = vmatpush1.msra.mxu0 %v5376
  %5378 = vmatprep.subr.mxu0 0.0
  %v5379 = vand.u32 %v61, 4294901760
  %v5380 = vsub.f32 %v61, %v5379
  %v5381 = vand.u32 %v5380, 4294901760
  %v5382 = vsub.f32 %v5380, %v5381
  %v5383 = vand.u32 %v5382, 4294901760
  %5384 = vmatpush1.msra.mxu0 %v5383
  %5385 = vmatprep.subr.mxu0 0.0
  %v5386 = vand.u32 %v62, 4294901760
  %v5387 = vsub.f32 %v62, %v5386
  %v5388 = vand.u32 %v5387, 4294901760
  %v5389 = vsub.f32 %v5387, %v5388
  %v5390 = vand.u32 %v5389, 4294901760
  %5391 = vmatpush1.msra.mxu0 %v5390
  %5392 = vmatprep.subr.mxu0 0.0
  %5393 = vmatpush1.msra.mxu0 0.0
  %5394 = vmatprep.subr.mxu0 0.0
  %5395 = vmatpush1.msra.mxu0 0.0
  %5396 = vmatprep.subr.mxu0 0.0
  %5397 = vmatpush1.msra.mxu0 0.0
  %5398 = vmatprep.subr.mxu0 0.0
  %5399 = vmatpush1.msra.mxu0 0.0
  %5400 = vmatprep.subr.mxu0 0.0
  %5401 = vmatpush1.msra.mxu0 0.0
  %5402 = vmatprep.subr.mxu0 0.0
  %5403 = vmatpush1.msra.mxu0 0.0
  %5404 = vmatprep.subr.mxu0 0.0
  %5405 = vmatpush1.msra.mxu0 0.0
  %5406 = vmatprep.subr.mxu0 0.0
  %5407 = vmatpush1.msra.mxu0 0.0
  %5408 = vmatprep.subr.mxu0 0.0
  %5409 = vmatpush1.msra.mxu0 0.0
  %5410 = vmatprep.subr.mxu0 0.0
  %5411 = vmatpush1.msra.mxu0 0.0
  %5412 = vmatprep.subr.mxu0 0.0
  %5413 = vmatpush1.msra.mxu0 0.0
  %5414 = vmatprep.subr.mxu0 0.0
  %5415 = vmatpush1.msra.mxu0 0.0
  %5416 = vmatprep.subr.mxu0 0.0
  %5417 = vmatpush1.msra.mxu0 0.0
  %5418 = vmatprep.subr.mxu0 0.0
  %5419 = vmatpush1.msra.mxu0 0.0
  %5420 = vmatprep.subr.mxu0 0.0
  %5421 = vmatpush1.msra.mxu0 0.0
  %5422 = vmatprep.subr.mxu0 0.0
  %5423 = vmatpush1.msra.mxu0 0.0
  %5424 = vmatprep.subr.mxu0 0.0
  %5425 = vmatpush1.msra.mxu0 0.0
  %5426 = vmatprep.subr.mxu0 0.0
  %5427 = vmatpush1.msra.mxu0 0.0
  %5428 = vmatprep.subr.mxu0 0.0
  %5429 = vmatpush1.msra.mxu0 0.0
  %5430 = vmatprep.subr.mxu0 0.0
  %5431 = vmatpush1.msra.mxu0 0.0
  %5432 = vmatprep.subr.mxu0 0.0
  %5433 = vmatpush1.msra.mxu0 0.0
  %5434 = vmatprep.subr.mxu0 0.0
  %5435 = vmatpush1.msra.mxu0 0.0
  %5436 = vmatprep.subr.mxu0 0.0
  %5437 = vmatpush1.msra.mxu0 0.0
  %5438 = vmatprep.subr.mxu0 0.0
  %5439 = vmatpush1.msra.mxu0 0.0
  %5440 = vmatprep.subr.mxu0 0.0
  %5441 = vmatpush1.msra.mxu0 0.0
  %5442 = vmatprep.subr.mxu0 0.0
  %5443 = vmatpush1.msra.mxu0 0.0
  %5444 = vmatprep.subr.mxu0 0.0
  %5445 = vmatpush1.msra.mxu0 0.0
  %5446 = vmatprep.subr.mxu0 0.0
  %5447 = vmatpush1.msra.mxu0 0.0
  %5448 = vmatprep.mubr.f32.mxu0 0.0
  %v5449 = vand.u32 %v5244, 4294901760
  %5450 = vmatmul.mubr.f32.gmra.mrb[0].mxu0 %v5449
  %v5451 = vpop.f32.mrb[0].mxu0
  %v5452 = vadd.f32 %v5331, %v5451
  %v5453 = vpop.f32.mrb[0].mxu0
  %5454 = vmatprep.mubr.f32.mxu0 0.0
  %v5455 = vand.u32 %v5247, 4294901760
  %5456 = vmatmul.mubr.f32.gmra.mrb[0].mxu0 %v5455
  %v5457 = vpop.f32.mrb[0].mxu0
  %v5458 = vadd.f32 %v5341, %v5457
  %v5459 = vpop.f32.mrb[0].mxu0
  %5460 = vmatprep.mubr.f32.mxu0 0.0
  %v5461 = vand.u32 %v5250, 4294901760
  %5462 = vmatmul.mubr.f32.gmra.mrb[0].mxu0 %v5461
  %v5463 = vpop.f32.mrb[0].mxu0
  %v5464 = vadd.f32 %v5351, %v5463
  %v5465 = vpop.f32.mrb[0].mxu0
  %5466 = vmatprep.mubr.f32.mxu0 0.0
  %v5467 = vand.u32 %v5253, 4294901760
  %5468 = vmatmul.mubr.f32.gmra.mrb[0].mxu0 %v5467
  %v5469 = vpop.f32.mrb[0].mxu0
  %v5470 = vadd.f32 %v5361, %v5469
  %v5471 = vpop.f32.mrb[0].mxu0
  %5472 = vdwg.mxu0
  %5473 = vmatprep.subr.mxu0 0.0
  %v5474 = vand.u32 %v59, 4294901760
  %v5475 = vsub.f32 %v59, %v5474
  %5476 = vmatpush1.msra.mxu0 %v5475
  %5477 = vmatprep.subr.mxu0 0.0
  %v5478 = vand.u32 %v60, 4294901760
  %v5479 = vsub.f32 %v60, %v5478
  %5480 = vmatpush1.msra.mxu0 %v5479
  %5481 = vmatprep.subr.mxu0 0.0
  %v5482 = vand.u32 %v61, 4294901760
  %v5483 = vsub.f32 %v61, %v5482
  %5484 = vmatpush1.msra.mxu0 %v5483
  %5485 = vmatprep.subr.mxu0 0.0
  %v5486 = vand.u32 %v62, 4294901760
  %v5487 = vsub.f32 %v62, %v5486
  %5488 = vmatpush1.msra.mxu0 %v5487
  %5489 = vmatprep.subr.mxu0 0.0
  %5490 = vmatpush1.msra.mxu0 0.0
  %5491 = vmatprep.subr.mxu0 0.0
  %5492 = vmatpush1.msra.mxu0 0.0
  %5493 = vmatprep.subr.mxu0 0.0
  %5494 = vmatpush1.msra.mxu0 0.0
  %5495 = vmatprep.subr.mxu0 0.0
  %5496 = vmatpush1.msra.mxu0 0.0
  %5497 = vmatprep.subr.mxu0 0.0
  %5498 = vmatpush1.msra.mxu0 0.0
  %5499 = vmatprep.subr.mxu0 0.0
  %5500 = vmatpush1.msra.mxu0 0.0
  %5501 = vmatprep.subr.mxu0 0.0
  %5502 = vmatpush1.msra.mxu0 0.0
  %5503 = vmatprep.subr.mxu0 0.0
  %5504 = vmatpush1.msra.mxu0 0.0
  %5505 = vmatprep.subr.mxu0 0.0
  %5506 = vmatpush1.msra.mxu0 0.0
  %5507 = vmatprep.subr.mxu0 0.0
  %5508 = vmatpush1.msra.mxu0 0.0
  %5509 = vmatprep.subr.mxu0 0.0
  %5510 = vmatpush1.msra.mxu0 0.0
  %5511 = vmatprep.subr.mxu0 0.0
  %5512 = vmatpush1.msra.mxu0 0.0
  %5513 = vmatprep.subr.mxu0 0.0
  %5514 = vmatpush1.msra.mxu0 0.0
  %5515 = vmatprep.subr.mxu0 0.0
  %5516 = vmatpush1.msra.mxu0 0.0
  %5517 = vmatprep.subr.mxu0 0.0
  %5518 = vmatpush1.msra.mxu0 0.0
  %5519 = vmatprep.subr.mxu0 0.0
  %5520 = vmatpush1.msra.mxu0 0.0
  %5521 = vmatprep.subr.mxu0 0.0
  %5522 = vmatpush1.msra.mxu0 0.0
  %5523 = vmatprep.subr.mxu0 0.0
  %5524 = vmatpush1.msra.mxu0 0.0
  %5525 = vmatprep.subr.mxu0 0.0
  %5526 = vmatpush1.msra.mxu0 0.0
  %5527 = vmatprep.subr.mxu0 0.0
  %5528 = vmatpush1.msra.mxu0 0.0
  %5529 = vmatprep.subr.mxu0 0.0
  %5530 = vmatpush1.msra.mxu0 0.0
  %5531 = vmatprep.subr.mxu0 0.0
  %5532 = vmatpush1.msra.mxu0 0.0
  %5533 = vmatprep.subr.mxu0 0.0
  %5534 = vmatpush1.msra.mxu0 0.0
  %5535 = vmatprep.subr.mxu0 0.0
  %5536 = vmatpush1.msra.mxu0 0.0
  %5537 = vmatprep.subr.mxu0 0.0
  %5538 = vmatpush1.msra.mxu0 0.0
  %5539 = vmatprep.subr.mxu0 0.0
  %5540 = vmatpush1.msra.mxu0 0.0
  %5541 = vmatprep.subr.mxu0 0.0
  %5542 = vmatpush1.msra.mxu0 0.0
  %5543 = vmatprep.subr.mxu0 0.0
  %5544 = vmatpush1.msra.mxu0 0.0
  %5545 = vmatprep.mubr.f32.mxu0 0.0
  %v5546 = vand.u32 %v5244, 4294901760
  %v5547 = vsub.f32 %v5244, %v5546
  %5548 = vmatmul.mubr.f32.gmra.mrb[0].mxu0 %v5547
  %v5549 = vpop.f32.mrb[0].mxu0
  %v5550 = vadd.f32 %v5452, %v5549
  %v5551 = vpop.f32.mrb[0].mxu0
  %5552 = vmatprep.mubr.f32.mxu0 0.0
  %v5553 = vand.u32 %v5247, 4294901760
  %v5554 = vsub.f32 %v5247, %v5553
  %5555 = vmatmul.mubr.f32.gmra.mrb[0].mxu0 %v5554
  %v5556 = vpop.f32.mrb[0].mxu0
  %v5557 = vadd.f32 %v5458, %v5556
  %v5558 = vpop.f32.mrb[0].mxu0
  %5559 = vmatprep.mubr.f32.mxu0 0.0
  %v5560 = vand.u32 %v5250, 4294901760
  %v5561 = vsub.f32 %v5250, %v5560
  %5562 = vmatmul.mubr.f32.gmra.mrb[0].mxu0 %v5561
  %v5563 = vpop.f32.mrb[0].mxu0
  %v5564 = vadd.f32 %v5464, %v5563
  %v5565 = vpop.f32.mrb[0].mxu0
  %5566 = vmatprep.mubr.f32.mxu0 0.0
  %v5567 = vand.u32 %v5253, 4294901760
  %v5568 = vsub.f32 %v5253, %v5567
  %5569 = vmatmul.mubr.f32.gmra.mrb[0].mxu0 %v5568
  %v5570 = vpop.f32.mrb[0].mxu0
  %v5571 = vadd.f32 %v5470, %v5570
  %v5572 = vpop.f32.mrb[0].mxu0
  %5573 = vdwg.mxu0
  %5574 = vmatprep.subr.mxu0 0.0
  %v5575 = vand.u32 %v59, 4294901760
  %5576 = vmatpush1.msra.mxu0 %v5575
  %5577 = vmatprep.subr.mxu0 0.0
  %v5578 = vand.u32 %v60, 4294901760
  %5579 = vmatpush1.msra.mxu0 %v5578
  %5580 = vmatprep.subr.mxu0 0.0
  %v5581 = vand.u32 %v61, 4294901760
  %5582 = vmatpush1.msra.mxu0 %v5581
  %5583 = vmatprep.subr.mxu0 0.0
  %v5584 = vand.u32 %v62, 4294901760
  %5585 = vmatpush1.msra.mxu0 %v5584
  %5586 = vmatprep.subr.mxu0 0.0
  %5587 = vmatpush1.msra.mxu0 0.0
  %5588 = vmatprep.subr.mxu0 0.0
  %5589 = vmatpush1.msra.mxu0 0.0
  %5590 = vmatprep.subr.mxu0 0.0
  %5591 = vmatpush1.msra.mxu0 0.0
  %5592 = vmatprep.subr.mxu0 0.0
  %5593 = vmatpush1.msra.mxu0 0.0
  %5594 = vmatprep.subr.mxu0 0.0
  %5595 = vmatpush1.msra.mxu0 0.0
  %5596 = vmatprep.subr.mxu0 0.0
  %5597 = vmatpush1.msra.mxu0 0.0
  %5598 = vmatprep.subr.mxu0 0.0
  %5599 = vmatpush1.msra.mxu0 0.0
  %5600 = vmatprep.subr.mxu0 0.0
  %5601 = vmatpush1.msra.mxu0 0.0
  %5602 = vmatprep.subr.mxu0 0.0
  %5603 = vmatpush1.msra.mxu0 0.0
  %5604 = vmatprep.subr.mxu0 0.0
  %5605 = vmatpush1.msra.mxu0 0.0
  %5606 = vmatprep.subr.mxu0 0.0
  %5607 = vmatpush1.msra.mxu0 0.0
  %5608 = vmatprep.subr.mxu0 0.0
  %5609 = vmatpush1.msra.mxu0 0.0
  %5610 = vmatprep.subr.mxu0 0.0
  %5611 = vmatpush1.msra.mxu0 0.0
  %5612 = vmatprep.subr.mxu0 0.0
  %5613 = vmatpush1.msra.mxu0 0.0
  %5614 = vmatprep.subr.mxu0 0.0
  %5615 = vmatpush1.msra.mxu0 0.0
  %5616 = vmatprep.subr.mxu0 0.0
  %5617 = vmatpush1.msra.mxu0 0.0
  %5618 = vmatprep.subr.mxu0 0.0
  %5619 = vmatpush1.msra.mxu0 0.0
  %5620 = vmatprep.subr.mxu0 0.0
  %5621 = vmatpush1.msra.mxu0 0.0
  %5622 = vmatprep.subr.mxu0 0.0
  %5623 = vmatpush1.msra.mxu0 0.0
  %5624 = vmatprep.subr.mxu0 0.0
  %5625 = vmatpush1.msra.mxu0 0.0
  %5626 = vmatprep.subr.mxu0 0.0
  %5627 = vmatpush1.msra.mxu0 0.0
  %5628 = vmatprep.subr.mxu0 0.0
  %5629 = vmatpush1.msra.mxu0 0.0
  %5630 = vmatprep.subr.mxu0 0.0
  %5631 = vmatpush1.msra.mxu0 0.0
  %5632 = vmatprep.subr.mxu0 0.0
  %5633 = vmatpush1.msra.mxu0 0.0
  %5634 = vmatprep.subr.mxu0 0.0
  %5635 = vmatpush1.msra.mxu0 0.0
  %5636 = vmatprep.subr.mxu0 0.0
  %5637 = vmatpush1.msra.mxu0 0.0
  %5638 = vmatprep.subr.mxu0 0.0
  %5639 = vmatpush1.msra.mxu0 0.0
  %5640 = vmatprep.subr.mxu0 0.0
  %5641 = vmatpush1.msra.mxu0 0.0
  %5642 = vmatprep.mubr.f32.mxu0 0.0
  %v5643 = vand.u32 %v5244, 4294901760
  %v5644 = vsub.f32 %v5244, %v5643
  %v5645 = vand.u32 %v5644, 4294901760
  %5646 = vmatmul.mubr.f32.gmra.mrb[0].mxu0 %v5645
  %v5647 = vpop.f32.mrb[0].mxu0
  %v5648 = vadd.f32 %v5550, %v5647
  %v5649 = vpop.f32.mrb[0].mxu0
  %5650 = vmatprep.mubr.f32.mxu0 0.0
  %v5651 = vand.u32 %v5247, 4294901760
  %v5652 = vsub.f32 %v5247, %v5651
  %v5653 = vand.u32 %v5652, 4294901760
  %5654 = vmatmul.mubr.f32.gmra.mrb[0].mxu0 %v5653
  %v5655 = vpop.f32.mrb[0].mxu0
  %v5656 = vadd.f32 %v5557, %v5655
  %v5657 = vpop.f32.mrb[0].mxu0
  %5658 = vmatprep.mubr.f32.mxu0 0.0
  %v5659 = vand.u32 %v5250, 4294901760
  %v5660 = vsub.f32 %v5250, %v5659
  %v5661 = vand.u32 %v5660, 4294901760
  %5662 = vmatmul.mubr.f32.gmra.mrb[0].mxu0 %v5661
  %v5663 = vpop.f32.mrb[0].mxu0
  %v5664 = vadd.f32 %v5564, %v5663
  %v5665 = vpop.f32.mrb[0].mxu0
  %5666 = vmatprep.mubr.f32.mxu0 0.0
  %v5667 = vand.u32 %v5253, 4294901760
  %v5668 = vsub.f32 %v5253, %v5667
  %v5669 = vand.u32 %v5668, 4294901760
  %5670 = vmatmul.mubr.f32.gmra.mrb[0].mxu0 %v5669
  %v5671 = vpop.f32.mrb[0].mxu0
  %v5672 = vadd.f32 %v5571, %v5671
  %v5673 = vpop.f32.mrb[0].mxu0
  %5674 = vdwg.mxu0
  %5675 = vmatprep.subr.mxu0 0.0
  %v5676 = vand.u32 %v59, 4294901760
  %v5677 = vsub.f32 %v59, %v5676
  %v5678 = vand.u32 %v5677, 4294901760
  %5679 = vmatpush1.msra.mxu0 %v5678
  %5680 = vmatprep.subr.mxu0 0.0
  %v5681 = vand.u32 %v60, 4294901760
  %v5682 = vsub.f32 %v60, %v5681
  %v5683 = vand.u32 %v5682, 4294901760
  %5684 = vmatpush1.msra.mxu0 %v5683
  %5685 = vmatprep.subr.mxu0 0.0
  %v5686 = vand.u32 %v61, 4294901760
  %v5687 = vsub.f32 %v61, %v5686
  %v5688 = vand.u32 %v5687, 4294901760
  %5689 = vmatpush1.msra.mxu0 %v5688
  %5690 = vmatprep.subr.mxu0 0.0
  %v5691 = vand.u32 %v62, 4294901760
  %v5692 = vsub.f32 %v62, %v5691
  %v5693 = vand.u32 %v5692, 4294901760
  %5694 = vmatpush1.msra.mxu0 %v5693
  %5695 = vmatprep.subr.mxu0 0.0
  %5696 = vmatpush1.msra.mxu0 0.0
  %5697 = vmatprep.subr.mxu0 0.0
  %5698 = vmatpush1.msra.mxu0 0.0
  %5699 = vmatprep.subr.mxu0 0.0
  %5700 = vmatpush1.msra.mxu0 0.0
  %5701 = vmatprep.subr.mxu0 0.0
  %5702 = vmatpush1.msra.mxu0 0.0
  %5703 = vmatprep.subr.mxu0 0.0
  %5704 = vmatpush1.msra.mxu0 0.0
  %5705 = vmatprep.subr.mxu0 0.0
  %5706 = vmatpush1.msra.mxu0 0.0
  %5707 = vmatprep.subr.mxu0 0.0
  %5708 = vmatpush1.msra.mxu0 0.0
  %5709 = vmatprep.subr.mxu0 0.0
  %5710 = vmatpush1.msra.mxu0 0.0
  %5711 = vmatprep.subr.mxu0 0.0
  %5712 = vmatpush1.msra.mxu0 0.0
  %5713 = vmatprep.subr.mxu0 0.0
  %5714 = vmatpush1.msra.mxu0 0.0
  %5715 = vmatprep.subr.mxu0 0.0
  %5716 = vmatpush1.msra.mxu0 0.0
  %5717 = vmatprep.subr.mxu0 0.0
  %5718 = vmatpush1.msra.mxu0 0.0
  %5719 = vmatprep.subr.mxu0 0.0
  %5720 = vmatpush1.msra.mxu0 0.0
  %5721 = vmatprep.subr.mxu0 0.0
  %5722 = vmatpush1.msra.mxu0 0.0
  %5723 = vmatprep.subr.mxu0 0.0
  %5724 = vmatpush1.msra.mxu0 0.0
  %5725 = vmatprep.subr.mxu0 0.0
  %5726 = vmatpush1.msra.mxu0 0.0
  %5727 = vmatprep.subr.mxu0 0.0
  %5728 = vmatpush1.msra.mxu0 0.0
  %5729 = vmatprep.subr.mxu0 0.0
  %5730 = vmatpush1.msra.mxu0 0.0
  %5731 = vmatprep.subr.mxu0 0.0
  %5732 = vmatpush1.msra.mxu0 0.0
  %5733 = vmatprep.subr.mxu0 0.0
  %5734 = vmatpush1.msra.mxu0 0.0
  %5735 = vmatprep.subr.mxu0 0.0
  %5736 = vmatpush1.msra.mxu0 0.0
  %5737 = vmatprep.subr.mxu0 0.0
  %5738 = vmatpush1.msra.mxu0 0.0
  %5739 = vmatprep.subr.mxu0 0.0
  %5740 = vmatpush1.msra.mxu0 0.0
  %5741 = vmatprep.subr.mxu0 0.0
  %5742 = vmatpush1.msra.mxu0 0.0
  %5743 = vmatprep.subr.mxu0 0.0
  %5744 = vmatpush1.msra.mxu0 0.0
  %5745 = vmatprep.subr.mxu0 0.0
  %5746 = vmatpush1.msra.mxu0 0.0
  %5747 = vmatprep.subr.mxu0 0.0
  %5748 = vmatpush1.msra.mxu0 0.0
  %5749 = vmatprep.subr.mxu0 0.0
  %5750 = vmatpush1.msra.mxu0 0.0
  %5751 = vmatprep.mubr.f32.mxu0 0.0
  %v5752 = vand.u32 %v5244, 4294901760
  %5753 = vmatmul.mubr.f32.gmra.mrb[0].mxu0 %v5752
  %v5754 = vpop.f32.mrb[0].mxu0
  %v5755 = vadd.f32 %v5648, %v5754
  %v5756 = vpop.f32.mrb[0].mxu0
  %5757 = vmatprep.mubr.f32.mxu0 0.0
  %v5758 = vand.u32 %v5247, 4294901760
  %5759 = vmatmul.mubr.f32.gmra.mrb[0].mxu0 %v5758
  %v5760 = vpop.f32.mrb[0].mxu0
  %v5761 = vadd.f32 %v5656, %v5760
  %v5762 = vpop.f32.mrb[0].mxu0
  %5763 = vmatprep.mubr.f32.mxu0 0.0
  %v5764 = vand.u32 %v5250, 4294901760
  %5765 = vmatmul.mubr.f32.gmra.mrb[0].mxu0 %v5764
  %v5766 = vpop.f32.mrb[0].mxu0
  %v5767 = vadd.f32 %v5664, %v5766
  %v5768 = vpop.f32.mrb[0].mxu0
  %5769 = vmatprep.mubr.f32.mxu0 0.0
  %v5770 = vand.u32 %v5253, 4294901760
  %5771 = vmatmul.mubr.f32.gmra.mrb[0].mxu0 %v5770
  %v5772 = vpop.f32.mrb[0].mxu0
  %v5773 = vadd.f32 %v5672, %v5772
  %v5774 = vpop.f32.mrb[0].mxu0
  %5775 = vdwg.mxu0
  %5776 = vmatprep.subr.mxu0 0.0
  %v5777 = vand.u32 %v59, 4294901760
  %5778 = vmatpush1.msra.mxu0 %v5777
  %5779 = vmatprep.subr.mxu0 0.0
  %v5780 = vand.u32 %v60, 4294901760
  %5781 = vmatpush1.msra.mxu0 %v5780
  %5782 = vmatprep.subr.mxu0 0.0
  %v5783 = vand.u32 %v61, 4294901760
  %5784 = vmatpush1.msra.mxu0 %v5783
  %5785 = vmatprep.subr.mxu0 0.0
  %v5786 = vand.u32 %v62, 4294901760
  %5787 = vmatpush1.msra.mxu0 %v5786
  %5788 = vmatprep.subr.mxu0 0.0
  %5789 = vmatpush1.msra.mxu0 0.0
  %5790 = vmatprep.subr.mxu0 0.0
  %5791 = vmatpush1.msra.mxu0 0.0
  %5792 = vmatprep.subr.mxu0 0.0
  %5793 = vmatpush1.msra.mxu0 0.0
  %5794 = vmatprep.subr.mxu0 0.0
  %5795 = vmatpush1.msra.mxu0 0.0
  %5796 = vmatprep.subr.mxu0 0.0
  %5797 = vmatpush1.msra.mxu0 0.0
  %5798 = vmatprep.subr.mxu0 0.0
  %5799 = vmatpush1.msra.mxu0 0.0
  %5800 = vmatprep.subr.mxu0 0.0
  %5801 = vmatpush1.msra.mxu0 0.0
  %5802 = vmatprep.subr.mxu0 0.0
  %5803 = vmatpush1.msra.mxu0 0.0
  %5804 = vmatprep.subr.mxu0 0.0
  %5805 = vmatpush1.msra.mxu0 0.0
  %5806 = vmatprep.subr.mxu0 0.0
  %5807 = vmatpush1.msra.mxu0 0.0
  %5808 = vmatprep.subr.mxu0 0.0
  %5809 = vmatpush1.msra.mxu0 0.0
  %5810 = vmatprep.subr.mxu0 0.0
  %5811 = vmatpush1.msra.mxu0 0.0
  %5812 = vmatprep.subr.mxu0 0.0
  %5813 = vmatpush1.msra.mxu0 0.0
  %5814 = vmatprep.subr.mxu0 0.0
  %5815 = vmatpush1.msra.mxu0 0.0
  %5816 = vmatprep.subr.mxu0 0.0
  %5817 = vmatpush1.msra.mxu0 0.0
  %5818 = vmatprep.subr.mxu0 0.0
  %5819 = vmatpush1.msra.mxu0 0.0
  %5820 = vmatprep.subr.mxu0 0.0
  %5821 = vmatpush1.msra.mxu0 0.0
  %5822 = vmatprep.subr.mxu0 0.0
  %5823 = vmatpush1.msra.mxu0 0.0
  %5824 = vmatprep.subr.mxu0 0.0
  %5825 = vmatpush1.msra.mxu0 0.0
  %5826 = vmatprep.subr.mxu0 0.0
  %5827 = vmatpush1.msra.mxu0 0.0
  %5828 = vmatprep.subr.mxu0 0.0
  %5829 = vmatpush1.msra.mxu0 0.0
  %5830 = vmatprep.subr.mxu0 0.0
  %5831 = vmatpush1.msra.mxu0 0.0
  %5832 = vmatprep.subr.mxu0 0.0
  %5833 = vmatpush1.msra.mxu0 0.0
  %5834 = vmatprep.subr.mxu0 0.0
  %5835 = vmatpush1.msra.mxu0 0.0
  %5836 = vmatprep.subr.mxu0 0.0
  %5837 = vmatpush1.msra.mxu0 0.0
  %5838 = vmatprep.subr.mxu0 0.0
  %5839 = vmatpush1.msra.mxu0 0.0
  %5840 = vmatprep.subr.mxu0 0.0
  %5841 = vmatpush1.msra.mxu0 0.0
  %5842 = vmatprep.subr.mxu0 0.0
  %5843 = vmatpush1.msra.mxu0 0.0
  %5844 = vmatprep.mubr.f32.mxu0 0.0
  %v5845 = vand.u32 %v5244, 4294901760
  %5846 = vmatmul.mubr.f32.gmra.mrb[0].mxu0 %v5845
  %v5847 = vpop.f32.mrb[0].mxu0
  %v5848 = vadd.f32 %v5755, %v5847
  %v5849 = vpop.f32.mrb[0].mxu0
  %5850 = vmatprep.mubr.f32.mxu0 0.0
  %v5851 = vand.u32 %v5247, 4294901760
  %5852 = vmatmul.mubr.f32.gmra.mrb[0].mxu0 %v5851
  %v5853 = vpop.f32.mrb[0].mxu0
  %v5854 = vadd.f32 %v5761, %v5853
  %v5855 = vpop.f32.mrb[0].mxu0
  %5856 = vmatprep.mubr.f32.mxu0 0.0
  %v5857 = vand.u32 %v5250, 4294901760
  %5858 = vmatmul.mubr.f32.gmra.mrb[0].mxu0 %v5857
  %v5859 = vpop.f32.mrb[0].mxu0
  %v5860 = vadd.f32 %v5767, %v5859
  %v5861 = vpop.f32.mrb[0].mxu0
  %5862 = vmatprep.mubr.f32.mxu0 0.0
  %v5863 = vand.u32 %v5253, 4294901760
  %5864 = vmatmul.mubr.f32.gmra.mrb[0].mxu0 %v5863
  %v5865 = vpop.f32.mrb[0].mxu0
  %v5866 = vadd.f32 %v5773, %v5865
  %v5867 = vpop.f32.mrb[0].mxu0
  %5868 = vdwg.mxu0
  %v5869 = vmul.f32 %v5848, 0.25
  %v5870 = vmul.f32 %v5854, 0.25
  %v5871 = vmul.f32 %v5860, 0.25
  %v5872 = vmul.f32 %v5866, 0.25
  %v5873 = vmax.f32 %v5869, %v5871
  %v5874 = vmax.f32 %v5870, %v5872
  %v5875 = vsub.f32 %v5869, %v5873
  %v5876 = vsub.f32 %v5870, %v5874
  %v5877 = vmul.f32 %v5875, 1.442695
  %v5878 = vpow.pop %v5877
  %v5879 = vmul.f32 %v5876, 1.442695
  %v5880 = vpow.pop %v5879
  %v5881 = vsub.f32 %v5871, %v5873
  %v5882 = vsub.f32 %v5872, %v5874
  %v5883 = vmul.f32 %v5881, 1.442695
  %v5884 = vpow.pop %v5883
  %v5885 = vmul.f32 %v5882, 1.442695
  %v5886 = vpow.pop %v5885
  %v5887 = vadd.f32 %v5878, %v5884
  %v5888 = vadd.f32 %v5880, %v5886
  %v5889 = vrcp.pop %v5887
  %v5890 = vmul.f32 1.0, %v5889
  %v5891 = vrcp.pop %v5888
  %v5892 = vmul.f32 1.0, %v5891
  %v5893 = vmul.f32 %v5878, %v5890
  %v5894 = vmul.f32 %v5880, %v5892
  %v5895 = vmul.f32 %v5884, %v5890
  %v5896 = vmul.f32 %v5886, %v5892
  %5897 = vrot.lane.b32.xlu0 %v5202, 64
  %v5898 = vpop.permute.xlu0 %5897
  %5899 = vrot.lane.b32.xlu0 %v5208, 64
  %v5900 = vpop.permute.xlu0 %5899
  %v5903 = vmul.f32 %v5893, %v5898
  %v5904 = vmul.f32 %v5894, %v5900
  %5905 = vrot.lane.b32.xlu0 %v5214, 64
  %v5906 = vpop.permute.xlu0 %5905
  %5907 = vrot.lane.b32.xlu0 %v5220, 64
  %v5908 = vpop.permute.xlu0 %5907
  %v5911 = vmul.f32 %v5895, %v5906
  %v5912 = vmul.f32 %v5896, %v5908
  %v5913 = vadd.f32 %v5903, %v5911
  %v5914 = vadd.f32 %v5904, %v5912
  %s5915 = scalar_lea.vmem %s7, 32
  %v5916 = vld [vmem:[%s5915] sm:$0xff]
  %v5917 = vld [vmem:[%s5915 + $0x8] sm:$0xff]
  %v5918 = vld [vmem:[%s5915 + $0x10] sm:$0xff]
  %v5919 = vld [vmem:[%s5915 + $0x18] sm:$0xff]
  %s5920 = scalar_lea.vmem %s8, 1
  %v5921 = vld [vmem:[%s5920] sm:$0x1]
  %v5923 = vlaneseq
  %v5924 = vshrl.u32 %v5923, 7
  %v5925 = vsub.s32 0, %v5924
  %v5926 = vrot.slane %v5921, %v5925
  %v5929 = vsel %vm80, %v5913, 0
  %v5932 = vsel %vm80, %v5914, 0
  %5934 = vmatprep.subr.mxu0 0.0
  %v5935 = vand.u32 %v5916, 4294901760
  %5936 = vmatpush1.msra.mxu0 %v5935
  %5937 = vmatprep.subr.mxu0 0.0
  %v5938 = vand.u32 %v5917, 4294901760
  %5939 = vmatpush1.msra.mxu0 %v5938
  %5940 = vmatprep.subr.mxu0 0.0
  %v5941 = vand.u32 %v5918, 4294901760
  %5942 = vmatpush1.msra.mxu0 %v5941
  %5943 = vmatprep.subr.mxu0 0.0
  %v5944 = vand.u32 %v5919, 4294901760
  %5945 = vmatpush1.msra.mxu0 %v5944
  %5946 = vmatprep.subr.mxu0 0.0
  %5947 = vmatpush1.msra.mxu0 0.0
  %5948 = vmatprep.subr.mxu0 0.0
  %5949 = vmatpush1.msra.mxu0 0.0
  %5950 = vmatprep.subr.mxu0 0.0
  %5951 = vmatpush1.msra.mxu0 0.0
  %5952 = vmatprep.subr.mxu0 0.0
  %5953 = vmatpush1.msra.mxu0 0.0
  %5954 = vmatprep.subr.mxu0 0.0
  %5955 = vmatpush1.msra.mxu0 0.0
  %5956 = vmatprep.subr.mxu0 0.0
  %5957 = vmatpush1.msra.mxu0 0.0
  %5958 = vmatprep.subr.mxu0 0.0
  %5959 = vmatpush1.msra.mxu0 0.0
  %5960 = vmatprep.subr.mxu0 0.0
  %5961 = vmatpush1.msra.mxu0 0.0
  %5962 = vmatprep.subr.mxu0 0.0
  %5963 = vmatpush1.msra.mxu0 0.0
  %5964 = vmatprep.subr.mxu0 0.0
  %5965 = vmatpush1.msra.mxu0 0.0
  %5966 = vmatprep.subr.mxu0 0.0
  %5967 = vmatpush1.msra.mxu0 0.0
  %5968 = vmatprep.subr.mxu0 0.0
  %5969 = vmatpush1.msra.mxu0 0.0
  %5970 = vmatprep.subr.mxu0 0.0
  %5971 = vmatpush1.msra.mxu0 0.0
  %5972 = vmatprep.subr.mxu0 0.0
  %5973 = vmatpush1.msra.mxu0 0.0
  %5974 = vmatprep.subr.mxu0 0.0
  %5975 = vmatpush1.msra.mxu0 0.0
  %5976 = vmatprep.subr.mxu0 0.0
  %5977 = vmatpush1.msra.mxu0 0.0
  %5978 = vmatprep.subr.mxu0 0.0
  %5979 = vmatpush1.msra.mxu0 0.0
  %5980 = vmatprep.subr.mxu0 0.0
  %5981 = vmatpush1.msra.mxu0 0.0
  %5982 = vmatprep.subr.mxu0 0.0
  %5983 = vmatpush1.msra.mxu0 0.0
  %5984 = vmatprep.subr.mxu0 0.0
  %5985 = vmatpush1.msra.mxu0 0.0
  %5986 = vmatprep.subr.mxu0 0.0
  %5987 = vmatpush1.msra.mxu0 0.0
  %5988 = vmatprep.subr.mxu0 0.0
  %5989 = vmatpush1.msra.mxu0 0.0
  %5990 = vmatprep.subr.mxu0 0.0
  %5991 = vmatpush1.msra.mxu0 0.0
  %5992 = vmatprep.subr.mxu0 0.0
  %5993 = vmatpush1.msra.mxu0 0.0
  %5994 = vmatprep.subr.mxu0 0.0
  %5995 = vmatpush1.msra.mxu0 0.0
  %5996 = vmatprep.subr.mxu0 0.0
  %5997 = vmatpush1.msra.mxu0 0.0
  %5998 = vmatprep.subr.mxu0 0.0
  %5999 = vmatpush1.msra.mxu0 0.0
  %6000 = vmatprep.subr.mxu0 0.0
  %6001 = vmatpush1.msra.mxu0 0.0
  %6002 = vmatprep.mubr.f32.mxu0 0.0
  %v6003 = vand.u32 %v5929, 4294901760
  %v6004 = vsub.f32 %v5929, %v6003
  %v6005 = vand.u32 %v6004, 4294901760
  %v6006 = vsub.f32 %v6004, %v6005
  %v6007 = vand.u32 %v6006, 4294901760
  %6008 = vmatmul.mubr.f32.gmra.mrb[0].mxu0 %v6007
  %v6009 = vpop.f32.mrb[0].mxu0
  %v6010 = vadd.f32 %v5926, %v6009
  %v6011 = vpop.f32.mrb[0].mxu0
  %6012 = vmatprep.mubr.f32.mxu0 0.0
  %v6013 = vand.u32 %v5932, 4294901760
  %v6014 = vsub.f32 %v5932, %v6013
  %v6015 = vand.u32 %v6014, 4294901760
  %v6016 = vsub.f32 %v6014, %v6015
  %v6017 = vand.u32 %v6016, 4294901760
  %6018 = vmatmul.mubr.f32.gmra.mrb[0].mxu0 %v6017
  %v6019 = vpop.f32.mrb[0].mxu0
  %v6020 = vadd.f32 %v5926, %v6019
  %v6021 = vpop.f32.mrb[0].mxu0
  %6022 = vdwg.mxu0
  %6023 = vmatprep.subr.mxu0 0.0
  %v6024 = vand.u32 %v5916, 4294901760
  %v6025 = vsub.f32 %v5916, %v6024
  %v6026 = vand.u32 %v6025, 4294901760
  %v6027 = vsub.f32 %v6025, %v6026
  %v6028 = vand.u32 %v6027, 4294901760
  %6029 = vmatpush1.msra.mxu0 %v6028
  %6030 = vmatprep.subr.mxu0 0.0
  %v6031 = vand.u32 %v5917, 4294901760
  %v6032 = vsub.f32 %v5917, %v6031
  %v6033 = vand.u32 %v6032, 4294901760
  %v6034 = vsub.f32 %v6032, %v6033
  %v6035 = vand.u32 %v6034, 4294901760
  %6036 = vmatpush1.msra.mxu0 %v6035
  %6037 = vmatprep.subr.mxu0 0.0
  %v6038 = vand.u32 %v5918, 4294901760
  %v6039 = vsub.f32 %v5918, %v6038
  %v6040 = vand.u32 %v6039, 4294901760
  %v6041 = vsub.f32 %v6039, %v6040
  %v6042 = vand.u32 %v6041, 4294901760
  %6043 = vmatpush1.msra.mxu0 %v6042
  %6044 = vmatprep.subr.mxu0 0.0
  %v6045 = vand.u32 %v5919, 4294901760
  %v6046 = vsub.f32 %v5919, %v6045
  %v6047 = vand.u32 %v6046, 4294901760
  %v6048 = vsub.f32 %v6046, %v6047
  %v6049 = vand.u32 %v6048, 4294901760
  %6050 = vmatpush1.msra.mxu0 %v6049
  %6051 = vmatprep.subr.mxu0 0.0
  %6052 = vmatpush1.msra.mxu0 0.0
  %6053 = vmatprep.subr.mxu0 0.0
  %6054 = vmatpush1.msra.mxu0 0.0
  %6055 = vmatprep.subr.mxu0 0.0
  %6056 = vmatpush1.msra.mxu0 0.0
  %6057 = vmatprep.subr.mxu0 0.0
  %6058 = vmatpush1.msra.mxu0 0.0
  %6059 = vmatprep.subr.mxu0 0.0
  %6060 = vmatpush1.msra.mxu0 0.0
  %6061 = vmatprep.subr.mxu0 0.0
  %6062 = vmatpush1.msra.mxu0 0.0
  %6063 = vmatprep.subr.mxu0 0.0
  %6064 = vmatpush1.msra.mxu0 0.0
  %6065 = vmatprep.subr.mxu0 0.0
  %6066 = vmatpush1.msra.mxu0 0.0
  %6067 = vmatprep.subr.mxu0 0.0
  %6068 = vmatpush1.msra.mxu0 0.0
  %6069 = vmatprep.subr.mxu0 0.0
  %6070 = vmatpush1.msra.mxu0 0.0
  %6071 = vmatprep.subr.mxu0 0.0
  %6072 = vmatpush1.msra.mxu0 0.0
  %6073 = vmatprep.subr.mxu0 0.0
  %6074 = vmatpush1.msra.mxu0 0.0
  %6075 = vmatprep.subr.mxu0 0.0
  %6076 = vmatpush1.msra.mxu0 0.0
  %6077 = vmatprep.subr.mxu0 0.0
  %6078 = vmatpush1.msra.mxu0 0.0
  %6079 = vmatprep.subr.mxu0 0.0
  %6080 = vmatpush1.msra.mxu0 0.0
  %6081 = vmatprep.subr.mxu0 0.0
  %6082 = vmatpush1.msra.mxu0 0.0
  %6083 = vmatprep.subr.mxu0 0.0
  %6084 = vmatpush1.msra.mxu0 0.0
  %6085 = vmatprep.subr.mxu0 0.0
  %6086 = vmatpush1.msra.mxu0 0.0
  %6087 = vmatprep.subr.mxu0 0.0
  %6088 = vmatpush1.msra.mxu0 0.0
  %6089 = vmatprep.subr.mxu0 0.0
  %6090 = vmatpush1.msra.mxu0 0.0
  %6091 = vmatprep.subr.mxu0 0.0
  %6092 = vmatpush1.msra.mxu0 0.0
  %6093 = vmatprep.subr.mxu0 0.0
  %6094 = vmatpush1.msra.mxu0 0.0
  %6095 = vmatprep.subr.mxu0 0.0
  %6096 = vmatpush1.msra.mxu0 0.0
  %6097 = vmatprep.subr.mxu0 0.0
  %6098 = vmatpush1.msra.mxu0 0.0
  %6099 = vmatprep.subr.mxu0 0.0
  %6100 = vmatpush1.msra.mxu0 0.0
  %6101 = vmatprep.subr.mxu0 0.0
  %6102 = vmatpush1.msra.mxu0 0.0
  %6103 = vmatprep.subr.mxu0 0.0
  %6104 = vmatpush1.msra.mxu0 0.0
  %6105 = vmatprep.subr.mxu0 0.0
  %6106 = vmatpush1.msra.mxu0 0.0
  %6107 = vmatprep.mubr.f32.mxu0 0.0
  %v6108 = vand.u32 %v5929, 4294901760
  %6109 = vmatmul.mubr.f32.gmra.mrb[0].mxu0 %v6108
  %v6110 = vpop.f32.mrb[0].mxu0
  %v6111 = vadd.f32 %v6010, %v6110
  %v6112 = vpop.f32.mrb[0].mxu0
  %6113 = vmatprep.mubr.f32.mxu0 0.0
  %v6114 = vand.u32 %v5932, 4294901760
  %6115 = vmatmul.mubr.f32.gmra.mrb[0].mxu0 %v6114
  %v6116 = vpop.f32.mrb[0].mxu0
  %v6117 = vadd.f32 %v6020, %v6116
  %v6118 = vpop.f32.mrb[0].mxu0
  %6119 = vdwg.mxu0
  %6120 = vmatprep.subr.mxu0 0.0
  %v6121 = vand.u32 %v5916, 4294901760
  %v6122 = vsub.f32 %v5916, %v6121
  %6123 = vmatpush1.msra.mxu0 %v6122
  %6124 = vmatprep.subr.mxu0 0.0
  %v6125 = vand.u32 %v5917, 4294901760
  %v6126 = vsub.f32 %v5917, %v6125
  %6127 = vmatpush1.msra.mxu0 %v6126
  %6128 = vmatprep.subr.mxu0 0.0
  %v6129 = vand.u32 %v5918, 4294901760
  %v6130 = vsub.f32 %v5918, %v6129
  %6131 = vmatpush1.msra.mxu0 %v6130
  %6132 = vmatprep.subr.mxu0 0.0
  %v6133 = vand.u32 %v5919, 4294901760
  %v6134 = vsub.f32 %v5919, %v6133
  %6135 = vmatpush1.msra.mxu0 %v6134
  %6136 = vmatprep.subr.mxu0 0.0
  %6137 = vmatpush1.msra.mxu0 0.0
  %6138 = vmatprep.subr.mxu0 0.0
  %6139 = vmatpush1.msra.mxu0 0.0
  %6140 = vmatprep.subr.mxu0 0.0
  %6141 = vmatpush1.msra.mxu0 0.0
  %6142 = vmatprep.subr.mxu0 0.0
  %6143 = vmatpush1.msra.mxu0 0.0
  %6144 = vmatprep.subr.mxu0 0.0
  %6145 = vmatpush1.msra.mxu0 0.0
  %6146 = vmatprep.subr.mxu0 0.0
  %6147 = vmatpush1.msra.mxu0 0.0
  %6148 = vmatprep.subr.mxu0 0.0
  %6149 = vmatpush1.msra.mxu0 0.0
  %6150 = vmatprep.subr.mxu0 0.0
  %6151 = vmatpush1.msra.mxu0 0.0
  %6152 = vmatprep.subr.mxu0 0.0
  %6153 = vmatpush1.msra.mxu0 0.0
  %6154 = vmatprep.subr.mxu0 0.0
  %6155 = vmatpush1.msra.mxu0 0.0
  %6156 = vmatprep.subr.mxu0 0.0
  %6157 = vmatpush1.msra.mxu0 0.0
  %6158 = vmatprep.subr.mxu0 0.0
  %6159 = vmatpush1.msra.mxu0 0.0
  %6160 = vmatprep.subr.mxu0 0.0
  %6161 = vmatpush1.msra.mxu0 0.0
  %6162 = vmatprep.subr.mxu0 0.0
  %6163 = vmatpush1.msra.mxu0 0.0
  %6164 = vmatprep.subr.mxu0 0.0
  %6165 = vmatpush1.msra.mxu0 0.0
  %6166 = vmatprep.subr.mxu0 0.0
  %6167 = vmatpush1.msra.mxu0 0.0
  %6168 = vmatprep.subr.mxu0 0.0
  %6169 = vmatpush1.msra.mxu0 0.0
  %6170 = vmatprep.subr.mxu0 0.0
  %6171 = vmatpush1.msra.mxu0 0.0
  %6172 = vmatprep.subr.mxu0 0.0
  %6173 = vmatpush1.msra.mxu0 0.0
  %6174 = vmatprep.subr.mxu0 0.0
  %6175 = vmatpush1.msra.mxu0 0.0
  %6176 = vmatprep.subr.mxu0 0.0
  %6177 = vmatpush1.msra.mxu0 0.0
  %6178 = vmatprep.subr.mxu0 0.0
  %6179 = vmatpush1.msra.mxu0 0.0
  %6180 = vmatprep.subr.mxu0 0.0
  %6181 = vmatpush1.msra.mxu0 0.0
  %6182 = vmatprep.subr.mxu0 0.0
  %6183 = vmatpush1.msra.mxu0 0.0
  %6184 = vmatprep.subr.mxu0 0.0
  %6185 = vmatpush1.msra.mxu0 0.0
  %6186 = vmatprep.subr.mxu0 0.0
  %6187 = vmatpush1.msra.mxu0 0.0
  %6188 = vmatprep.subr.mxu0 0.0
  %6189 = vmatpush1.msra.mxu0 0.0
  %6190 = vmatprep.subr.mxu0 0.0
  %6191 = vmatpush1.msra.mxu0 0.0
  %6192 = vmatprep.mubr.f32.mxu0 0.0
  %v6193 = vand.u32 %v5929, 4294901760
  %v6194 = vsub.f32 %v5929, %v6193
  %6195 = vmatmul.mubr.f32.gmra.mrb[0].mxu0 %v6194
  %v6196 = vpop.f32.mrb[0].mxu0
  %v6197 = vadd.f32 %v6111, %v6196
  %v6198 = vpop.f32.mrb[0].mxu0
  %6199 = vmatprep.mubr.f32.mxu0 0.0
  %v6200 = vand.u32 %v5932, 4294901760
  %v6201 = vsub.f32 %v5932, %v6200
  %6202 = vmatmul.mubr.f32.gmra.mrb[0].mxu0 %v6201
  %v6203 = vpop.f32.mrb[0].mxu0
  %v6204 = vadd.f32 %v6117, %v6203
  %v6205 = vpop.f32.mrb[0].mxu0
  %6206 = vdwg.mxu0
  %6207 = vmatprep.subr.mxu0 0.0
  %v6208 = vand.u32 %v5916, 4294901760
  %6209 = vmatpush1.msra.mxu0 %v6208
  %6210 = vmatprep.subr.mxu0 0.0
  %v6211 = vand.u32 %v5917, 4294901760
  %6212 = vmatpush1.msra.mxu0 %v6211
  %6213 = vmatprep.subr.mxu0 0.0
  %v6214 = vand.u32 %v5918, 4294901760
  %6215 = vmatpush1.msra.mxu0 %v6214
  %6216 = vmatprep.subr.mxu0 0.0
  %v6217 = vand.u32 %v5919, 4294901760
  %6218 = vmatpush1.msra.mxu0 %v6217
  %6219 = vmatprep.subr.mxu0 0.0
  %6220 = vmatpush1.msra.mxu0 0.0
  %6221 = vmatprep.subr.mxu0 0.0
  %6222 = vmatpush1.msra.mxu0 0.0
  %6223 = vmatprep.subr.mxu0 0.0
  %6224 = vmatpush1.msra.mxu0 0.0
  %6225 = vmatprep.subr.mxu0 0.0
  %6226 = vmatpush1.msra.mxu0 0.0
  %6227 = vmatprep.subr.mxu0 0.0
  %6228 = vmatpush1.msra.mxu0 0.0
  %6229 = vmatprep.subr.mxu0 0.0
  %6230 = vmatpush1.msra.mxu0 0.0
  %6231 = vmatprep.subr.mxu0 0.0
  %6232 = vmatpush1.msra.mxu0 0.0
  %6233 = vmatprep.subr.mxu0 0.0
  %6234 = vmatpush1.msra.mxu0 0.0
  %6235 = vmatprep.subr.mxu0 0.0
  %6236 = vmatpush1.msra.mxu0 0.0
  %6237 = vmatprep.subr.mxu0 0.0
  %6238 = vmatpush1.msra.mxu0 0.0
  %6239 = vmatprep.subr.mxu0 0.0
  %6240 = vmatpush1.msra.mxu0 0.0
  %6241 = vmatprep.subr.mxu0 0.0
  %6242 = vmatpush1.msra.mxu0 0.0
  %6243 = vmatprep.subr.mxu0 0.0
  %6244 = vmatpush1.msra.mxu0 0.0
  %6245 = vmatprep.subr.mxu0 0.0
  %6246 = vmatpush1.msra.mxu0 0.0
  %6247 = vmatprep.subr.mxu0 0.0
  %6248 = vmatpush1.msra.mxu0 0.0
  %6249 = vmatprep.subr.mxu0 0.0
  %6250 = vmatpush1.msra.mxu0 0.0
  %6251 = vmatprep.subr.mxu0 0.0
  %6252 = vmatpush1.msra.mxu0 0.0
  %6253 = vmatprep.subr.mxu0 0.0
  %6254 = vmatpush1.msra.mxu0 0.0
  %6255 = vmatprep.subr.mxu0 0.0
  %6256 = vmatpush1.msra.mxu0 0.0
  %6257 = vmatprep.subr.mxu0 0.0
  %6258 = vmatpush1.msra.mxu0 0.0
  %6259 = vmatprep.subr.mxu0 0.0
  %6260 = vmatpush1.msra.mxu0 0.0
  %6261 = vmatprep.subr.mxu0 0.0
  %6262 = vmatpush1.msra.mxu0 0.0
  %6263 = vmatprep.subr.mxu0 0.0
  %6264 = vmatpush1.msra.mxu0 0.0
  %6265 = vmatprep.subr.mxu0 0.0
  %6266 = vmatpush1.msra.mxu0 0.0
  %6267 = vmatprep.subr.mxu0 0.0
  %6268 = vmatpush1.msra.mxu0 0.0
  %6269 = vmatprep.subr.mxu0 0.0
  %6270 = vmatpush1.msra.mxu0 0.0
  %6271 = vmatprep.subr.mxu0 0.0
  %6272 = vmatpush1.msra.mxu0 0.0
  %6273 = vmatprep.subr.mxu0 0.0
  %6274 = vmatpush1.msra.mxu0 0.0
  %6275 = vmatprep.mubr.f32.mxu0 0.0
  %v6276 = vand.u32 %v5929, 4294901760
  %v6277 = vsub.f32 %v5929, %v6276
  %v6278 = vand.u32 %v6277, 4294901760
  %6279 = vmatmul.mubr.f32.gmra.mrb[0].mxu0 %v6278
  %v6280 = vpop.f32.mrb[0].mxu0
  %v6281 = vadd.f32 %v6197, %v6280
  %v6282 = vpop.f32.mrb[0].mxu0
  %6283 = vmatprep.mubr.f32.mxu0 0.0
  %v6284 = vand.u32 %v5932, 4294901760
  %v6285 = vsub.f32 %v5932, %v6284
  %v6286 = vand.u32 %v6285, 4294901760
  %6287 = vmatmul.mubr.f32.gmra.mrb[0].mxu0 %v6286
  %v6288 = vpop.f32.mrb[0].mxu0
  %v6289 = vadd.f32 %v6204, %v6288
  %v6290 = vpop.f32.mrb[0].mxu0
  %6291 = vdwg.mxu0
  %6292 = vmatprep.subr.mxu0 0.0
  %v6293 = vand.u32 %v5916, 4294901760
  %v6294 = vsub.f32 %v5916, %v6293
  %v6295 = vand.u32 %v6294, 4294901760
  %6296 = vmatpush1.msra.mxu0 %v6295
  %6297 = vmatprep.subr.mxu0 0.0
  %v6298 = vand.u32 %v5917, 4294901760
  %v6299 = vsub.f32 %v5917, %v6298
  %v6300 = vand.u32 %v6299, 4294901760
  %6301 = vmatpush1.msra.mxu0 %v6300
  %6302 = vmatprep.subr.mxu0 0.0
  %v6303 = vand.u32 %v5918, 4294901760
  %v6304 = vsub.f32 %v5918, %v6303
  %v6305 = vand.u32 %v6304, 4294901760
  %6306 = vmatpush1.msra.mxu0 %v6305
  %6307 = vmatprep.subr.mxu0 0.0
  %v6308 = vand.u32 %v5919, 4294901760
  %v6309 = vsub.f32 %v5919, %v6308
  %v6310 = vand.u32 %v6309, 4294901760
  %6311 = vmatpush1.msra.mxu0 %v6310
  %6312 = vmatprep.subr.mxu0 0.0
  %6313 = vmatpush1.msra.mxu0 0.0
  %6314 = vmatprep.subr.mxu0 0.0
  %6315 = vmatpush1.msra.mxu0 0.0
  %6316 = vmatprep.subr.mxu0 0.0
  %6317 = vmatpush1.msra.mxu0 0.0
  %6318 = vmatprep.subr.mxu0 0.0
  %6319 = vmatpush1.msra.mxu0 0.0
  %6320 = vmatprep.subr.mxu0 0.0
  %6321 = vmatpush1.msra.mxu0 0.0
  %6322 = vmatprep.subr.mxu0 0.0
  %6323 = vmatpush1.msra.mxu0 0.0
  %6324 = vmatprep.subr.mxu0 0.0
  %6325 = vmatpush1.msra.mxu0 0.0
  %6326 = vmatprep.subr.mxu0 0.0
  %6327 = vmatpush1.msra.mxu0 0.0
  %6328 = vmatprep.subr.mxu0 0.0
  %6329 = vmatpush1.msra.mxu0 0.0
  %6330 = vmatprep.subr.mxu0 0.0
  %6331 = vmatpush1.msra.mxu0 0.0
  %6332 = vmatprep.subr.mxu0 0.0
  %6333 = vmatpush1.msra.mxu0 0.0
  %6334 = vmatprep.subr.mxu0 0.0
  %6335 = vmatpush1.msra.mxu0 0.0
  %6336 = vmatprep.subr.mxu0 0.0
  %6337 = vmatpush1.msra.mxu0 0.0
  %6338 = vmatprep.subr.mxu0 0.0
  %6339 = vmatpush1.msra.mxu0 0.0
  %6340 = vmatprep.subr.mxu0 0.0
  %6341 = vmatpush1.msra.mxu0 0.0
  %6342 = vmatprep.subr.mxu0 0.0
  %6343 = vmatpush1.msra.mxu0 0.0
  %6344 = vmatprep.subr.mxu0 0.0
  %6345 = vmatpush1.msra.mxu0 0.0
  %6346 = vmatprep.subr.mxu0 0.0
  %6347 = vmatpush1.msra.mxu0 0.0
  %6348 = vmatprep.subr.mxu0 0.0
  %6349 = vmatpush1.msra.mxu0 0.0
  %6350 = vmatprep.subr.mxu0 0.0
  %6351 = vmatpush1.msra.mxu0 0.0
  %6352 = vmatprep.subr.mxu0 0.0
  %6353 = vmatpush1.msra.mxu0 0.0
  %6354 = vmatprep.subr.mxu0 0.0
  %6355 = vmatpush1.msra.mxu0 0.0
  %6356 = vmatprep.subr.mxu0 0.0
  %6357 = vmatpush1.msra.mxu0 0.0
  %6358 = vmatprep.subr.mxu0 0.0
  %6359 = vmatpush1.msra.mxu0 0.0
  %6360 = vmatprep.subr.mxu0 0.0
  %6361 = vmatpush1.msra.mxu0 0.0
  %6362 = vmatprep.subr.mxu0 0.0
  %6363 = vmatpush1.msra.mxu0 0.0
  %6364 = vmatprep.subr.mxu0 0.0
  %6365 = vmatpush1.msra.mxu0 0.0
  %6366 = vmatprep.subr.mxu0 0.0
  %6367 = vmatpush1.msra.mxu0 0.0
  %6368 = vmatprep.mubr.f32.mxu0 0.0
  %v6369 = vand.u32 %v5929, 4294901760
  %6370 = vmatmul.mubr.f32.gmra.mrb[0].mxu0 %v6369
  %v6371 = vpop.f32.mrb[0].mxu0
  %v6372 = vadd.f32 %v6281, %v6371
  %v6373 = vpop.f32.mrb[0].mxu0
  %6374 = vmatprep.mubr.f32.mxu0 0.0
  %v6375 = vand.u32 %v5932, 4294901760
  %6376 = vmatmul.mubr.f32.gmra.mrb[0].mxu0 %v6375
  %v6377 = vpop.f32.mrb[0].mxu0
  %v6378 = vadd.f32 %v6289, %v6377
  %v6379 = vpop.f32.mrb[0].mxu0
  %6380 = vdwg.mxu0
  %6381 = vmatprep.subr.mxu0 0.0
  %v6382 = vand.u32 %v5916, 4294901760
  %6383 = vmatpush1.msra.mxu0 %v6382
  %6384 = vmatprep.subr.mxu0 0.0
  %v6385 = vand.u32 %v5917, 4294901760
  %6386 = vmatpush1.msra.mxu0 %v6385
  %6387 = vmatprep.subr.mxu0 0.0
  %v6388 = vand.u32 %v5918, 4294901760
  %6389 = vmatpush1.msra.mxu0 %v6388
  %6390 = vmatprep.subr.mxu0 0.0
  %v6391 = vand.u32 %v5919, 4294901760
  %6392 = vmatpush1.msra.mxu0 %v6391
  %6393 = vmatprep.subr.mxu0 0.0
  %6394 = vmatpush1.msra.mxu0 0.0
  %6395 = vmatprep.subr.mxu0 0.0
  %6396 = vmatpush1.msra.mxu0 0.0
  %6397 = vmatprep.subr.mxu0 0.0
  %6398 = vmatpush1.msra.mxu0 0.0
  %6399 = vmatprep.subr.mxu0 0.0
  %6400 = vmatpush1.msra.mxu0 0.0
  %6401 = vmatprep.subr.mxu0 0.0
  %6402 = vmatpush1.msra.mxu0 0.0
  %6403 = vmatprep.subr.mxu0 0.0
  %6404 = vmatpush1.msra.mxu0 0.0
  %6405 = vmatprep.subr.mxu0 0.0
  %6406 = vmatpush1.msra.mxu0 0.0
  %6407 = vmatprep.subr.mxu0 0.0
  %6408 = vmatpush1.msra.mxu0 0.0
  %6409 = vmatprep.subr.mxu0 0.0
  %6410 = vmatpush1.msra.mxu0 0.0
  %6411 = vmatprep.subr.mxu0 0.0
  %6412 = vmatpush1.msra.mxu0 0.0
  %6413 = vmatprep.subr.mxu0 0.0
  %6414 = vmatpush1.msra.mxu0 0.0
  %6415 = vmatprep.subr.mxu0 0.0
  %6416 = vmatpush1.msra.mxu0 0.0
  %6417 = vmatprep.subr.mxu0 0.0
  %6418 = vmatpush1.msra.mxu0 0.0
  %6419 = vmatprep.subr.mxu0 0.0
  %6420 = vmatpush1.msra.mxu0 0.0
  %6421 = vmatprep.subr.mxu0 0.0
  %6422 = vmatpush1.msra.mxu0 0.0
  %6423 = vmatprep.subr.mxu0 0.0
  %6424 = vmatpush1.msra.mxu0 0.0
  %6425 = vmatprep.subr.mxu0 0.0
  %6426 = vmatpush1.msra.mxu0 0.0
  %6427 = vmatprep.subr.mxu0 0.0
  %6428 = vmatpush1.msra.mxu0 0.0
  %6429 = vmatprep.subr.mxu0 0.0
  %6430 = vmatpush1.msra.mxu0 0.0
  %6431 = vmatprep.subr.mxu0 0.0
  %6432 = vmatpush1.msra.mxu0 0.0
  %6433 = vmatprep.subr.mxu0 0.0
  %6434 = vmatpush1.msra.mxu0 0.0
  %6435 = vmatprep.subr.mxu0 0.0
  %6436 = vmatpush1.msra.mxu0 0.0
  %6437 = vmatprep.subr.mxu0 0.0
  %6438 = vmatpush1.msra.mxu0 0.0
  %6439 = vmatprep.subr.mxu0 0.0
  %6440 = vmatpush1.msra.mxu0 0.0
  %6441 = vmatprep.subr.mxu0 0.0
  %6442 = vmatpush1.msra.mxu0 0.0
  %6443 = vmatprep.subr.mxu0 0.0
  %6444 = vmatpush1.msra.mxu0 0.0
  %6445 = vmatprep.subr.mxu0 0.0
  %6446 = vmatpush1.msra.mxu0 0.0
  %6447 = vmatprep.subr.mxu0 0.0
  %6448 = vmatpush1.msra.mxu0 0.0
  %6449 = vmatprep.mubr.f32.mxu0 0.0
  %v6450 = vand.u32 %v5929, 4294901760
  %6451 = vmatmul.mubr.f32.gmra.mrb[0].mxu0 %v6450
  %v6452 = vpop.f32.mrb[0].mxu0
  %v6453 = vadd.f32 %v6372, %v6452
  %v6454 = vpop.f32.mrb[0].mxu0
  %6455 = vmatprep.mubr.f32.mxu0 0.0
  %v6456 = vand.u32 %v5932, 4294901760
  %6457 = vmatmul.mubr.f32.gmra.mrb[0].mxu0 %v6456
  %v6458 = vpop.f32.mrb[0].mxu0
  %v6459 = vadd.f32 %v6378, %v6458
  %v6460 = vpop.f32.mrb[0].mxu0
  %6461 = vdwg.mxu0
  %v6462 = vadd.f32 %v4500, %v6453
  %v6463 = vadd.f32 %v4501, %v6459
  %v6464 = vsel %vm80, %v6462, 0.0
  %6465 = vadd.xlane.f32.xlu0 %v6464
  %v6466 = vpop.xlane.xlu0 %6465
  %v6467 = vsel %vm80, %v6463, 0.0
  %6468 = vadd.xlane.f32.xlu0 %v6467
  %v6469 = vpop.xlane.xlu0 %6468
  %v6470 = vmul.f32 %v6466, %v637
  %v6471 = vmul.f32 %v6469, %v637
  %v6472 = vsub.f32 %v6462, %v6470
  %v6473 = vsub.f32 %v6463, %v6471
  %v6474 = vmul.f32 %v6472, %v6472
  %v6475 = vmul.f32 %v6473, %v6473
  %v6476 = vsel %vm80, %v6474, 0.0
  %6477 = vadd.xlane.f32.xlu0 %v6476
  %v6478 = vpop.xlane.xlu0 %6477
  %v6479 = vsel %vm80, %v6475, 0.0
  %6480 = vadd.xlane.f32.xlu0 %v6479
  %v6481 = vpop.xlane.xlu0 %6480
  %v6482 = vmul.f32 %v6478, %v637
  %v6483 = vmul.f32 %v6481, %v637
  %v6484 = vadd.f32 %v6482, 1e-05
  %v6485 = vadd.f32 %v6483, 1e-05
  %v6486 = vrsqrt.pop %v6484
  %v6487 = vrsqrt.pop %v6485
  %v6488 = vmul.f32 %v6472, %v6486
  %v6489 = vmul.f32 %v6473, %v6487
  %v6491 = vlaneseq
  %v6492 = vshrl.u32 %v6491, 7
  %v6493 = vsub.s32 0, %v6492
  %v6494 = vrot.slane %v4509, %v6493
  %v6496 = vmul.f32 %v6488, %v6494
  %v6497 = vmul.f32 %v6489, %v6494
  %v6499 = vlaneseq
  %v6500 = vshrl.u32 %v6499, 7
  %v6501 = vsub.s32 0, %v6500
  %v6502 = vrot.slane %v4511, %v6501
  %v6504 = vadd.f32 %v6496, %v6502
  %v6505 = vadd.f32 %v6497, %v6502
  %s6506 = scalar_lea.vmem %s9, 32
  %v6507 = vld [vmem:[%s6506] sm:$0xff]
  %v6508 = vld [vmem:[%s6506 + $0x8] sm:$0xff]
  %v6509 = vld [vmem:[%s6506 + $0x10] sm:$0xff]
  %v6510 = vld [vmem:[%s6506 + $0x18] sm:$0xff]
  %s6511 = scalar_lea.vmem %s10, 1
  %v6512 = vld [vmem:[%s6511] sm:$0x1]
  %v6514 = vlaneseq
  %v6515 = vshrl.u32 %v6514, 7
  %v6516 = vsub.s32 0, %v6515
  %v6517 = vrot.slane %v6512, %v6516
  %v6520 = vsel %vm80, %v6504, 0
  %v6523 = vsel %vm80, %v6505, 0
  %6525 = vmatprep.subr.mxu0 0.0
  %v6526 = vand.u32 %v6507, 4294901760
  %6527 = vmatpush1.msra.mxu0 %v6526
  %6528 = vmatprep.subr.mxu0 0.0
  %v6529 = vand.u32 %v6508, 4294901760
  %6530 = vmatpush1.msra.mxu0 %v6529
  %6531 = vmatprep.subr.mxu0 0.0
  %v6532 = vand.u32 %v6509, 4294901760
  %6533 = vmatpush1.msra.mxu0 %v6532
  %6534 = vmatprep.subr.mxu0 0.0
  %v6535 = vand.u32 %v6510, 4294901760
  %6536 = vmatpush1.msra.mxu0 %v6535
  %6537 = vmatprep.subr.mxu0 0.0
  %6538 = vmatpush1.msra.mxu0 0.0
  %6539 = vmatprep.subr.mxu0 0.0
  %6540 = vmatpush1.msra.mxu0 0.0
  %6541 = vmatprep.subr.mxu0 0.0
  %6542 = vmatpush1.msra.mxu0 0.0
  %6543 = vmatprep.subr.mxu0 0.0
  %6544 = vmatpush1.msra.mxu0 0.0
  %6545 = vmatprep.subr.mxu0 0.0
  %6546 = vmatpush1.msra.mxu0 0.0
  %6547 = vmatprep.subr.mxu0 0.0
  %6548 = vmatpush1.msra.mxu0 0.0
  %6549 = vmatprep.subr.mxu0 0.0
  %6550 = vmatpush1.msra.mxu0 0.0
  %6551 = vmatprep.subr.mxu0 0.0
  %6552 = vmatpush1.msra.mxu0 0.0
  %6553 = vmatprep.subr.mxu0 0.0
  %6554 = vmatpush1.msra.mxu0 0.0
  %6555 = vmatprep.subr.mxu0 0.0
  %6556 = vmatpush1.msra.mxu0 0.0
  %6557 = vmatprep.subr.mxu0 0.0
  %6558 = vmatpush1.msra.mxu0 0.0
  %6559 = vmatprep.subr.mxu0 0.0
  %6560 = vmatpush1.msra.mxu0 0.0
  %6561 = vmatprep.subr.mxu0 0.0
  %6562 = vmatpush1.msra.mxu0 0.0
  %6563 = vmatprep.subr.mxu0 0.0
  %6564 = vmatpush1.msra.mxu0 0.0
  %6565 = vmatprep.subr.mxu0 0.0
  %6566 = vmatpush1.msra.mxu0 0.0
  %6567 = vmatprep.subr.mxu0 0.0
  %6568 = vmatpush1.msra.mxu0 0.0
  %6569 = vmatprep.subr.mxu0 0.0
  %6570 = vmatpush1.msra.mxu0 0.0
  %6571 = vmatprep.subr.mxu0 0.0
  %6572 = vmatpush1.msra.mxu0 0.0
  %6573 = vmatprep.subr.mxu0 0.0
  %6574 = vmatpush1.msra.mxu0 0.0
  %6575 = vmatprep.subr.mxu0 0.0
  %6576 = vmatpush1.msra.mxu0 0.0
  %6577 = vmatprep.subr.mxu0 0.0
  %6578 = vmatpush1.msra.mxu0 0.0
  %6579 = vmatprep.subr.mxu0 0.0
  %6580 = vmatpush1.msra.mxu0 0.0
  %6581 = vmatprep.subr.mxu0 0.0
  %6582 = vmatpush1.msra.mxu0 0.0
  %6583 = vmatprep.subr.mxu0 0.0
  %6584 = vmatpush1.msra.mxu0 0.0
  %6585 = vmatprep.subr.mxu0 0.0
  %6586 = vmatpush1.msra.mxu0 0.0
  %6587 = vmatprep.subr.mxu0 0.0
  %6588 = vmatpush1.msra.mxu0 0.0
  %6589 = vmatprep.subr.mxu0 0.0
  %6590 = vmatpush1.msra.mxu0 0.0
  %6591 = vmatprep.subr.mxu0 0.0
  %6592 = vmatpush1.msra.mxu0 0.0
  %6593 = vmatprep.mubr.f32.mxu0 0.0
  %v6594 = vand.u32 %v6520, 4294901760
  %v6595 = vsub.f32 %v6520, %v6594
  %v6596 = vand.u32 %v6595, 4294901760
  %v6597 = vsub.f32 %v6595, %v6596
  %v6598 = vand.u32 %v6597, 4294901760
  %6599 = vmatmul.mubr.f32.gmra.mrb[0].mxu0 %v6598
  %v6600 = vpop.f32.mrb[0].mxu0
  %v6601 = vadd.f32 %v6517, %v6600
  %v6602 = vpop.f32.mrb[0].mxu0
  %6603 = vmatprep.mubr.f32.mxu0 0.0
  %v6604 = vand.u32 %v6523, 4294901760
  %v6605 = vsub.f32 %v6523, %v6604
  %v6606 = vand.u32 %v6605, 4294901760
  %v6607 = vsub.f32 %v6605, %v6606
  %v6608 = vand.u32 %v6607, 4294901760
  %6609 = vmatmul.mubr.f32.gmra.mrb[0].mxu0 %v6608
  %v6610 = vpop.f32.mrb[0].mxu0
  %v6611 = vadd.f32 %v6517, %v6610
  %v6612 = vpop.f32.mrb[0].mxu0
  %6613 = vdwg.mxu0
  %6614 = vmatprep.subr.mxu0 0.0
  %v6615 = vand.u32 %v6507, 4294901760
  %v6616 = vsub.f32 %v6507, %v6615
  %v6617 = vand.u32 %v6616, 4294901760
  %v6618 = vsub.f32 %v6616, %v6617
  %v6619 = vand.u32 %v6618, 4294901760
  %6620 = vmatpush1.msra.mxu0 %v6619
  %6621 = vmatprep.subr.mxu0 0.0
  %v6622 = vand.u32 %v6508, 4294901760
  %v6623 = vsub.f32 %v6508, %v6622
  %v6624 = vand.u32 %v6623, 4294901760
  %v6625 = vsub.f32 %v6623, %v6624
  %v6626 = vand.u32 %v6625, 4294901760
  %6627 = vmatpush1.msra.mxu0 %v6626
  %6628 = vmatprep.subr.mxu0 0.0
  %v6629 = vand.u32 %v6509, 4294901760
  %v6630 = vsub.f32 %v6509, %v6629
  %v6631 = vand.u32 %v6630, 4294901760
  %v6632 = vsub.f32 %v6630, %v6631
  %v6633 = vand.u32 %v6632, 4294901760
  %6634 = vmatpush1.msra.mxu0 %v6633
  %6635 = vmatprep.subr.mxu0 0.0
  %v6636 = vand.u32 %v6510, 4294901760
  %v6637 = vsub.f32 %v6510, %v6636
  %v6638 = vand.u32 %v6637, 4294901760
  %v6639 = vsub.f32 %v6637, %v6638
  %v6640 = vand.u32 %v6639, 4294901760
  %6641 = vmatpush1.msra.mxu0 %v6640
  %6642 = vmatprep.subr.mxu0 0.0
  %6643 = vmatpush1.msra.mxu0 0.0
  %6644 = vmatprep.subr.mxu0 0.0
  %6645 = vmatpush1.msra.mxu0 0.0
  %6646 = vmatprep.subr.mxu0 0.0
  %6647 = vmatpush1.msra.mxu0 0.0
  %6648 = vmatprep.subr.mxu0 0.0
  %6649 = vmatpush1.msra.mxu0 0.0
  %6650 = vmatprep.subr.mxu0 0.0
  %6651 = vmatpush1.msra.mxu0 0.0
  %6652 = vmatprep.subr.mxu0 0.0
  %6653 = vmatpush1.msra.mxu0 0.0
  %6654 = vmatprep.subr.mxu0 0.0
  %6655 = vmatpush1.msra.mxu0 0.0
  %6656 = vmatprep.subr.mxu0 0.0
  %6657 = vmatpush1.msra.mxu0 0.0
  %6658 = vmatprep.subr.mxu0 0.0
  %6659 = vmatpush1.msra.mxu0 0.0
  %6660 = vmatprep.subr.mxu0 0.0
  %6661 = vmatpush1.msra.mxu0 0.0
  %6662 = vmatprep.subr.mxu0 0.0
  %6663 = vmatpush1.msra.mxu0 0.0
  %6664 = vmatprep.subr.mxu0 0.0
  %6665 = vmatpush1.msra.mxu0 0.0
  %6666 = vmatprep.subr.mxu0 0.0
  %6667 = vmatpush1.msra.mxu0 0.0
  %6668 = vmatprep.subr.mxu0 0.0
  %6669 = vmatpush1.msra.mxu0 0.0
  %6670 = vmatprep.subr.mxu0 0.0
  %6671 = vmatpush1.msra.mxu0 0.0
  %6672 = vmatprep.subr.mxu0 0.0
  %6673 = vmatpush1.msra.mxu0 0.0
  %6674 = vmatprep.subr.mxu0 0.0
  %6675 = vmatpush1.msra.mxu0 0.0
  %6676 = vmatprep.subr.mxu0 0.0
  %6677 = vmatpush1.msra.mxu0 0.0
  %6678 = vmatprep.subr.mxu0 0.0
  %6679 = vmatpush1.msra.mxu0 0.0
  %6680 = vmatprep.subr.mxu0 0.0
  %6681 = vmatpush1.msra.mxu0 0.0
  %6682 = vmatprep.subr.mxu0 0.0
  %6683 = vmatpush1.msra.mxu0 0.0
  %6684 = vmatprep.subr.mxu0 0.0
  %6685 = vmatpush1.msra.mxu0 0.0
  %6686 = vmatprep.subr.mxu0 0.0
  %6687 = vmatpush1.msra.mxu0 0.0
  %6688 = vmatprep.subr.mxu0 0.0
  %6689 = vmatpush1.msra.mxu0 0.0
  %6690 = vmatprep.subr.mxu0 0.0
  %6691 = vmatpush1.msra.mxu0 0.0
  %6692 = vmatprep.subr.mxu0 0.0
  %6693 = vmatpush1.msra.mxu0 0.0
  %6694 = vmatprep.subr.mxu0 0.0
  %6695 = vmatpush1.msra.mxu0 0.0
  %6696 = vmatprep.subr.mxu0 0.0
  %6697 = vmatpush1.msra.mxu0 0.0
  %6698 = vmatprep.mubr.f32.mxu0 0.0
  %v6699 = vand.u32 %v6520, 4294901760
  %6700 = vmatmul.mubr.f32.gmra.mrb[0].mxu0 %v6699
  %v6701 = vpop.f32.mrb[0].mxu0
  %v6702 = vadd.f32 %v6601, %v6701
  %v6703 = vpop.f32.mrb[0].mxu0
  %6704 = vmatprep.mubr.f32.mxu0 0.0
  %v6705 = vand.u32 %v6523, 4294901760
  %6706 = vmatmul.mubr.f32.gmra.mrb[0].mxu0 %v6705
  %v6707 = vpop.f32.mrb[0].mxu0
  %v6708 = vadd.f32 %v6611, %v6707
  %v6709 = vpop.f32.mrb[0].mxu0
  %6710 = vdwg.mxu0
  %6711 = vmatprep.subr.mxu0 0.0
  %v6712 = vand.u32 %v6507, 4294901760
  %v6713 = vsub.f32 %v6507, %v6712
  %6714 = vmatpush1.msra.mxu0 %v6713
  %6715 = vmatprep.subr.mxu0 0.0
  %v6716 = vand.u32 %v6508, 4294901760
  %v6717 = vsub.f32 %v6508, %v6716
  %6718 = vmatpush1.msra.mxu0 %v6717
  %6719 = vmatprep.subr.mxu0 0.0
  %v6720 = vand.u32 %v6509, 4294901760
  %v6721 = vsub.f32 %v6509, %v6720
  %6722 = vmatpush1.msra.mxu0 %v6721
  %6723 = vmatprep.subr.mxu0 0.0
  %v6724 = vand.u32 %v6510, 4294901760
  %v6725 = vsub.f32 %v6510, %v6724
  %6726 = vmatpush1.msra.mxu0 %v6725
  %6727 = vmatprep.subr.mxu0 0.0
  %6728 = vmatpush1.msra.mxu0 0.0
  %6729 = vmatprep.subr.mxu0 0.0
  %6730 = vmatpush1.msra.mxu0 0.0
  %6731 = vmatprep.subr.mxu0 0.0
  %6732 = vmatpush1.msra.mxu0 0.0
  %6733 = vmatprep.subr.mxu0 0.0
  %6734 = vmatpush1.msra.mxu0 0.0
  %6735 = vmatprep.subr.mxu0 0.0
  %6736 = vmatpush1.msra.mxu0 0.0
  %6737 = vmatprep.subr.mxu0 0.0
  %6738 = vmatpush1.msra.mxu0 0.0
  %6739 = vmatprep.subr.mxu0 0.0
  %6740 = vmatpush1.msra.mxu0 0.0
  %6741 = vmatprep.subr.mxu0 0.0
  %6742 = vmatpush1.msra.mxu0 0.0
  %6743 = vmatprep.subr.mxu0 0.0
  %6744 = vmatpush1.msra.mxu0 0.0
  %6745 = vmatprep.subr.mxu0 0.0
  %6746 = vmatpush1.msra.mxu0 0.0
  %6747 = vmatprep.subr.mxu0 0.0
  %6748 = vmatpush1.msra.mxu0 0.0
  %6749 = vmatprep.subr.mxu0 0.0
  %6750 = vmatpush1.msra.mxu0 0.0
  %6751 = vmatprep.subr.mxu0 0.0
  %6752 = vmatpush1.msra.mxu0 0.0
  %6753 = vmatprep.subr.mxu0 0.0
  %6754 = vmatpush1.msra.mxu0 0.0
  %6755 = vmatprep.subr.mxu0 0.0
  %6756 = vmatpush1.msra.mxu0 0.0
  %6757 = vmatprep.subr.mxu0 0.0
  %6758 = vmatpush1.msra.mxu0 0.0
  %6759 = vmatprep.subr.mxu0 0.0
  %6760 = vmatpush1.msra.mxu0 0.0
  %6761 = vmatprep.subr.mxu0 0.0
  %6762 = vmatpush1.msra.mxu0 0.0
  %6763 = vmatprep.subr.mxu0 0.0
  %6764 = vmatpush1.msra.mxu0 0.0
  %6765 = vmatprep.subr.mxu0 0.0
  %6766 = vmatpush1.msra.mxu0 0.0
  %6767 = vmatprep.subr.mxu0 0.0
  %6768 = vmatpush1.msra.mxu0 0.0
  %6769 = vmatprep.subr.mxu0 0.0
  %6770 = vmatpush1.msra.mxu0 0.0
  %6771 = vmatprep.subr.mxu0 0.0
  %6772 = vmatpush1.msra.mxu0 0.0
  %6773 = vmatprep.subr.mxu0 0.0
  %6774 = vmatpush1.msra.mxu0 0.0
  %6775 = vmatprep.subr.mxu0 0.0
  %6776 = vmatpush1.msra.mxu0 0.0
  %6777 = vmatprep.subr.mxu0 0.0
  %6778 = vmatpush1.msra.mxu0 0.0
  %6779 = vmatprep.subr.mxu0 0.0
  %6780 = vmatpush1.msra.mxu0 0.0
  %6781 = vmatprep.subr.mxu0 0.0
  %6782 = vmatpush1.msra.mxu0 0.0
  %6783 = vmatprep.mubr.f32.mxu0 0.0
  %v6784 = vand.u32 %v6520, 4294901760
  %v6785 = vsub.f32 %v6520, %v6784
  %6786 = vmatmul.mubr.f32.gmra.mrb[0].mxu0 %v6785
  %v6787 = vpop.f32.mrb[0].mxu0
  %v6788 = vadd.f32 %v6702, %v6787
  %v6789 = vpop.f32.mrb[0].mxu0
  %6790 = vmatprep.mubr.f32.mxu0 0.0
  %v6791 = vand.u32 %v6523, 4294901760
  %v6792 = vsub.f32 %v6523, %v6791
  %6793 = vmatmul.mubr.f32.gmra.mrb[0].mxu0 %v6792
  %v6794 = vpop.f32.mrb[0].mxu0
  %v6795 = vadd.f32 %v6708, %v6794
  %v6796 = vpop.f32.mrb[0].mxu0
  %6797 = vdwg.mxu0
  %6798 = vmatprep.subr.mxu0 0.0
  %v6799 = vand.u32 %v6507, 4294901760
  %6800 = vmatpush1.msra.mxu0 %v6799
  %6801 = vmatprep.subr.mxu0 0.0
  %v6802 = vand.u32 %v6508, 4294901760
  %6803 = vmatpush1.msra.mxu0 %v6802
  %6804 = vmatprep.subr.mxu0 0.0
  %v6805 = vand.u32 %v6509, 4294901760
  %6806 = vmatpush1.msra.mxu0 %v6805
  %6807 = vmatprep.subr.mxu0 0.0
  %v6808 = vand.u32 %v6510, 4294901760
  %6809 = vmatpush1.msra.mxu0 %v6808
  %6810 = vmatprep.subr.mxu0 0.0
  %6811 = vmatpush1.msra.mxu0 0.0
  %6812 = vmatprep.subr.mxu0 0.0
  %6813 = vmatpush1.msra.mxu0 0.0
  %6814 = vmatprep.subr.mxu0 0.0
  %6815 = vmatpush1.msra.mxu0 0.0
  %6816 = vmatprep.subr.mxu0 0.0
  %6817 = vmatpush1.msra.mxu0 0.0
  %6818 = vmatprep.subr.mxu0 0.0
  %6819 = vmatpush1.msra.mxu0 0.0
  %6820 = vmatprep.subr.mxu0 0.0
  %6821 = vmatpush1.msra.mxu0 0.0
  %6822 = vmatprep.subr.mxu0 0.0
  %6823 = vmatpush1.msra.mxu0 0.0
  %6824 = vmatprep.subr.mxu0 0.0
  %6825 = vmatpush1.msra.mxu0 0.0
  %6826 = vmatprep.subr.mxu0 0.0
  %6827 = vmatpush1.msra.mxu0 0.0
  %6828 = vmatprep.subr.mxu0 0.0
  %6829 = vmatpush1.msra.mxu0 0.0
  %6830 = vmatprep.subr.mxu0 0.0
  %6831 = vmatpush1.msra.mxu0 0.0
  %6832 = vmatprep.subr.mxu0 0.0
  %6833 = vmatpush1.msra.mxu0 0.0
  %6834 = vmatprep.subr.mxu0 0.0
  %6835 = vmatpush1.msra.mxu0 0.0
  %6836 = vmatprep.subr.mxu0 0.0
  %6837 = vmatpush1.msra.mxu0 0.0
  %6838 = vmatprep.subr.mxu0 0.0
  %6839 = vmatpush1.msra.mxu0 0.0
  %6840 = vmatprep.subr.mxu0 0.0
  %6841 = vmatpush1.msra.mxu0 0.0
  %6842 = vmatprep.subr.mxu0 0.0
  %6843 = vmatpush1.msra.mxu0 0.0
  %6844 = vmatprep.subr.mxu0 0.0
  %6845 = vmatpush1.msra.mxu0 0.0
  %6846 = vmatprep.subr.mxu0 0.0
  %6847 = vmatpush1.msra.mxu0 0.0
  %6848 = vmatprep.subr.mxu0 0.0
  %6849 = vmatpush1.msra.mxu0 0.0
  %6850 = vmatprep.subr.mxu0 0.0
  %6851 = vmatpush1.msra.mxu0 0.0
  %6852 = vmatprep.subr.mxu0 0.0
  %6853 = vmatpush1.msra.mxu0 0.0
  %6854 = vmatprep.subr.mxu0 0.0
  %6855 = vmatpush1.msra.mxu0 0.0
  %6856 = vmatprep.subr.mxu0 0.0
  %6857 = vmatpush1.msra.mxu0 0.0
  %6858 = vmatprep.subr.mxu0 0.0
  %6859 = vmatpush1.msra.mxu0 0.0
  %6860 = vmatprep.subr.mxu0 0.0
  %6861 = vmatpush1.msra.mxu0 0.0
  %6862 = vmatprep.subr.mxu0 0.0
  %6863 = vmatpush1.msra.mxu0 0.0
  %6864 = vmatprep.subr.mxu0 0.0
  %6865 = vmatpush1.msra.mxu0 0.0
  %6866 = vmatprep.mubr.f32.mxu0 0.0
  %v6867 = vand.u32 %v6520, 4294901760
  %v6868 = vsub.f32 %v6520, %v6867
  %v6869 = vand.u32 %v6868, 4294901760
  %6870 = vmatmul.mubr.f32.gmra.mrb[0].mxu0 %v6869
  %v6871 = vpop.f32.mrb[0].mxu0
  %v6872 = vadd.f32 %v6788, %v6871
  %v6873 = vpop.f32.mrb[0].mxu0
  %6874 = vmatprep.mubr.f32.mxu0 0.0
  %v6875 = vand.u32 %v6523, 4294901760
  %v6876 = vsub.f32 %v6523, %v6875
  %v6877 = vand.u32 %v6876, 4294901760
  %6878 = vmatmul.mubr.f32.gmra.mrb[0].mxu0 %v6877
  %v6879 = vpop.f32.mrb[0].mxu0
  %v6880 = vadd.f32 %v6795, %v6879
  %v6881 = vpop.f32.mrb[0].mxu0
  %6882 = vdwg.mxu0
  %6883 = vmatprep.subr.mxu0 0.0
  %v6884 = vand.u32 %v6507, 4294901760
  %v6885 = vsub.f32 %v6507, %v6884
  %v6886 = vand.u32 %v6885, 4294901760
  %6887 = vmatpush1.msra.mxu0 %v6886
  %6888 = vmatprep.subr.mxu0 0.0
  %v6889 = vand.u32 %v6508, 4294901760
  %v6890 = vsub.f32 %v6508, %v6889
  %v6891 = vand.u32 %v6890, 4294901760
  %6892 = vmatpush1.msra.mxu0 %v6891
  %6893 = vmatprep.subr.mxu0 0.0
  %v6894 = vand.u32 %v6509, 4294901760
  %v6895 = vsub.f32 %v6509, %v6894
  %v6896 = vand.u32 %v6895, 4294901760
  %6897 = vmatpush1.msra.mxu0 %v6896
  %6898 = vmatprep.subr.mxu0 0.0
  %v6899 = vand.u32 %v6510, 4294901760
  %v6900 = vsub.f32 %v6510, %v6899
  %v6901 = vand.u32 %v6900, 4294901760
  %6902 = vmatpush1.msra.mxu0 %v6901
  %6903 = vmatprep.subr.mxu0 0.0
  %6904 = vmatpush1.msra.mxu0 0.0
  %6905 = vmatprep.subr.mxu0 0.0
  %6906 = vmatpush1.msra.mxu0 0.0
  %6907 = vmatprep.subr.mxu0 0.0
  %6908 = vmatpush1.msra.mxu0 0.0
  %6909 = vmatprep.subr.mxu0 0.0
  %6910 = vmatpush1.msra.mxu0 0.0
  %6911 = vmatprep.subr.mxu0 0.0
  %6912 = vmatpush1.msra.mxu0 0.0
  %6913 = vmatprep.subr.mxu0 0.0
  %6914 = vmatpush1.msra.mxu0 0.0
  %6915 = vmatprep.subr.mxu0 0.0
  %6916 = vmatpush1.msra.mxu0 0.0
  %6917 = vmatprep.subr.mxu0 0.0
  %6918 = vmatpush1.msra.mxu0 0.0
  %6919 = vmatprep.subr.mxu0 0.0
  %6920 = vmatpush1.msra.mxu0 0.0
  %6921 = vmatprep.subr.mxu0 0.0
  %6922 = vmatpush1.msra.mxu0 0.0
  %6923 = vmatprep.subr.mxu0 0.0
  %6924 = vmatpush1.msra.mxu0 0.0
  %6925 = vmatprep.subr.mxu0 0.0
  %6926 = vmatpush1.msra.mxu0 0.0
  %6927 = vmatprep.subr.mxu0 0.0
  %6928 = vmatpush1.msra.mxu0 0.0
  %6929 = vmatprep.subr.mxu0 0.0
  %6930 = vmatpush1.msra.mxu0 0.0
  %6931 = vmatprep.subr.mxu0 0.0
  %6932 = vmatpush1.msra.mxu0 0.0
  %6933 = vmatprep.subr.mxu0 0.0
  %6934 = vmatpush1.msra.mxu0 0.0
  %6935 = vmatprep.subr.mxu0 0.0
  %6936 = vmatpush1.msra.mxu0 0.0
  %6937 = vmatprep.subr.mxu0 0.0
  %6938 = vmatpush1.msra.mxu0 0.0
  %6939 = vmatprep.subr.mxu0 0.0
  %6940 = vmatpush1.msra.mxu0 0.0
  %6941 = vmatprep.subr.mxu0 0.0
  %6942 = vmatpush1.msra.mxu0 0.0
  %6943 = vmatprep.subr.mxu0 0.0
  %6944 = vmatpush1.msra.mxu0 0.0
  %6945 = vmatprep.subr.mxu0 0.0
  %6946 = vmatpush1.msra.mxu0 0.0
  %6947 = vmatprep.subr.mxu0 0.0
  %6948 = vmatpush1.msra.mxu0 0.0
  %6949 = vmatprep.subr.mxu0 0.0
  %6950 = vmatpush1.msra.mxu0 0.0
  %6951 = vmatprep.subr.mxu0 0.0
  %6952 = vmatpush1.msra.mxu0 0.0
  %6953 = vmatprep.subr.mxu0 0.0
  %6954 = vmatpush1.msra.mxu0 0.0
  %6955 = vmatprep.subr.mxu0 0.0
  %6956 = vmatpush1.msra.mxu0 0.0
  %6957 = vmatprep.subr.mxu0 0.0
  %6958 = vmatpush1.msra.mxu0 0.0
  %6959 = vmatprep.mubr.f32.mxu0 0.0
  %v6960 = vand.u32 %v6520, 4294901760
  %6961 = vmatmul.mubr.f32.gmra.mrb[0].mxu0 %v6960
  %v6962 = vpop.f32.mrb[0].mxu0
  %v6963 = vadd.f32 %v6872, %v6962
  %v6964 = vpop.f32.mrb[0].mxu0
  %6965 = vmatprep.mubr.f32.mxu0 0.0
  %v6966 = vand.u32 %v6523, 4294901760
  %6967 = vmatmul.mubr.f32.gmra.mrb[0].mxu0 %v6966
  %v6968 = vpop.f32.mrb[0].mxu0
  %v6969 = vadd.f32 %v6880, %v6968
  %v6970 = vpop.f32.mrb[0].mxu0
  %6971 = vdwg.mxu0
  %6972 = vmatprep.subr.mxu0 0.0
  %v6973 = vand.u32 %v6507, 4294901760
  %6974 = vmatpush1.msra.mxu0 %v6973
  %6975 = vmatprep.subr.mxu0 0.0
  %v6976 = vand.u32 %v6508, 4294901760
  %6977 = vmatpush1.msra.mxu0 %v6976
  %6978 = vmatprep.subr.mxu0 0.0
  %v6979 = vand.u32 %v6509, 4294901760
  %6980 = vmatpush1.msra.mxu0 %v6979
  %6981 = vmatprep.subr.mxu0 0.0
  %v6982 = vand.u32 %v6510, 4294901760
  %6983 = vmatpush1.msra.mxu0 %v6982
  %6984 = vmatprep.subr.mxu0 0.0
  %6985 = vmatpush1.msra.mxu0 0.0
  %6986 = vmatprep.subr.mxu0 0.0
  %6987 = vmatpush1.msra.mxu0 0.0
  %6988 = vmatprep.subr.mxu0 0.0
  %6989 = vmatpush1.msra.mxu0 0.0
  %6990 = vmatprep.subr.mxu0 0.0
  %6991 = vmatpush1.msra.mxu0 0.0
  %6992 = vmatprep.subr.mxu0 0.0
  %6993 = vmatpush1.msra.mxu0 0.0
  %6994 = vmatprep.subr.mxu0 0.0
  %6995 = vmatpush1.msra.mxu0 0.0
  %6996 = vmatprep.subr.mxu0 0.0
  %6997 = vmatpush1.msra.mxu0 0.0
  %6998 = vmatprep.subr.mxu0 0.0
  %6999 = vmatpush1.msra.mxu0 0.0
  %7000 = vmatprep.subr.mxu0 0.0
  %7001 = vmatpush1.msra.mxu0 0.0
  %7002 = vmatprep.subr.mxu0 0.0
  %7003 = vmatpush1.msra.mxu0 0.0
  %7004 = vmatprep.subr.mxu0 0.0
  %7005 = vmatpush1.msra.mxu0 0.0
  %7006 = vmatprep.subr.mxu0 0.0
  %7007 = vmatpush1.msra.mxu0 0.0
  %7008 = vmatprep.subr.mxu0 0.0
  %7009 = vmatpush1.msra.mxu0 0.0
  %7010 = vmatprep.subr.mxu0 0.0
  %7011 = vmatpush1.msra.mxu0 0.0
  %7012 = vmatprep.subr.mxu0 0.0
  %7013 = vmatpush1.msra.mxu0 0.0
  %7014 = vmatprep.subr.mxu0 0.0
  %7015 = vmatpush1.msra.mxu0 0.0
  %7016 = vmatprep.subr.mxu0 0.0
  %7017 = vmatpush1.msra.mxu0 0.0
  %7018 = vmatprep.subr.mxu0 0.0
  %7019 = vmatpush1.msra.mxu0 0.0
  %7020 = vmatprep.subr.mxu0 0.0
  %7021 = vmatpush1.msra.mxu0 0.0
  %7022 = vmatprep.subr.mxu0 0.0
  %7023 = vmatpush1.msra.mxu0 0.0
  %7024 = vmatprep.subr.mxu0 0.0
  %7025 = vmatpush1.msra.mxu0 0.0
  %7026 = vmatprep.subr.mxu0 0.0
  %7027 = vmatpush1.msra.mxu0 0.0
  %7028 = vmatprep.subr.mxu0 0.0
  %7029 = vmatpush1.msra.mxu0 0.0
  %7030 = vmatprep.subr.mxu0 0.0
  %7031 = vmatpush1.msra.mxu0 0.0
  %7032 = vmatprep.subr.mxu0 0.0
  %7033 = vmatpush1.msra.mxu0 0.0
  %7034 = vmatprep.subr.mxu0 0.0
  %7035 = vmatpush1.msra.mxu0 0.0
  %7036 = vmatprep.subr.mxu0 0.0
  %7037 = vmatpush1.msra.mxu0 0.0
  %7038 = vmatprep.subr.mxu0 0.0
  %7039 = vmatpush1.msra.mxu0 0.0
  %7040 = vmatprep.mubr.f32.mxu0 0.0
  %v7041 = vand.u32 %v6520, 4294901760
  %7042 = vmatmul.mubr.f32.gmra.mrb[0].mxu0 %v7041
  %v7043 = vpop.f32.mrb[0].mxu0
  %v7044 = vadd.f32 %v6963, %v7043
  %v7045 = vpop.f32.mrb[0].mxu0
  %7046 = vmatprep.mubr.f32.mxu0 0.0
  %v7047 = vand.u32 %v6523, 4294901760
  %7048 = vmatmul.mubr.f32.gmra.mrb[0].mxu0 %v7047
  %v7049 = vpop.f32.mrb[0].mxu0
  %v7050 = vadd.f32 %v6969, %v7049
  %v7051 = vpop.f32.mrb[0].mxu0
  %7052 = vdwg.mxu0
  %v7053 = vmul.f32 %v7044, 0.5
  %v7054 = vmul.f32 %v7050, 0.5
  %v7055 = vmul.f32 %v7044, 0.70710677
  %v7056 = vmul.f32 %v7050, 0.70710677
  %v7057 = vand.u32 2147483647, %v7055
  %v7058 = vand.u32 2147483647, %v7056
  %v7059 = vmul.f32 %v7057, 0.3275911
  %v7060 = vmul.f32 %v7058, 0.3275911
  %v7061 = vadd.f32 %v7059, 1.0
  %v7062 = vadd.f32 %v7060, 1.0
  %v7063 = vrcp.pop %v7061
  %v7064 = vmul.f32 1.0, %v7063
  %v7065 = vrcp.pop %v7062
  %v7066 = vmul.f32 1.0, %v7065
  %v7067 = vmul.f32 %v7064, 1.0614054
  %v7068 = vmul.f32 %v7066, 1.0614054
  %v7069 = vadd.f32 %v7067, -1.4531521
  %v7070 = vadd.f32 %v7068, -1.4531521
  %v7071 = vmul.f32 %v7064, %v7069
  %v7072 = vmul.f32 %v7066, %v7070
  %v7073 = vadd.f32 %v7071, 1.4214138
  %v7074 = vadd.f32 %v7072, 1.4214138
  %v7075 = vmul.f32 %v7064, %v7073
  %v7076 = vmul.f32 %v7066, %v7074
  %v7077 = vadd.f32 %v7075, -0.28449672
  %v7078 = vadd.f32 %v7076, -0.28449672
  %v7079 = vmul.f32 %v7064, %v7077
  %v7080 = vmul.f32 %v7066, %v7078
  %v7081 = vadd.f32 %v7079, 0.2548296
  %v7082 = vadd.f32 %v7080, 0.2548296
  %v7083 = vmul.f32 %v7064, %v7081
  %v7084 = vmul.f32 %v7066, %v7082
  %v7085 = vsub.f32 0.0, %v7057
  %v7086 = vsub.f32 0.0, %v7058
  %v7087 = vmul.f32 %v7085, %v7057
  %v7088 = vmul.f32 %v7086, %v7058
  %v7089 = vmul.f32 %v7087, 1.442695
  %v7090 = vpow.pop %v7089
  %v7091 = vmul.f32 %v7088, 1.442695
  %v7092 = vpow.pop %v7091
  %v7093 = vmul.f32 %v7083, %v7090
  %v7094 = vmul.f32 %v7084, %v7092
  %v7095 = vsub.f32 1.0, %v7093
  %v7096 = vsub.f32 1.0, %v7094
  %vm7097 = vcmp.ge.f32.partialorder %v7055, 0.0
  %vm7098 = vcmp.ge.f32.partialorder %v7056, 0.0
  %v7099 = vsub.f32 0.0, %v7095
  %v7100 = vsub.f32 0.0, %v7096
  %v7101 = vsel %vm7097, %v7095, %v7099
  %v7102 = vsel %vm7098, %v7096, %v7100
  %v7103 = vadd.f32 %v7101, 1.0
  %v7104 = vadd.f32 %v7102, 1.0
  %v7105 = vmul.f32 %v7053, %v7103
  %v7106 = vmul.f32 %v7054, %v7104
  %s7107 = scalar_lea.vmem %s11, 128
  %v7108 = vld [vmem:[%s7107] sm:$0xff]
  %v7109 = vld [vmem:[%s7107 + $0x8] sm:$0xff]
  %v7110 = vld [vmem:[%s7107 + $0x10] sm:$0xff]
  %v7111 = vld [vmem:[%s7107 + $0x18] sm:$0xff]
  %v7112 = vld [vmem:[%s7107 + $0x20] sm:$0xff]
  %v7113 = vld [vmem:[%s7107 + $0x28] sm:$0xff]
  %v7114 = vld [vmem:[%s7107 + $0x30] sm:$0xff]
  %v7115 = vld [vmem:[%s7107 + $0x38] sm:$0xff]
  %v7116 = vld [vmem:[%s7107 + $0x40] sm:$0xff]
  %v7117 = vld [vmem:[%s7107 + $0x48] sm:$0xff]
  %v7118 = vld [vmem:[%s7107 + $0x50] sm:$0xff]
  %v7119 = vld [vmem:[%s7107 + $0x58] sm:$0xff]
  %v7120 = vld [vmem:[%s7107 + $0x60] sm:$0xff]
  %v7121 = vld [vmem:[%s7107 + $0x68] sm:$0xff]
  %v7122 = vld [vmem:[%s7107 + $0x70] sm:$0xff]
  %v7123 = vld [vmem:[%s7107 + $0x78] sm:$0xff]
  %s7124 = scalar_lea.vmem %s12, 1
  %v7125 = vld [vmem:[%s7124] sm:$0x1]
  %v7127 = vlaneseq
  %v7128 = vshrl.u32 %v7127, 7
  %v7129 = vsub.s32 0, %v7128
  %v7130 = vrot.slane %v7125, %v7129
  %7132 = vmatprep.subr.mxu0 0.0
  %v7133 = vand.u32 %v7108, 4294901760
  %7134 = vmatpush1.msra.mxu0 %v7133
  %7135 = vmatprep.subr.mxu0 0.0
  %v7136 = vand.u32 %v7109, 4294901760
  %7137 = vmatpush1.msra.mxu0 %v7136
  %7138 = vmatprep.subr.mxu0 0.0
  %v7139 = vand.u32 %v7110, 4294901760
  %7140 = vmatpush1.msra.mxu0 %v7139
  %7141 = vmatprep.subr.mxu0 0.0
  %v7142 = vand.u32 %v7111, 4294901760
  %7143 = vmatpush1.msra.mxu0 %v7142
  %7144 = vmatprep.subr.mxu0 0.0
  %v7145 = vand.u32 %v7112, 4294901760
  %7146 = vmatpush1.msra.mxu0 %v7145
  %7147 = vmatprep.subr.mxu0 0.0
  %v7148 = vand.u32 %v7113, 4294901760
  %7149 = vmatpush1.msra.mxu0 %v7148
  %7150 = vmatprep.subr.mxu0 0.0
  %v7151 = vand.u32 %v7114, 4294901760
  %7152 = vmatpush1.msra.mxu0 %v7151
  %7153 = vmatprep.subr.mxu0 0.0
  %v7154 = vand.u32 %v7115, 4294901760
  %7155 = vmatpush1.msra.mxu0 %v7154
  %7156 = vmatprep.subr.mxu0 0.0
  %v7157 = vand.u32 %v7116, 4294901760
  %7158 = vmatpush1.msra.mxu0 %v7157
  %7159 = vmatprep.subr.mxu0 0.0
  %v7160 = vand.u32 %v7117, 4294901760
  %7161 = vmatpush1.msra.mxu0 %v7160
  %7162 = vmatprep.subr.mxu0 0.0
  %v7163 = vand.u32 %v7118, 4294901760
  %7164 = vmatpush1.msra.mxu0 %v7163
  %7165 = vmatprep.subr.mxu0 0.0
  %v7166 = vand.u32 %v7119, 4294901760
  %7167 = vmatpush1.msra.mxu0 %v7166
  %7168 = vmatprep.subr.mxu0 0.0
  %v7169 = vand.u32 %v7120, 4294901760
  %7170 = vmatpush1.msra.mxu0 %v7169
  %7171 = vmatprep.subr.mxu0 0.0
  %v7172 = vand.u32 %v7121, 4294901760
  %7173 = vmatpush1.msra.mxu0 %v7172
  %7174 = vmatprep.subr.mxu0 0.0
  %v7175 = vand.u32 %v7122, 4294901760
  %7176 = vmatpush1.msra.mxu0 %v7175
  %7177 = vmatprep.subr.mxu0 0.0
  %v7178 = vand.u32 %v7123, 4294901760
  %7179 = vmatpush1.msra.mxu0 %v7178
  %7180 = vmatprep.subr.mxu0 0.0
  %7181 = vmatpush1.msra.mxu0 0.0
  %7182 = vmatprep.subr.mxu0 0.0
  %7183 = vmatpush1.msra.mxu0 0.0
  %7184 = vmatprep.subr.mxu0 0.0
  %7185 = vmatpush1.msra.mxu0 0.0
  %7186 = vmatprep.subr.mxu0 0.0
  %7187 = vmatpush1.msra.mxu0 0.0
  %7188 = vmatprep.subr.mxu0 0.0
  %7189 = vmatpush1.msra.mxu0 0.0
  %7190 = vmatprep.subr.mxu0 0.0
  %7191 = vmatpush1.msra.mxu0 0.0
  %7192 = vmatprep.subr.mxu0 0.0
  %7193 = vmatpush1.msra.mxu0 0.0
  %7194 = vmatprep.subr.mxu0 0.0
  %7195 = vmatpush1.msra.mxu0 0.0
  %7196 = vmatprep.subr.mxu0 0.0
  %7197 = vmatpush1.msra.mxu0 0.0
  %7198 = vmatprep.subr.mxu0 0.0
  %7199 = vmatpush1.msra.mxu0 0.0
  %7200 = vmatprep.subr.mxu0 0.0
  %7201 = vmatpush1.msra.mxu0 0.0
  %7202 = vmatprep.subr.mxu0 0.0
  %7203 = vmatpush1.msra.mxu0 0.0
  %7204 = vmatprep.subr.mxu0 0.0
  %7205 = vmatpush1.msra.mxu0 0.0
  %7206 = vmatprep.subr.mxu0 0.0
  %7207 = vmatpush1.msra.mxu0 0.0
  %7208 = vmatprep.subr.mxu0 0.0
  %7209 = vmatpush1.msra.mxu0 0.0
  %7210 = vmatprep.subr.mxu0 0.0
  %7211 = vmatpush1.msra.mxu0 0.0
  %7212 = vmatprep.mubr.f32.mxu0 0.0
  %v7213 = vand.u32 %v7105, 4294901760
  %v7214 = vsub.f32 %v7105, %v7213
  %v7215 = vand.u32 %v7214, 4294901760
  %v7216 = vsub.f32 %v7214, %v7215
  %v7217 = vand.u32 %v7216, 4294901760
  %7218 = vmatmul.mubr.f32.gmra.mrb[0].mxu0 %v7217
  %v7219 = vpop.f32.mrb[0].mxu0
  %v7220 = vadd.f32 %v7130, %v7219
  %v7221 = vpop.f32.mrb[0].mxu0
  %7222 = vmatprep.mubr.f32.mxu0 0.0
  %v7223 = vand.u32 %v7106, 4294901760
  %v7224 = vsub.f32 %v7106, %v7223
  %v7225 = vand.u32 %v7224, 4294901760
  %v7226 = vsub.f32 %v7224, %v7225
  %v7227 = vand.u32 %v7226, 4294901760
  %7228 = vmatmul.mubr.f32.gmra.mrb[0].mxu0 %v7227
  %v7229 = vpop.f32.mrb[0].mxu0
  %v7230 = vadd.f32 %v7130, %v7229
  %v7231 = vpop.f32.mrb[0].mxu0
  %7232 = vdwg.mxu0
  %7233 = vmatprep.subr.mxu0 0.0
  %v7234 = vand.u32 %v7108, 4294901760
  %v7235 = vsub.f32 %v7108, %v7234
  %v7236 = vand.u32 %v7235, 4294901760
  %v7237 = vsub.f32 %v7235, %v7236
  %v7238 = vand.u32 %v7237, 4294901760
  %7239 = vmatpush1.msra.mxu0 %v7238
  %7240 = vmatprep.subr.mxu0 0.0
  %v7241 = vand.u32 %v7109, 4294901760
  %v7242 = vsub.f32 %v7109, %v7241
  %v7243 = vand.u32 %v7242, 4294901760
  %v7244 = vsub.f32 %v7242, %v7243
  %v7245 = vand.u32 %v7244, 4294901760
  %7246 = vmatpush1.msra.mxu0 %v7245
  %7247 = vmatprep.subr.mxu0 0.0
  %v7248 = vand.u32 %v7110, 4294901760
  %v7249 = vsub.f32 %v7110, %v7248
  %v7250 = vand.u32 %v7249, 4294901760
  %v7251 = vsub.f32 %v7249, %v7250
  %v7252 = vand.u32 %v7251, 4294901760
  %7253 = vmatpush1.msra.mxu0 %v7252
  %7254 = vmatprep.subr.mxu0 0.0
  %v7255 = vand.u32 %v7111, 4294901760
  %v7256 = vsub.f32 %v7111, %v7255
  %v7257 = vand.u32 %v7256, 4294901760
  %v7258 = vsub.f32 %v7256, %v7257
  %v7259 = vand.u32 %v7258, 4294901760
  %7260 = vmatpush1.msra.mxu0 %v7259
  %7261 = vmatprep.subr.mxu0 0.0
  %v7262 = vand.u32 %v7112, 4294901760
  %v7263 = vsub.f32 %v7112, %v7262
  %v7264 = vand.u32 %v7263, 4294901760
  %v7265 = vsub.f32 %v7263, %v7264
  %v7266 = vand.u32 %v7265, 4294901760
  %7267 = vmatpush1.msra.mxu0 %v7266
  %7268 = vmatprep.subr.mxu0 0.0
  %v7269 = vand.u32 %v7113, 4294901760
  %v7270 = vsub.f32 %v7113, %v7269
  %v7271 = vand.u32 %v7270, 4294901760
  %v7272 = vsub.f32 %v7270, %v7271
  %v7273 = vand.u32 %v7272, 4294901760
  %7274 = vmatpush1.msra.mxu0 %v7273
  %7275 = vmatprep.subr.mxu0 0.0
  %v7276 = vand.u32 %v7114, 4294901760
  %v7277 = vsub.f32 %v7114, %v7276
  %v7278 = vand.u32 %v7277, 4294901760
  %v7279 = vsub.f32 %v7277, %v7278
  %v7280 = vand.u32 %v7279, 4294901760
  %7281 = vmatpush1.msra.mxu0 %v7280
  %7282 = vmatprep.subr.mxu0 0.0
  %v7283 = vand.u32 %v7115, 4294901760
  %v7284 = vsub.f32 %v7115, %v7283
  %v7285 = vand.u32 %v7284, 4294901760
  %v7286 = vsub.f32 %v7284, %v7285
  %v7287 = vand.u32 %v7286, 4294901760
  %7288 = vmatpush1.msra.mxu0 %v7287
  %7289 = vmatprep.subr.mxu0 0.0
  %v7290 = vand.u32 %v7116, 4294901760
  %v7291 = vsub.f32 %v7116, %v7290
  %v7292 = vand.u32 %v7291, 4294901760
  %v7293 = vsub.f32 %v7291, %v7292
  %v7294 = vand.u32 %v7293, 4294901760
  %7295 = vmatpush1.msra.mxu0 %v7294
  %7296 = vmatprep.subr.mxu0 0.0
  %v7297 = vand.u32 %v7117, 4294901760
  %v7298 = vsub.f32 %v7117, %v7297
  %v7299 = vand.u32 %v7298, 4294901760
  %v7300 = vsub.f32 %v7298, %v7299
  %v7301 = vand.u32 %v7300, 4294901760
  %7302 = vmatpush1.msra.mxu0 %v7301
  %7303 = vmatprep.subr.mxu0 0.0
  %v7304 = vand.u32 %v7118, 4294901760
  %v7305 = vsub.f32 %v7118, %v7304
  %v7306 = vand.u32 %v7305, 4294901760
  %v7307 = vsub.f32 %v7305, %v7306
  %v7308 = vand.u32 %v7307, 4294901760
  %7309 = vmatpush1.msra.mxu0 %v7308
  %7310 = vmatprep.subr.mxu0 0.0
  %v7311 = vand.u32 %v7119, 4294901760
  %v7312 = vsub.f32 %v7119, %v7311
  %v7313 = vand.u32 %v7312, 4294901760
  %v7314 = vsub.f32 %v7312, %v7313
  %v7315 = vand.u32 %v7314, 4294901760
  %7316 = vmatpush1.msra.mxu0 %v7315
  %7317 = vmatprep.subr.mxu0 0.0
  %v7318 = vand.u32 %v7120, 4294901760
  %v7319 = vsub.f32 %v7120, %v7318
  %v7320 = vand.u32 %v7319, 4294901760
  %v7321 = vsub.f32 %v7319, %v7320
  %v7322 = vand.u32 %v7321, 4294901760
  %7323 = vmatpush1.msra.mxu0 %v7322
  %7324 = vmatprep.subr.mxu0 0.0
  %v7325 = vand.u32 %v7121, 4294901760
  %v7326 = vsub.f32 %v7121, %v7325
  %v7327 = vand.u32 %v7326, 4294901760
  %v7328 = vsub.f32 %v7326, %v7327
  %v7329 = vand.u32 %v7328, 4294901760
  %7330 = vmatpush1.msra.mxu0 %v7329
  %7331 = vmatprep.subr.mxu0 0.0
  %v7332 = vand.u32 %v7122, 4294901760
  %v7333 = vsub.f32 %v7122, %v7332
  %v7334 = vand.u32 %v7333, 4294901760
  %v7335 = vsub.f32 %v7333, %v7334
  %v7336 = vand.u32 %v7335, 4294901760
  %7337 = vmatpush1.msra.mxu0 %v7336
  %7338 = vmatprep.subr.mxu0 0.0
  %v7339 = vand.u32 %v7123, 4294901760
  %v7340 = vsub.f32 %v7123, %v7339
  %v7341 = vand.u32 %v7340, 4294901760
  %v7342 = vsub.f32 %v7340, %v7341
  %v7343 = vand.u32 %v7342, 4294901760
  %7344 = vmatpush1.msra.mxu0 %v7343
  %7345 = vmatprep.subr.mxu0 0.0
  %7346 = vmatpush1.msra.mxu0 0.0
  %7347 = vmatprep.subr.mxu0 0.0
  %7348 = vmatpush1.msra.mxu0 0.0
  %7349 = vmatprep.subr.mxu0 0.0
  %7350 = vmatpush1.msra.mxu0 0.0
  %7351 = vmatprep.subr.mxu0 0.0
  %7352 = vmatpush1.msra.mxu0 0.0
  %7353 = vmatprep.subr.mxu0 0.0
  %7354 = vmatpush1.msra.mxu0 0.0
  %7355 = vmatprep.subr.mxu0 0.0
  %7356 = vmatpush1.msra.mxu0 0.0
  %7357 = vmatprep.subr.mxu0 0.0
  %7358 = vmatpush1.msra.mxu0 0.0
  %7359 = vmatprep.subr.mxu0 0.0
  %7360 = vmatpush1.msra.mxu0 0.0
  %7361 = vmatprep.subr.mxu0 0.0
  %7362 = vmatpush1.msra.mxu0 0.0
  %7363 = vmatprep.subr.mxu0 0.0
  %7364 = vmatpush1.msra.mxu0 0.0
  %7365 = vmatprep.subr.mxu0 0.0
  %7366 = vmatpush1.msra.mxu0 0.0
  %7367 = vmatprep.subr.mxu0 0.0
  %7368 = vmatpush1.msra.mxu0 0.0
  %7369 = vmatprep.subr.mxu0 0.0
  %7370 = vmatpush1.msra.mxu0 0.0
  %7371 = vmatprep.subr.mxu0 0.0
  %7372 = vmatpush1.msra.mxu0 0.0
  %7373 = vmatprep.subr.mxu0 0.0
  %7374 = vmatpush1.msra.mxu0 0.0
  %7375 = vmatprep.subr.mxu0 0.0
  %7376 = vmatpush1.msra.mxu0 0.0
  %7377 = vmatprep.mubr.f32.mxu0 0.0
  %v7378 = vand.u32 %v7105, 4294901760
  %7379 = vmatmul.mubr.f32.gmra.mrb[0].mxu0 %v7378
  %v7380 = vpop.f32.mrb[0].mxu0
  %v7381 = vadd.f32 %v7220, %v7380
  %v7382 = vpop.f32.mrb[0].mxu0
  %7383 = vmatprep.mubr.f32.mxu0 0.0
  %v7384 = vand.u32 %v7106, 4294901760
  %7385 = vmatmul.mubr.f32.gmra.mrb[0].mxu0 %v7384
  %v7386 = vpop.f32.mrb[0].mxu0
  %v7387 = vadd.f32 %v7230, %v7386
  %v7388 = vpop.f32.mrb[0].mxu0
  %7389 = vdwg.mxu0
  %7390 = vmatprep.subr.mxu0 0.0
  %v7391 = vand.u32 %v7108, 4294901760
  %v7392 = vsub.f32 %v7108, %v7391
  %7393 = vmatpush1.msra.mxu0 %v7392
  %7394 = vmatprep.subr.mxu0 0.0
  %v7395 = vand.u32 %v7109, 4294901760
  %v7396 = vsub.f32 %v7109, %v7395
  %7397 = vmatpush1.msra.mxu0 %v7396
  %7398 = vmatprep.subr.mxu0 0.0
  %v7399 = vand.u32 %v7110, 4294901760
  %v7400 = vsub.f32 %v7110, %v7399
  %7401 = vmatpush1.msra.mxu0 %v7400
  %7402 = vmatprep.subr.mxu0 0.0
  %v7403 = vand.u32 %v7111, 4294901760
  %v7404 = vsub.f32 %v7111, %v7403
  %7405 = vmatpush1.msra.mxu0 %v7404
  %7406 = vmatprep.subr.mxu0 0.0
  %v7407 = vand.u32 %v7112, 4294901760
  %v7408 = vsub.f32 %v7112, %v7407
  %7409 = vmatpush1.msra.mxu0 %v7408
  %7410 = vmatprep.subr.mxu0 0.0
  %v7411 = vand.u32 %v7113, 4294901760
  %v7412 = vsub.f32 %v7113, %v7411
  %7413 = vmatpush1.msra.mxu0 %v7412
  %7414 = vmatprep.subr.mxu0 0.0
  %v7415 = vand.u32 %v7114, 4294901760
  %v7416 = vsub.f32 %v7114, %v7415
  %7417 = vmatpush1.msra.mxu0 %v7416
  %7418 = vmatprep.subr.mxu0 0.0
  %v7419 = vand.u32 %v7115, 4294901760
  %v7420 = vsub.f32 %v7115, %v7419
  %7421 = vmatpush1.msra.mxu0 %v7420
  %7422 = vmatprep.subr.mxu0 0.0
  %v7423 = vand.u32 %v7116, 4294901760
  %v7424 = vsub.f32 %v7116, %v7423
  %7425 = vmatpush1.msra.mxu0 %v7424
  %7426 = vmatprep.subr.mxu0 0.0
  %v7427 = vand.u32 %v7117, 4294901760
  %v7428 = vsub.f32 %v7117, %v7427
  %7429 = vmatpush1.msra.mxu0 %v7428
  %7430 = vmatprep.subr.mxu0 0.0
  %v7431 = vand.u32 %v7118, 4294901760
  %v7432 = vsub.f32 %v7118, %v7431
  %7433 = vmatpush1.msra.mxu0 %v7432
  %7434 = vmatprep.subr.mxu0 0.0
  %v7435 = vand.u32 %v7119, 4294901760
  %v7436 = vsub.f32 %v7119, %v7435
  %7437 = vmatpush1.msra.mxu0 %v7436
  %7438 = vmatprep.subr.mxu0 0.0
  %v7439 = vand.u32 %v7120, 4294901760
  %v7440 = vsub.f32 %v7120, %v7439
  %7441 = vmatpush1.msra.mxu0 %v7440
  %7442 = vmatprep.subr.mxu0 0.0
  %v7443 = vand.u32 %v7121, 4294901760
  %v7444 = vsub.f32 %v7121, %v7443
  %7445 = vmatpush1.msra.mxu0 %v7444
  %7446 = vmatprep.subr.mxu0 0.0
  %v7447 = vand.u32 %v7122, 4294901760
  %v7448 = vsub.f32 %v7122, %v7447
  %7449 = vmatpush1.msra.mxu0 %v7448
  %7450 = vmatprep.subr.mxu0 0.0
  %v7451 = vand.u32 %v7123, 4294901760
  %v7452 = vsub.f32 %v7123, %v7451
  %7453 = vmatpush1.msra.mxu0 %v7452
  %7454 = vmatprep.subr.mxu0 0.0
  %7455 = vmatpush1.msra.mxu0 0.0
  %7456 = vmatprep.subr.mxu0 0.0
  %7457 = vmatpush1.msra.mxu0 0.0
  %7458 = vmatprep.subr.mxu0 0.0
  %7459 = vmatpush1.msra.mxu0 0.0
  %7460 = vmatprep.subr.mxu0 0.0
  %7461 = vmatpush1.msra.mxu0 0.0
  %7462 = vmatprep.subr.mxu0 0.0
  %7463 = vmatpush1.msra.mxu0 0.0
  %7464 = vmatprep.subr.mxu0 0.0
  %7465 = vmatpush1.msra.mxu0 0.0
  %7466 = vmatprep.subr.mxu0 0.0
  %7467 = vmatpush1.msra.mxu0 0.0
  %7468 = vmatprep.subr.mxu0 0.0
  %7469 = vmatpush1.msra.mxu0 0.0
  %7470 = vmatprep.subr.mxu0 0.0
  %7471 = vmatpush1.msra.mxu0 0.0
  %7472 = vmatprep.subr.mxu0 0.0
  %7473 = vmatpush1.msra.mxu0 0.0
  %7474 = vmatprep.subr.mxu0 0.0
  %7475 = vmatpush1.msra.mxu0 0.0
  %7476 = vmatprep.subr.mxu0 0.0
  %7477 = vmatpush1.msra.mxu0 0.0
  %7478 = vmatprep.subr.mxu0 0.0
  %7479 = vmatpush1.msra.mxu0 0.0
  %7480 = vmatprep.subr.mxu0 0.0
  %7481 = vmatpush1.msra.mxu0 0.0
  %7482 = vmatprep.subr.mxu0 0.0
  %7483 = vmatpush1.msra.mxu0 0.0
  %7484 = vmatprep.subr.mxu0 0.0
  %7485 = vmatpush1.msra.mxu0 0.0
  %7486 = vmatprep.mubr.f32.mxu0 0.0
  %v7487 = vand.u32 %v7105, 4294901760
  %v7488 = vsub.f32 %v7105, %v7487
  %7489 = vmatmul.mubr.f32.gmra.mrb[0].mxu0 %v7488
  %v7490 = vpop.f32.mrb[0].mxu0
  %v7491 = vadd.f32 %v7381, %v7490
  %v7492 = vpop.f32.mrb[0].mxu0
  %7493 = vmatprep.mubr.f32.mxu0 0.0
  %v7494 = vand.u32 %v7106, 4294901760
  %v7495 = vsub.f32 %v7106, %v7494
  %7496 = vmatmul.mubr.f32.gmra.mrb[0].mxu0 %v7495
  %v7497 = vpop.f32.mrb[0].mxu0
  %v7498 = vadd.f32 %v7387, %v7497
  %v7499 = vpop.f32.mrb[0].mxu0
  %7500 = vdwg.mxu0
  %7501 = vmatprep.subr.mxu0 0.0
  %v7502 = vand.u32 %v7108, 4294901760
  %7503 = vmatpush1.msra.mxu0 %v7502
  %7504 = vmatprep.subr.mxu0 0.0
  %v7505 = vand.u32 %v7109, 4294901760
  %7506 = vmatpush1.msra.mxu0 %v7505
  %7507 = vmatprep.subr.mxu0 0.0
  %v7508 = vand.u32 %v7110, 4294901760
  %7509 = vmatpush1.msra.mxu0 %v7508
  %7510 = vmatprep.subr.mxu0 0.0
  %v7511 = vand.u32 %v7111, 4294901760
  %7512 = vmatpush1.msra.mxu0 %v7511
  %7513 = vmatprep.subr.mxu0 0.0
  %v7514 = vand.u32 %v7112, 4294901760
  %7515 = vmatpush1.msra.mxu0 %v7514
  %7516 = vmatprep.subr.mxu0 0.0
  %v7517 = vand.u32 %v7113, 4294901760
  %7518 = vmatpush1.msra.mxu0 %v7517
  %7519 = vmatprep.subr.mxu0 0.0
  %v7520 = vand.u32 %v7114, 4294901760
  %7521 = vmatpush1.msra.mxu0 %v7520
  %7522 = vmatprep.subr.mxu0 0.0
  %v7523 = vand.u32 %v7115, 4294901760
  %7524 = vmatpush1.msra.mxu0 %v7523
  %7525 = vmatprep.subr.mxu0 0.0
  %v7526 = vand.u32 %v7116, 4294901760
  %7527 = vmatpush1.msra.mxu0 %v7526
  %7528 = vmatprep.subr.mxu0 0.0
  %v7529 = vand.u32 %v7117, 4294901760
  %7530 = vmatpush1.msra.mxu0 %v7529
  %7531 = vmatprep.subr.mxu0 0.0
  %v7532 = vand.u32 %v7118, 4294901760
  %7533 = vmatpush1.msra.mxu0 %v7532
  %7534 = vmatprep.subr.mxu0 0.0
  %v7535 = vand.u32 %v7119, 4294901760
  %7536 = vmatpush1.msra.mxu0 %v7535
  %7537 = vmatprep.subr.mxu0 0.0
  %v7538 = vand.u32 %v7120, 4294901760
  %7539 = vmatpush1.msra.mxu0 %v7538
  %7540 = vmatprep.subr.mxu0 0.0
  %v7541 = vand.u32 %v7121, 4294901760
  %7542 = vmatpush1.msra.mxu0 %v7541
  %7543 = vmatprep.subr.mxu0 0.0
  %v7544 = vand.u32 %v7122, 4294901760
  %7545 = vmatpush1.msra.mxu0 %v7544
  %7546 = vmatprep.subr.mxu0 0.0
  %v7547 = vand.u32 %v7123, 4294901760
  %7548 = vmatpush1.msra.mxu0 %v7547
  %7549 = vmatprep.subr.mxu0 0.0
  %7550 = vmatpush1.msra.mxu0 0.0
  %7551 = vmatprep.subr.mxu0 0.0
  %7552 = vmatpush1.msra.mxu0 0.0
  %7553 = vmatprep.subr.mxu0 0.0
  %7554 = vmatpush1.msra.mxu0 0.0
  %7555 = vmatprep.subr.mxu0 0.0
  %7556 = vmatpush1.msra.mxu0 0.0
  %7557 = vmatprep.subr.mxu0 0.0
  %7558 = vmatpush1.msra.mxu0 0.0
  %7559 = vmatprep.subr.mxu0 0.0
  %7560 = vmatpush1.msra.mxu0 0.0
  %7561 = vmatprep.subr.mxu0 0.0
  %7562 = vmatpush1.msra.mxu0 0.0
  %7563 = vmatprep.subr.mxu0 0.0
  %7564 = vmatpush1.msra.mxu0 0.0
  %7565 = vmatprep.subr.mxu0 0.0
  %7566 = vmatpush1.msra.mxu0 0.0
  %7567 = vmatprep.subr.mxu0 0.0
  %7568 = vmatpush1.msra.mxu0 0.0
  %7569 = vmatprep.subr.mxu0 0.0
  %7570 = vmatpush1.msra.mxu0 0.0
  %7571 = vmatprep.subr.mxu0 0.0
  %7572 = vmatpush1.msra.mxu0 0.0
  %7573 = vmatprep.subr.mxu0 0.0
  %7574 = vmatpush1.msra.mxu0 0.0
  %7575 = vmatprep.subr.mxu0 0.0
  %7576 = vmatpush1.msra.mxu0 0.0
  %7577 = vmatprep.subr.mxu0 0.0
  %7578 = vmatpush1.msra.mxu0 0.0
  %7579 = vmatprep.subr.mxu0 0.0
  %7580 = vmatpush1.msra.mxu0 0.0
  %7581 = vmatprep.mubr.f32.mxu0 0.0
  %v7582 = vand.u32 %v7105, 4294901760
  %v7583 = vsub.f32 %v7105, %v7582
  %v7584 = vand.u32 %v7583, 4294901760
  %7585 = vmatmul.mubr.f32.gmra.mrb[0].mxu0 %v7584
  %v7586 = vpop.f32.mrb[0].mxu0
  %v7587 = vadd.f32 %v7491, %v7586
  %v7588 = vpop.f32.mrb[0].mxu0
  %7589 = vmatprep.mubr.f32.mxu0 0.0
  %v7590 = vand.u32 %v7106, 4294901760
  %v7591 = vsub.f32 %v7106, %v7590
  %v7592 = vand.u32 %v7591, 4294901760
  %7593 = vmatmul.mubr.f32.gmra.mrb[0].mxu0 %v7592
  %v7594 = vpop.f32.mrb[0].mxu0
  %v7595 = vadd.f32 %v7498, %v7594
  %v7596 = vpop.f32.mrb[0].mxu0
  %7597 = vdwg.mxu0
  %7598 = vmatprep.subr.mxu0 0.0
  %v7599 = vand.u32 %v7108, 4294901760
  %v7600 = vsub.f32 %v7108, %v7599
  %v7601 = vand.u32 %v7600, 4294901760
  %7602 = vmatpush1.msra.mxu0 %v7601
  %7603 = vmatprep.subr.mxu0 0.0
  %v7604 = vand.u32 %v7109, 4294901760
  %v7605 = vsub.f32 %v7109, %v7604
  %v7606 = vand.u32 %v7605, 4294901760
  %7607 = vmatpush1.msra.mxu0 %v7606
  %7608 = vmatprep.subr.mxu0 0.0
  %v7609 = vand.u32 %v7110, 4294901760
  %v7610 = vsub.f32 %v7110, %v7609
  %v7611 = vand.u32 %v7610, 4294901760
  %7612 = vmatpush1.msra.mxu0 %v7611
  %7613 = vmatprep.subr.mxu0 0.0
  %v7614 = vand.u32 %v7111, 4294901760
  %v7615 = vsub.f32 %v7111, %v7614
  %v7616 = vand.u32 %v7615, 4294901760
  %7617 = vmatpush1.msra.mxu0 %v7616
  %7618 = vmatprep.subr.mxu0 0.0
  %v7619 = vand.u32 %v7112, 4294901760
  %v7620 = vsub.f32 %v7112, %v7619
  %v7621 = vand.u32 %v7620, 4294901760
  %7622 = vmatpush1.msra.mxu0 %v7621
  %7623 = vmatprep.subr.mxu0 0.0
  %v7624 = vand.u32 %v7113, 4294901760
  %v7625 = vsub.f32 %v7113, %v7624
  %v7626 = vand.u32 %v7625, 4294901760
  %7627 = vmatpush1.msra.mxu0 %v7626
  %7628 = vmatprep.subr.mxu0 0.0
  %v7629 = vand.u32 %v7114, 4294901760
  %v7630 = vsub.f32 %v7114, %v7629
  %v7631 = vand.u32 %v7630, 4294901760
  %7632 = vmatpush1.msra.mxu0 %v7631
  %7633 = vmatprep.subr.mxu0 0.0
  %v7634 = vand.u32 %v7115, 4294901760
  %v7635 = vsub.f32 %v7115, %v7634
  %v7636 = vand.u32 %v7635, 4294901760
  %7637 = vmatpush1.msra.mxu0 %v7636
  %7638 = vmatprep.subr.mxu0 0.0
  %v7639 = vand.u32 %v7116, 4294901760
  %v7640 = vsub.f32 %v7116, %v7639
  %v7641 = vand.u32 %v7640, 4294901760
  %7642 = vmatpush1.msra.mxu0 %v7641
  %7643 = vmatprep.subr.mxu0 0.0
  %v7644 = vand.u32 %v7117, 4294901760
  %v7645 = vsub.f32 %v7117, %v7644
  %v7646 = vand.u32 %v7645, 4294901760
  %7647 = vmatpush1.msra.mxu0 %v7646
  %7648 = vmatprep.subr.mxu0 0.0
  %v7649 = vand.u32 %v7118, 4294901760
  %v7650 = vsub.f32 %v7118, %v7649
  %v7651 = vand.u32 %v7650, 4294901760
  %7652 = vmatpush1.msra.mxu0 %v7651
  %7653 = vmatprep.subr.mxu0 0.0
  %v7654 = vand.u32 %v7119, 4294901760
  %v7655 = vsub.f32 %v7119, %v7654
  %v7656 = vand.u32 %v7655, 4294901760
  %7657 = vmatpush1.msra.mxu0 %v7656
  %7658 = vmatprep.subr.mxu0 0.0
  %v7659 = vand.u32 %v7120, 4294901760
  %v7660 = vsub.f32 %v7120, %v7659
  %v7661 = vand.u32 %v7660, 4294901760
  %7662 = vmatpush1.msra.mxu0 %v7661
  %7663 = vmatprep.subr.mxu0 0.0
  %v7664 = vand.u32 %v7121, 4294901760
  %v7665 = vsub.f32 %v7121, %v7664
  %v7666 = vand.u32 %v7665, 4294901760
  %7667 = vmatpush1.msra.mxu0 %v7666
  %7668 = vmatprep.subr.mxu0 0.0
  %v7669 = vand.u32 %v7122, 4294901760
  %v7670 = vsub.f32 %v7122, %v7669
  %v7671 = vand.u32 %v7670, 4294901760
  %7672 = vmatpush1.msra.mxu0 %v7671
  %7673 = vmatprep.subr.mxu0 0.0
  %v7674 = vand.u32 %v7123, 4294901760
  %v7675 = vsub.f32 %v7123, %v7674
  %v7676 = vand.u32 %v7675, 4294901760
  %7677 = vmatpush1.msra.mxu0 %v7676
  %7678 = vmatprep.subr.mxu0 0.0
  %7679 = vmatpush1.msra.mxu0 0.0
  %7680 = vmatprep.subr.mxu0 0.0
  %7681 = vmatpush1.msra.mxu0 0.0
  %7682 = vmatprep.subr.mxu0 0.0
  %7683 = vmatpush1.msra.mxu0 0.0
  %7684 = vmatprep.subr.mxu0 0.0
  %7685 = vmatpush1.msra.mxu0 0.0
  %7686 = vmatprep.subr.mxu0 0.0
  %7687 = vmatpush1.msra.mxu0 0.0
  %7688 = vmatprep.subr.mxu0 0.0
  %7689 = vmatpush1.msra.mxu0 0.0
  %7690 = vmatprep.subr.mxu0 0.0
  %7691 = vmatpush1.msra.mxu0 0.0
  %7692 = vmatprep.subr.mxu0 0.0
  %7693 = vmatpush1.msra.mxu0 0.0
  %7694 = vmatprep.subr.mxu0 0.0
  %7695 = vmatpush1.msra.mxu0 0.0
  %7696 = vmatprep.subr.mxu0 0.0
  %7697 = vmatpush1.msra.mxu0 0.0
  %7698 = vmatprep.subr.mxu0 0.0
  %7699 = vmatpush1.msra.mxu0 0.0
  %7700 = vmatprep.subr.mxu0 0.0
  %7701 = vmatpush1.msra.mxu0 0.0
  %7702 = vmatprep.subr.mxu0 0.0
  %7703 = vmatpush1.msra.mxu0 0.0
  %7704 = vmatprep.subr.mxu0 0.0
  %7705 = vmatpush1.msra.mxu0 0.0
  %7706 = vmatprep.subr.mxu0 0.0
  %7707 = vmatpush1.msra.mxu0 0.0
  %7708 = vmatprep.subr.mxu0 0.0
  %7709 = vmatpush1.msra.mxu0 0.0
  %7710 = vmatprep.mubr.f32.mxu0 0.0
  %v7711 = vand.u32 %v7105, 4294901760
  %7712 = vmatmul.mubr.f32.gmra.mrb[0].mxu0 %v7711
  %v7713 = vpop.f32.mrb[0].mxu0
  %v7714 = vadd.f32 %v7587, %v7713
  %v7715 = vpop.f32.mrb[0].mxu0
  %7716 = vmatprep.mubr.f32.mxu0 0.0
  %v7717 = vand.u32 %v7106, 4294901760
  %7718 = vmatmul.mubr.f32.gmra.mrb[0].mxu0 %v7717
  %v7719 = vpop.f32.mrb[0].mxu0
  %v7720 = vadd.f32 %v7595, %v7719
  %v7721 = vpop.f32.mrb[0].mxu0
  %7722 = vdwg.mxu0
  %7723 = vmatprep.subr.mxu0 0.0
  %v7724 = vand.u32 %v7108, 4294901760
  %7725 = vmatpush1.msra.mxu0 %v7724
  %7726 = vmatprep.subr.mxu0 0.0
  %v7727 = vand.u32 %v7109, 4294901760
  %7728 = vmatpush1.msra.mxu0 %v7727
  %7729 = vmatprep.subr.mxu0 0.0
  %v7730 = vand.u32 %v7110, 4294901760
  %7731 = vmatpush1.msra.mxu0 %v7730
  %7732 = vmatprep.subr.mxu0 0.0
  %v7733 = vand.u32 %v7111, 4294901760
  %7734 = vmatpush1.msra.mxu0 %v7733
  %7735 = vmatprep.subr.mxu0 0.0
  %v7736 = vand.u32 %v7112, 4294901760
  %7737 = vmatpush1.msra.mxu0 %v7736
  %7738 = vmatprep.subr.mxu0 0.0
  %v7739 = vand.u32 %v7113, 4294901760
  %7740 = vmatpush1.msra.mxu0 %v7739
  %7741 = vmatprep.subr.mxu0 0.0
  %v7742 = vand.u32 %v7114, 4294901760
  %7743 = vmatpush1.msra.mxu0 %v7742
  %7744 = vmatprep.subr.mxu0 0.0
  %v7745 = vand.u32 %v7115, 4294901760
  %7746 = vmatpush1.msra.mxu0 %v7745
  %7747 = vmatprep.subr.mxu0 0.0
  %v7748 = vand.u32 %v7116, 4294901760
  %7749 = vmatpush1.msra.mxu0 %v7748
  %7750 = vmatprep.subr.mxu0 0.0
  %v7751 = vand.u32 %v7117, 4294901760
  %7752 = vmatpush1.msra.mxu0 %v7751
  %7753 = vmatprep.subr.mxu0 0.0
  %v7754 = vand.u32 %v7118, 4294901760
  %7755 = vmatpush1.msra.mxu0 %v7754
  %7756 = vmatprep.subr.mxu0 0.0
  %v7757 = vand.u32 %v7119, 4294901760
  %7758 = vmatpush1.msra.mxu0 %v7757
  %7759 = vmatprep.subr.mxu0 0.0
  %v7760 = vand.u32 %v7120, 4294901760
  %7761 = vmatpush1.msra.mxu0 %v7760
  %7762 = vmatprep.subr.mxu0 0.0
  %v7763 = vand.u32 %v7121, 4294901760
  %7764 = vmatpush1.msra.mxu0 %v7763
  %7765 = vmatprep.subr.mxu0 0.0
  %v7766 = vand.u32 %v7122, 4294901760
  %7767 = vmatpush1.msra.mxu0 %v7766
  %7768 = vmatprep.subr.mxu0 0.0
  %v7769 = vand.u32 %v7123, 4294901760
  %7770 = vmatpush1.msra.mxu0 %v7769
  %7771 = vmatprep.subr.mxu0 0.0
  %7772 = vmatpush1.msra.mxu0 0.0
  %7773 = vmatprep.subr.mxu0 0.0
  %7774 = vmatpush1.msra.mxu0 0.0
  %7775 = vmatprep.subr.mxu0 0.0
  %7776 = vmatpush1.msra.mxu0 0.0
  %7777 = vmatprep.subr.mxu0 0.0
  %7778 = vmatpush1.msra.mxu0 0.0
  %7779 = vmatprep.subr.mxu0 0.0
  %7780 = vmatpush1.msra.mxu0 0.0
  %7781 = vmatprep.subr.mxu0 0.0
  %7782 = vmatpush1.msra.mxu0 0.0
  %7783 = vmatprep.subr.mxu0 0.0
  %7784 = vmatpush1.msra.mxu0 0.0
  %7785 = vmatprep.subr.mxu0 0.0
  %7786 = vmatpush1.msra.mxu0 0.0
  %7787 = vmatprep.subr.mxu0 0.0
  %7788 = vmatpush1.msra.mxu0 0.0
  %7789 = vmatprep.subr.mxu0 0.0
  %7790 = vmatpush1.msra.mxu0 0.0
  %7791 = vmatprep.subr.mxu0 0.0
  %7792 = vmatpush1.msra.mxu0 0.0
  %7793 = vmatprep.subr.mxu0 0.0
  %7794 = vmatpush1.msra.mxu0 0.0
  %7795 = vmatprep.subr.mxu0 0.0
  %7796 = vmatpush1.msra.mxu0 0.0
  %7797 = vmatprep.subr.mxu0 0.0
  %7798 = vmatpush1.msra.mxu0 0.0
  %7799 = vmatprep.subr.mxu0 0.0
  %7800 = vmatpush1.msra.mxu0 0.0
  %7801 = vmatprep.subr.mxu0 0.0
  %7802 = vmatpush1.msra.mxu0 0.0
  %7803 = vmatprep.mubr.f32.mxu0 0.0
  %v7804 = vand.u32 %v7105, 4294901760
  %7805 = vmatmul.mubr.f32.gmra.mrb[0].mxu0 %v7804
  %v7806 = vpop.f32.mrb[0].mxu0
  %v7807 = vadd.f32 %v7714, %v7806
  %v7808 = vpop.f32.mrb[0].mxu0
  %7809 = vmatprep.mubr.f32.mxu0 0.0
  %v7810 = vand.u32 %v7106, 4294901760
  %7811 = vmatmul.mubr.f32.gmra.mrb[0].mxu0 %v7810
  %v7812 = vpop.f32.mrb[0].mxu0
  %v7813 = vadd.f32 %v7720, %v7812
  %v7814 = vpop.f32.mrb[0].mxu0
  %7815 = vdwg.mxu0
  %v7816 = vadd.f32 %v6462, %v7807
  %v7817 = vadd.f32 %v6463, %v7813
  %s7818 = scalar_lea.vmem %s3, 4
  %v7819 = vld [vmem:[%s7818] sm:$0x1]
  %s7820 = scalar_lea.vmem %s4, 4
  %v7821 = vld [vmem:[%s7820] sm:$0x1]
  %s7822 = scalar_lea.vmem %s3, 5
  %v7823 = vld [vmem:[%s7822] sm:$0x1]
  %s7824 = scalar_lea.vmem %s4, 5
  %v7825 = vld [vmem:[%s7824] sm:$0x1]
  %v7827 = vlaneseq
  %v7828 = vshrl.u32 %v7827, 7
  %v7829 = vsub.s32 0, %v7828
  %v7830 = vrot.slane %v7819, %v7829
  %v7832 = vmul.f32 %v4560, %v7830
  %v7833 = vmul.f32 %v4561, %v7830
  %v7834 = vmul.f32 %v4562, %v7830
  %v7835 = vmul.f32 %v4563, %v7830
  %v7837 = vlaneseq
  %v7838 = vshrl.u32 %v7837, 7
  %v7839 = vsub.s32 0, %v7838
  %v7840 = vrot.slane %v7821, %v7839
  %v7842 = vadd.f32 %v7832, %v7840
  %v7843 = vadd.f32 %v7833, %v7840
  %v7844 = vadd.f32 %v7834, %v7840
  %v7845 = vadd.f32 %v7835, %v7840
  %s7846 = scalar_lea.vmem %s5, 64
  %v7847 = vld [vmem:[%s7846] sm:$0xff]
  %v7848 = vld [vmem:[%s7846 + $0x8] sm:$0xff]
  %v7849 = vld [vmem:[%s7846 + $0x10] sm:$0xff]
  %v7850 = vld [vmem:[%s7846 + $0x18] sm:$0xff]
  %s7851 = scalar_lea.vmem %s6, 2
  %v7852 = vld [vmem:[%s7851] sm:$0x1]
  %v7854 = vlaneseq
  %v7855 = vshrl.u32 %v7854, 7
  %v7856 = vsub.s32 0, %v7855
  %v7857 = vrot.slane %v7852, %v7856
  %v7860 = vsel %vm80, %v7842, 0
  %v7863 = vsel %vm80, %v7843, 0
  %v7866 = vsel %vm80, %v7844, 0
  %v7869 = vsel %vm80, %v7845, 0
  %7871 = vmatprep.subr.mxu0 0.0
  %v7872 = vand.u32 %v7847, 4294901760
  %7873 = vmatpush1.msra.mxu0 %v7872
  %7874 = vmatprep.subr.mxu0 0.0
  %v7875 = vand.u32 %v7848, 4294901760
  %7876 = vmatpush1.msra.mxu0 %v7875
  %7877 = vmatprep.subr.mxu0 0.0
  %v7878 = vand.u32 %v7849, 4294901760
  %7879 = vmatpush1.msra.mxu0 %v7878
  %7880 = vmatprep.subr.mxu0 0.0
  %v7881 = vand.u32 %v7850, 4294901760
  %7882 = vmatpush1.msra.mxu0 %v7881
  %7883 = vmatprep.subr.mxu0 0.0
  %7884 = vmatpush1.msra.mxu0 0.0
  %7885 = vmatprep.subr.mxu0 0.0
  %7886 = vmatpush1.msra.mxu0 0.0
  %7887 = vmatprep.subr.mxu0 0.0
  %7888 = vmatpush1.msra.mxu0 0.0
  %7889 = vmatprep.subr.mxu0 0.0
  %7890 = vmatpush1.msra.mxu0 0.0
  %7891 = vmatprep.subr.mxu0 0.0
  %7892 = vmatpush1.msra.mxu0 0.0
  %7893 = vmatprep.subr.mxu0 0.0
  %7894 = vmatpush1.msra.mxu0 0.0
  %7895 = vmatprep.subr.mxu0 0.0
  %7896 = vmatpush1.msra.mxu0 0.0
  %7897 = vmatprep.subr.mxu0 0.0
  %7898 = vmatpush1.msra.mxu0 0.0
  %7899 = vmatprep.subr.mxu0 0.0
  %7900 = vmatpush1.msra.mxu0 0.0
  %7901 = vmatprep.subr.mxu0 0.0
  %7902 = vmatpush1.msra.mxu0 0.0
  %7903 = vmatprep.subr.mxu0 0.0
  %7904 = vmatpush1.msra.mxu0 0.0
  %7905 = vmatprep.subr.mxu0 0.0
  %7906 = vmatpush1.msra.mxu0 0.0
  %7907 = vmatprep.subr.mxu0 0.0
  %7908 = vmatpush1.msra.mxu0 0.0
  %7909 = vmatprep.subr.mxu0 0.0
  %7910 = vmatpush1.msra.mxu0 0.0
  %7911 = vmatprep.subr.mxu0 0.0
  %7912 = vmatpush1.msra.mxu0 0.0
  %7913 = vmatprep.subr.mxu0 0.0
  %7914 = vmatpush1.msra.mxu0 0.0
  %7915 = vmatprep.subr.mxu0 0.0
  %7916 = vmatpush1.msra.mxu0 0.0
  %7917 = vmatprep.subr.mxu0 0.0
  %7918 = vmatpush1.msra.mxu0 0.0
  %7919 = vmatprep.subr.mxu0 0.0
  %7920 = vmatpush1.msra.mxu0 0.0
  %7921 = vmatprep.subr.mxu0 0.0
  %7922 = vmatpush1.msra.mxu0 0.0
  %7923 = vmatprep.subr.mxu0 0.0
  %7924 = vmatpush1.msra.mxu0 0.0
  %7925 = vmatprep.subr.mxu0 0.0
  %7926 = vmatpush1.msra.mxu0 0.0
  %7927 = vmatprep.subr.mxu0 0.0
  %7928 = vmatpush1.msra.mxu0 0.0
  %7929 = vmatprep.subr.mxu0 0.0
  %7930 = vmatpush1.msra.mxu0 0.0
  %7931 = vmatprep.subr.mxu0 0.0
  %7932 = vmatpush1.msra.mxu0 0.0
  %7933 = vmatprep.subr.mxu0 0.0
  %7934 = vmatpush1.msra.mxu0 0.0
  %7935 = vmatprep.subr.mxu0 0.0
  %7936 = vmatpush1.msra.mxu0 0.0
  %7937 = vmatprep.subr.mxu0 0.0
  %7938 = vmatpush1.msra.mxu0 0.0
  %7939 = vmatprep.mubr.f32.mxu0 0.0
  %v7940 = vand.u32 %v7860, 4294901760
  %v7941 = vsub.f32 %v7860, %v7940
  %v7942 = vand.u32 %v7941, 4294901760
  %v7943 = vsub.f32 %v7941, %v7942
  %v7944 = vand.u32 %v7943, 4294901760
  %7945 = vmatmul.mubr.f32.gmra.mrb[0].mxu0 %v7944
  %v7946 = vpop.f32.mrb[0].mxu0
  %v7947 = vadd.f32 %v7857, %v7946
  %v7948 = vpop.f32.mrb[0].mxu0
  %7949 = vmatprep.mubr.f32.mxu0 0.0
  %v7950 = vand.u32 %v7863, 4294901760
  %v7951 = vsub.f32 %v7863, %v7950
  %v7952 = vand.u32 %v7951, 4294901760
  %v7953 = vsub.f32 %v7951, %v7952
  %v7954 = vand.u32 %v7953, 4294901760
  %7955 = vmatmul.mubr.f32.gmra.mrb[0].mxu0 %v7954
  %v7956 = vpop.f32.mrb[0].mxu0
  %v7957 = vadd.f32 %v7857, %v7956
  %v7958 = vpop.f32.mrb[0].mxu0
  %7959 = vmatprep.mubr.f32.mxu0 0.0
  %v7960 = vand.u32 %v7866, 4294901760
  %v7961 = vsub.f32 %v7866, %v7960
  %v7962 = vand.u32 %v7961, 4294901760
  %v7963 = vsub.f32 %v7961, %v7962
  %v7964 = vand.u32 %v7963, 4294901760
  %7965 = vmatmul.mubr.f32.gmra.mrb[0].mxu0 %v7964
  %v7966 = vpop.f32.mrb[0].mxu0
  %v7967 = vadd.f32 %v7857, %v7966
  %v7968 = vpop.f32.mrb[0].mxu0
  %7969 = vmatprep.mubr.f32.mxu0 0.0
  %v7970 = vand.u32 %v7869, 4294901760
  %v7971 = vsub.f32 %v7869, %v7970
  %v7972 = vand.u32 %v7971, 4294901760
  %v7973 = vsub.f32 %v7971, %v7972
  %v7974 = vand.u32 %v7973, 4294901760
  %7975 = vmatmul.mubr.f32.gmra.mrb[0].mxu0 %v7974
  %v7976 = vpop.f32.mrb[0].mxu0
  %v7977 = vadd.f32 %v7857, %v7976
  %v7978 = vpop.f32.mrb[0].mxu0
  %7979 = vdwg.mxu0
  %7980 = vmatprep.subr.mxu0 0.0
  %v7981 = vand.u32 %v7847, 4294901760
  %v7982 = vsub.f32 %v7847, %v7981
  %v7983 = vand.u32 %v7982, 4294901760
  %v7984 = vsub.f32 %v7982, %v7983
  %v7985 = vand.u32 %v7984, 4294901760
  %7986 = vmatpush1.msra.mxu0 %v7985
  %7987 = vmatprep.subr.mxu0 0.0
  %v7988 = vand.u32 %v7848, 4294901760
  %v7989 = vsub.f32 %v7848, %v7988
  %v7990 = vand.u32 %v7989, 4294901760
  %v7991 = vsub.f32 %v7989, %v7990
  %v7992 = vand.u32 %v7991, 4294901760
  %7993 = vmatpush1.msra.mxu0 %v7992
  %7994 = vmatprep.subr.mxu0 0.0
  %v7995 = vand.u32 %v7849, 4294901760
  %v7996 = vsub.f32 %v7849, %v7995
  %v7997 = vand.u32 %v7996, 4294901760
  %v7998 = vsub.f32 %v7996, %v7997
  %v7999 = vand.u32 %v7998, 4294901760
  %8000 = vmatpush1.msra.mxu0 %v7999
  %8001 = vmatprep.subr.mxu0 0.0
  %v8002 = vand.u32 %v7850, 4294901760
  %v8003 = vsub.f32 %v7850, %v8002
  %v8004 = vand.u32 %v8003, 4294901760
  %v8005 = vsub.f32 %v8003, %v8004
  %v8006 = vand.u32 %v8005, 4294901760
  %8007 = vmatpush1.msra.mxu0 %v8006
  %8008 = vmatprep.subr.mxu0 0.0
  %8009 = vmatpush1.msra.mxu0 0.0
  %8010 = vmatprep.subr.mxu0 0.0
  %8011 = vmatpush1.msra.mxu0 0.0
  %8012 = vmatprep.subr.mxu0 0.0
  %8013 = vmatpush1.msra.mxu0 0.0
  %8014 = vmatprep.subr.mxu0 0.0
  %8015 = vmatpush1.msra.mxu0 0.0
  %8016 = vmatprep.subr.mxu0 0.0
  %8017 = vmatpush1.msra.mxu0 0.0
  %8018 = vmatprep.subr.mxu0 0.0
  %8019 = vmatpush1.msra.mxu0 0.0
  %8020 = vmatprep.subr.mxu0 0.0
  %8021 = vmatpush1.msra.mxu0 0.0
  %8022 = vmatprep.subr.mxu0 0.0
  %8023 = vmatpush1.msra.mxu0 0.0
  %8024 = vmatprep.subr.mxu0 0.0
  %8025 = vmatpush1.msra.mxu0 0.0
  %8026 = vmatprep.subr.mxu0 0.0
  %8027 = vmatpush1.msra.mxu0 0.0
  %8028 = vmatprep.subr.mxu0 0.0
  %8029 = vmatpush1.msra.mxu0 0.0
  %8030 = vmatprep.subr.mxu0 0.0
  %8031 = vmatpush1.msra.mxu0 0.0
  %8032 = vmatprep.subr.mxu0 0.0
  %8033 = vmatpush1.msra.mxu0 0.0
  %8034 = vmatprep.subr.mxu0 0.0
  %8035 = vmatpush1.msra.mxu0 0.0
  %8036 = vmatprep.subr.mxu0 0.0
  %8037 = vmatpush1.msra.mxu0 0.0
  %8038 = vmatprep.subr.mxu0 0.0
  %8039 = vmatpush1.msra.mxu0 0.0
  %8040 = vmatprep.subr.mxu0 0.0
  %8041 = vmatpush1.msra.mxu0 0.0
  %8042 = vmatprep.subr.mxu0 0.0
  %8043 = vmatpush1.msra.mxu0 0.0
  %8044 = vmatprep.subr.mxu0 0.0
  %8045 = vmatpush1.msra.mxu0 0.0
  %8046 = vmatprep.subr.mxu0 0.0
  %8047 = vmatpush1.msra.mxu0 0.0
  %8048 = vmatprep.subr.mxu0 0.0
  %8049 = vmatpush1.msra.mxu0 0.0
  %8050 = vmatprep.subr.mxu0 0.0
  %8051 = vmatpush1.msra.mxu0 0.0
  %8052 = vmatprep.subr.mxu0 0.0
  %8053 = vmatpush1.msra.mxu0 0.0
  %8054 = vmatprep.subr.mxu0 0.0
  %8055 = vmatpush1.msra.mxu0 0.0
  %8056 = vmatprep.subr.mxu0 0.0
  %8057 = vmatpush1.msra.mxu0 0.0
  %8058 = vmatprep.subr.mxu0 0.0
  %8059 = vmatpush1.msra.mxu0 0.0
  %8060 = vmatprep.subr.mxu0 0.0
  %8061 = vmatpush1.msra.mxu0 0.0
  %8062 = vmatprep.subr.mxu0 0.0
  %8063 = vmatpush1.msra.mxu0 0.0
  %8064 = vmatprep.mubr.f32.mxu0 0.0
  %v8065 = vand.u32 %v7860, 4294901760
  %8066 = vmatmul.mubr.f32.gmra.mrb[0].mxu0 %v8065
  %v8067 = vpop.f32.mrb[0].mxu0
  %v8068 = vadd.f32 %v7947, %v8067
  %v8069 = vpop.f32.mrb[0].mxu0
  %8070 = vmatprep.mubr.f32.mxu0 0.0
  %v8071 = vand.u32 %v7863, 4294901760
  %8072 = vmatmul.mubr.f32.gmra.mrb[0].mxu0 %v8071
  %v8073 = vpop.f32.mrb[0].mxu0
  %v8074 = vadd.f32 %v7957, %v8073
  %v8075 = vpop.f32.mrb[0].mxu0
  %8076 = vmatprep.mubr.f32.mxu0 0.0
  %v8077 = vand.u32 %v7866, 4294901760
  %8078 = vmatmul.mubr.f32.gmra.mrb[0].mxu0 %v8077
  %v8079 = vpop.f32.mrb[0].mxu0
  %v8080 = vadd.f32 %v7967, %v8079
  %v8081 = vpop.f32.mrb[0].mxu0
  %8082 = vmatprep.mubr.f32.mxu0 0.0
  %v8083 = vand.u32 %v7869, 4294901760
  %8084 = vmatmul.mubr.f32.gmra.mrb[0].mxu0 %v8083
  %v8085 = vpop.f32.mrb[0].mxu0
  %v8086 = vadd.f32 %v7977, %v8085
  %v8087 = vpop.f32.mrb[0].mxu0
  %8088 = vdwg.mxu0
  %8089 = vmatprep.subr.mxu0 0.0
  %v8090 = vand.u32 %v7847, 4294901760
  %v8091 = vsub.f32 %v7847, %v8090
  %8092 = vmatpush1.msra.mxu0 %v8091
  %8093 = vmatprep.subr.mxu0 0.0
  %v8094 = vand.u32 %v7848, 4294901760
  %v8095 = vsub.f32 %v7848, %v8094
  %8096 = vmatpush1.msra.mxu0 %v8095
  %8097 = vmatprep.subr.mxu0 0.0
  %v8098 = vand.u32 %v7849, 4294901760
  %v8099 = vsub.f32 %v7849, %v8098
  %8100 = vmatpush1.msra.mxu0 %v8099
  %8101 = vmatprep.subr.mxu0 0.0
  %v8102 = vand.u32 %v7850, 4294901760
  %v8103 = vsub.f32 %v7850, %v8102
  %8104 = vmatpush1.msra.mxu0 %v8103
  %8105 = vmatprep.subr.mxu0 0.0
  %8106 = vmatpush1.msra.mxu0 0.0
  %8107 = vmatprep.subr.mxu0 0.0
  %8108 = vmatpush1.msra.mxu0 0.0
  %8109 = vmatprep.subr.mxu0 0.0
  %8110 = vmatpush1.msra.mxu0 0.0
  %8111 = vmatprep.subr.mxu0 0.0
  %8112 = vmatpush1.msra.mxu0 0.0
  %8113 = vmatprep.subr.mxu0 0.0
  %8114 = vmatpush1.msra.mxu0 0.0
  %8115 = vmatprep.subr.mxu0 0.0
  %8116 = vmatpush1.msra.mxu0 0.0
  %8117 = vmatprep.subr.mxu0 0.0
  %8118 = vmatpush1.msra.mxu0 0.0
  %8119 = vmatprep.subr.mxu0 0.0
  %8120 = vmatpush1.msra.mxu0 0.0
  %8121 = vmatprep.subr.mxu0 0.0
  %8122 = vmatpush1.msra.mxu0 0.0
  %8123 = vmatprep.subr.mxu0 0.0
  %8124 = vmatpush1.msra.mxu0 0.0
  %8125 = vmatprep.subr.mxu0 0.0
  %8126 = vmatpush1.msra.mxu0 0.0
  %8127 = vmatprep.subr.mxu0 0.0
  %8128 = vmatpush1.msra.mxu0 0.0
  %8129 = vmatprep.subr.mxu0 0.0
  %8130 = vmatpush1.msra.mxu0 0.0
  %8131 = vmatprep.subr.mxu0 0.0
  %8132 = vmatpush1.msra.mxu0 0.0
  %8133 = vmatprep.subr.mxu0 0.0
  %8134 = vmatpush1.msra.mxu0 0.0
  %8135 = vmatprep.subr.mxu0 0.0
  %8136 = vmatpush1.msra.mxu0 0.0
  %8137 = vmatprep.subr.mxu0 0.0
  %8138 = vmatpush1.msra.mxu0 0.0
  %8139 = vmatprep.subr.mxu0 0.0
  %8140 = vmatpush1.msra.mxu0 0.0
  %8141 = vmatprep.subr.mxu0 0.0
  %8142 = vmatpush1.msra.mxu0 0.0
  %8143 = vmatprep.subr.mxu0 0.0
  %8144 = vmatpush1.msra.mxu0 0.0
  %8145 = vmatprep.subr.mxu0 0.0
  %8146 = vmatpush1.msra.mxu0 0.0
  %8147 = vmatprep.subr.mxu0 0.0
  %8148 = vmatpush1.msra.mxu0 0.0
  %8149 = vmatprep.subr.mxu0 0.0
  %8150 = vmatpush1.msra.mxu0 0.0
  %8151 = vmatprep.subr.mxu0 0.0
  %8152 = vmatpush1.msra.mxu0 0.0
  %8153 = vmatprep.subr.mxu0 0.0
  %8154 = vmatpush1.msra.mxu0 0.0
  %8155 = vmatprep.subr.mxu0 0.0
  %8156 = vmatpush1.msra.mxu0 0.0
  %8157 = vmatprep.subr.mxu0 0.0
  %8158 = vmatpush1.msra.mxu0 0.0
  %8159 = vmatprep.subr.mxu0 0.0
  %8160 = vmatpush1.msra.mxu0 0.0
  %8161 = vmatprep.mubr.f32.mxu0 0.0
  %v8162 = vand.u32 %v7860, 4294901760
  %v8163 = vsub.f32 %v7860, %v8162
  %8164 = vmatmul.mubr.f32.gmra.mrb[0].mxu0 %v8163
  %v8165 = vpop.f32.mrb[0].mxu0
  %v8166 = vadd.f32 %v8068, %v8165
  %v8167 = vpop.f32.mrb[0].mxu0
  %8168 = vmatprep.mubr.f32.mxu0 0.0
  %v8169 = vand.u32 %v7863, 4294901760
  %v8170 = vsub.f32 %v7863, %v8169
  %8171 = vmatmul.mubr.f32.gmra.mrb[0].mxu0 %v8170
  %v8172 = vpop.f32.mrb[0].mxu0
  %v8173 = vadd.f32 %v8074, %v8172
  %v8174 = vpop.f32.mrb[0].mxu0
  %8175 = vmatprep.mubr.f32.mxu0 0.0
  %v8176 = vand.u32 %v7866, 4294901760
  %v8177 = vsub.f32 %v7866, %v8176
  %8178 = vmatmul.mubr.f32.gmra.mrb[0].mxu0 %v8177
  %v8179 = vpop.f32.mrb[0].mxu0
  %v8180 = vadd.f32 %v8080, %v8179
  %v8181 = vpop.f32.mrb[0].mxu0
  %8182 = vmatprep.mubr.f32.mxu0 0.0
  %v8183 = vand.u32 %v7869, 4294901760
  %v8184 = vsub.f32 %v7869, %v8183
  %8185 = vmatmul.mubr.f32.gmra.mrb[0].mxu0 %v8184
  %v8186 = vpop.f32.mrb[0].mxu0
  %v8187 = vadd.f32 %v8086, %v8186
  %v8188 = vpop.f32.mrb[0].mxu0
  %8189 = vdwg.mxu0
  %8190 = vmatprep.subr.mxu0 0.0
  %v8191 = vand.u32 %v7847, 4294901760
  %8192 = vmatpush1.msra.mxu0 %v8191
  %8193 = vmatprep.subr.mxu0 0.0
  %v8194 = vand.u32 %v7848, 4294901760
  %8195 = vmatpush1.msra.mxu0 %v8194
  %8196 = vmatprep.subr.mxu0 0.0
  %v8197 = vand.u32 %v7849, 4294901760
  %8198 = vmatpush1.msra.mxu0 %v8197
  %8199 = vmatprep.subr.mxu0 0.0
  %v8200 = vand.u32 %v7850, 4294901760
  %8201 = vmatpush1.msra.mxu0 %v8200
  %8202 = vmatprep.subr.mxu0 0.0
  %8203 = vmatpush1.msra.mxu0 0.0
  %8204 = vmatprep.subr.mxu0 0.0
  %8205 = vmatpush1.msra.mxu0 0.0
  %8206 = vmatprep.subr.mxu0 0.0
  %8207 = vmatpush1.msra.mxu0 0.0
  %8208 = vmatprep.subr.mxu0 0.0
  %8209 = vmatpush1.msra.mxu0 0.0
  %8210 = vmatprep.subr.mxu0 0.0
  %8211 = vmatpush1.msra.mxu0 0.0
  %8212 = vmatprep.subr.mxu0 0.0
  %8213 = vmatpush1.msra.mxu0 0.0
  %8214 = vmatprep.subr.mxu0 0.0
  %8215 = vmatpush1.msra.mxu0 0.0
  %8216 = vmatprep.subr.mxu0 0.0
  %8217 = vmatpush1.msra.mxu0 0.0
  %8218 = vmatprep.subr.mxu0 0.0
  %8219 = vmatpush1.msra.mxu0 0.0
  %8220 = vmatprep.subr.mxu0 0.0
  %8221 = vmatpush1.msra.mxu0 0.0
  %8222 = vmatprep.subr.mxu0 0.0
  %8223 = vmatpush1.msra.mxu0 0.0
  %8224 = vmatprep.subr.mxu0 0.0
  %8225 = vmatpush1.msra.mxu0 0.0
  %8226 = vmatprep.subr.mxu0 0.0
  %8227 = vmatpush1.msra.mxu0 0.0
  %8228 = vmatprep.subr.mxu0 0.0
  %8229 = vmatpush1.msra.mxu0 0.0
  %8230 = vmatprep.subr.mxu0 0.0
  %8231 = vmatpush1.msra.mxu0 0.0
  %8232 = vmatprep.subr.mxu0 0.0
  %8233 = vmatpush1.msra.mxu0 0.0
  %8234 = vmatprep.subr.mxu0 0.0
  %8235 = vmatpush1.msra.mxu0 0.0
  %8236 = vmatprep.subr.mxu0 0.0
  %8237 = vmatpush1.msra.mxu0 0.0
  %8238 = vmatprep.subr.mxu0 0.0
  %8239 = vmatpush1.msra.mxu0 0.0
  %8240 = vmatprep.subr.mxu0 0.0
  %8241 = vmatpush1.msra.mxu0 0.0
  %8242 = vmatprep.subr.mxu0 0.0
  %8243 = vmatpush1.msra.mxu0 0.0
  %8244 = vmatprep.subr.mxu0 0.0
  %8245 = vmatpush1.msra.mxu0 0.0
  %8246 = vmatprep.subr.mxu0 0.0
  %8247 = vmatpush1.msra.mxu0 0.0
  %8248 = vmatprep.subr.mxu0 0.0
  %8249 = vmatpush1.msra.mxu0 0.0
  %8250 = vmatprep.subr.mxu0 0.0
  %8251 = vmatpush1.msra.mxu0 0.0
  %8252 = vmatprep.subr.mxu0 0.0
  %8253 = vmatpush1.msra.mxu0 0.0
  %8254 = vmatprep.subr.mxu0 0.0
  %8255 = vmatpush1.msra.mxu0 0.0
  %8256 = vmatprep.subr.mxu0 0.0
  %8257 = vmatpush1.msra.mxu0 0.0
  %8258 = vmatprep.mubr.f32.mxu0 0.0
  %v8259 = vand.u32 %v7860, 4294901760
  %v8260 = vsub.f32 %v7860, %v8259
  %v8261 = vand.u32 %v8260, 4294901760
  %8262 = vmatmul.mubr.f32.gmra.mrb[0].mxu0 %v8261
  %v8263 = vpop.f32.mrb[0].mxu0
  %v8264 = vadd.f32 %v8166, %v8263
  %v8265 = vpop.f32.mrb[0].mxu0
  %8266 = vmatprep.mubr.f32.mxu0 0.0
  %v8267 = vand.u32 %v7863, 4294901760
  %v8268 = vsub.f32 %v7863, %v8267
  %v8269 = vand.u32 %v8268, 4294901760
  %8270 = vmatmul.mubr.f32.gmra.mrb[0].mxu0 %v8269
  %v8271 = vpop.f32.mrb[0].mxu0
  %v8272 = vadd.f32 %v8173, %v8271
  %v8273 = vpop.f32.mrb[0].mxu0
  %8274 = vmatprep.mubr.f32.mxu0 0.0
  %v8275 = vand.u32 %v7866, 4294901760
  %v8276 = vsub.f32 %v7866, %v8275
  %v8277 = vand.u32 %v8276, 4294901760
  %8278 = vmatmul.mubr.f32.gmra.mrb[0].mxu0 %v8277
  %v8279 = vpop.f32.mrb[0].mxu0
  %v8280 = vadd.f32 %v8180, %v8279
  %v8281 = vpop.f32.mrb[0].mxu0
  %8282 = vmatprep.mubr.f32.mxu0 0.0
  %v8283 = vand.u32 %v7869, 4294901760
  %v8284 = vsub.f32 %v7869, %v8283
  %v8285 = vand.u32 %v8284, 4294901760
  %8286 = vmatmul.mubr.f32.gmra.mrb[0].mxu0 %v8285
  %v8287 = vpop.f32.mrb[0].mxu0
  %v8288 = vadd.f32 %v8187, %v8287
  %v8289 = vpop.f32.mrb[0].mxu0
  %8290 = vdwg.mxu0
  %8291 = vmatprep.subr.mxu0 0.0
  %v8292 = vand.u32 %v7847, 4294901760
  %v8293 = vsub.f32 %v7847, %v8292
  %v8294 = vand.u32 %v8293, 4294901760
  %8295 = vmatpush1.msra.mxu0 %v8294
  %8296 = vmatprep.subr.mxu0 0.0
  %v8297 = vand.u32 %v7848, 4294901760
  %v8298 = vsub.f32 %v7848, %v8297
  %v8299 = vand.u32 %v8298, 4294901760
  %8300 = vmatpush1.msra.mxu0 %v8299
  %8301 = vmatprep.subr.mxu0 0.0
  %v8302 = vand.u32 %v7849, 4294901760
  %v8303 = vsub.f32 %v7849, %v8302
  %v8304 = vand.u32 %v8303, 4294901760
  %8305 = vmatpush1.msra.mxu0 %v8304
  %8306 = vmatprep.subr.mxu0 0.0
  %v8307 = vand.u32 %v7850, 4294901760
  %v8308 = vsub.f32 %v7850, %v8307
  %v8309 = vand.u32 %v8308, 4294901760
  %8310 = vmatpush1.msra.mxu0 %v8309
  %8311 = vmatprep.subr.mxu0 0.0
  %8312 = vmatpush1.msra.mxu0 0.0
  %8313 = vmatprep.subr.mxu0 0.0
  %8314 = vmatpush1.msra.mxu0 0.0
  %8315 = vmatprep.subr.mxu0 0.0
  %8316 = vmatpush1.msra.mxu0 0.0
  %8317 = vmatprep.subr.mxu0 0.0
  %8318 = vmatpush1.msra.mxu0 0.0
  %8319 = vmatprep.subr.mxu0 0.0
  %8320 = vmatpush1.msra.mxu0 0.0
  %8321 = vmatprep.subr.mxu0 0.0
  %8322 = vmatpush1.msra.mxu0 0.0
  %8323 = vmatprep.subr.mxu0 0.0
  %8324 = vmatpush1.msra.mxu0 0.0
  %8325 = vmatprep.subr.mxu0 0.0
  %8326 = vmatpush1.msra.mxu0 0.0
  %8327 = vmatprep.subr.mxu0 0.0
  %8328 = vmatpush1.msra.mxu0 0.0
  %8329 = vmatprep.subr.mxu0 0.0
  %8330 = vmatpush1.msra.mxu0 0.0
  %8331 = vmatprep.subr.mxu0 0.0
  %8332 = vmatpush1.msra.mxu0 0.0
  %8333 = vmatprep.subr.mxu0 0.0
  %8334 = vmatpush1.msra.mxu0 0.0
  %8335 = vmatprep.subr.mxu0 0.0
  %8336 = vmatpush1.msra.mxu0 0.0
  %8337 = vmatprep.subr.mxu0 0.0
  %8338 = vmatpush1.msra.mxu0 0.0
  %8339 = vmatprep.subr.mxu0 0.0
  %8340 = vmatpush1.msra.mxu0 0.0
  %8341 = vmatprep.subr.mxu0 0.0
  %8342 = vmatpush1.msra.mxu0 0.0
  %8343 = vmatprep.subr.mxu0 0.0
  %8344 = vmatpush1.msra.mxu0 0.0
  %8345 = vmatprep.subr.mxu0 0.0
  %8346 = vmatpush1.msra.mxu0 0.0
  %8347 = vmatprep.subr.mxu0 0.0
  %8348 = vmatpush1.msra.mxu0 0.0
  %8349 = vmatprep.subr.mxu0 0.0
  %8350 = vmatpush1.msra.mxu0 0.0
  %8351 = vmatprep.subr.mxu0 0.0
  %8352 = vmatpush1.msra.mxu0 0.0
  %8353 = vmatprep.subr.mxu0 0.0
  %8354 = vmatpush1.msra.mxu0 0.0
  %8355 = vmatprep.subr.mxu0 0.0
  %8356 = vmatpush1.msra.mxu0 0.0
  %8357 = vmatprep.subr.mxu0 0.0
  %8358 = vmatpush1.msra.mxu0 0.0
  %8359 = vmatprep.subr.mxu0 0.0
  %8360 = vmatpush1.msra.mxu0 0.0
  %8361 = vmatprep.subr.mxu0 0.0
  %8362 = vmatpush1.msra.mxu0 0.0
  %8363 = vmatprep.subr.mxu0 0.0
  %8364 = vmatpush1.msra.mxu0 0.0
  %8365 = vmatprep.subr.mxu0 0.0
  %8366 = vmatpush1.msra.mxu0 0.0
  %8367 = vmatprep.mubr.f32.mxu0 0.0
  %v8368 = vand.u32 %v7860, 4294901760
  %8369 = vmatmul.mubr.f32.gmra.mrb[0].mxu0 %v8368
  %v8370 = vpop.f32.mrb[0].mxu0
  %v8371 = vadd.f32 %v8264, %v8370
  %v8372 = vpop.f32.mrb[0].mxu0
  %8373 = vmatprep.mubr.f32.mxu0 0.0
  %v8374 = vand.u32 %v7863, 4294901760
  %8375 = vmatmul.mubr.f32.gmra.mrb[0].mxu0 %v8374
  %v8376 = vpop.f32.mrb[0].mxu0
  %v8377 = vadd.f32 %v8272, %v8376
  %v8378 = vpop.f32.mrb[0].mxu0
  %8379 = vmatprep.mubr.f32.mxu0 0.0
  %v8380 = vand.u32 %v7866, 4294901760
  %8381 = vmatmul.mubr.f32.gmra.mrb[0].mxu0 %v8380
  %v8382 = vpop.f32.mrb[0].mxu0
  %v8383 = vadd.f32 %v8280, %v8382
  %v8384 = vpop.f32.mrb[0].mxu0
  %8385 = vmatprep.mubr.f32.mxu0 0.0
  %v8386 = vand.u32 %v7869, 4294901760
  %8387 = vmatmul.mubr.f32.gmra.mrb[0].mxu0 %v8386
  %v8388 = vpop.f32.mrb[0].mxu0
  %v8389 = vadd.f32 %v8288, %v8388
  %v8390 = vpop.f32.mrb[0].mxu0
  %8391 = vdwg.mxu0
  %8392 = vmatprep.subr.mxu0 0.0
  %v8393 = vand.u32 %v7847, 4294901760
  %8394 = vmatpush1.msra.mxu0 %v8393
  %8395 = vmatprep.subr.mxu0 0.0
  %v8396 = vand.u32 %v7848, 4294901760
  %8397 = vmatpush1.msra.mxu0 %v8396
  %8398 = vmatprep.subr.mxu0 0.0
  %v8399 = vand.u32 %v7849, 4294901760
  %8400 = vmatpush1.msra.mxu0 %v8399
  %8401 = vmatprep.subr.mxu0 0.0
  %v8402 = vand.u32 %v7850, 4294901760
  %8403 = vmatpush1.msra.mxu0 %v8402
  %8404 = vmatprep.subr.mxu0 0.0
  %8405 = vmatpush1.msra.mxu0 0.0
  %8406 = vmatprep.subr.mxu0 0.0
  %8407 = vmatpush1.msra.mxu0 0.0
  %8408 = vmatprep.subr.mxu0 0.0
  %8409 = vmatpush1.msra.mxu0 0.0
  %8410 = vmatprep.subr.mxu0 0.0
  %8411 = vmatpush1.msra.mxu0 0.0
  %8412 = vmatprep.subr.mxu0 0.0
  %8413 = vmatpush1.msra.mxu0 0.0
  %8414 = vmatprep.subr.mxu0 0.0
  %8415 = vmatpush1.msra.mxu0 0.0
  %8416 = vmatprep.subr.mxu0 0.0
  %8417 = vmatpush1.msra.mxu0 0.0
  %8418 = vmatprep.subr.mxu0 0.0
  %8419 = vmatpush1.msra.mxu0 0.0
  %8420 = vmatprep.subr.mxu0 0.0
  %8421 = vmatpush1.msra.mxu0 0.0
  %8422 = vmatprep.subr.mxu0 0.0
  %8423 = vmatpush1.msra.mxu0 0.0
  %8424 = vmatprep.subr.mxu0 0.0
  %8425 = vmatpush1.msra.mxu0 0.0
  %8426 = vmatprep.subr.mxu0 0.0
  %8427 = vmatpush1.msra.mxu0 0.0
  %8428 = vmatprep.subr.mxu0 0.0
  %8429 = vmatpush1.msra.mxu0 0.0
  %8430 = vmatprep.subr.mxu0 0.0
  %8431 = vmatpush1.msra.mxu0 0.0
  %8432 = vmatprep.subr.mxu0 0.0
  %8433 = vmatpush1.msra.mxu0 0.0
  %8434 = vmatprep.subr.mxu0 0.0
  %8435 = vmatpush1.msra.mxu0 0.0
  %8436 = vmatprep.subr.mxu0 0.0
  %8437 = vmatpush1.msra.mxu0 0.0
  %8438 = vmatprep.subr.mxu0 0.0
  %8439 = vmatpush1.msra.mxu0 0.0
  %8440 = vmatprep.subr.mxu0 0.0
  %8441 = vmatpush1.msra.mxu0 0.0
  %8442 = vmatprep.subr.mxu0 0.0
  %8443 = vmatpush1.msra.mxu0 0.0
  %8444 = vmatprep.subr.mxu0 0.0
  %8445 = vmatpush1.msra.mxu0 0.0
  %8446 = vmatprep.subr.mxu0 0.0
  %8447 = vmatpush1.msra.mxu0 0.0
  %8448 = vmatprep.subr.mxu0 0.0
  %8449 = vmatpush1.msra.mxu0 0.0
  %8450 = vmatprep.subr.mxu0 0.0
  %8451 = vmatpush1.msra.mxu0 0.0
  %8452 = vmatprep.subr.mxu0 0.0
  %8453 = vmatpush1.msra.mxu0 0.0
  %8454 = vmatprep.subr.mxu0 0.0
  %8455 = vmatpush1.msra.mxu0 0.0
  %8456 = vmatprep.subr.mxu0 0.0
  %8457 = vmatpush1.msra.mxu0 0.0
  %8458 = vmatprep.subr.mxu0 0.0
  %8459 = vmatpush1.msra.mxu0 0.0
  %8460 = vmatprep.mubr.f32.mxu0 0.0
  %v8461 = vand.u32 %v7860, 4294901760
  %8462 = vmatmul.mubr.f32.gmra.mrb[0].mxu0 %v8461
  %v8463 = vpop.f32.mrb[0].mxu0
  %v8464 = vadd.f32 %v8371, %v8463
  %v8465 = vpop.f32.mrb[0].mxu0
  %8466 = vmatprep.mubr.f32.mxu0 0.0
  %v8467 = vand.u32 %v7863, 4294901760
  %8468 = vmatmul.mubr.f32.gmra.mrb[0].mxu0 %v8467
  %v8469 = vpop.f32.mrb[0].mxu0
  %v8470 = vadd.f32 %v8377, %v8469
  %v8471 = vpop.f32.mrb[0].mxu0
  %8472 = vmatprep.mubr.f32.mxu0 0.0
  %v8473 = vand.u32 %v7866, 4294901760
  %8474 = vmatmul.mubr.f32.gmra.mrb[0].mxu0 %v8473
  %v8475 = vpop.f32.mrb[0].mxu0
  %v8476 = vadd.f32 %v8383, %v8475
  %v8477 = vpop.f32.mrb[0].mxu0
  %8478 = vmatprep.mubr.f32.mxu0 0.0
  %v8479 = vand.u32 %v7869, 4294901760
  %8480 = vmatmul.mubr.f32.gmra.mrb[0].mxu0 %v8479
  %v8481 = vpop.f32.mrb[0].mxu0
  %v8482 = vadd.f32 %v8389, %v8481
  %v8483 = vpop.f32.mrb[0].mxu0
  %8484 = vdwg.mxu0
  %8487 = vrot.lane.b32.xlu0 %v8464, 96
  %v8488 = vpop.permute.xlu0 %8487
  %8489 = vrot.lane.b32.xlu0 %v8470, 96
  %v8490 = vpop.permute.xlu0 %8489
  %v8493 = vmul.f32 %v8464, %v8488
  %v8494 = vmul.f32 %v8470, %v8490
  %8497 = vrot.lane.b32.xlu0 %v8476, 96
  %v8498 = vpop.permute.xlu0 %8497
  %8499 = vrot.lane.b32.xlu0 %v8482, 96
  %v8500 = vpop.permute.xlu0 %8499
  %v8503 = vmul.f32 %v8464, %v8498
  %v8504 = vmul.f32 %v8470, %v8500
  %v8506 = vsel %vm80, %v8493, 0
  %v8509 = vsel %vm80, %v8494, 0
  %v8512 = vsel %vm80, %v8503, 0
  %v8515 = vsel %vm80, %v8504, 0
  %8517 = vmatprep.subr.mxu0 0.0
  %v8518 = vand.u32 %v59, 4294901760
  %8519 = vmatpush1.msra.mxu0 %v8518
  %8520 = vmatprep.subr.mxu0 0.0
  %v8521 = vand.u32 %v60, 4294901760
  %8522 = vmatpush1.msra.mxu0 %v8521
  %8523 = vmatprep.subr.mxu0 0.0
  %v8524 = vand.u32 %v61, 4294901760
  %8525 = vmatpush1.msra.mxu0 %v8524
  %8526 = vmatprep.subr.mxu0 0.0
  %v8527 = vand.u32 %v62, 4294901760
  %8528 = vmatpush1.msra.mxu0 %v8527
  %8529 = vmatprep.subr.mxu0 0.0
  %8530 = vmatpush1.msra.mxu0 0.0
  %8531 = vmatprep.subr.mxu0 0.0
  %8532 = vmatpush1.msra.mxu0 0.0
  %8533 = vmatprep.subr.mxu0 0.0
  %8534 = vmatpush1.msra.mxu0 0.0
  %8535 = vmatprep.subr.mxu0 0.0
  %8536 = vmatpush1.msra.mxu0 0.0
  %8537 = vmatprep.subr.mxu0 0.0
  %8538 = vmatpush1.msra.mxu0 0.0
  %8539 = vmatprep.subr.mxu0 0.0
  %8540 = vmatpush1.msra.mxu0 0.0
  %8541 = vmatprep.subr.mxu0 0.0
  %8542 = vmatpush1.msra.mxu0 0.0
  %8543 = vmatprep.subr.mxu0 0.0
  %8544 = vmatpush1.msra.mxu0 0.0
  %8545 = vmatprep.subr.mxu0 0.0
  %8546 = vmatpush1.msra.mxu0 0.0
  %8547 = vmatprep.subr.mxu0 0.0
  %8548 = vmatpush1.msra.mxu0 0.0
  %8549 = vmatprep.subr.mxu0 0.0
  %8550 = vmatpush1.msra.mxu0 0.0
  %8551 = vmatprep.subr.mxu0 0.0
  %8552 = vmatpush1.msra.mxu0 0.0
  %8553 = vmatprep.subr.mxu0 0.0
  %8554 = vmatpush1.msra.mxu0 0.0
  %8555 = vmatprep.subr.mxu0 0.0
  %8556 = vmatpush1.msra.mxu0 0.0
  %8557 = vmatprep.subr.mxu0 0.0
  %8558 = vmatpush1.msra.mxu0 0.0
  %8559 = vmatprep.subr.mxu0 0.0
  %8560 = vmatpush1.msra.mxu0 0.0
  %8561 = vmatprep.subr.mxu0 0.0
  %8562 = vmatpush1.msra.mxu0 0.0
  %8563 = vmatprep.subr.mxu0 0.0
  %8564 = vmatpush1.msra.mxu0 0.0
  %8565 = vmatprep.subr.mxu0 0.0
  %8566 = vmatpush1.msra.mxu0 0.0
  %8567 = vmatprep.subr.mxu0 0.0
  %8568 = vmatpush1.msra.mxu0 0.0
  %8569 = vmatprep.subr.mxu0 0.0
  %8570 = vmatpush1.msra.mxu0 0.0
  %8571 = vmatprep.subr.mxu0 0.0
  %8572 = vmatpush1.msra.mxu0 0.0
  %8573 = vmatprep.subr.mxu0 0.0
  %8574 = vmatpush1.msra.mxu0 0.0
  %8575 = vmatprep.subr.mxu0 0.0
  %8576 = vmatpush1.msra.mxu0 0.0
  %8577 = vmatprep.subr.mxu0 0.0
  %8578 = vmatpush1.msra.mxu0 0.0
  %8579 = vmatprep.subr.mxu0 0.0
  %8580 = vmatpush1.msra.mxu0 0.0
  %8581 = vmatprep.subr.mxu0 0.0
  %8582 = vmatpush1.msra.mxu0 0.0
  %8583 = vmatprep.subr.mxu0 0.0
  %8584 = vmatpush1.msra.mxu0 0.0
  %8585 = vmatprep.mubr.f32.mxu0 0.0
  %v8586 = vand.u32 %v8506, 4294901760
  %v8587 = vsub.f32 %v8506, %v8586
  %v8588 = vand.u32 %v8587, 4294901760
  %v8589 = vsub.f32 %v8587, %v8588
  %v8590 = vand.u32 %v8589, 4294901760
  %8591 = vmatmul.mubr.f32.gmra.mrb[0].mxu0 %v8590
  %v8592 = vpop.f32.mrb[0].mxu0
  %v8593 = vadd.f32 0.0, %v8592
  %v8594 = vpop.f32.mrb[0].mxu0
  %8595 = vmatprep.mubr.f32.mxu0 0.0
  %v8596 = vand.u32 %v8509, 4294901760
  %v8597 = vsub.f32 %v8509, %v8596
  %v8598 = vand.u32 %v8597, 4294901760
  %v8599 = vsub.f32 %v8597, %v8598
  %v8600 = vand.u32 %v8599, 4294901760
  %8601 = vmatmul.mubr.f32.gmra.mrb[0].mxu0 %v8600
  %v8602 = vpop.f32.mrb[0].mxu0
  %v8603 = vadd.f32 0.0, %v8602
  %v8604 = vpop.f32.mrb[0].mxu0
  %8605 = vmatprep.mubr.f32.mxu0 0.0
  %v8606 = vand.u32 %v8512, 4294901760
  %v8607 = vsub.f32 %v8512, %v8606
  %v8608 = vand.u32 %v8607, 4294901760
  %v8609 = vsub.f32 %v8607, %v8608
  %v8610 = vand.u32 %v8609, 4294901760
  %8611 = vmatmul.mubr.f32.gmra.mrb[0].mxu0 %v8610
  %v8612 = vpop.f32.mrb[0].mxu0
  %v8613 = vadd.f32 0.0, %v8612
  %v8614 = vpop.f32.mrb[0].mxu0
  %8615 = vmatprep.mubr.f32.mxu0 0.0
  %v8616 = vand.u32 %v8515, 4294901760
  %v8617 = vsub.f32 %v8515, %v8616
  %v8618 = vand.u32 %v8617, 4294901760
  %v8619 = vsub.f32 %v8617, %v8618
  %v8620 = vand.u32 %v8619, 4294901760
  %8621 = vmatmul.mubr.f32.gmra.mrb[0].mxu0 %v8620
  %v8622 = vpop.f32.mrb[0].mxu0
  %v8623 = vadd.f32 0.0, %v8622
  %v8624 = vpop.f32.mrb[0].mxu0
  %8625 = vdwg.mxu0
  %8626 = vmatprep.subr.mxu0 0.0
  %v8627 = vand.u32 %v59, 4294901760
  %v8628 = vsub.f32 %v59, %v8627
  %v8629 = vand.u32 %v8628, 4294901760
  %v8630 = vsub.f32 %v8628, %v8629
  %v8631 = vand.u32 %v8630, 4294901760
  %8632 = vmatpush1.msra.mxu0 %v8631
  %8633 = vmatprep.subr.mxu0 0.0
  %v8634 = vand.u32 %v60, 4294901760
  %v8635 = vsub.f32 %v60, %v8634
  %v8636 = vand.u32 %v8635, 4294901760
  %v8637 = vsub.f32 %v8635, %v8636
  %v8638 = vand.u32 %v8637, 4294901760
  %8639 = vmatpush1.msra.mxu0 %v8638
  %8640 = vmatprep.subr.mxu0 0.0
  %v8641 = vand.u32 %v61, 4294901760
  %v8642 = vsub.f32 %v61, %v8641
  %v8643 = vand.u32 %v8642, 4294901760
  %v8644 = vsub.f32 %v8642, %v8643
  %v8645 = vand.u32 %v8644, 4294901760
  %8646 = vmatpush1.msra.mxu0 %v8645
  %8647 = vmatprep.subr.mxu0 0.0
  %v8648 = vand.u32 %v62, 4294901760
  %v8649 = vsub.f32 %v62, %v8648
  %v8650 = vand.u32 %v8649, 4294901760
  %v8651 = vsub.f32 %v8649, %v8650
  %v8652 = vand.u32 %v8651, 4294901760
  %8653 = vmatpush1.msra.mxu0 %v8652
  %8654 = vmatprep.subr.mxu0 0.0
  %8655 = vmatpush1.msra.mxu0 0.0
  %8656 = vmatprep.subr.mxu0 0.0
  %8657 = vmatpush1.msra.mxu0 0.0
  %8658 = vmatprep.subr.mxu0 0.0
  %8659 = vmatpush1.msra.mxu0 0.0
  %8660 = vmatprep.subr.mxu0 0.0
  %8661 = vmatpush1.msra.mxu0 0.0
  %8662 = vmatprep.subr.mxu0 0.0
  %8663 = vmatpush1.msra.mxu0 0.0
  %8664 = vmatprep.subr.mxu0 0.0
  %8665 = vmatpush1.msra.mxu0 0.0
  %8666 = vmatprep.subr.mxu0 0.0
  %8667 = vmatpush1.msra.mxu0 0.0
  %8668 = vmatprep.subr.mxu0 0.0
  %8669 = vmatpush1.msra.mxu0 0.0
  %8670 = vmatprep.subr.mxu0 0.0
  %8671 = vmatpush1.msra.mxu0 0.0
  %8672 = vmatprep.subr.mxu0 0.0
  %8673 = vmatpush1.msra.mxu0 0.0
  %8674 = vmatprep.subr.mxu0 0.0
  %8675 = vmatpush1.msra.mxu0 0.0
  %8676 = vmatprep.subr.mxu0 0.0
  %8677 = vmatpush1.msra.mxu0 0.0
  %8678 = vmatprep.subr.mxu0 0.0
  %8679 = vmatpush1.msra.mxu0 0.0
  %8680 = vmatprep.subr.mxu0 0.0
  %8681 = vmatpush1.msra.mxu0 0.0
  %8682 = vmatprep.subr.mxu0 0.0
  %8683 = vmatpush1.msra.mxu0 0.0
  %8684 = vmatprep.subr.mxu0 0.0
  %8685 = vmatpush1.msra.mxu0 0.0
  %8686 = vmatprep.subr.mxu0 0.0
  %8687 = vmatpush1.msra.mxu0 0.0
  %8688 = vmatprep.subr.mxu0 0.0
  %8689 = vmatpush1.msra.mxu0 0.0
  %8690 = vmatprep.subr.mxu0 0.0
  %8691 = vmatpush1.msra.mxu0 0.0
  %8692 = vmatprep.subr.mxu0 0.0
  %8693 = vmatpush1.msra.mxu0 0.0
  %8694 = vmatprep.subr.mxu0 0.0
  %8695 = vmatpush1.msra.mxu0 0.0
  %8696 = vmatprep.subr.mxu0 0.0
  %8697 = vmatpush1.msra.mxu0 0.0
  %8698 = vmatprep.subr.mxu0 0.0
  %8699 = vmatpush1.msra.mxu0 0.0
  %8700 = vmatprep.subr.mxu0 0.0
  %8701 = vmatpush1.msra.mxu0 0.0
  %8702 = vmatprep.subr.mxu0 0.0
  %8703 = vmatpush1.msra.mxu0 0.0
  %8704 = vmatprep.subr.mxu0 0.0
  %8705 = vmatpush1.msra.mxu0 0.0
  %8706 = vmatprep.subr.mxu0 0.0
  %8707 = vmatpush1.msra.mxu0 0.0
  %8708 = vmatprep.subr.mxu0 0.0
  %8709 = vmatpush1.msra.mxu0 0.0
  %8710 = vmatprep.mubr.f32.mxu0 0.0
  %v8711 = vand.u32 %v8506, 4294901760
  %8712 = vmatmul.mubr.f32.gmra.mrb[0].mxu0 %v8711
  %v8713 = vpop.f32.mrb[0].mxu0
  %v8714 = vadd.f32 %v8593, %v8713
  %v8715 = vpop.f32.mrb[0].mxu0
  %8716 = vmatprep.mubr.f32.mxu0 0.0
  %v8717 = vand.u32 %v8509, 4294901760
  %8718 = vmatmul.mubr.f32.gmra.mrb[0].mxu0 %v8717
  %v8719 = vpop.f32.mrb[0].mxu0
  %v8720 = vadd.f32 %v8603, %v8719
  %v8721 = vpop.f32.mrb[0].mxu0
  %8722 = vmatprep.mubr.f32.mxu0 0.0
  %v8723 = vand.u32 %v8512, 4294901760
  %8724 = vmatmul.mubr.f32.gmra.mrb[0].mxu0 %v8723
  %v8725 = vpop.f32.mrb[0].mxu0
  %v8726 = vadd.f32 %v8613, %v8725
  %v8727 = vpop.f32.mrb[0].mxu0
  %8728 = vmatprep.mubr.f32.mxu0 0.0
  %v8729 = vand.u32 %v8515, 4294901760
  %8730 = vmatmul.mubr.f32.gmra.mrb[0].mxu0 %v8729
  %v8731 = vpop.f32.mrb[0].mxu0
  %v8732 = vadd.f32 %v8623, %v8731
  %v8733 = vpop.f32.mrb[0].mxu0
  %8734 = vdwg.mxu0
  %8735 = vmatprep.subr.mxu0 0.0
  %v8736 = vand.u32 %v59, 4294901760
  %v8737 = vsub.f32 %v59, %v8736
  %8738 = vmatpush1.msra.mxu0 %v8737
  %8739 = vmatprep.subr.mxu0 0.0
  %v8740 = vand.u32 %v60, 4294901760
  %v8741 = vsub.f32 %v60, %v8740
  %8742 = vmatpush1.msra.mxu0 %v8741
  %8743 = vmatprep.subr.mxu0 0.0
  %v8744 = vand.u32 %v61, 4294901760
  %v8745 = vsub.f32 %v61, %v8744
  %8746 = vmatpush1.msra.mxu0 %v8745
  %8747 = vmatprep.subr.mxu0 0.0
  %v8748 = vand.u32 %v62, 4294901760
  %v8749 = vsub.f32 %v62, %v8748
  %8750 = vmatpush1.msra.mxu0 %v8749
  %8751 = vmatprep.subr.mxu0 0.0
  %8752 = vmatpush1.msra.mxu0 0.0
  %8753 = vmatprep.subr.mxu0 0.0
  %8754 = vmatpush1.msra.mxu0 0.0
  %8755 = vmatprep.subr.mxu0 0.0
  %8756 = vmatpush1.msra.mxu0 0.0
  %8757 = vmatprep.subr.mxu0 0.0
  %8758 = vmatpush1.msra.mxu0 0.0
  %8759 = vmatprep.subr.mxu0 0.0
  %8760 = vmatpush1.msra.mxu0 0.0
  %8761 = vmatprep.subr.mxu0 0.0
  %8762 = vmatpush1.msra.mxu0 0.0
  %8763 = vmatprep.subr.mxu0 0.0
  %8764 = vmatpush1.msra.mxu0 0.0
  %8765 = vmatprep.subr.mxu0 0.0
  %8766 = vmatpush1.msra.mxu0 0.0
  %8767 = vmatprep.subr.mxu0 0.0
  %8768 = vmatpush1.msra.mxu0 0.0
  %8769 = vmatprep.subr.mxu0 0.0
  %8770 = vmatpush1.msra.mxu0 0.0
  %8771 = vmatprep.subr.mxu0 0.0
  %8772 = vmatpush1.msra.mxu0 0.0
  %8773 = vmatprep.subr.mxu0 0.0
  %8774 = vmatpush1.msra.mxu0 0.0
  %8775 = vmatprep.subr.mxu0 0.0
  %8776 = vmatpush1.msra.mxu0 0.0
  %8777 = vmatprep.subr.mxu0 0.0
  %8778 = vmatpush1.msra.mxu0 0.0
  %8779 = vmatprep.subr.mxu0 0.0
  %8780 = vmatpush1.msra.mxu0 0.0
  %8781 = vmatprep.subr.mxu0 0.0
  %8782 = vmatpush1.msra.mxu0 0.0
  %8783 = vmatprep.subr.mxu0 0.0
  %8784 = vmatpush1.msra.mxu0 0.0
  %8785 = vmatprep.subr.mxu0 0.0
  %8786 = vmatpush1.msra.mxu0 0.0
  %8787 = vmatprep.subr.mxu0 0.0
  %8788 = vmatpush1.msra.mxu0 0.0
  %8789 = vmatprep.subr.mxu0 0.0
  %8790 = vmatpush1.msra.mxu0 0.0
  %8791 = vmatprep.subr.mxu0 0.0
  %8792 = vmatpush1.msra.mxu0 0.0
  %8793 = vmatprep.subr.mxu0 0.0
  %8794 = vmatpush1.msra.mxu0 0.0
  %8795 = vmatprep.subr.mxu0 0.0
  %8796 = vmatpush1.msra.mxu0 0.0
  %8797 = vmatprep.subr.mxu0 0.0
  %8798 = vmatpush1.msra.mxu0 0.0
  %8799 = vmatprep.subr.mxu0 0.0
  %8800 = vmatpush1.msra.mxu0 0.0
  %8801 = vmatprep.subr.mxu0 0.0
  %8802 = vmatpush1.msra.mxu0 0.0
  %8803 = vmatprep.subr.mxu0 0.0
  %8804 = vmatpush1.msra.mxu0 0.0
  %8805 = vmatprep.subr.mxu0 0.0
  %8806 = vmatpush1.msra.mxu0 0.0
  %8807 = vmatprep.mubr.f32.mxu0 0.0
  %v8808 = vand.u32 %v8506, 4294901760
  %v8809 = vsub.f32 %v8506, %v8808
  %8810 = vmatmul.mubr.f32.gmra.mrb[0].mxu0 %v8809
  %v8811 = vpop.f32.mrb[0].mxu0
  %v8812 = vadd.f32 %v8714, %v8811
  %v8813 = vpop.f32.mrb[0].mxu0
  %8814 = vmatprep.mubr.f32.mxu0 0.0
  %v8815 = vand.u32 %v8509, 4294901760
  %v8816 = vsub.f32 %v8509, %v8815
  %8817 = vmatmul.mubr.f32.gmra.mrb[0].mxu0 %v8816
  %v8818 = vpop.f32.mrb[0].mxu0
  %v8819 = vadd.f32 %v8720, %v8818
  %v8820 = vpop.f32.mrb[0].mxu0
  %8821 = vmatprep.mubr.f32.mxu0 0.0
  %v8822 = vand.u32 %v8512, 4294901760
  %v8823 = vsub.f32 %v8512, %v8822
  %8824 = vmatmul.mubr.f32.gmra.mrb[0].mxu0 %v8823
  %v8825 = vpop.f32.mrb[0].mxu0
  %v8826 = vadd.f32 %v8726, %v8825
  %v8827 = vpop.f32.mrb[0].mxu0
  %8828 = vmatprep.mubr.f32.mxu0 0.0
  %v8829 = vand.u32 %v8515, 4294901760
  %v8830 = vsub.f32 %v8515, %v8829
  %8831 = vmatmul.mubr.f32.gmra.mrb[0].mxu0 %v8830
  %v8832 = vpop.f32.mrb[0].mxu0
  %v8833 = vadd.f32 %v8732, %v8832
  %v8834 = vpop.f32.mrb[0].mxu0
  %8835 = vdwg.mxu0
  %8836 = vmatprep.subr.mxu0 0.0
  %v8837 = vand.u32 %v59, 4294901760
  %8838 = vmatpush1.msra.mxu0 %v8837
  %8839 = vmatprep.subr.mxu0 0.0
  %v8840 = vand.u32 %v60, 4294901760
  %8841 = vmatpush1.msra.mxu0 %v8840
  %8842 = vmatprep.subr.mxu0 0.0
  %v8843 = vand.u32 %v61, 4294901760
  %8844 = vmatpush1.msra.mxu0 %v8843
  %8845 = vmatprep.subr.mxu0 0.0
  %v8846 = vand.u32 %v62, 4294901760
  %8847 = vmatpush1.msra.mxu0 %v8846
  %8848 = vmatprep.subr.mxu0 0.0
  %8849 = vmatpush1.msra.mxu0 0.0
  %8850 = vmatprep.subr.mxu0 0.0
  %8851 = vmatpush1.msra.mxu0 0.0
  %8852 = vmatprep.subr.mxu0 0.0
  %8853 = vmatpush1.msra.mxu0 0.0
  %8854 = vmatprep.subr.mxu0 0.0
  %8855 = vmatpush1.msra.mxu0 0.0
  %8856 = vmatprep.subr.mxu0 0.0
  %8857 = vmatpush1.msra.mxu0 0.0
  %8858 = vmatprep.subr.mxu0 0.0
  %8859 = vmatpush1.msra.mxu0 0.0
  %8860 = vmatprep.subr.mxu0 0.0
  %8861 = vmatpush1.msra.mxu0 0.0
  %8862 = vmatprep.subr.mxu0 0.0
  %8863 = vmatpush1.msra.mxu0 0.0
  %8864 = vmatprep.subr.mxu0 0.0
  %8865 = vmatpush1.msra.mxu0 0.0
  %8866 = vmatprep.subr.mxu0 0.0
  %8867 = vmatpush1.msra.mxu0 0.0
  %8868 = vmatprep.subr.mxu0 0.0
  %8869 = vmatpush1.msra.mxu0 0.0
  %8870 = vmatprep.subr.mxu0 0.0
  %8871 = vmatpush1.msra.mxu0 0.0
  %8872 = vmatprep.subr.mxu0 0.0
  %8873 = vmatpush1.msra.mxu0 0.0
  %8874 = vmatprep.subr.mxu0 0.0
  %8875 = vmatpush1.msra.mxu0 0.0
  %8876 = vmatprep.subr.mxu0 0.0
  %8877 = vmatpush1.msra.mxu0 0.0
  %8878 = vmatprep.subr.mxu0 0.0
  %8879 = vmatpush1.msra.mxu0 0.0
  %8880 = vmatprep.subr.mxu0 0.0
  %8881 = vmatpush1.msra.mxu0 0.0
  %8882 = vmatprep.subr.mxu0 0.0
  %8883 = vmatpush1.msra.mxu0 0.0
  %8884 = vmatprep.subr.mxu0 0.0
  %8885 = vmatpush1.msra.mxu0 0.0
  %8886 = vmatprep.subr.mxu0 0.0
  %8887 = vmatpush1.msra.mxu0 0.0
  %8888 = vmatprep.subr.mxu0 0.0
  %8889 = vmatpush1.msra.mxu0 0.0
  %8890 = vmatprep.subr.mxu0 0.0
  %8891 = vmatpush1.msra.mxu0 0.0
  %8892 = vmatprep.subr.mxu0 0.0
  %8893 = vmatpush1.msra.mxu0 0.0
  %8894 = vmatprep.subr.mxu0 0.0
  %8895 = vmatpush1.msra.mxu0 0.0
  %8896 = vmatprep.subr.mxu0 0.0
  %8897 = vmatpush1.msra.mxu0 0.0
  %8898 = vmatprep.subr.mxu0 0.0
  %8899 = vmatpush1.msra.mxu0 0.0
  %8900 = vmatprep.subr.mxu0 0.0
  %8901 = vmatpush1.msra.mxu0 0.0
  %8902 = vmatprep.subr.mxu0 0.0
  %8903 = vmatpush1.msra.mxu0 0.0
  %8904 = vmatprep.mubr.f32.mxu0 0.0
  %v8905 = vand.u32 %v8506, 4294901760
  %v8906 = vsub.f32 %v8506, %v8905
  %v8907 = vand.u32 %v8906, 4294901760
  %8908 = vmatmul.mubr.f32.gmra.mrb[0].mxu0 %v8907
  %v8909 = vpop.f32.mrb[0].mxu0
  %v8910 = vadd.f32 %v8812, %v8909
  %v8911 = vpop.f32.mrb[0].mxu0
  %8912 = vmatprep.mubr.f32.mxu0 0.0
  %v8913 = vand.u32 %v8509, 4294901760
  %v8914 = vsub.f32 %v8509, %v8913
  %v8915 = vand.u32 %v8914, 4294901760
  %8916 = vmatmul.mubr.f32.gmra.mrb[0].mxu0 %v8915
  %v8917 = vpop.f32.mrb[0].mxu0
  %v8918 = vadd.f32 %v8819, %v8917
  %v8919 = vpop.f32.mrb[0].mxu0
  %8920 = vmatprep.mubr.f32.mxu0 0.0
  %v8921 = vand.u32 %v8512, 4294901760
  %v8922 = vsub.f32 %v8512, %v8921
  %v8923 = vand.u32 %v8922, 4294901760
  %8924 = vmatmul.mubr.f32.gmra.mrb[0].mxu0 %v8923
  %v8925 = vpop.f32.mrb[0].mxu0
  %v8926 = vadd.f32 %v8826, %v8925
  %v8927 = vpop.f32.mrb[0].mxu0
  %8928 = vmatprep.mubr.f32.mxu0 0.0
  %v8929 = vand.u32 %v8515, 4294901760
  %v8930 = vsub.f32 %v8515, %v8929
  %v8931 = vand.u32 %v8930, 4294901760
  %8932 = vmatmul.mubr.f32.gmra.mrb[0].mxu0 %v8931
  %v8933 = vpop.f32.mrb[0].mxu0
  %v8934 = vadd.f32 %v8833, %v8933
  %v8935 = vpop.f32.mrb[0].mxu0
  %8936 = vdwg.mxu0
  %8937 = vmatprep.subr.mxu0 0.0
  %v8938 = vand.u32 %v59, 4294901760
  %v8939 = vsub.f32 %v59, %v8938
  %v8940 = vand.u32 %v8939, 4294901760
  %8941 = vmatpush1.msra.mxu0 %v8940
  %8942 = vmatprep.subr.mxu0 0.0
  %v8943 = vand.u32 %v60, 4294901760
  %v8944 = vsub.f32 %v60, %v8943
  %v8945 = vand.u32 %v8944, 4294901760
  %8946 = vmatpush1.msra.mxu0 %v8945
  %8947 = vmatprep.subr.mxu0 0.0
  %v8948 = vand.u32 %v61, 4294901760
  %v8949 = vsub.f32 %v61, %v8948
  %v8950 = vand.u32 %v8949, 4294901760
  %8951 = vmatpush1.msra.mxu0 %v8950
  %8952 = vmatprep.subr.mxu0 0.0
  %v8953 = vand.u32 %v62, 4294901760
  %v8954 = vsub.f32 %v62, %v8953
  %v8955 = vand.u32 %v8954, 4294901760
  %8956 = vmatpush1.msra.mxu0 %v8955
  %8957 = vmatprep.subr.mxu0 0.0
  %8958 = vmatpush1.msra.mxu0 0.0
  %8959 = vmatprep.subr.mxu0 0.0
  %8960 = vmatpush1.msra.mxu0 0.0
  %8961 = vmatprep.subr.mxu0 0.0
  %8962 = vmatpush1.msra.mxu0 0.0
  %8963 = vmatprep.subr.mxu0 0.0
  %8964 = vmatpush1.msra.mxu0 0.0
  %8965 = vmatprep.subr.mxu0 0.0
  %8966 = vmatpush1.msra.mxu0 0.0
  %8967 = vmatprep.subr.mxu0 0.0
  %8968 = vmatpush1.msra.mxu0 0.0
  %8969 = vmatprep.subr.mxu0 0.0
  %8970 = vmatpush1.msra.mxu0 0.0
  %8971 = vmatprep.subr.mxu0 0.0
  %8972 = vmatpush1.msra.mxu0 0.0
  %8973 = vmatprep.subr.mxu0 0.0
  %8974 = vmatpush1.msra.mxu0 0.0
  %8975 = vmatprep.subr.mxu0 0.0
  %8976 = vmatpush1.msra.mxu0 0.0
  %8977 = vmatprep.subr.mxu0 0.0
  %8978 = vmatpush1.msra.mxu0 0.0
  %8979 = vmatprep.subr.mxu0 0.0
  %8980 = vmatpush1.msra.mxu0 0.0
  %8981 = vmatprep.subr.mxu0 0.0
  %8982 = vmatpush1.msra.mxu0 0.0
  %8983 = vmatprep.subr.mxu0 0.0
  %8984 = vmatpush1.msra.mxu0 0.0
  %8985 = vmatprep.subr.mxu0 0.0
  %8986 = vmatpush1.msra.mxu0 0.0
  %8987 = vmatprep.subr.mxu0 0.0
  %8988 = vmatpush1.msra.mxu0 0.0
  %8989 = vmatprep.subr.mxu0 0.0
  %8990 = vmatpush1.msra.mxu0 0.0
  %8991 = vmatprep.subr.mxu0 0.0
  %8992 = vmatpush1.msra.mxu0 0.0
  %8993 = vmatprep.subr.mxu0 0.0
  %8994 = vmatpush1.msra.mxu0 0.0
  %8995 = vmatprep.subr.mxu0 0.0
  %8996 = vmatpush1.msra.mxu0 0.0
  %8997 = vmatprep.subr.mxu0 0.0
  %8998 = vmatpush1.msra.mxu0 0.0
  %8999 = vmatprep.subr.mxu0 0.0
  %9000 = vmatpush1.msra.mxu0 0.0
  %9001 = vmatprep.subr.mxu0 0.0
  %9002 = vmatpush1.msra.mxu0 0.0
  %9003 = vmatprep.subr.mxu0 0.0
  %9004 = vmatpush1.msra.mxu0 0.0
  %9005 = vmatprep.subr.mxu0 0.0
  %9006 = vmatpush1.msra.mxu0 0.0
  %9007 = vmatprep.subr.mxu0 0.0
  %9008 = vmatpush1.msra.mxu0 0.0
  %9009 = vmatprep.subr.mxu0 0.0
  %9010 = vmatpush1.msra.mxu0 0.0
  %9011 = vmatprep.subr.mxu0 0.0
  %9012 = vmatpush1.msra.mxu0 0.0
  %9013 = vmatprep.mubr.f32.mxu0 0.0
  %v9014 = vand.u32 %v8506, 4294901760
  %9015 = vmatmul.mubr.f32.gmra.mrb[0].mxu0 %v9014
  %v9016 = vpop.f32.mrb[0].mxu0
  %v9017 = vadd.f32 %v8910, %v9016
  %v9018 = vpop.f32.mrb[0].mxu0
  %9019 = vmatprep.mubr.f32.mxu0 0.0
  %v9020 = vand.u32 %v8509, 4294901760
  %9021 = vmatmul.mubr.f32.gmra.mrb[0].mxu0 %v9020
  %v9022 = vpop.f32.mrb[0].mxu0
  %v9023 = vadd.f32 %v8918, %v9022
  %v9024 = vpop.f32.mrb[0].mxu0
  %9025 = vmatprep.mubr.f32.mxu0 0.0
  %v9026 = vand.u32 %v8512, 4294901760
  %9027 = vmatmul.mubr.f32.gmra.mrb[0].mxu0 %v9026
  %v9028 = vpop.f32.mrb[0].mxu0
  %v9029 = vadd.f32 %v8926, %v9028
  %v9030 = vpop.f32.mrb[0].mxu0
  %9031 = vmatprep.mubr.f32.mxu0 0.0
  %v9032 = vand.u32 %v8515, 4294901760
  %9033 = vmatmul.mubr.f32.gmra.mrb[0].mxu0 %v9032
  %v9034 = vpop.f32.mrb[0].mxu0
  %v9035 = vadd.f32 %v8934, %v9034
  %v9036 = vpop.f32.mrb[0].mxu0
  %9037 = vdwg.mxu0
  %9038 = vmatprep.subr.mxu0 0.0
  %v9039 = vand.u32 %v59, 4294901760
  %9040 = vmatpush1.msra.mxu0 %v9039
  %9041 = vmatprep.subr.mxu0 0.0
  %v9042 = vand.u32 %v60, 4294901760
  %9043 = vmatpush1.msra.mxu0 %v9042
  %9044 = vmatprep.subr.mxu0 0.0
  %v9045 = vand.u32 %v61, 4294901760
  %9046 = vmatpush1.msra.mxu0 %v9045
  %9047 = vmatprep.subr.mxu0 0.0
  %v9048 = vand.u32 %v62, 4294901760
  %9049 = vmatpush1.msra.mxu0 %v9048
  %9050 = vmatprep.subr.mxu0 0.0
  %9051 = vmatpush1.msra.mxu0 0.0
  %9052 = vmatprep.subr.mxu0 0.0
  %9053 = vmatpush1.msra.mxu0 0.0
  %9054 = vmatprep.subr.mxu0 0.0
  %9055 = vmatpush1.msra.mxu0 0.0
  %9056 = vmatprep.subr.mxu0 0.0
  %9057 = vmatpush1.msra.mxu0 0.0
  %9058 = vmatprep.subr.mxu0 0.0
  %9059 = vmatpush1.msra.mxu0 0.0
  %9060 = vmatprep.subr.mxu0 0.0
  %9061 = vmatpush1.msra.mxu0 0.0
  %9062 = vmatprep.subr.mxu0 0.0
  %9063 = vmatpush1.msra.mxu0 0.0
  %9064 = vmatprep.subr.mxu0 0.0
  %9065 = vmatpush1.msra.mxu0 0.0
  %9066 = vmatprep.subr.mxu0 0.0
  %9067 = vmatpush1.msra.mxu0 0.0
  %9068 = vmatprep.subr.mxu0 0.0
  %9069 = vmatpush1.msra.mxu0 0.0
  %9070 = vmatprep.subr.mxu0 0.0
  %9071 = vmatpush1.msra.mxu0 0.0
  %9072 = vmatprep.subr.mxu0 0.0
  %9073 = vmatpush1.msra.mxu0 0.0
  %9074 = vmatprep.subr.mxu0 0.0
  %9075 = vmatpush1.msra.mxu0 0.0
  %9076 = vmatprep.subr.mxu0 0.0
  %9077 = vmatpush1.msra.mxu0 0.0
  %9078 = vmatprep.subr.mxu0 0.0
  %9079 = vmatpush1.msra.mxu0 0.0
  %9080 = vmatprep.subr.mxu0 0.0
  %9081 = vmatpush1.msra.mxu0 0.0
  %9082 = vmatprep.subr.mxu0 0.0
  %9083 = vmatpush1.msra.mxu0 0.0
  %9084 = vmatprep.subr.mxu0 0.0
  %9085 = vmatpush1.msra.mxu0 0.0
  %9086 = vmatprep.subr.mxu0 0.0
  %9087 = vmatpush1.msra.mxu0 0.0
  %9088 = vmatprep.subr.mxu0 0.0
  %9089 = vmatpush1.msra.mxu0 0.0
  %9090 = vmatprep.subr.mxu0 0.0
  %9091 = vmatpush1.msra.mxu0 0.0
  %9092 = vmatprep.subr.mxu0 0.0
  %9093 = vmatpush1.msra.mxu0 0.0
  %9094 = vmatprep.subr.mxu0 0.0
  %9095 = vmatpush1.msra.mxu0 0.0
  %9096 = vmatprep.subr.mxu0 0.0
  %9097 = vmatpush1.msra.mxu0 0.0
  %9098 = vmatprep.subr.mxu0 0.0
  %9099 = vmatpush1.msra.mxu0 0.0
  %9100 = vmatprep.subr.mxu0 0.0
  %9101 = vmatpush1.msra.mxu0 0.0
  %9102 = vmatprep.subr.mxu0 0.0
  %9103 = vmatpush1.msra.mxu0 0.0
  %9104 = vmatprep.subr.mxu0 0.0
  %9105 = vmatpush1.msra.mxu0 0.0
  %9106 = vmatprep.mubr.f32.mxu0 0.0
  %v9107 = vand.u32 %v8506, 4294901760
  %9108 = vmatmul.mubr.f32.gmra.mrb[0].mxu0 %v9107
  %v9109 = vpop.f32.mrb[0].mxu0
  %v9110 = vadd.f32 %v9017, %v9109
  %v9111 = vpop.f32.mrb[0].mxu0
  %9112 = vmatprep.mubr.f32.mxu0 0.0
  %v9113 = vand.u32 %v8509, 4294901760
  %9114 = vmatmul.mubr.f32.gmra.mrb[0].mxu0 %v9113
  %v9115 = vpop.f32.mrb[0].mxu0
  %v9116 = vadd.f32 %v9023, %v9115
  %v9117 = vpop.f32.mrb[0].mxu0
  %9118 = vmatprep.mubr.f32.mxu0 0.0
  %v9119 = vand.u32 %v8512, 4294901760
  %9120 = vmatmul.mubr.f32.gmra.mrb[0].mxu0 %v9119
  %v9121 = vpop.f32.mrb[0].mxu0
  %v9122 = vadd.f32 %v9029, %v9121
  %v9123 = vpop.f32.mrb[0].mxu0
  %9124 = vmatprep.mubr.f32.mxu0 0.0
  %v9125 = vand.u32 %v8515, 4294901760
  %9126 = vmatmul.mubr.f32.gmra.mrb[0].mxu0 %v9125
  %v9127 = vpop.f32.mrb[0].mxu0
  %v9128 = vadd.f32 %v9035, %v9127
  %v9129 = vpop.f32.mrb[0].mxu0
  %9130 = vdwg.mxu0
  %v9131 = vmul.f32 %v9110, 0.25
  %v9132 = vmul.f32 %v9116, 0.25
  %v9133 = vmul.f32 %v9122, 0.25
  %v9134 = vmul.f32 %v9128, 0.25
  %v9135 = vmax.f32 %v9131, %v9133
  %v9136 = vmax.f32 %v9132, %v9134
  %v9137 = vsub.f32 %v9131, %v9135
  %v9138 = vsub.f32 %v9132, %v9136
  %v9139 = vmul.f32 %v9137, 1.442695
  %v9140 = vpow.pop %v9139
  %v9141 = vmul.f32 %v9138, 1.442695
  %v9142 = vpow.pop %v9141
  %v9143 = vsub.f32 %v9133, %v9135
  %v9144 = vsub.f32 %v9134, %v9136
  %v9145 = vmul.f32 %v9143, 1.442695
  %v9146 = vpow.pop %v9145
  %v9147 = vmul.f32 %v9144, 1.442695
  %v9148 = vpow.pop %v9147
  %v9149 = vadd.f32 %v9140, %v9146
  %v9150 = vadd.f32 %v9142, %v9148
  %v9151 = vrcp.pop %v9149
  %v9152 = vmul.f32 1.0, %v9151
  %v9153 = vrcp.pop %v9150
  %v9154 = vmul.f32 1.0, %v9153
  %v9155 = vmul.f32 %v9140, %v9152
  %v9156 = vmul.f32 %v9142, %v9154
  %v9157 = vmul.f32 %v9146, %v9152
  %v9158 = vmul.f32 %v9148, %v9154
  %9159 = vrot.lane.b32.xlu0 %v8464, 64
  %v9160 = vpop.permute.xlu0 %9159
  %9161 = vrot.lane.b32.xlu0 %v8470, 64
  %v9162 = vpop.permute.xlu0 %9161
  %v9165 = vmul.f32 %v9155, %v9160
  %v9166 = vmul.f32 %v9156, %v9162
  %9167 = vrot.lane.b32.xlu0 %v8476, 64
  %v9168 = vpop.permute.xlu0 %9167
  %9169 = vrot.lane.b32.xlu0 %v8482, 64
  %v9170 = vpop.permute.xlu0 %9169
  %v9173 = vmul.f32 %v9157, %v9168
  %v9174 = vmul.f32 %v9158, %v9170
  %v9175 = vadd.f32 %v9165, %v9173
  %v9176 = vadd.f32 %v9166, %v9174
  %s9177 = scalar_lea.vmem %s7, 64
  %v9178 = vld [vmem:[%s9177] sm:$0xff]
  %v9179 = vld [vmem:[%s9177 + $0x8] sm:$0xff]
  %v9180 = vld [vmem:[%s9177 + $0x10] sm:$0xff]
  %v9181 = vld [vmem:[%s9177 + $0x18] sm:$0xff]
  %s9182 = scalar_lea.vmem %s8, 2
  %v9183 = vld [vmem:[%s9182] sm:$0x1]
  %v9185 = vlaneseq
  %v9186 = vshrl.u32 %v9185, 7
  %v9187 = vsub.s32 0, %v9186
  %v9188 = vrot.slane %v9183, %v9187
  %v9191 = vsel %vm80, %v9175, 0
  %v9194 = vsel %vm80, %v9176, 0
  %9196 = vmatprep.subr.mxu0 0.0
  %v9197 = vand.u32 %v9178, 4294901760
  %9198 = vmatpush1.msra.mxu0 %v9197
  %9199 = vmatprep.subr.mxu0 0.0
  %v9200 = vand.u32 %v9179, 4294901760
  %9201 = vmatpush1.msra.mxu0 %v9200
  %9202 = vmatprep.subr.mxu0 0.0
  %v9203 = vand.u32 %v9180, 4294901760
  %9204 = vmatpush1.msra.mxu0 %v9203
  %9205 = vmatprep.subr.mxu0 0.0
  %v9206 = vand.u32 %v9181, 4294901760
  %9207 = vmatpush1.msra.mxu0 %v9206
  %9208 = vmatprep.subr.mxu0 0.0
  %9209 = vmatpush1.msra.mxu0 0.0
  %9210 = vmatprep.subr.mxu0 0.0
  %9211 = vmatpush1.msra.mxu0 0.0
  %9212 = vmatprep.subr.mxu0 0.0
  %9213 = vmatpush1.msra.mxu0 0.0
  %9214 = vmatprep.subr.mxu0 0.0
  %9215 = vmatpush1.msra.mxu0 0.0
  %9216 = vmatprep.subr.mxu0 0.0
  %9217 = vmatpush1.msra.mxu0 0.0
  %9218 = vmatprep.subr.mxu0 0.0
  %9219 = vmatpush1.msra.mxu0 0.0
  %9220 = vmatprep.subr.mxu0 0.0
  %9221 = vmatpush1.msra.mxu0 0.0
  %9222 = vmatprep.subr.mxu0 0.0
  %9223 = vmatpush1.msra.mxu0 0.0
  %9224 = vmatprep.subr.mxu0 0.0
  %9225 = vmatpush1.msra.mxu0 0.0
  %9226 = vmatprep.subr.mxu0 0.0
  %9227 = vmatpush1.msra.mxu0 0.0
  %9228 = vmatprep.subr.mxu0 0.0
  %9229 = vmatpush1.msra.mxu0 0.0
  %9230 = vmatprep.subr.mxu0 0.0
  %9231 = vmatpush1.msra.mxu0 0.0
  %9232 = vmatprep.subr.mxu0 0.0
  %9233 = vmatpush1.msra.mxu0 0.0
  %9234 = vmatprep.subr.mxu0 0.0
  %9235 = vmatpush1.msra.mxu0 0.0
  %9236 = vmatprep.subr.mxu0 0.0
  %9237 = vmatpush1.msra.mxu0 0.0
  %9238 = vmatprep.subr.mxu0 0.0
  %9239 = vmatpush1.msra.mxu0 0.0
  %9240 = vmatprep.subr.mxu0 0.0
  %9241 = vmatpush1.msra.mxu0 0.0
  %9242 = vmatprep.subr.mxu0 0.0
  %9243 = vmatpush1.msra.mxu0 0.0
  %9244 = vmatprep.subr.mxu0 0.0
  %9245 = vmatpush1.msra.mxu0 0.0
  %9246 = vmatprep.subr.mxu0 0.0
  %9247 = vmatpush1.msra.mxu0 0.0
  %9248 = vmatprep.subr.mxu0 0.0
  %9249 = vmatpush1.msra.mxu0 0.0
  %9250 = vmatprep.subr.mxu0 0.0
  %9251 = vmatpush1.msra.mxu0 0.0
  %9252 = vmatprep.subr.mxu0 0.0
  %9253 = vmatpush1.msra.mxu0 0.0
  %9254 = vmatprep.subr.mxu0 0.0
  %9255 = vmatpush1.msra.mxu0 0.0
  %9256 = vmatprep.subr.mxu0 0.0
  %9257 = vmatpush1.msra.mxu0 0.0
  %9258 = vmatprep.subr.mxu0 0.0
  %9259 = vmatpush1.msra.mxu0 0.0
  %9260 = vmatprep.subr.mxu0 0.0
  %9261 = vmatpush1.msra.mxu0 0.0
  %9262 = vmatprep.subr.mxu0 0.0
  %9263 = vmatpush1.msra.mxu0 0.0
  %9264 = vmatprep.mubr.f32.mxu0 0.0
  %v9265 = vand.u32 %v9191, 4294901760
  %v9266 = vsub.f32 %v9191, %v9265
  %v9267 = vand.u32 %v9266, 4294901760
  %v9268 = vsub.f32 %v9266, %v9267
  %v9269 = vand.u32 %v9268, 4294901760
  %9270 = vmatmul.mubr.f32.gmra.mrb[0].mxu0 %v9269
  %v9271 = vpop.f32.mrb[0].mxu0
  %v9272 = vadd.f32 %v9188, %v9271
  %v9273 = vpop.f32.mrb[0].mxu0
  %9274 = vmatprep.mubr.f32.mxu0 0.0
  %v9275 = vand.u32 %v9194, 4294901760
  %v9276 = vsub.f32 %v9194, %v9275
  %v9277 = vand.u32 %v9276, 4294901760
  %v9278 = vsub.f32 %v9276, %v9277
  %v9279 = vand.u32 %v9278, 4294901760
  %9280 = vmatmul.mubr.f32.gmra.mrb[0].mxu0 %v9279
  %v9281 = vpop.f32.mrb[0].mxu0
  %v9282 = vadd.f32 %v9188, %v9281
  %v9283 = vpop.f32.mrb[0].mxu0
  %9284 = vdwg.mxu0
  %9285 = vmatprep.subr.mxu0 0.0
  %v9286 = vand.u32 %v9178, 4294901760
  %v9287 = vsub.f32 %v9178, %v9286
  %v9288 = vand.u32 %v9287, 4294901760
  %v9289 = vsub.f32 %v9287, %v9288
  %v9290 = vand.u32 %v9289, 4294901760
  %9291 = vmatpush1.msra.mxu0 %v9290
  %9292 = vmatprep.subr.mxu0 0.0
  %v9293 = vand.u32 %v9179, 4294901760
  %v9294 = vsub.f32 %v9179, %v9293
  %v9295 = vand.u32 %v9294, 4294901760
  %v9296 = vsub.f32 %v9294, %v9295
  %v9297 = vand.u32 %v9296, 4294901760
  %9298 = vmatpush1.msra.mxu0 %v9297
  %9299 = vmatprep.subr.mxu0 0.0
  %v9300 = vand.u32 %v9180, 4294901760
  %v9301 = vsub.f32 %v9180, %v9300
  %v9302 = vand.u32 %v9301, 4294901760
  %v9303 = vsub.f32 %v9301, %v9302
  %v9304 = vand.u32 %v9303, 4294901760
  %9305 = vmatpush1.msra.mxu0 %v9304
  %9306 = vmatprep.subr.mxu0 0.0
  %v9307 = vand.u32 %v9181, 4294901760
  %v9308 = vsub.f32 %v9181, %v9307
  %v9309 = vand.u32 %v9308, 4294901760
  %v9310 = vsub.f32 %v9308, %v9309
  %v9311 = vand.u32 %v9310, 4294901760
  %9312 = vmatpush1.msra.mxu0 %v9311
  %9313 = vmatprep.subr.mxu0 0.0
  %9314 = vmatpush1.msra.mxu0 0.0
  %9315 = vmatprep.subr.mxu0 0.0
  %9316 = vmatpush1.msra.mxu0 0.0
  %9317 = vmatprep.subr.mxu0 0.0
  %9318 = vmatpush1.msra.mxu0 0.0
  %9319 = vmatprep.subr.mxu0 0.0
  %9320 = vmatpush1.msra.mxu0 0.0
  %9321 = vmatprep.subr.mxu0 0.0
  %9322 = vmatpush1.msra.mxu0 0.0
  %9323 = vmatprep.subr.mxu0 0.0
  %9324 = vmatpush1.msra.mxu0 0.0
  %9325 = vmatprep.subr.mxu0 0.0
  %9326 = vmatpush1.msra.mxu0 0.0
  %9327 = vmatprep.subr.mxu0 0.0
  %9328 = vmatpush1.msra.mxu0 0.0
  %9329 = vmatprep.subr.mxu0 0.0
  %9330 = vmatpush1.msra.mxu0 0.0
  %9331 = vmatprep.subr.mxu0 0.0
  %9332 = vmatpush1.msra.mxu0 0.0
  %9333 = vmatprep.subr.mxu0 0.0
  %9334 = vmatpush1.msra.mxu0 0.0
  %9335 = vmatprep.subr.mxu0 0.0
  %9336 = vmatpush1.msra.mxu0 0.0
  %9337 = vmatprep.subr.mxu0 0.0
  %9338 = vmatpush1.msra.mxu0 0.0
  %9339 = vmatprep.subr.mxu0 0.0
  %9340 = vmatpush1.msra.mxu0 0.0
  %9341 = vmatprep.subr.mxu0 0.0
  %9342 = vmatpush1.msra.mxu0 0.0
  %9343 = vmatprep.subr.mxu0 0.0
  %9344 = vmatpush1.msra.mxu0 0.0
  %9345 = vmatprep.subr.mxu0 0.0
  %9346 = vmatpush1.msra.mxu0 0.0
  %9347 = vmatprep.subr.mxu0 0.0
  %9348 = vmatpush1.msra.mxu0 0.0
  %9349 = vmatprep.subr.mxu0 0.0
  %9350 = vmatpush1.msra.mxu0 0.0
  %9351 = vmatprep.subr.mxu0 0.0
  %9352 = vmatpush1.msra.mxu0 0.0
  %9353 = vmatprep.subr.mxu0 0.0
  %9354 = vmatpush1.msra.mxu0 0.0
  %9355 = vmatprep.subr.mxu0 0.0
  %9356 = vmatpush1.msra.mxu0 0.0
  %9357 = vmatprep.subr.mxu0 0.0
  %9358 = vmatpush1.msra.mxu0 0.0
  %9359 = vmatprep.subr.mxu0 0.0
  %9360 = vmatpush1.msra.mxu0 0.0
  %9361 = vmatprep.subr.mxu0 0.0
  %9362 = vmatpush1.msra.mxu0 0.0
  %9363 = vmatprep.subr.mxu0 0.0
  %9364 = vmatpush1.msra.mxu0 0.0
  %9365 = vmatprep.subr.mxu0 0.0
  %9366 = vmatpush1.msra.mxu0 0.0
  %9367 = vmatprep.subr.mxu0 0.0
  %9368 = vmatpush1.msra.mxu0 0.0
  %9369 = vmatprep.mubr.f32.mxu0 0.0
  %v9370 = vand.u32 %v9191, 4294901760
  %9371 = vmatmul.mubr.f32.gmra.mrb[0].mxu0 %v9370
  %v9372 = vpop.f32.mrb[0].mxu0
  %v9373 = vadd.f32 %v9272, %v9372
  %v9374 = vpop.f32.mrb[0].mxu0
  %9375 = vmatprep.mubr.f32.mxu0 0.0
  %v9376 = vand.u32 %v9194, 4294901760
  %9377 = vmatmul.mubr.f32.gmra.mrb[0].mxu0 %v9376
  %v9378 = vpop.f32.mrb[0].mxu0
  %v9379 = vadd.f32 %v9282, %v9378
  %v9380 = vpop.f32.mrb[0].mxu0
  %9381 = vdwg.mxu0
  %9382 = vmatprep.subr.mxu0 0.0
  %v9383 = vand.u32 %v9178, 4294901760
  %v9384 = vsub.f32 %v9178, %v9383
  %9385 = vmatpush1.msra.mxu0 %v9384
  %9386 = vmatprep.subr.mxu0 0.0
  %v9387 = vand.u32 %v9179, 4294901760
  %v9388 = vsub.f32 %v9179, %v9387
  %9389 = vmatpush1.msra.mxu0 %v9388
  %9390 = vmatprep.subr.mxu0 0.0
  %v9391 = vand.u32 %v9180, 4294901760
  %v9392 = vsub.f32 %v9180, %v9391
  %9393 = vmatpush1.msra.mxu0 %v9392
  %9394 = vmatprep.subr.mxu0 0.0
  %v9395 = vand.u32 %v9181, 4294901760
  %v9396 = vsub.f32 %v9181, %v9395
  %9397 = vmatpush1.msra.mxu0 %v9396
  %9398 = vmatprep.subr.mxu0 0.0
  %9399 = vmatpush1.msra.mxu0 0.0
  %9400 = vmatprep.subr.mxu0 0.0
  %9401 = vmatpush1.msra.mxu0 0.0
  %9402 = vmatprep.subr.mxu0 0.0
  %9403 = vmatpush1.msra.mxu0 0.0
  %9404 = vmatprep.subr.mxu0 0.0
  %9405 = vmatpush1.msra.mxu0 0.0
  %9406 = vmatprep.subr.mxu0 0.0
  %9407 = vmatpush1.msra.mxu0 0.0
  %9408 = vmatprep.subr.mxu0 0.0
  %9409 = vmatpush1.msra.mxu0 0.0
  %9410 = vmatprep.subr.mxu0 0.0
  %9411 = vmatpush1.msra.mxu0 0.0
  %9412 = vmatprep.subr.mxu0 0.0
  %9413 = vmatpush1.msra.mxu0 0.0
  %9414 = vmatprep.subr.mxu0 0.0
  %9415 = vmatpush1.msra.mxu0 0.0
  %9416 = vmatprep.subr.mxu0 0.0
  %9417 = vmatpush1.msra.mxu0 0.0
  %9418 = vmatprep.subr.mxu0 0.0
  %9419 = vmatpush1.msra.mxu0 0.0
  %9420 = vmatprep.subr.mxu0 0.0
  %9421 = vmatpush1.msra.mxu0 0.0
  %9422 = vmatprep.subr.mxu0 0.0
  %9423 = vmatpush1.msra.mxu0 0.0
  %9424 = vmatprep.subr.mxu0 0.0
  %9425 = vmatpush1.msra.mxu0 0.0
  %9426 = vmatprep.subr.mxu0 0.0
  %9427 = vmatpush1.msra.mxu0 0.0
  %9428 = vmatprep.subr.mxu0 0.0
  %9429 = vmatpush1.msra.mxu0 0.0
  %9430 = vmatprep.subr.mxu0 0.0
  %9431 = vmatpush1.msra.mxu0 0.0
  %9432 = vmatprep.subr.mxu0 0.0
  %9433 = vmatpush1.msra.mxu0 0.0
  %9434 = vmatprep.subr.mxu0 0.0
  %9435 = vmatpush1.msra.mxu0 0.0
  %9436 = vmatprep.subr.mxu0 0.0
  %9437 = vmatpush1.msra.mxu0 0.0
  %9438 = vmatprep.subr.mxu0 0.0
  %9439 = vmatpush1.msra.mxu0 0.0
  %9440 = vmatprep.subr.mxu0 0.0
  %9441 = vmatpush1.msra.mxu0 0.0
  %9442 = vmatprep.subr.mxu0 0.0
  %9443 = vmatpush1.msra.mxu0 0.0
  %9444 = vmatprep.subr.mxu0 0.0
  %9445 = vmatpush1.msra.mxu0 0.0
  %9446 = vmatprep.subr.mxu0 0.0
  %9447 = vmatpush1.msra.mxu0 0.0
  %9448 = vmatprep.subr.mxu0 0.0
  %9449 = vmatpush1.msra.mxu0 0.0
  %9450 = vmatprep.subr.mxu0 0.0
  %9451 = vmatpush1.msra.mxu0 0.0
  %9452 = vmatprep.subr.mxu0 0.0
  %9453 = vmatpush1.msra.mxu0 0.0
  %9454 = vmatprep.mubr.f32.mxu0 0.0
  %v9455 = vand.u32 %v9191, 4294901760
  %v9456 = vsub.f32 %v9191, %v9455
  %9457 = vmatmul.mubr.f32.gmra.mrb[0].mxu0 %v9456
  %v9458 = vpop.f32.mrb[0].mxu0
  %v9459 = vadd.f32 %v9373, %v9458
  %v9460 = vpop.f32.mrb[0].mxu0
  %9461 = vmatprep.mubr.f32.mxu0 0.0
  %v9462 = vand.u32 %v9194, 4294901760
  %v9463 = vsub.f32 %v9194, %v9462
  %9464 = vmatmul.mubr.f32.gmra.mrb[0].mxu0 %v9463
  %v9465 = vpop.f32.mrb[0].mxu0
  %v9466 = vadd.f32 %v9379, %v9465
  %v9467 = vpop.f32.mrb[0].mxu0
  %9468 = vdwg.mxu0
  %9469 = vmatprep.subr.mxu0 0.0
  %v9470 = vand.u32 %v9178, 4294901760
  %9471 = vmatpush1.msra.mxu0 %v9470
  %9472 = vmatprep.subr.mxu0 0.0
  %v9473 = vand.u32 %v9179, 4294901760
  %9474 = vmatpush1.msra.mxu0 %v9473
  %9475 = vmatprep.subr.mxu0 0.0
  %v9476 = vand.u32 %v9180, 4294901760
  %9477 = vmatpush1.msra.mxu0 %v9476
  %9478 = vmatprep.subr.mxu0 0.0
  %v9479 = vand.u32 %v9181, 4294901760
  %9480 = vmatpush1.msra.mxu0 %v9479
  %9481 = vmatprep.subr.mxu0 0.0
  %9482 = vmatpush1.msra.mxu0 0.0
  %9483 = vmatprep.subr.mxu0 0.0
  %9484 = vmatpush1.msra.mxu0 0.0
  %9485 = vmatprep.subr.mxu0 0.0
  %9486 = vmatpush1.msra.mxu0 0.0
  %9487 = vmatprep.subr.mxu0 0.0
  %9488 = vmatpush1.msra.mxu0 0.0
  %9489 = vmatprep.subr.mxu0 0.0
  %9490 = vmatpush1.msra.mxu0 0.0
  %9491 = vmatprep.subr.mxu0 0.0
  %9492 = vmatpush1.msra.mxu0 0.0
  %9493 = vmatprep.subr.mxu0 0.0
  %9494 = vmatpush1.msra.mxu0 0.0
  %9495 = vmatprep.subr.mxu0 0.0
  %9496 = vmatpush1.msra.mxu0 0.0
  %9497 = vmatprep.subr.mxu0 0.0
  %9498 = vmatpush1.msra.mxu0 0.0
  %9499 = vmatprep.subr.mxu0 0.0
  %9500 = vmatpush1.msra.mxu0 0.0
  %9501 = vmatprep.subr.mxu0 0.0
  %9502 = vmatpush1.msra.mxu0 0.0
  %9503 = vmatprep.subr.mxu0 0.0
  %9504 = vmatpush1.msra.mxu0 0.0
  %9505 = vmatprep.subr.mxu0 0.0
  %9506 = vmatpush1.msra.mxu0 0.0
  %9507 = vmatprep.subr.mxu0 0.0
  %9508 = vmatpush1.msra.mxu0 0.0
  %9509 = vmatprep.subr.mxu0 0.0
  %9510 = vmatpush1.msra.mxu0 0.0
  %9511 = vmatprep.subr.mxu0 0.0
  %9512 = vmatpush1.msra.mxu0 0.0
  %9513 = vmatprep.subr.mxu0 0.0
  %9514 = vmatpush1.msra.mxu0 0.0
  %9515 = vmatprep.subr.mxu0 0.0
  %9516 = vmatpush1.msra.mxu0 0.0
  %9517 = vmatprep.subr.mxu0 0.0
  %9518 = vmatpush1.msra.mxu0 0.0
  %9519 = vmatprep.subr.mxu0 0.0
  %9520 = vmatpush1.msra.mxu0 0.0
  %9521 = vmatprep.subr.mxu0 0.0
  %9522 = vmatpush1.msra.mxu0 0.0
  %9523 = vmatprep.subr.mxu0 0.0
  %9524 = vmatpush1.msra.mxu0 0.0
  %9525 = vmatprep.subr.mxu0 0.0
  %9526 = vmatpush1.msra.mxu0 0.0
  %9527 = vmatprep.subr.mxu0 0.0
  %9528 = vmatpush1.msra.mxu0 0.0
  %9529 = vmatprep.subr.mxu0 0.0
  %9530 = vmatpush1.msra.mxu0 0.0
  %9531 = vmatprep.subr.mxu0 0.0
  %9532 = vmatpush1.msra.mxu0 0.0
  %9533 = vmatprep.subr.mxu0 0.0
  %9534 = vmatpush1.msra.mxu0 0.0
  %9535 = vmatprep.subr.mxu0 0.0
  %9536 = vmatpush1.msra.mxu0 0.0
  %9537 = vmatprep.mubr.f32.mxu0 0.0
  %v9538 = vand.u32 %v9191, 4294901760
  %v9539 = vsub.f32 %v9191, %v9538
  %v9540 = vand.u32 %v9539, 4294901760
  %9541 = vmatmul.mubr.f32.gmra.mrb[0].mxu0 %v9540
  %v9542 = vpop.f32.mrb[0].mxu0
  %v9543 = vadd.f32 %v9459, %v9542
  %v9544 = vpop.f32.mrb[0].mxu0
  %9545 = vmatprep.mubr.f32.mxu0 0.0
  %v9546 = vand.u32 %v9194, 4294901760
  %v9547 = vsub.f32 %v9194, %v9546
  %v9548 = vand.u32 %v9547, 4294901760
  %9549 = vmatmul.mubr.f32.gmra.mrb[0].mxu0 %v9548
  %v9550 = vpop.f32.mrb[0].mxu0
  %v9551 = vadd.f32 %v9466, %v9550
  %v9552 = vpop.f32.mrb[0].mxu0
  %9553 = vdwg.mxu0
  %9554 = vmatprep.subr.mxu0 0.0
  %v9555 = vand.u32 %v9178, 4294901760
  %v9556 = vsub.f32 %v9178, %v9555
  %v9557 = vand.u32 %v9556, 4294901760
  %9558 = vmatpush1.msra.mxu0 %v9557
  %9559 = vmatprep.subr.mxu0 0.0
  %v9560 = vand.u32 %v9179, 4294901760
  %v9561 = vsub.f32 %v9179, %v9560
  %v9562 = vand.u32 %v9561, 4294901760
  %9563 = vmatpush1.msra.mxu0 %v9562
  %9564 = vmatprep.subr.mxu0 0.0
  %v9565 = vand.u32 %v9180, 4294901760
  %v9566 = vsub.f32 %v9180, %v9565
  %v9567 = vand.u32 %v9566, 4294901760
  %9568 = vmatpush1.msra.mxu0 %v9567
  %9569 = vmatprep.subr.mxu0 0.0
  %v9570 = vand.u32 %v9181, 4294901760
  %v9571 = vsub.f32 %v9181, %v9570
  %v9572 = vand.u32 %v9571, 4294901760
  %9573 = vmatpush1.msra.mxu0 %v9572
  %9574 = vmatprep.subr.mxu0 0.0
  %9575 = vmatpush1.msra.mxu0 0.0
  %9576 = vmatprep.subr.mxu0 0.0
  %9577 = vmatpush1.msra.mxu0 0.0
  %9578 = vmatprep.subr.mxu0 0.0
  %9579 = vmatpush1.msra.mxu0 0.0
  %9580 = vmatprep.subr.mxu0 0.0
  %9581 = vmatpush1.msra.mxu0 0.0
  %9582 = vmatprep.subr.mxu0 0.0
  %9583 = vmatpush1.msra.mxu0 0.0
  %9584 = vmatprep.subr.mxu0 0.0
  %9585 = vmatpush1.msra.mxu0 0.0
  %9586 = vmatprep.subr.mxu0 0.0
  %9587 = vmatpush1.msra.mxu0 0.0
  %9588 = vmatprep.subr.mxu0 0.0
  %9589 = vmatpush1.msra.mxu0 0.0
  %9590 = vmatprep.subr.mxu0 0.0
  %9591 = vmatpush1.msra.mxu0 0.0
  %9592 = vmatprep.subr.mxu0 0.0
  %9593 = vmatpush1.msra.mxu0 0.0
  %9594 = vmatprep.subr.mxu0 0.0
  %9595 = vmatpush1.msra.mxu0 0.0
  %9596 = vmatprep.subr.mxu0 0.0
  %9597 = vmatpush1.msra.mxu0 0.0
  %9598 = vmatprep.subr.mxu0 0.0
  %9599 = vmatpush1.msra.mxu0 0.0
  %9600 = vmatprep.subr.mxu0 0.0
  %9601 = vmatpush1.msra.mxu0 0.0
  %9602 = vmatprep.subr.mxu0 0.0
  %9603 = vmatpush1.msra.mxu0 0.0
  %9604 = vmatprep.subr.mxu0 0.0
  %9605 = vmatpush1.msra.mxu0 0.0
  %9606 = vmatprep.subr.mxu0 0.0
  %9607 = vmatpush1.msra.mxu0 0.0
  %9608 = vmatprep.subr.mxu0 0.0
  %9609 = vmatpush1.msra.mxu0 0.0
  %9610 = vmatprep.subr.mxu0 0.0
  %9611 = vmatpush1.msra.mxu0 0.0
  %9612 = vmatprep.subr.mxu0 0.0
  %9613 = vmatpush1.msra.mxu0 0.0
  %9614 = vmatprep.subr.mxu0 0.0
  %9615 = vmatpush1.msra.mxu0 0.0
  %9616 = vmatprep.subr.mxu0 0.0
  %9617 = vmatpush1.msra.mxu0 0.0
  %9618 = vmatprep.subr.mxu0 0.0
  %9619 = vmatpush1.msra.mxu0 0.0
  %9620 = vmatprep.subr.mxu0 0.0
  %9621 = vmatpush1.msra.mxu0 0.0
  %9622 = vmatprep.subr.mxu0 0.0
  %9623 = vmatpush1.msra.mxu0 0.0
  %9624 = vmatprep.subr.mxu0 0.0
  %9625 = vmatpush1.msra.mxu0 0.0
  %9626 = vmatprep.subr.mxu0 0.0
  %9627 = vmatpush1.msra.mxu0 0.0
  %9628 = vmatprep.subr.mxu0 0.0
  %9629 = vmatpush1.msra.mxu0 0.0
  %9630 = vmatprep.mubr.f32.mxu0 0.0
  %v9631 = vand.u32 %v9191, 4294901760
  %9632 = vmatmul.mubr.f32.gmra.mrb[0].mxu0 %v9631
  %v9633 = vpop.f32.mrb[0].mxu0
  %v9634 = vadd.f32 %v9543, %v9633
  %v9635 = vpop.f32.mrb[0].mxu0
  %9636 = vmatprep.mubr.f32.mxu0 0.0
  %v9637 = vand.u32 %v9194, 4294901760
  %9638 = vmatmul.mubr.f32.gmra.mrb[0].mxu0 %v9637
  %v9639 = vpop.f32.mrb[0].mxu0
  %v9640 = vadd.f32 %v9551, %v9639
  %v9641 = vpop.f32.mrb[0].mxu0
  %9642 = vdwg.mxu0
  %9643 = vmatprep.subr.mxu0 0.0
  %v9644 = vand.u32 %v9178, 4294901760
  %9645 = vmatpush1.msra.mxu0 %v9644
  %9646 = vmatprep.subr.mxu0 0.0
  %v9647 = vand.u32 %v9179, 4294901760
  %9648 = vmatpush1.msra.mxu0 %v9647
  %9649 = vmatprep.subr.mxu0 0.0
  %v9650 = vand.u32 %v9180, 4294901760
  %9651 = vmatpush1.msra.mxu0 %v9650
  %9652 = vmatprep.subr.mxu0 0.0
  %v9653 = vand.u32 %v9181, 4294901760
  %9654 = vmatpush1.msra.mxu0 %v9653
  %9655 = vmatprep.subr.mxu0 0.0
  %9656 = vmatpush1.msra.mxu0 0.0
  %9657 = vmatprep.subr.mxu0 0.0
  %9658 = vmatpush1.msra.mxu0 0.0
  %9659 = vmatprep.subr.mxu0 0.0
  %9660 = vmatpush1.msra.mxu0 0.0
  %9661 = vmatprep.subr.mxu0 0.0
  %9662 = vmatpush1.msra.mxu0 0.0
  %9663 = vmatprep.subr.mxu0 0.0
  %9664 = vmatpush1.msra.mxu0 0.0
  %9665 = vmatprep.subr.mxu0 0.0
  %9666 = vmatpush1.msra.mxu0 0.0
  %9667 = vmatprep.subr.mxu0 0.0
  %9668 = vmatpush1.msra.mxu0 0.0
  %9669 = vmatprep.subr.mxu0 0.0
  %9670 = vmatpush1.msra.mxu0 0.0
  %9671 = vmatprep.subr.mxu0 0.0
  %9672 = vmatpush1.msra.mxu0 0.0
  %9673 = vmatprep.subr.mxu0 0.0
  %9674 = vmatpush1.msra.mxu0 0.0
  %9675 = vmatprep.subr.mxu0 0.0
  %9676 = vmatpush1.msra.mxu0 0.0
  %9677 = vmatprep.subr.mxu0 0.0
  %9678 = vmatpush1.msra.mxu0 0.0
  %9679 = vmatprep.subr.mxu0 0.0
  %9680 = vmatpush1.msra.mxu0 0.0
  %9681 = vmatprep.subr.mxu0 0.0
  %9682 = vmatpush1.msra.mxu0 0.0
  %9683 = vmatprep.subr.mxu0 0.0
  %9684 = vmatpush1.msra.mxu0 0.0
  %9685 = vmatprep.subr.mxu0 0.0
  %9686 = vmatpush1.msra.mxu0 0.0
  %9687 = vmatprep.subr.mxu0 0.0
  %9688 = vmatpush1.msra.mxu0 0.0
  %9689 = vmatprep.subr.mxu0 0.0
  %9690 = vmatpush1.msra.mxu0 0.0
  %9691 = vmatprep.subr.mxu0 0.0
  %9692 = vmatpush1.msra.mxu0 0.0
  %9693 = vmatprep.subr.mxu0 0.0
  %9694 = vmatpush1.msra.mxu0 0.0
  %9695 = vmatprep.subr.mxu0 0.0
  %9696 = vmatpush1.msra.mxu0 0.0
  %9697 = vmatprep.subr.mxu0 0.0
  %9698 = vmatpush1.msra.mxu0 0.0
  %9699 = vmatprep.subr.mxu0 0.0
  %9700 = vmatpush1.msra.mxu0 0.0
  %9701 = vmatprep.subr.mxu0 0.0
  %9702 = vmatpush1.msra.mxu0 0.0
  %9703 = vmatprep.subr.mxu0 0.0
  %9704 = vmatpush1.msra.mxu0 0.0
  %9705 = vmatprep.subr.mxu0 0.0
  %9706 = vmatpush1.msra.mxu0 0.0
  %9707 = vmatprep.subr.mxu0 0.0
  %9708 = vmatpush1.msra.mxu0 0.0
  %9709 = vmatprep.subr.mxu0 0.0
  %9710 = vmatpush1.msra.mxu0 0.0
  %9711 = vmatprep.mubr.f32.mxu0 0.0
  %v9712 = vand.u32 %v9191, 4294901760
  %9713 = vmatmul.mubr.f32.gmra.mrb[0].mxu0 %v9712
  %v9714 = vpop.f32.mrb[0].mxu0
  %v9715 = vadd.f32 %v9634, %v9714
  %v9716 = vpop.f32.mrb[0].mxu0
  %9717 = vmatprep.mubr.f32.mxu0 0.0
  %v9718 = vand.u32 %v9194, 4294901760
  %9719 = vmatmul.mubr.f32.gmra.mrb[0].mxu0 %v9718
  %v9720 = vpop.f32.mrb[0].mxu0
  %v9721 = vadd.f32 %v9640, %v9720
  %v9722 = vpop.f32.mrb[0].mxu0
  %9723 = vdwg.mxu0
  %v9724 = vadd.f32 %v4500, %v9715
  %v9725 = vadd.f32 %v4501, %v9721
  %v9726 = vsel %vm80, %v9724, 0.0
  %9727 = vadd.xlane.f32.xlu0 %v9726
  %v9728 = vpop.xlane.xlu0 %9727
  %v9729 = vsel %vm80, %v9725, 0.0
  %9730 = vadd.xlane.f32.xlu0 %v9729
  %v9731 = vpop.xlane.xlu0 %9730
  %v9732 = vmul.f32 %v9728, %v637
  %v9733 = vmul.f32 %v9731, %v637
  %v9734 = vsub.f32 %v9724, %v9732
  %v9735 = vsub.f32 %v9725, %v9733
  %v9736 = vmul.f32 %v9734, %v9734
  %v9737 = vmul.f32 %v9735, %v9735
  %v9738 = vsel %vm80, %v9736, 0.0
  %9739 = vadd.xlane.f32.xlu0 %v9738
  %v9740 = vpop.xlane.xlu0 %9739
  %v9741 = vsel %vm80, %v9737, 0.0
  %9742 = vadd.xlane.f32.xlu0 %v9741
  %v9743 = vpop.xlane.xlu0 %9742
  %v9744 = vmul.f32 %v9740, %v637
  %v9745 = vmul.f32 %v9743, %v637
  %v9746 = vadd.f32 %v9744, 1e-05
  %v9747 = vadd.f32 %v9745, 1e-05
  %v9748 = vrsqrt.pop %v9746
  %v9749 = vrsqrt.pop %v9747
  %v9750 = vmul.f32 %v9734, %v9748
  %v9751 = vmul.f32 %v9735, %v9749
  %v9753 = vlaneseq
  %v9754 = vshrl.u32 %v9753, 7
  %v9755 = vsub.s32 0, %v9754
  %v9756 = vrot.slane %v7823, %v9755
  %v9758 = vmul.f32 %v9750, %v9756
  %v9759 = vmul.f32 %v9751, %v9756
  %v9761 = vlaneseq
  %v9762 = vshrl.u32 %v9761, 7
  %v9763 = vsub.s32 0, %v9762
  %v9764 = vrot.slane %v7825, %v9763
  %v9766 = vadd.f32 %v9758, %v9764
  %v9767 = vadd.f32 %v9759, %v9764
  %s9768 = scalar_lea.vmem %s9, 64
  %v9769 = vld [vmem:[%s9768] sm:$0xff]
  %v9770 = vld [vmem:[%s9768 + $0x8] sm:$0xff]
  %v9771 = vld [vmem:[%s9768 + $0x10] sm:$0xff]
  %v9772 = vld [vmem:[%s9768 + $0x18] sm:$0xff]
  %s9773 = scalar_lea.vmem %s10, 2
  %v9774 = vld [vmem:[%s9773] sm:$0x1]
  %v9776 = vlaneseq
  %v9777 = vshrl.u32 %v9776, 7
  %v9778 = vsub.s32 0, %v9777
  %v9779 = vrot.slane %v9774, %v9778
  %v9782 = vsel %vm80, %v9766, 0
  %v9785 = vsel %vm80, %v9767, 0
  %9787 = vmatprep.subr.mxu0 0.0
  %v9788 = vand.u32 %v9769, 4294901760
  %9789 = vmatpush1.msra.mxu0 %v9788
  %9790 = vmatprep.subr.mxu0 0.0
  %v9791 = vand.u32 %v9770, 4294901760
  %9792 = vmatpush1.msra.mxu0 %v9791
  %9793 = vmatprep.subr.mxu0 0.0
  %v9794 = vand.u32 %v9771, 4294901760
  %9795 = vmatpush1.msra.mxu0 %v9794
  %9796 = vmatprep.subr.mxu0 0.0
  %v9797 = vand.u32 %v9772, 4294901760
  %9798 = vmatpush1.msra.mxu0 %v9797
  %9799 = vmatprep.subr.mxu0 0.0
  %9800 = vmatpush1.msra.mxu0 0.0
  %9801 = vmatprep.subr.mxu0 0.0
  %9802 = vmatpush1.msra.mxu0 0.0
  %9803 = vmatprep.subr.mxu0 0.0
  %9804 = vmatpush1.msra.mxu0 0.0
  %9805 = vmatprep.subr.mxu0 0.0
  %9806 = vmatpush1.msra.mxu0 0.0
  %9807 = vmatprep.subr.mxu0 0.0
  %9808 = vmatpush1.msra.mxu0 0.0
  %9809 = vmatprep.subr.mxu0 0.0
  %9810 = vmatpush1.msra.mxu0 0.0
  %9811 = vmatprep.subr.mxu0 0.0
  %9812 = vmatpush1.msra.mxu0 0.0
  %9813 = vmatprep.subr.mxu0 0.0
  %9814 = vmatpush1.msra.mxu0 0.0
  %9815 = vmatprep.subr.mxu0 0.0
  %9816 = vmatpush1.msra.mxu0 0.0
  %9817 = vmatprep.subr.mxu0 0.0
  %9818 = vmatpush1.msra.mxu0 0.0
  %9819 = vmatprep.subr.mxu0 0.0
  %9820 = vmatpush1.msra.mxu0 0.0
  %9821 = vmatprep.subr.mxu0 0.0
  %9822 = vmatpush1.msra.mxu0 0.0
  %9823 = vmatprep.subr.mxu0 0.0
  %9824 = vmatpush1.msra.mxu0 0.0
  %9825 = vmatprep.subr.mxu0 0.0
  %9826 = vmatpush1.msra.mxu0 0.0
  %9827 = vmatprep.subr.mxu0 0.0
  %9828 = vmatpush1.msra.mxu0 0.0
  %9829 = vmatprep.subr.mxu0 0.0
  %9830 = vmatpush1.msra.mxu0 0.0
  %9831 = vmatprep.subr.mxu0 0.0
  %9832 = vmatpush1.msra.mxu0 0.0
  %9833 = vmatprep.subr.mxu0 0.0
  %9834 = vmatpush1.msra.mxu0 0.0
  %9835 = vmatprep.subr.mxu0 0.0
  %9836 = vmatpush1.msra.mxu0 0.0
  %9837 = vmatprep.subr.mxu0 0.0
  %9838 = vmatpush1.msra.mxu0 0.0
  %9839 = vmatprep.subr.mxu0 0.0
  %9840 = vmatpush1.msra.mxu0 0.0
  %9841 = vmatprep.subr.mxu0 0.0
  %9842 = vmatpush1.msra.mxu0 0.0
  %9843 = vmatprep.subr.mxu0 0.0
  %9844 = vmatpush1.msra.mxu0 0.0
  %9845 = vmatprep.subr.mxu0 0.0
  %9846 = vmatpush1.msra.mxu0 0.0
  %9847 = vmatprep.subr.mxu0 0.0
  %9848 = vmatpush1.msra.mxu0 0.0
  %9849 = vmatprep.subr.mxu0 0.0
  %9850 = vmatpush1.msra.mxu0 0.0
  %9851 = vmatprep.subr.mxu0 0.0
  %9852 = vmatpush1.msra.mxu0 0.0
  %9853 = vmatprep.subr.mxu0 0.0
  %9854 = vmatpush1.msra.mxu0 0.0
  %9855 = vmatprep.mubr.f32.mxu0 0.0
  %v9856 = vand.u32 %v9782, 4294901760
  %v9857 = vsub.f32 %v9782, %v9856
  %v9858 = vand.u32 %v9857, 4294901760
  %v9859 = vsub.f32 %v9857, %v9858
  %v9860 = vand.u32 %v9859, 4294901760
  %9861 = vmatmul.mubr.f32.gmra.mrb[0].mxu0 %v9860
  %v9862 = vpop.f32.mrb[0].mxu0
  %v9863 = vadd.f32 %v9779, %v9862
  %v9864 = vpop.f32.mrb[0].mxu0
  %9865 = vmatprep.mubr.f32.mxu0 0.0
  %v9866 = vand.u32 %v9785, 4294901760
  %v9867 = vsub.f32 %v9785, %v9866
  %v9868 = vand.u32 %v9867, 4294901760
  %v9869 = vsub.f32 %v9867, %v9868
  %v9870 = vand.u32 %v9869, 4294901760
  %9871 = vmatmul.mubr.f32.gmra.mrb[0].mxu0 %v9870
  %v9872 = vpop.f32.mrb[0].mxu0
  %v9873 = vadd.f32 %v9779, %v9872
  %v9874 = vpop.f32.mrb[0].mxu0
  %9875 = vdwg.mxu0
  %9876 = vmatprep.subr.mxu0 0.0
  %v9877 = vand.u32 %v9769, 4294901760
  %v9878 = vsub.f32 %v9769, %v9877
  %v9879 = vand.u32 %v9878, 4294901760
  %v9880 = vsub.f32 %v9878, %v9879
  %v9881 = vand.u32 %v9880, 4294901760
  %9882 = vmatpush1.msra.mxu0 %v9881
  %9883 = vmatprep.subr.mxu0 0.0
  %v9884 = vand.u32 %v9770, 4294901760
  %v9885 = vsub.f32 %v9770, %v9884
  %v9886 = vand.u32 %v9885, 4294901760
  %v9887 = vsub.f32 %v9885, %v9886
  %v9888 = vand.u32 %v9887, 4294901760
  %9889 = vmatpush1.msra.mxu0 %v9888
  %9890 = vmatprep.subr.mxu0 0.0
  %v9891 = vand.u32 %v9771, 4294901760
  %v9892 = vsub.f32 %v9771, %v9891
  %v9893 = vand.u32 %v9892, 4294901760
  %v9894 = vsub.f32 %v9892, %v9893
  %v9895 = vand.u32 %v9894, 4294901760
  %9896 = vmatpush1.msra.mxu0 %v9895
  %9897 = vmatprep.subr.mxu0 0.0
  %v9898 = vand.u32 %v9772, 4294901760
  %v9899 = vsub.f32 %v9772, %v9898
  %v9900 = vand.u32 %v9899, 4294901760
  %v9901 = vsub.f32 %v9899, %v9900
  %v9902 = vand.u32 %v9901, 4294901760
  %9903 = vmatpush1.msra.mxu0 %v9902
  %9904 = vmatprep.subr.mxu0 0.0
  %9905 = vmatpush1.msra.mxu0 0.0
  %9906 = vmatprep.subr.mxu0 0.0
  %9907 = vmatpush1.msra.mxu0 0.0
  %9908 = vmatprep.subr.mxu0 0.0
  %9909 = vmatpush1.msra.mxu0 0.0
  %9910 = vmatprep.subr.mxu0 0.0
  %9911 = vmatpush1.msra.mxu0 0.0
  %9912 = vmatprep.subr.mxu0 0.0
  %9913 = vmatpush1.msra.mxu0 0.0
  %9914 = vmatprep.subr.mxu0 0.0
  %9915 = vmatpush1.msra.mxu0 0.0
  %9916 = vmatprep.subr.mxu0 0.0
  %9917 = vmatpush1.msra.mxu0 0.0
  %9918 = vmatprep.subr.mxu0 0.0
  %9919 = vmatpush1.msra.mxu0 0.0
  %9920 = vmatprep.subr.mxu0 0.0
  %9921 = vmatpush1.msra.mxu0 0.0
  %9922 = vmatprep.subr.mxu0 0.0
  %9923 = vmatpush1.msra.mxu0 0.0
  %9924 = vmatprep.subr.mxu0 0.0
  %9925 = vmatpush1.msra.mxu0 0.0
  %9926 = vmatprep.subr.mxu0 0.0
  %9927 = vmatpush1.msra.mxu0 0.0
  %9928 = vmatprep.subr.mxu0 0.0
  %9929 = vmatpush1.msra.mxu0 0.0
  %9930 = vmatprep.subr.mxu0 0.0
  %9931 = vmatpush1.msra.mxu0 0.0
  %9932 = vmatprep.subr.mxu0 0.0
  %9933 = vmatpush1.msra.mxu0 0.0
  %9934 = vmatprep.subr.mxu0 0.0
  %9935 = vmatpush1.msra.mxu0 0.0
  %9936 = vmatprep.subr.mxu0 0.0
  %9937 = vmatpush1.msra.mxu0 0.0
  %9938 = vmatprep.subr.mxu0 0.0
  %9939 = vmatpush1.msra.mxu0 0.0
  %9940 = vmatprep.subr.mxu0 0.0
  %9941 = vmatpush1.msra.mxu0 0.0
  %9942 = vmatprep.subr.mxu0 0.0
  %9943 = vmatpush1.msra.mxu0 0.0
  %9944 = vmatprep.subr.mxu0 0.0
  %9945 = vmatpush1.msra.mxu0 0.0
  %9946 = vmatprep.subr.mxu0 0.0
  %9947 = vmatpush1.msra.mxu0 0.0
  %9948 = vmatprep.subr.mxu0 0.0
  %9949 = vmatpush1.msra.mxu0 0.0
  %9950 = vmatprep.subr.mxu0 0.0
  %9951 = vmatpush1.msra.mxu0 0.0
  %9952 = vmatprep.subr.mxu0 0.0
  %9953 = vmatpush1.msra.mxu0 0.0
  %9954 = vmatprep.subr.mxu0 0.0
  %9955 = vmatpush1.msra.mxu0 0.0
  %9956 = vmatprep.subr.mxu0 0.0
  %9957 = vmatpush1.msra.mxu0 0.0
  %9958 = vmatprep.subr.mxu0 0.0
  %9959 = vmatpush1.msra.mxu0 0.0
  %9960 = vmatprep.mubr.f32.mxu0 0.0
  %v9961 = vand.u32 %v9782, 4294901760
  %9962 = vmatmul.mubr.f32.gmra.mrb[0].mxu0 %v9961
  %v9963 = vpop.f32.mrb[0].mxu0
  %v9964 = vadd.f32 %v9863, %v9963
  %v9965 = vpop.f32.mrb[0].mxu0
  %9966 = vmatprep.mubr.f32.mxu0 0.0
  %v9967 = vand.u32 %v9785, 4294901760
  %9968 = vmatmul.mubr.f32.gmra.mrb[0].mxu0 %v9967
  %v9969 = vpop.f32.mrb[0].mxu0
  %v9970 = vadd.f32 %v9873, %v9969
  %v9971 = vpop.f32.mrb[0].mxu0
  %9972 = vdwg.mxu0
  %9973 = vmatprep.subr.mxu0 0.0
  %v9974 = vand.u32 %v9769, 4294901760
  %v9975 = vsub.f32 %v9769, %v9974
  %9976 = vmatpush1.msra.mxu0 %v9975
  %9977 = vmatprep.subr.mxu0 0.0
  %v9978 = vand.u32 %v9770, 4294901760
  %v9979 = vsub.f32 %v9770, %v9978
  %9980 = vmatpush1.msra.mxu0 %v9979
  %9981 = vmatprep.subr.mxu0 0.0
  %v9982 = vand.u32 %v9771, 4294901760
  %v9983 = vsub.f32 %v9771, %v9982
  %9984 = vmatpush1.msra.mxu0 %v9983
  %9985 = vmatprep.subr.mxu0 0.0
  %v9986 = vand.u32 %v9772, 4294901760
  %v9987 = vsub.f32 %v9772, %v9986
  %9988 = vmatpush1.msra.mxu0 %v9987
  %9989 = vmatprep.subr.mxu0 0.0
  %9990 = vmatpush1.msra.mxu0 0.0
  %9991 = vmatprep.subr.mxu0 0.0
  %9992 = vmatpush1.msra.mxu0 0.0
  %9993 = vmatprep.subr.mxu0 0.0
  %9994 = vmatpush1.msra.mxu0 0.0
  %9995 = vmatprep.subr.mxu0 0.0
  %9996 = vmatpush1.msra.mxu0 0.0
  %9997 = vmatprep.subr.mxu0 0.0
  %9998 = vmatpush1.msra.mxu0 0.0
  %9999 = vmatprep.subr.mxu0 0.0
  %10000 = vmatpush1.msra.mxu0 0.0
  %10001 = vmatprep.subr.mxu0 0.0
  %10002 = vmatpush1.msra.mxu0 0.0
  %10003 = vmatprep.subr.mxu0 0.0
  %10004 = vmatpush1.msra.mxu0 0.0
  %10005 = vmatprep.subr.mxu0 0.0
  %10006 = vmatpush1.msra.mxu0 0.0
  %10007 = vmatprep.subr.mxu0 0.0
  %10008 = vmatpush1.msra.mxu0 0.0
  %10009 = vmatprep.subr.mxu0 0.0
  %10010 = vmatpush1.msra.mxu0 0.0
  %10011 = vmatprep.subr.mxu0 0.0
  %10012 = vmatpush1.msra.mxu0 0.0
  %10013 = vmatprep.subr.mxu0 0.0
  %10014 = vmatpush1.msra.mxu0 0.0
  %10015 = vmatprep.subr.mxu0 0.0
  %10016 = vmatpush1.msra.mxu0 0.0
  %10017 = vmatprep.subr.mxu0 0.0
  %10018 = vmatpush1.msra.mxu0 0.0
  %10019 = vmatprep.subr.mxu0 0.0
  %10020 = vmatpush1.msra.mxu0 0.0
  %10021 = vmatprep.subr.mxu0 0.0
  %10022 = vmatpush1.msra.mxu0 0.0
  %10023 = vmatprep.subr.mxu0 0.0
  %10024 = vmatpush1.msra.mxu0 0.0
  %10025 = vmatprep.subr.mxu0 0.0
  %10026 = vmatpush1.msra.mxu0 0.0
  %10027 = vmatprep.subr.mxu0 0.0
  %10028 = vmatpush1.msra.mxu0 0.0
  %10029 = vmatprep.subr.mxu0 0.0
  %10030 = vmatpush1.msra.mxu0 0.0
  %10031 = vmatprep.subr.mxu0 0.0
  %10032 = vmatpush1.msra.mxu0 0.0
  %10033 = vmatprep.subr.mxu0 0.0
  %10034 = vmatpush1.msra.mxu0 0.0
  %10035 = vmatprep.subr.mxu0 0.0
  %10036 = vmatpush1.msra.mxu0 0.0
  %10037 = vmatprep.subr.mxu0 0.0
  %10038 = vmatpush1.msra.mxu0 0.0
  %10039 = vmatprep.subr.mxu0 0.0
  %10040 = vmatpush1.msra.mxu0 0.0
  %10041 = vmatprep.subr.mxu0 0.0
  %10042 = vmatpush1.msra.mxu0 0.0
  %10043 = vmatprep.subr.mxu0 0.0
  %10044 = vmatpush1.msra.mxu0 0.0
  %10045 = vmatprep.mubr.f32.mxu0 0.0
  %v10046 = vand.u32 %v9782, 4294901760
  %v10047 = vsub.f32 %v9782, %v10046
  %10048 = vmatmul.mubr.f32.gmra.mrb[0].mxu0 %v10047
  %v10049 = vpop.f32.mrb[0].mxu0
  %v10050 = vadd.f32 %v9964, %v10049
  %v10051 = vpop.f32.mrb[0].mxu0
  %10052 = vmatprep.mubr.f32.mxu0 0.0
  %v10053 = vand.u32 %v9785, 4294901760
  %v10054 = vsub.f32 %v9785, %v10053
  %10055 = vmatmul.mubr.f32.gmra.mrb[0].mxu0 %v10054
  %v10056 = vpop.f32.mrb[0].mxu0
  %v10057 = vadd.f32 %v9970, %v10056
  %v10058 = vpop.f32.mrb[0].mxu0
  %10059 = vdwg.mxu0
  %10060 = vmatprep.subr.mxu0 0.0
  %v10061 = vand.u32 %v9769, 4294901760
  %10062 = vmatpush1.msra.mxu0 %v10061
  %10063 = vmatprep.subr.mxu0 0.0
  %v10064 = vand.u32 %v9770, 4294901760
  %10065 = vmatpush1.msra.mxu0 %v10064
  %10066 = vmatprep.subr.mxu0 0.0
  %v10067 = vand.u32 %v9771, 4294901760
  %10068 = vmatpush1.msra.mxu0 %v10067
  %10069 = vmatprep.subr.mxu0 0.0
  %v10070 = vand.u32 %v9772, 4294901760
  %10071 = vmatpush1.msra.mxu0 %v10070
  %10072 = vmatprep.subr.mxu0 0.0
  %10073 = vmatpush1.msra.mxu0 0.0
  %10074 = vmatprep.subr.mxu0 0.0
  %10075 = vmatpush1.msra.mxu0 0.0
  %10076 = vmatprep.subr.mxu0 0.0
  %10077 = vmatpush1.msra.mxu0 0.0
  %10078 = vmatprep.subr.mxu0 0.0
  %10079 = vmatpush1.msra.mxu0 0.0
  %10080 = vmatprep.subr.mxu0 0.0
  %10081 = vmatpush1.msra.mxu0 0.0
  %10082 = vmatprep.subr.mxu0 0.0
  %10083 = vmatpush1.msra.mxu0 0.0
  %10084 = vmatprep.subr.mxu0 0.0
  %10085 = vmatpush1.msra.mxu0 0.0
  %10086 = vmatprep.subr.mxu0 0.0
  %10087 = vmatpush1.msra.mxu0 0.0
  %10088 = vmatprep.subr.mxu0 0.0
  %10089 = vmatpush1.msra.mxu0 0.0
  %10090 = vmatprep.subr.mxu0 0.0
  %10091 = vmatpush1.msra.mxu0 0.0
  %10092 = vmatprep.subr.mxu0 0.0
  %10093 = vmatpush1.msra.mxu0 0.0
  %10094 = vmatprep.subr.mxu0 0.0
  %10095 = vmatpush1.msra.mxu0 0.0
  %10096 = vmatprep.subr.mxu0 0.0
  %10097 = vmatpush1.msra.mxu0 0.0
  %10098 = vmatprep.subr.mxu0 0.0
  %10099 = vmatpush1.msra.mxu0 0.0
  %10100 = vmatprep.subr.mxu0 0.0
  %10101 = vmatpush1.msra.mxu0 0.0
  %10102 = vmatprep.subr.mxu0 0.0
  %10103 = vmatpush1.msra.mxu0 0.0
  %10104 = vmatprep.subr.mxu0 0.0
  %10105 = vmatpush1.msra.mxu0 0.0
  %10106 = vmatprep.subr.mxu0 0.0
  %10107 = vmatpush1.msra.mxu0 0.0
  %10108 = vmatprep.subr.mxu0 0.0
  %10109 = vmatpush1.msra.mxu0 0.0
  %10110 = vmatprep.subr.mxu0 0.0
  %10111 = vmatpush1.msra.mxu0 0.0
  %10112 = vmatprep.subr.mxu0 0.0
  %10113 = vmatpush1.msra.mxu0 0.0
  %10114 = vmatprep.subr.mxu0 0.0
  %10115 = vmatpush1.msra.mxu0 0.0
  %10116 = vmatprep.subr.mxu0 0.0
  %10117 = vmatpush1.msra.mxu0 0.0
  %10118 = vmatprep.subr.mxu0 0.0
  %10119 = vmatpush1.msra.mxu0 0.0
  %10120 = vmatprep.subr.mxu0 0.0
  %10121 = vmatpush1.msra.mxu0 0.0
  %10122 = vmatprep.subr.mxu0 0.0
  %10123 = vmatpush1.msra.mxu0 0.0
  %10124 = vmatprep.subr.mxu0 0.0
  %10125 = vmatpush1.msra.mxu0 0.0
  %10126 = vmatprep.subr.mxu0 0.0
  %10127 = vmatpush1.msra.mxu0 0.0
  %10128 = vmatprep.mubr.f32.mxu0 0.0
  %v10129 = vand.u32 %v9782, 4294901760
  %v10130 = vsub.f32 %v9782, %v10129
  %v10131 = vand.u32 %v10130, 4294901760
  %10132 = vmatmul.mubr.f32.gmra.mrb[0].mxu0 %v10131
  %v10133 = vpop.f32.mrb[0].mxu0
  %v10134 = vadd.f32 %v10050, %v10133
  %v10135 = vpop.f32.mrb[0].mxu0
  %10136 = vmatprep.mubr.f32.mxu0 0.0
  %v10137 = vand.u32 %v9785, 4294901760
  %v10138 = vsub.f32 %v9785, %v10137
  %v10139 = vand.u32 %v10138, 4294901760
  %10140 = vmatmul.mubr.f32.gmra.mrb[0].mxu0 %v10139
  %v10141 = vpop.f32.mrb[0].mxu0
  %v10142 = vadd.f32 %v10057, %v10141
  %v10143 = vpop.f32.mrb[0].mxu0
  %10144 = vdwg.mxu0
  %10145 = vmatprep.subr.mxu0 0.0
  %v10146 = vand.u32 %v9769, 4294901760
  %v10147 = vsub.f32 %v9769, %v10146
  %v10148 = vand.u32 %v10147, 4294901760
  %10149 = vmatpush1.msra.mxu0 %v10148
  %10150 = vmatprep.subr.mxu0 0.0
  %v10151 = vand.u32 %v9770, 4294901760
  %v10152 = vsub.f32 %v9770, %v10151
  %v10153 = vand.u32 %v10152, 4294901760
  %10154 = vmatpush1.msra.mxu0 %v10153
  %10155 = vmatprep.subr.mxu0 0.0
  %v10156 = vand.u32 %v9771, 4294901760
  %v10157 = vsub.f32 %v9771, %v10156
  %v10158 = vand.u32 %v10157, 4294901760
  %10159 = vmatpush1.msra.mxu0 %v10158
  %10160 = vmatprep.subr.mxu0 0.0
  %v10161 = vand.u32 %v9772, 4294901760
  %v10162 = vsub.f32 %v9772, %v10161
  %v10163 = vand.u32 %v10162, 4294901760
  %10164 = vmatpush1.msra.mxu0 %v10163
  %10165 = vmatprep.subr.mxu0 0.0
  %10166 = vmatpush1.msra.mxu0 0.0
  %10167 = vmatprep.subr.mxu0 0.0
  %10168 = vmatpush1.msra.mxu0 0.0
  %10169 = vmatprep.subr.mxu0 0.0
  %10170 = vmatpush1.msra.mxu0 0.0
  %10171 = vmatprep.subr.mxu0 0.0
  %10172 = vmatpush1.msra.mxu0 0.0
  %10173 = vmatprep.subr.mxu0 0.0
  %10174 = vmatpush1.msra.mxu0 0.0
  %10175 = vmatprep.subr.mxu0 0.0
  %10176 = vmatpush1.msra.mxu0 0.0
  %10177 = vmatprep.subr.mxu0 0.0
  %10178 = vmatpush1.msra.mxu0 0.0
  %10179 = vmatprep.subr.mxu0 0.0
  %10180 = vmatpush1.msra.mxu0 0.0
  %10181 = vmatprep.subr.mxu0 0.0
  %10182 = vmatpush1.msra.mxu0 0.0
  %10183 = vmatprep.subr.mxu0 0.0
  %10184 = vmatpush1.msra.mxu0 0.0
  %10185 = vmatprep.subr.mxu0 0.0
  %10186 = vmatpush1.msra.mxu0 0.0
  %10187 = vmatprep.subr.mxu0 0.0
  %10188 = vmatpush1.msra.mxu0 0.0
  %10189 = vmatprep.subr.mxu0 0.0
  %10190 = vmatpush1.msra.mxu0 0.0
  %10191 = vmatprep.subr.mxu0 0.0
  %10192 = vmatpush1.msra.mxu0 0.0
  %10193 = vmatprep.subr.mxu0 0.0
  %10194 = vmatpush1.msra.mxu0 0.0
  %10195 = vmatprep.subr.mxu0 0.0
  %10196 = vmatpush1.msra.mxu0 0.0
  %10197 = vmatprep.subr.mxu0 0.0
  %10198 = vmatpush1.msra.mxu0 0.0
  %10199 = vmatprep.subr.mxu0 0.0
  %10200 = vmatpush1.msra.mxu0 0.0
  %10201 = vmatprep.subr.mxu0 0.0
  %10202 = vmatpush1.msra.mxu0 0.0
  %10203 = vmatprep.subr.mxu0 0.0
  %10204 = vmatpush1.msra.mxu0 0.0
  %10205 = vmatprep.subr.mxu0 0.0
  %10206 = vmatpush1.msra.mxu0 0.0
  %10207 = vmatprep.subr.mxu0 0.0
  %10208 = vmatpush1.msra.mxu0 0.0
  %10209 = vmatprep.subr.mxu0 0.0
  %10210 = vmatpush1.msra.mxu0 0.0
  %10211 = vmatprep.subr.mxu0 0.0
  %10212 = vmatpush1.msra.mxu0 0.0
  %10213 = vmatprep.subr.mxu0 0.0
  %10214 = vmatpush1.msra.mxu0 0.0
  %10215 = vmatprep.subr.mxu0 0.0
  %10216 = vmatpush1.msra.mxu0 0.0
  %10217 = vmatprep.subr.mxu0 0.0
  %10218 = vmatpush1.msra.mxu0 0.0
  %10219 = vmatprep.subr.mxu0 0.0
  %10220 = vmatpush1.msra.mxu0 0.0
  %10221 = vmatprep.mubr.f32.mxu0 0.0
  %v10222 = vand.u32 %v9782, 4294901760
  %10223 = vmatmul.mubr.f32.gmra.mrb[0].mxu0 %v10222
  %v10224 = vpop.f32.mrb[0].mxu0
  %v10225 = vadd.f32 %v10134, %v10224
  %v10226 = vpop.f32.mrb[0].mxu0
  %10227 = vmatprep.mubr.f32.mxu0 0.0
  %v10228 = vand.u32 %v9785, 4294901760
  %10229 = vmatmul.mubr.f32.gmra.mrb[0].mxu0 %v10228
  %v10230 = vpop.f32.mrb[0].mxu0
  %v10231 = vadd.f32 %v10142, %v10230
  %v10232 = vpop.f32.mrb[0].mxu0
  %10233 = vdwg.mxu0
  %10234 = vmatprep.subr.mxu0 0.0
  %v10235 = vand.u32 %v9769, 4294901760
  %10236 = vmatpush1.msra.mxu0 %v10235
  %10237 = vmatprep.subr.mxu0 0.0
  %v10238 = vand.u32 %v9770, 4294901760
  %10239 = vmatpush1.msra.mxu0 %v10238
  %10240 = vmatprep.subr.mxu0 0.0
  %v10241 = vand.u32 %v9771, 4294901760
  %10242 = vmatpush1.msra.mxu0 %v10241
  %10243 = vmatprep.subr.mxu0 0.0
  %v10244 = vand.u32 %v9772, 4294901760
  %10245 = vmatpush1.msra.mxu0 %v10244
  %10246 = vmatprep.subr.mxu0 0.0
  %10247 = vmatpush1.msra.mxu0 0.0
  %10248 = vmatprep.subr.mxu0 0.0
  %10249 = vmatpush1.msra.mxu0 0.0
  %10250 = vmatprep.subr.mxu0 0.0
  %10251 = vmatpush1.msra.mxu0 0.0
  %10252 = vmatprep.subr.mxu0 0.0
  %10253 = vmatpush1.msra.mxu0 0.0
  %10254 = vmatprep.subr.mxu0 0.0
  %10255 = vmatpush1.msra.mxu0 0.0
  %10256 = vmatprep.subr.mxu0 0.0
  %10257 = vmatpush1.msra.mxu0 0.0
  %10258 = vmatprep.subr.mxu0 0.0
  %10259 = vmatpush1.msra.mxu0 0.0
  %10260 = vmatprep.subr.mxu0 0.0
  %10261 = vmatpush1.msra.mxu0 0.0
  %10262 = vmatprep.subr.mxu0 0.0
  %10263 = vmatpush1.msra.mxu0 0.0
  %10264 = vmatprep.subr.mxu0 0.0
  %10265 = vmatpush1.msra.mxu0 0.0
  %10266 = vmatprep.subr.mxu0 0.0
  %10267 = vmatpush1.msra.mxu0 0.0
  %10268 = vmatprep.subr.mxu0 0.0
  %10269 = vmatpush1.msra.mxu0 0.0
  %10270 = vmatprep.subr.mxu0 0.0
  %10271 = vmatpush1.msra.mxu0 0.0
  %10272 = vmatprep.subr.mxu0 0.0
  %10273 = vmatpush1.msra.mxu0 0.0
  %10274 = vmatprep.subr.mxu0 0.0
  %10275 = vmatpush1.msra.mxu0 0.0
  %10276 = vmatprep.subr.mxu0 0.0
  %10277 = vmatpush1.msra.mxu0 0.0
  %10278 = vmatprep.subr.mxu0 0.0
  %10279 = vmatpush1.msra.mxu0 0.0
  %10280 = vmatprep.subr.mxu0 0.0
  %10281 = vmatpush1.msra.mxu0 0.0
  %10282 = vmatprep.subr.mxu0 0.0
  %10283 = vmatpush1.msra.mxu0 0.0
  %10284 = vmatprep.subr.mxu0 0.0
  %10285 = vmatpush1.msra.mxu0 0.0
  %10286 = vmatprep.subr.mxu0 0.0
  %10287 = vmatpush1.msra.mxu0 0.0
  %10288 = vmatprep.subr.mxu0 0.0
  %10289 = vmatpush1.msra.mxu0 0.0
  %10290 = vmatprep.subr.mxu0 0.0
  %10291 = vmatpush1.msra.mxu0 0.0
  %10292 = vmatprep.subr.mxu0 0.0
  %10293 = vmatpush1.msra.mxu0 0.0
  %10294 = vmatprep.subr.mxu0 0.0
  %10295 = vmatpush1.msra.mxu0 0.0
  %10296 = vmatprep.subr.mxu0 0.0
  %10297 = vmatpush1.msra.mxu0 0.0
  %10298 = vmatprep.subr.mxu0 0.0
  %10299 = vmatpush1.msra.mxu0 0.0
  %10300 = vmatprep.subr.mxu0 0.0
  %10301 = vmatpush1.msra.mxu0 0.0
  %10302 = vmatprep.mubr.f32.mxu0 0.0
  %v10303 = vand.u32 %v9782, 4294901760
  %10304 = vmatmul.mubr.f32.gmra.mrb[0].mxu0 %v10303
  %v10305 = vpop.f32.mrb[0].mxu0
  %v10306 = vadd.f32 %v10225, %v10305
  %v10307 = vpop.f32.mrb[0].mxu0
  %10308 = vmatprep.mubr.f32.mxu0 0.0
  %v10309 = vand.u32 %v9785, 4294901760
  %10310 = vmatmul.mubr.f32.gmra.mrb[0].mxu0 %v10309
  %v10311 = vpop.f32.mrb[0].mxu0
  %v10312 = vadd.f32 %v10231, %v10311
  %v10313 = vpop.f32.mrb[0].mxu0
  %10314 = vdwg.mxu0
  %v10315 = vmul.f32 %v10306, 0.5
  %v10316 = vmul.f32 %v10312, 0.5
  %v10317 = vmul.f32 %v10306, 0.70710677
  %v10318 = vmul.f32 %v10312, 0.70710677
  %v10319 = vand.u32 2147483647, %v10317
  %v10320 = vand.u32 2147483647, %v10318
  %v10321 = vmul.f32 %v10319, 0.3275911
  %v10322 = vmul.f32 %v10320, 0.3275911
  %v10323 = vadd.f32 %v10321, 1.0
  %v10324 = vadd.f32 %v10322, 1.0
  %v10325 = vrcp.pop %v10323
  %v10326 = vmul.f32 1.0, %v10325
  %v10327 = vrcp.pop %v10324
  %v10328 = vmul.f32 1.0, %v10327
  %v10329 = vmul.f32 %v10326, 1.0614054
  %v10330 = vmul.f32 %v10328, 1.0614054
  %v10331 = vadd.f32 %v10329, -1.4531521
  %v10332 = vadd.f32 %v10330, -1.4531521
  %v10333 = vmul.f32 %v10326, %v10331
  %v10334 = vmul.f32 %v10328, %v10332
  %v10335 = vadd.f32 %v10333, 1.4214138
  %v10336 = vadd.f32 %v10334, 1.4214138
  %v10337 = vmul.f32 %v10326, %v10335
  %v10338 = vmul.f32 %v10328, %v10336
  %v10339 = vadd.f32 %v10337, -0.28449672
  %v10340 = vadd.f32 %v10338, -0.28449672
  %v10341 = vmul.f32 %v10326, %v10339
  %v10342 = vmul.f32 %v10328, %v10340
  %v10343 = vadd.f32 %v10341, 0.2548296
  %v10344 = vadd.f32 %v10342, 0.2548296
  %v10345 = vmul.f32 %v10326, %v10343
  %v10346 = vmul.f32 %v10328, %v10344
  %v10347 = vsub.f32 0.0, %v10319
  %v10348 = vsub.f32 0.0, %v10320
  %v10349 = vmul.f32 %v10347, %v10319
  %v10350 = vmul.f32 %v10348, %v10320
  %v10351 = vmul.f32 %v10349, 1.442695
  %v10352 = vpow.pop %v10351
  %v10353 = vmul.f32 %v10350, 1.442695
  %v10354 = vpow.pop %v10353
  %v10355 = vmul.f32 %v10345, %v10352
  %v10356 = vmul.f32 %v10346, %v10354
  %v10357 = vsub.f32 1.0, %v10355
  %v10358 = vsub.f32 1.0, %v10356
  %vm10359 = vcmp.ge.f32.partialorder %v10317, 0.0
  %vm10360 = vcmp.ge.f32.partialorder %v10318, 0.0
  %v10361 = vsub.f32 0.0, %v10357
  %v10362 = vsub.f32 0.0, %v10358
  %v10363 = vsel %vm10359, %v10357, %v10361
  %v10364 = vsel %vm10360, %v10358, %v10362
  %v10365 = vadd.f32 %v10363, 1.0
  %v10366 = vadd.f32 %v10364, 1.0
  %v10367 = vmul.f32 %v10315, %v10365
  %v10368 = vmul.f32 %v10316, %v10366
  %s10369 = scalar_lea.vmem %s11, 256
  %v10370 = vld [vmem:[%s10369] sm:$0xff]
  %v10371 = vld [vmem:[%s10369 + $0x8] sm:$0xff]
  %v10372 = vld [vmem:[%s10369 + $0x10] sm:$0xff]
  %v10373 = vld [vmem:[%s10369 + $0x18] sm:$0xff]
  %v10374 = vld [vmem:[%s10369 + $0x20] sm:$0xff]
  %v10375 = vld [vmem:[%s10369 + $0x28] sm:$0xff]
  %v10376 = vld [vmem:[%s10369 + $0x30] sm:$0xff]
  %v10377 = vld [vmem:[%s10369 + $0x38] sm:$0xff]
  %v10378 = vld [vmem:[%s10369 + $0x40] sm:$0xff]
  %v10379 = vld [vmem:[%s10369 + $0x48] sm:$0xff]
  %v10380 = vld [vmem:[%s10369 + $0x50] sm:$0xff]
  %v10381 = vld [vmem:[%s10369 + $0x58] sm:$0xff]
  %v10382 = vld [vmem:[%s10369 + $0x60] sm:$0xff]
  %v10383 = vld [vmem:[%s10369 + $0x68] sm:$0xff]
  %v10384 = vld [vmem:[%s10369 + $0x70] sm:$0xff]
  %v10385 = vld [vmem:[%s10369 + $0x78] sm:$0xff]
  %s10386 = scalar_lea.vmem %s12, 2
  %v10387 = vld [vmem:[%s10386] sm:$0x1]
  %v10389 = vlaneseq
  %v10390 = vshrl.u32 %v10389, 7
  %v10391 = vsub.s32 0, %v10390
  %v10392 = vrot.slane %v10387, %v10391
  %10394 = vmatprep.subr.mxu0 0.0
  %v10395 = vand.u32 %v10370, 4294901760
  %10396 = vmatpush1.msra.mxu0 %v10395
  %10397 = vmatprep.subr.mxu0 0.0
  %v10398 = vand.u32 %v10371, 4294901760
  %10399 = vmatpush1.msra.mxu0 %v10398
  %10400 = vmatprep.subr.mxu0 0.0
  %v10401 = vand.u32 %v10372, 4294901760
  %10402 = vmatpush1.msra.mxu0 %v10401
  %10403 = vmatprep.subr.mxu0 0.0
  %v10404 = vand.u32 %v10373, 4294901760
  %10405 = vmatpush1.msra.mxu0 %v10404
  %10406 = vmatprep.subr.mxu0 0.0
  %v10407 = vand.u32 %v10374, 4294901760
  %10408 = vmatpush1.msra.mxu0 %v10407
  %10409 = vmatprep.subr.mxu0 0.0
  %v10410 = vand.u32 %v10375, 4294901760
  %10411 = vmatpush1.msra.mxu0 %v10410
  %10412 = vmatprep.subr.mxu0 0.0
  %v10413 = vand.u32 %v10376, 4294901760
  %10414 = vmatpush1.msra.mxu0 %v10413
  %10415 = vmatprep.subr.mxu0 0.0
  %v10416 = vand.u32 %v10377, 4294901760
  %10417 = vmatpush1.msra.mxu0 %v10416
  %10418 = vmatprep.subr.mxu0 0.0
  %v10419 = vand.u32 %v10378, 4294901760
  %10420 = vmatpush1.msra.mxu0 %v10419
  %10421 = vmatprep.subr.mxu0 0.0
  %v10422 = vand.u32 %v10379, 4294901760
  %10423 = vmatpush1.msra.mxu0 %v10422
  %10424 = vmatprep.subr.mxu0 0.0
  %v10425 = vand.u32 %v10380, 4294901760
  %10426 = vmatpush1.msra.mxu0 %v10425
  %10427 = vmatprep.subr.mxu0 0.0
  %v10428 = vand.u32 %v10381, 4294901760
  %10429 = vmatpush1.msra.mxu0 %v10428
  %10430 = vmatprep.subr.mxu0 0.0
  %v10431 = vand.u32 %v10382, 4294901760
  %10432 = vmatpush1.msra.mxu0 %v10431
  %10433 = vmatprep.subr.mxu0 0.0
  %v10434 = vand.u32 %v10383, 4294901760
  %10435 = vmatpush1.msra.mxu0 %v10434
  %10436 = vmatprep.subr.mxu0 0.0
  %v10437 = vand.u32 %v10384, 4294901760
  %10438 = vmatpush1.msra.mxu0 %v10437
  %10439 = vmatprep.subr.mxu0 0.0
  %v10440 = vand.u32 %v10385, 4294901760
  %10441 = vmatpush1.msra.mxu0 %v10440
  %10442 = vmatprep.subr.mxu0 0.0
  %10443 = vmatpush1.msra.mxu0 0.0
  %10444 = vmatprep.subr.mxu0 0.0
  %10445 = vmatpush1.msra.mxu0 0.0
  %10446 = vmatprep.subr.mxu0 0.0
  %10447 = vmatpush1.msra.mxu0 0.0
  %10448 = vmatprep.subr.mxu0 0.0
  %10449 = vmatpush1.msra.mxu0 0.0
  %10450 = vmatprep.subr.mxu0 0.0
  %10451 = vmatpush1.msra.mxu0 0.0
  %10452 = vmatprep.subr.mxu0 0.0
  %10453 = vmatpush1.msra.mxu0 0.0
  %10454 = vmatprep.subr.mxu0 0.0
  %10455 = vmatpush1.msra.mxu0 0.0
  %10456 = vmatprep.subr.mxu0 0.0
  %10457 = vmatpush1.msra.mxu0 0.0
  %10458 = vmatprep.subr.mxu0 0.0
  %10459 = vmatpush1.msra.mxu0 0.0
  %10460 = vmatprep.subr.mxu0 0.0
  %10461 = vmatpush1.msra.mxu0 0.0
  %10462 = vmatprep.subr.mxu0 0.0
  %10463 = vmatpush1.msra.mxu0 0.0
  %10464 = vmatprep.subr.mxu0 0.0
  %10465 = vmatpush1.msra.mxu0 0.0
  %10466 = vmatprep.subr.mxu0 0.0
  %10467 = vmatpush1.msra.mxu0 0.0
  %10468 = vmatprep.subr.mxu0 0.0
  %10469 = vmatpush1.msra.mxu0 0.0
  %10470 = vmatprep.subr.mxu0 0.0
  %10471 = vmatpush1.msra.mxu0 0.0
  %10472 = vmatprep.subr.mxu0 0.0
  %10473 = vmatpush1.msra.mxu0 0.0
  %10474 = vmatprep.mubr.f32.mxu0 0.0
  %v10475 = vand.u32 %v10367, 4294901760
  %v10476 = vsub.f32 %v10367, %v10475
  %v10477 = vand.u32 %v10476, 4294901760
  %v10478 = vsub.f32 %v10476, %v10477
  %v10479 = vand.u32 %v10478, 4294901760
  %10480 = vmatmul.mubr.f32.gmra.mrb[0].mxu0 %v10479
  %v10481 = vpop.f32.mrb[0].mxu0
  %v10482 = vadd.f32 %v10392, %v10481
  %v10483 = vpop.f32.mrb[0].mxu0
  %10484 = vmatprep.mubr.f32.mxu0 0.0
  %v10485 = vand.u32 %v10368, 4294901760
  %v10486 = vsub.f32 %v10368, %v10485
  %v10487 = vand.u32 %v10486, 4294901760
  %v10488 = vsub.f32 %v10486, %v10487
  %v10489 = vand.u32 %v10488, 4294901760
  %10490 = vmatmul.mubr.f32.gmra.mrb[0].mxu0 %v10489
  %v10491 = vpop.f32.mrb[0].mxu0
  %v10492 = vadd.f32 %v10392, %v10491
  %v10493 = vpop.f32.mrb[0].mxu0
  %10494 = vdwg.mxu0
  %10495 = vmatprep.subr.mxu0 0.0
  %v10496 = vand.u32 %v10370, 4294901760
  %v10497 = vsub.f32 %v10370, %v10496
  %v10498 = vand.u32 %v10497, 4294901760
  %v10499 = vsub.f32 %v10497, %v10498
  %v10500 = vand.u32 %v10499, 4294901760
  %10501 = vmatpush1.msra.mxu0 %v10500
  %10502 = vmatprep.subr.mxu0 0.0
  %v10503 = vand.u32 %v10371, 4294901760
  %v10504 = vsub.f32 %v10371, %v10503
  %v10505 = vand.u32 %v10504, 4294901760
  %v10506 = vsub.f32 %v10504, %v10505
  %v10507 = vand.u32 %v10506, 4294901760
  %10508 = vmatpush1.msra.mxu0 %v10507
  %10509 = vmatprep.subr.mxu0 0.0
  %v10510 = vand.u32 %v10372, 4294901760
  %v10511 = vsub.f32 %v10372, %v10510
  %v10512 = vand.u32 %v10511, 4294901760
  %v10513 = vsub.f32 %v10511, %v10512
  %v10514 = vand.u32 %v10513, 4294901760
  %10515 = vmatpush1.msra.mxu0 %v10514
  %10516 = vmatprep.subr.mxu0 0.0
  %v10517 = vand.u32 %v10373, 4294901760
  %v10518 = vsub.f32 %v10373, %v10517
  %v10519 = vand.u32 %v10518, 4294901760
  %v10520 = vsub.f32 %v10518, %v10519
  %v10521 = vand.u32 %v10520, 4294901760
  %10522 = vmatpush1.msra.mxu0 %v10521
  %10523 = vmatprep.subr.mxu0 0.0
  %v10524 = vand.u32 %v10374, 4294901760
  %v10525 = vsub.f32 %v10374, %v10524
  %v10526 = vand.u32 %v10525, 4294901760
  %v10527 = vsub.f32 %v10525, %v10526
  %v10528 = vand.u32 %v10527, 4294901760
  %10529 = vmatpush1.msra.mxu0 %v10528
  %10530 = vmatprep.subr.mxu0 0.0
  %v10531 = vand.u32 %v10375, 4294901760
  %v10532 = vsub.f32 %v10375, %v10531
  %v10533 = vand.u32 %v10532, 4294901760
  %v10534 = vsub.f32 %v10532, %v10533
  %v10535 = vand.u32 %v10534, 4294901760
  %10536 = vmatpush1.msra.mxu0 %v10535
  %10537 = vmatprep.subr.mxu0 0.0
  %v10538 = vand.u32 %v10376, 4294901760
  %v10539 = vsub.f32 %v10376, %v10538
  %v10540 = vand.u32 %v10539, 4294901760
  %v10541 = vsub.f32 %v10539, %v10540
  %v10542 = vand.u32 %v10541, 4294901760
  %10543 = vmatpush1.msra.mxu0 %v10542
  %10544 = vmatprep.subr.mxu0 0.0
  %v10545 = vand.u32 %v10377, 4294901760
  %v10546 = vsub.f32 %v10377, %v10545
  %v10547 = vand.u32 %v10546, 4294901760
  %v10548 = vsub.f32 %v10546, %v10547
  %v10549 = vand.u32 %v10548, 4294901760
  %10550 = vmatpush1.msra.mxu0 %v10549
  %10551 = vmatprep.subr.mxu0 0.0
  %v10552 = vand.u32 %v10378, 4294901760
  %v10553 = vsub.f32 %v10378, %v10552
  %v10554 = vand.u32 %v10553, 4294901760
  %v10555 = vsub.f32 %v10553, %v10554
  %v10556 = vand.u32 %v10555, 4294901760
  %10557 = vmatpush1.msra.mxu0 %v10556
  %10558 = vmatprep.subr.mxu0 0.0
  %v10559 = vand.u32 %v10379, 4294901760
  %v10560 = vsub.f32 %v10379, %v10559
  %v10561 = vand.u32 %v10560, 4294901760
  %v10562 = vsub.f32 %v10560, %v10561
  %v10563 = vand.u32 %v10562, 4294901760
  %10564 = vmatpush1.msra.mxu0 %v10563
  %10565 = vmatprep.subr.mxu0 0.0
  %v10566 = vand.u32 %v10380, 4294901760
  %v10567 = vsub.f32 %v10380, %v10566
  %v10568 = vand.u32 %v10567, 4294901760
  %v10569 = vsub.f32 %v10567, %v10568
  %v10570 = vand.u32 %v10569, 4294901760
  %10571 = vmatpush1.msra.mxu0 %v10570
  %10572 = vmatprep.subr.mxu0 0.0
  %v10573 = vand.u32 %v10381, 4294901760
  %v10574 = vsub.f32 %v10381, %v10573
  %v10575 = vand.u32 %v10574, 4294901760
  %v10576 = vsub.f32 %v10574, %v10575
  %v10577 = vand.u32 %v10576, 4294901760
  %10578 = vmatpush1.msra.mxu0 %v10577
  %10579 = vmatprep.subr.mxu0 0.0
  %v10580 = vand.u32 %v10382, 4294901760
  %v10581 = vsub.f32 %v10382, %v10580
  %v10582 = vand.u32 %v10581, 4294901760
  %v10583 = vsub.f32 %v10581, %v10582
  %v10584 = vand.u32 %v10583, 4294901760
  %10585 = vmatpush1.msra.mxu0 %v10584
  %10586 = vmatprep.subr.mxu0 0.0
  %v10587 = vand.u32 %v10383, 4294901760
  %v10588 = vsub.f32 %v10383, %v10587
  %v10589 = vand.u32 %v10588, 4294901760
  %v10590 = vsub.f32 %v10588, %v10589
  %v10591 = vand.u32 %v10590, 4294901760
  %10592 = vmatpush1.msra.mxu0 %v10591
  %10593 = vmatprep.subr.mxu0 0.0
  %v10594 = vand.u32 %v10384, 4294901760
  %v10595 = vsub.f32 %v10384, %v10594
  %v10596 = vand.u32 %v10595, 4294901760
  %v10597 = vsub.f32 %v10595, %v10596
  %v10598 = vand.u32 %v10597, 4294901760
  %10599 = vmatpush1.msra.mxu0 %v10598
  %10600 = vmatprep.subr.mxu0 0.0
  %v10601 = vand.u32 %v10385, 4294901760
  %v10602 = vsub.f32 %v10385, %v10601
  %v10603 = vand.u32 %v10602, 4294901760
  %v10604 = vsub.f32 %v10602, %v10603
  %v10605 = vand.u32 %v10604, 4294901760
  %10606 = vmatpush1.msra.mxu0 %v10605
  %10607 = vmatprep.subr.mxu0 0.0
  %10608 = vmatpush1.msra.mxu0 0.0
  %10609 = vmatprep.subr.mxu0 0.0
  %10610 = vmatpush1.msra.mxu0 0.0
  %10611 = vmatprep.subr.mxu0 0.0
  %10612 = vmatpush1.msra.mxu0 0.0
  %10613 = vmatprep.subr.mxu0 0.0
  %10614 = vmatpush1.msra.mxu0 0.0
  %10615 = vmatprep.subr.mxu0 0.0
  %10616 = vmatpush1.msra.mxu0 0.0
  %10617 = vmatprep.subr.mxu0 0.0
  %10618 = vmatpush1.msra.mxu0 0.0
  %10619 = vmatprep.subr.mxu0 0.0
  %10620 = vmatpush1.msra.mxu0 0.0
  %10621 = vmatprep.subr.mxu0 0.0
  %10622 = vmatpush1.msra.mxu0 0.0
  %10623 = vmatprep.subr.mxu0 0.0
  %10624 = vmatpush1.msra.mxu0 0.0
  %10625 = vmatprep.subr.mxu0 0.0
  %10626 = vmatpush1.msra.mxu0 0.0
  %10627 = vmatprep.subr.mxu0 0.0
  %10628 = vmatpush1.msra.mxu0 0.0
  %10629 = vmatprep.subr.mxu0 0.0
  %10630 = vmatpush1.msra.mxu0 0.0
  %10631 = vmatprep.subr.mxu0 0.0
  %10632 = vmatpush1.msra.mxu0 0.0
  %10633 = vmatprep.subr.mxu0 0.0
  %10634 = vmatpush1.msra.mxu0 0.0
  %10635 = vmatprep.subr.mxu0 0.0
  %10636 = vmatpush1.msra.mxu0 0.0
  %10637 = vmatprep.subr.mxu0 0.0
  %10638 = vmatpush1.msra.mxu0 0.0
  %10639 = vmatprep.mubr.f32.mxu0 0.0
  %v10640 = vand.u32 %v10367, 4294901760
  %10641 = vmatmul.mubr.f32.gmra.mrb[0].mxu0 %v10640
  %v10642 = vpop.f32.mrb[0].mxu0
  %v10643 = vadd.f32 %v10482, %v10642
  %v10644 = vpop.f32.mrb[0].mxu0
  %10645 = vmatprep.mubr.f32.mxu0 0.0
  %v10646 = vand.u32 %v10368, 4294901760
  %10647 = vmatmul.mubr.f32.gmra.mrb[0].mxu0 %v10646
  %v10648 = vpop.f32.mrb[0].mxu0
  %v10649 = vadd.f32 %v10492, %v10648
  %v10650 = vpop.f32.mrb[0].mxu0
  %10651 = vdwg.mxu0
  %10652 = vmatprep.subr.mxu0 0.0
  %v10653 = vand.u32 %v10370, 4294901760
  %v10654 = vsub.f32 %v10370, %v10653
  %10655 = vmatpush1.msra.mxu0 %v10654
  %10656 = vmatprep.subr.mxu0 0.0
  %v10657 = vand.u32 %v10371, 4294901760
  %v10658 = vsub.f32 %v10371, %v10657
  %10659 = vmatpush1.msra.mxu0 %v10658
  %10660 = vmatprep.subr.mxu0 0.0
  %v10661 = vand.u32 %v10372, 4294901760
  %v10662 = vsub.f32 %v10372, %v10661
  %10663 = vmatpush1.msra.mxu0 %v10662
  %10664 = vmatprep.subr.mxu0 0.0
  %v10665 = vand.u32 %v10373, 4294901760
  %v10666 = vsub.f32 %v10373, %v10665
  %10667 = vmatpush1.msra.mxu0 %v10666
  %10668 = vmatprep.subr.mxu0 0.0
  %v10669 = vand.u32 %v10374, 4294901760
  %v10670 = vsub.f32 %v10374, %v10669
  %10671 = vmatpush1.msra.mxu0 %v10670
  %10672 = vmatprep.subr.mxu0 0.0
  %v10673 = vand.u32 %v10375, 4294901760
  %v10674 = vsub.f32 %v10375, %v10673
  %10675 = vmatpush1.msra.mxu0 %v10674
  %10676 = vmatprep.subr.mxu0 0.0
  %v10677 = vand.u32 %v10376, 4294901760
  %v10678 = vsub.f32 %v10376, %v10677
  %10679 = vmatpush1.msra.mxu0 %v10678
  %10680 = vmatprep.subr.mxu0 0.0
  %v10681 = vand.u32 %v10377, 4294901760
  %v10682 = vsub.f32 %v10377, %v10681
  %10683 = vmatpush1.msra.mxu0 %v10682
  %10684 = vmatprep.subr.mxu0 0.0
  %v10685 = vand.u32 %v10378, 4294901760
  %v10686 = vsub.f32 %v10378, %v10685
  %10687 = vmatpush1.msra.mxu0 %v10686
  %10688 = vmatprep.subr.mxu0 0.0
  %v10689 = vand.u32 %v10379, 4294901760
  %v10690 = vsub.f32 %v10379, %v10689
  %10691 = vmatpush1.msra.mxu0 %v10690
  %10692 = vmatprep.subr.mxu0 0.0
  %v10693 = vand.u32 %v10380, 4294901760
  %v10694 = vsub.f32 %v10380, %v10693
  %10695 = vmatpush1.msra.mxu0 %v10694
  %10696 = vmatprep.subr.mxu0 0.0
  %v10697 = vand.u32 %v10381, 4294901760
  %v10698 = vsub.f32 %v10381, %v10697
  %10699 = vmatpush1.msra.mxu0 %v10698
  %10700 = vmatprep.subr.mxu0 0.0
  %v10701 = vand.u32 %v10382, 4294901760
  %v10702 = vsub.f32 %v10382, %v10701
  %10703 = vmatpush1.msra.mxu0 %v10702
  %10704 = vmatprep.subr.mxu0 0.0
  %v10705 = vand.u32 %v10383, 4294901760
  %v10706 = vsub.f32 %v10383, %v10705
  %10707 = vmatpush1.msra.mxu0 %v10706
  %10708 = vmatprep.subr.mxu0 0.0
  %v10709 = vand.u32 %v10384, 4294901760
  %v10710 = vsub.f32 %v10384, %v10709
  %10711 = vmatpush1.msra.mxu0 %v10710
  %10712 = vmatprep.subr.mxu0 0.0
  %v10713 = vand.u32 %v10385, 4294901760
  %v10714 = vsub.f32 %v10385, %v10713
  %10715 = vmatpush1.msra.mxu0 %v10714
  %10716 = vmatprep.subr.mxu0 0.0
  %10717 = vmatpush1.msra.mxu0 0.0
  %10718 = vmatprep.subr.mxu0 0.0
  %10719 = vmatpush1.msra.mxu0 0.0
  %10720 = vmatprep.subr.mxu0 0.0
  %10721 = vmatpush1.msra.mxu0 0.0
  %10722 = vmatprep.subr.mxu0 0.0
  %10723 = vmatpush1.msra.mxu0 0.0
  %10724 = vmatprep.subr.mxu0 0.0
  %10725 = vmatpush1.msra.mxu0 0.0
  %10726 = vmatprep.subr.mxu0 0.0
  %10727 = vmatpush1.msra.mxu0 0.0
  %10728 = vmatprep.subr.mxu0 0.0
  %10729 = vmatpush1.msra.mxu0 0.0
  %10730 = vmatprep.subr.mxu0 0.0
  %10731 = vmatpush1.msra.mxu0 0.0
  %10732 = vmatprep.subr.mxu0 0.0
  %10733 = vmatpush1.msra.mxu0 0.0
  %10734 = vmatprep.subr.mxu0 0.0
  %10735 = vmatpush1.msra.mxu0 0.0
  %10736 = vmatprep.subr.mxu0 0.0
  %10737 = vmatpush1.msra.mxu0 0.0
  %10738 = vmatprep.subr.mxu0 0.0
  %10739 = vmatpush1.msra.mxu0 0.0
  %10740 = vmatprep.subr.mxu0 0.0
  %10741 = vmatpush1.msra.mxu0 0.0
  %10742 = vmatprep.subr.mxu0 0.0
  %10743 = vmatpush1.msra.mxu0 0.0
  %10744 = vmatprep.subr.mxu0 0.0
  %10745 = vmatpush1.msra.mxu0 0.0
  %10746 = vmatprep.subr.mxu0 0.0
  %10747 = vmatpush1.msra.mxu0 0.0
  %10748 = vmatprep.mubr.f32.mxu0 0.0
  %v10749 = vand.u32 %v10367, 4294901760
  %v10750 = vsub.f32 %v10367, %v10749
  %10751 = vmatmul.mubr.f32.gmra.mrb[0].mxu0 %v10750
  %v10752 = vpop.f32.mrb[0].mxu0
  %v10753 = vadd.f32 %v10643, %v10752
  %v10754 = vpop.f32.mrb[0].mxu0
  %10755 = vmatprep.mubr.f32.mxu0 0.0
  %v10756 = vand.u32 %v10368, 4294901760
  %v10757 = vsub.f32 %v10368, %v10756
  %10758 = vmatmul.mubr.f32.gmra.mrb[0].mxu0 %v10757
  %v10759 = vpop.f32.mrb[0].mxu0
  %v10760 = vadd.f32 %v10649, %v10759
  %v10761 = vpop.f32.mrb[0].mxu0
  %10762 = vdwg.mxu0
  %10763 = vmatprep.subr.mxu0 0.0
  %v10764 = vand.u32 %v10370, 4294901760
  %10765 = vmatpush1.msra.mxu0 %v10764
  %10766 = vmatprep.subr.mxu0 0.0
  %v10767 = vand.u32 %v10371, 4294901760
  %10768 = vmatpush1.msra.mxu0 %v10767
  %10769 = vmatprep.subr.mxu0 0.0
  %v10770 = vand.u32 %v10372, 4294901760
  %10771 = vmatpush1.msra.mxu0 %v10770
  %10772 = vmatprep.subr.mxu0 0.0
  %v10773 = vand.u32 %v10373, 4294901760
  %10774 = vmatpush1.msra.mxu0 %v10773
  %10775 = vmatprep.subr.mxu0 0.0
  %v10776 = vand.u32 %v10374, 4294901760
  %10777 = vmatpush1.msra.mxu0 %v10776
  %10778 = vmatprep.subr.mxu0 0.0
  %v10779 = vand.u32 %v10375, 4294901760
  %10780 = vmatpush1.msra.mxu0 %v10779
  %10781 = vmatprep.subr.mxu0 0.0
  %v10782 = vand.u32 %v10376, 4294901760
  %10783 = vmatpush1.msra.mxu0 %v10782
  %10784 = vmatprep.subr.mxu0 0.0
  %v10785 = vand.u32 %v10377, 4294901760
  %10786 = vmatpush1.msra.mxu0 %v10785
  %10787 = vmatprep.subr.mxu0 0.0
  %v10788 = vand.u32 %v10378, 4294901760
  %10789 = vmatpush1.msra.mxu0 %v10788
  %10790 = vmatprep.subr.mxu0 0.0
  %v10791 = vand.u32 %v10379, 4294901760
  %10792 = vmatpush1.msra.mxu0 %v10791
  %10793 = vmatprep.subr.mxu0 0.0
  %v10794 = vand.u32 %v10380, 4294901760
  %10795 = vmatpush1.msra.mxu0 %v10794
  %10796 = vmatprep.subr.mxu0 0.0
  %v10797 = vand.u32 %v10381, 4294901760
  %10798 = vmatpush1.msra.mxu0 %v10797
  %10799 = vmatprep.subr.mxu0 0.0
  %v10800 = vand.u32 %v10382, 4294901760
  %10801 = vmatpush1.msra.mxu0 %v10800
  %10802 = vmatprep.subr.mxu0 0.0
  %v10803 = vand.u32 %v10383, 4294901760
  %10804 = vmatpush1.msra.mxu0 %v10803
  %10805 = vmatprep.subr.mxu0 0.0
  %v10806 = vand.u32 %v10384, 4294901760
  %10807 = vmatpush1.msra.mxu0 %v10806
  %10808 = vmatprep.subr.mxu0 0.0
  %v10809 = vand.u32 %v10385, 4294901760
  %10810 = vmatpush1.msra.mxu0 %v10809
  %10811 = vmatprep.subr.mxu0 0.0
  %10812 = vmatpush1.msra.mxu0 0.0
  %10813 = vmatprep.subr.mxu0 0.0
  %10814 = vmatpush1.msra.mxu0 0.0
  %10815 = vmatprep.subr.mxu0 0.0
  %10816 = vmatpush1.msra.mxu0 0.0
  %10817 = vmatprep.subr.mxu0 0.0
  %10818 = vmatpush1.msra.mxu0 0.0
  %10819 = vmatprep.subr.mxu0 0.0
  %10820 = vmatpush1.msra.mxu0 0.0
  %10821 = vmatprep.subr.mxu0 0.0
  %10822 = vmatpush1.msra.mxu0 0.0
  %10823 = vmatprep.subr.mxu0 0.0
  %10824 = vmatpush1.msra.mxu0 0.0
  %10825 = vmatprep.subr.mxu0 0.0
  %10826 = vmatpush1.msra.mxu0 0.0
  %10827 = vmatprep.subr.mxu0 0.0
  %10828 = vmatpush1.msra.mxu0 0.0
  %10829 = vmatprep.subr.mxu0 0.0
  %10830 = vmatpush1.msra.mxu0 0.0
  %10831 = vmatprep.subr.mxu0 0.0
  %10832 = vmatpush1.msra.mxu0 0.0
  %10833 = vmatprep.subr.mxu0 0.0
  %10834 = vmatpush1.msra.mxu0 0.0
  %10835 = vmatprep.subr.mxu0 0.0
  %10836 = vmatpush1.msra.mxu0 0.0
  %10837 = vmatprep.subr.mxu0 0.0
  %10838 = vmatpush1.msra.mxu0 0.0
  %10839 = vmatprep.subr.mxu0 0.0
  %10840 = vmatpush1.msra.mxu0 0.0
  %10841 = vmatprep.subr.mxu0 0.0
  %10842 = vmatpush1.msra.mxu0 0.0
  %10843 = vmatprep.mubr.f32.mxu0 0.0
  %v10844 = vand.u32 %v10367, 4294901760
  %v10845 = vsub.f32 %v10367, %v10844
  %v10846 = vand.u32 %v10845, 4294901760
  %10847 = vmatmul.mubr.f32.gmra.mrb[0].mxu0 %v10846
  %v10848 = vpop.f32.mrb[0].mxu0
  %v10849 = vadd.f32 %v10753, %v10848
  %v10850 = vpop.f32.mrb[0].mxu0
  %10851 = vmatprep.mubr.f32.mxu0 0.0
  %v10852 = vand.u32 %v10368, 4294901760
  %v10853 = vsub.f32 %v10368, %v10852
  %v10854 = vand.u32 %v10853, 4294901760
  %10855 = vmatmul.mubr.f32.gmra.mrb[0].mxu0 %v10854
  %v10856 = vpop.f32.mrb[0].mxu0
  %v10857 = vadd.f32 %v10760, %v10856
  %v10858 = vpop.f32.mrb[0].mxu0
  %10859 = vdwg.mxu0
  %10860 = vmatprep.subr.mxu0 0.0
  %v10861 = vand.u32 %v10370, 4294901760
  %v10862 = vsub.f32 %v10370, %v10861
  %v10863 = vand.u32 %v10862, 4294901760
  %10864 = vmatpush1.msra.mxu0 %v10863
  %10865 = vmatprep.subr.mxu0 0.0
  %v10866 = vand.u32 %v10371, 4294901760
  %v10867 = vsub.f32 %v10371, %v10866
  %v10868 = vand.u32 %v10867, 4294901760
  %10869 = vmatpush1.msra.mxu0 %v10868
  %10870 = vmatprep.subr.mxu0 0.0
  %v10871 = vand.u32 %v10372, 4294901760
  %v10872 = vsub.f32 %v10372, %v10871
  %v10873 = vand.u32 %v10872, 4294901760
  %10874 = vmatpush1.msra.mxu0 %v10873
  %10875 = vmatprep.subr.mxu0 0.0
  %v10876 = vand.u32 %v10373, 4294901760
  %v10877 = vsub.f32 %v10373, %v10876
  %v10878 = vand.u32 %v10877, 4294901760
  %10879 = vmatpush1.msra.mxu0 %v10878
  %10880 = vmatprep.subr.mxu0 0.0
  %v10881 = vand.u32 %v10374, 4294901760
  %v10882 = vsub.f32 %v10374, %v10881
  %v10883 = vand.u32 %v10882, 4294901760
  %10884 = vmatpush1.msra.mxu0 %v10883
  %10885 = vmatprep.subr.mxu0 0.0
  %v10886 = vand.u32 %v10375, 4294901760
  %v10887 = vsub.f32 %v10375, %v10886
  %v10888 = vand.u32 %v10887, 4294901760
  %10889 = vmatpush1.msra.mxu0 %v10888
  %10890 = vmatprep.subr.mxu0 0.0
  %v10891 = vand.u32 %v10376, 4294901760
  %v10892 = vsub.f32 %v10376, %v10891
  %v10893 = vand.u32 %v10892, 4294901760
  %10894 = vmatpush1.msra.mxu0 %v10893
  %10895 = vmatprep.subr.mxu0 0.0
  %v10896 = vand.u32 %v10377, 4294901760
  %v10897 = vsub.f32 %v10377, %v10896
  %v10898 = vand.u32 %v10897, 4294901760
  %10899 = vmatpush1.msra.mxu0 %v10898
  %10900 = vmatprep.subr.mxu0 0.0
  %v10901 = vand.u32 %v10378, 4294901760
  %v10902 = vsub.f32 %v10378, %v10901
  %v10903 = vand.u32 %v10902, 4294901760
  %10904 = vmatpush1.msra.mxu0 %v10903
  %10905 = vmatprep.subr.mxu0 0.0
  %v10906 = vand.u32 %v10379, 4294901760
  %v10907 = vsub.f32 %v10379, %v10906
  %v10908 = vand.u32 %v10907, 4294901760
  %10909 = vmatpush1.msra.mxu0 %v10908
  %10910 = vmatprep.subr.mxu0 0.0
  %v10911 = vand.u32 %v10380, 4294901760
  %v10912 = vsub.f32 %v10380, %v10911
  %v10913 = vand.u32 %v10912, 4294901760
  %10914 = vmatpush1.msra.mxu0 %v10913
  %10915 = vmatprep.subr.mxu0 0.0
  %v10916 = vand.u32 %v10381, 4294901760
  %v10917 = vsub.f32 %v10381, %v10916
  %v10918 = vand.u32 %v10917, 4294901760
  %10919 = vmatpush1.msra.mxu0 %v10918
  %10920 = vmatprep.subr.mxu0 0.0
  %v10921 = vand.u32 %v10382, 4294901760
  %v10922 = vsub.f32 %v10382, %v10921
  %v10923 = vand.u32 %v10922, 4294901760
  %10924 = vmatpush1.msra.mxu0 %v10923
  %10925 = vmatprep.subr.mxu0 0.0
  %v10926 = vand.u32 %v10383, 4294901760
  %v10927 = vsub.f32 %v10383, %v10926
  %v10928 = vand.u32 %v10927, 4294901760
  %10929 = vmatpush1.msra.mxu0 %v10928
  %10930 = vmatprep.subr.mxu0 0.0
  %v10931 = vand.u32 %v10384, 4294901760
  %v10932 = vsub.f32 %v10384, %v10931
  %v10933 = vand.u32 %v10932, 4294901760
  %10934 = vmatpush1.msra.mxu0 %v10933
  %10935 = vmatprep.subr.mxu0 0.0
  %v10936 = vand.u32 %v10385, 4294901760
  %v10937 = vsub.f32 %v10385, %v10936
  %v10938 = vand.u32 %v10937, 4294901760
  %10939 = vmatpush1.msra.mxu0 %v10938
  %10940 = vmatprep.subr.mxu0 0.0
  %10941 = vmatpush1.msra.mxu0 0.0
  %10942 = vmatprep.subr.mxu0 0.0
  %10943 = vmatpush1.msra.mxu0 0.0
  %10944 = vmatprep.subr.mxu0 0.0
  %10945 = vmatpush1.msra.mxu0 0.0
  %10946 = vmatprep.subr.mxu0 0.0
  %10947 = vmatpush1.msra.mxu0 0.0
  %10948 = vmatprep.subr.mxu0 0.0
  %10949 = vmatpush1.msra.mxu0 0.0
  %10950 = vmatprep.subr.mxu0 0.0
  %10951 = vmatpush1.msra.mxu0 0.0
  %10952 = vmatprep.subr.mxu0 0.0
  %10953 = vmatpush1.msra.mxu0 0.0
  %10954 = vmatprep.subr.mxu0 0.0
  %10955 = vmatpush1.msra.mxu0 0.0
  %10956 = vmatprep.subr.mxu0 0.0
  %10957 = vmatpush1.msra.mxu0 0.0
  %10958 = vmatprep.subr.mxu0 0.0
  %10959 = vmatpush1.msra.mxu0 0.0
  %10960 = vmatprep.subr.mxu0 0.0
  %10961 = vmatpush1.msra.mxu0 0.0
  %10962 = vmatprep.subr.mxu0 0.0
  %10963 = vmatpush1.msra.mxu0 0.0
  %10964 = vmatprep.subr.mxu0 0.0
  %10965 = vmatpush1.msra.mxu0 0.0
  %10966 = vmatprep.subr.mxu0 0.0
  %10967 = vmatpush1.msra.mxu0 0.0
  %10968 = vmatprep.subr.mxu0 0.0
  %10969 = vmatpush1.msra.mxu0 0.0
  %10970 = vmatprep.subr.mxu0 0.0
  %10971 = vmatpush1.msra.mxu0 0.0
  %10972 = vmatprep.mubr.f32.mxu0 0.0
  %v10973 = vand.u32 %v10367, 4294901760
  %10974 = vmatmul.mubr.f32.gmra.mrb[0].mxu0 %v10973
  %v10975 = vpop.f32.mrb[0].mxu0
  %v10976 = vadd.f32 %v10849, %v10975
  %v10977 = vpop.f32.mrb[0].mxu0
  %10978 = vmatprep.mubr.f32.mxu0 0.0
  %v10979 = vand.u32 %v10368, 4294901760
  %10980 = vmatmul.mubr.f32.gmra.mrb[0].mxu0 %v10979
  %v10981 = vpop.f32.mrb[0].mxu0
  %v10982 = vadd.f32 %v10857, %v10981
  %v10983 = vpop.f32.mrb[0].mxu0
  %10984 = vdwg.mxu0
  %10985 = vmatprep.subr.mxu0 0.0
  %v10986 = vand.u32 %v10370, 4294901760
  %10987 = vmatpush1.msra.mxu0 %v10986
  %10988 = vmatprep.subr.mxu0 0.0
  %v10989 = vand.u32 %v10371, 4294901760
  %10990 = vmatpush1.msra.mxu0 %v10989
  %10991 = vmatprep.subr.mxu0 0.0
  %v10992 = vand.u32 %v10372, 4294901760
  %10993 = vmatpush1.msra.mxu0 %v10992
  %10994 = vmatprep.subr.mxu0 0.0
  %v10995 = vand.u32 %v10373, 4294901760
  %10996 = vmatpush1.msra.mxu0 %v10995
  %10997 = vmatprep.subr.mxu0 0.0
  %v10998 = vand.u32 %v10374, 4294901760
  %10999 = vmatpush1.msra.mxu0 %v10998
  %11000 = vmatprep.subr.mxu0 0.0
  %v11001 = vand.u32 %v10375, 4294901760
  %11002 = vmatpush1.msra.mxu0 %v11001
  %11003 = vmatprep.subr.mxu0 0.0
  %v11004 = vand.u32 %v10376, 4294901760
  %11005 = vmatpush1.msra.mxu0 %v11004
  %11006 = vmatprep.subr.mxu0 0.0
  %v11007 = vand.u32 %v10377, 4294901760
  %11008 = vmatpush1.msra.mxu0 %v11007
  %11009 = vmatprep.subr.mxu0 0.0
  %v11010 = vand.u32 %v10378, 4294901760
  %11011 = vmatpush1.msra.mxu0 %v11010
  %11012 = vmatprep.subr.mxu0 0.0
  %v11013 = vand.u32 %v10379, 4294901760
  %11014 = vmatpush1.msra.mxu0 %v11013
  %11015 = vmatprep.subr.mxu0 0.0
  %v11016 = vand.u32 %v10380, 4294901760
  %11017 = vmatpush1.msra.mxu0 %v11016
  %11018 = vmatprep.subr.mxu0 0.0
  %v11019 = vand.u32 %v10381, 4294901760
  %11020 = vmatpush1.msra.mxu0 %v11019
  %11021 = vmatprep.subr.mxu0 0.0
  %v11022 = vand.u32 %v10382, 4294901760
  %11023 = vmatpush1.msra.mxu0 %v11022
  %11024 = vmatprep.subr.mxu0 0.0
  %v11025 = vand.u32 %v10383, 4294901760
  %11026 = vmatpush1.msra.mxu0 %v11025
  %11027 = vmatprep.subr.mxu0 0.0
  %v11028 = vand.u32 %v10384, 4294901760
  %11029 = vmatpush1.msra.mxu0 %v11028
  %11030 = vmatprep.subr.mxu0 0.0
  %v11031 = vand.u32 %v10385, 4294901760
  %11032 = vmatpush1.msra.mxu0 %v11031
  %11033 = vmatprep.subr.mxu0 0.0
  %11034 = vmatpush1.msra.mxu0 0.0
  %11035 = vmatprep.subr.mxu0 0.0
  %11036 = vmatpush1.msra.mxu0 0.0
  %11037 = vmatprep.subr.mxu0 0.0
  %11038 = vmatpush1.msra.mxu0 0.0
  %11039 = vmatprep.subr.mxu0 0.0
  %11040 = vmatpush1.msra.mxu0 0.0
  %11041 = vmatprep.subr.mxu0 0.0
  %11042 = vmatpush1.msra.mxu0 0.0
  %11043 = vmatprep.subr.mxu0 0.0
  %11044 = vmatpush1.msra.mxu0 0.0
  %11045 = vmatprep.subr.mxu0 0.0
  %11046 = vmatpush1.msra.mxu0 0.0
  %11047 = vmatprep.subr.mxu0 0.0
  %11048 = vmatpush1.msra.mxu0 0.0
  %11049 = vmatprep.subr.mxu0 0.0
  %11050 = vmatpush1.msra.mxu0 0.0
  %11051 = vmatprep.subr.mxu0 0.0
  %11052 = vmatpush1.msra.mxu0 0.0
  %11053 = vmatprep.subr.mxu0 0.0
  %11054 = vmatpush1.msra.mxu0 0.0
  %11055 = vmatprep.subr.mxu0 0.0
  %11056 = vmatpush1.msra.mxu0 0.0
  %11057 = vmatprep.subr.mxu0 0.0
  %11058 = vmatpush1.msra.mxu0 0.0
  %11059 = vmatprep.subr.mxu0 0.0
  %11060 = vmatpush1.msra.mxu0 0.0
  %11061 = vmatprep.subr.mxu0 0.0
  %11062 = vmatpush1.msra.mxu0 0.0
  %11063 = vmatprep.subr.mxu0 0.0
  %11064 = vmatpush1.msra.mxu0 0.0
  %11065 = vmatprep.mubr.f32.mxu0 0.0
  %v11066 = vand.u32 %v10367, 4294901760
  %11067 = vmatmul.mubr.f32.gmra.mrb[0].mxu0 %v11066
  %v11068 = vpop.f32.mrb[0].mxu0
  %v11069 = vadd.f32 %v10976, %v11068
  %v11070 = vpop.f32.mrb[0].mxu0
  %11071 = vmatprep.mubr.f32.mxu0 0.0
  %v11072 = vand.u32 %v10368, 4294901760
  %11073 = vmatmul.mubr.f32.gmra.mrb[0].mxu0 %v11072
  %v11074 = vpop.f32.mrb[0].mxu0
  %v11075 = vadd.f32 %v10982, %v11074
  %v11076 = vpop.f32.mrb[0].mxu0
  %11077 = vdwg.mxu0
  %v11078 = vadd.f32 %v9724, %v11069
  %v11079 = vadd.f32 %v9725, %v11075
  %v11080 = vld [vmem:[%s13] sm:$0x1]
  %v11081 = vld [vmem:[%s14] sm:$0x1]
  %v11082 = vsel %vm80, %v7816, 0.0
  %11083 = vadd.xlane.f32.xlu0 %v11082
  %v11084 = vpop.xlane.xlu0 %11083
  %v11085 = vsel %vm80, %v7817, 0.0
  %11086 = vadd.xlane.f32.xlu0 %v11085
  %v11087 = vpop.xlane.xlu0 %11086
  %v11088 = vsel %vm80, %v11078, 0.0
  %11089 = vadd.xlane.f32.xlu0 %v11088
  %v11090 = vpop.xlane.xlu0 %11089
  %v11091 = vsel %vm80, %v11079, 0.0
  %11092 = vadd.xlane.f32.xlu0 %v11091
  %v11093 = vpop.xlane.xlu0 %11092
  %v11094 = vmul.f32 %v11084, %v637
  %v11095 = vmul.f32 %v11087, %v637
  %v11096 = vmul.f32 %v11090, %v637
  %v11097 = vmul.f32 %v11093, %v637
  %v11098 = vsub.f32 %v7816, %v11094
  %v11099 = vsub.f32 %v7817, %v11095
  %v11100 = vsub.f32 %v11078, %v11096
  %v11101 = vsub.f32 %v11079, %v11097
  %v11102 = vmul.f32 %v11098, %v11098
  %v11103 = vmul.f32 %v11099, %v11099
  %v11104 = vmul.f32 %v11100, %v11100
  %v11105 = vmul.f32 %v11101, %v11101
  %v11106 = vsel %vm80, %v11102, 0.0
  %11107 = vadd.xlane.f32.xlu0 %v11106
  %v11108 = vpop.xlane.xlu0 %11107
  %v11109 = vsel %vm80, %v11103, 0.0
  %11110 = vadd.xlane.f32.xlu0 %v11109
  %v11111 = vpop.xlane.xlu0 %11110
  %v11112 = vsel %vm80, %v11104, 0.0
  %11113 = vadd.xlane.f32.xlu0 %v11112
  %v11114 = vpop.xlane.xlu0 %11113
  %v11115 = vsel %vm80, %v11105, 0.0
  %11116 = vadd.xlane.f32.xlu0 %v11115
  %v11117 = vpop.xlane.xlu0 %11116
  %v11118 = vmul.f32 %v11108, %v637
  %v11119 = vmul.f32 %v11111, %v637
  %v11120 = vmul.f32 %v11114, %v637
  %v11121 = vmul.f32 %v11117, %v637
  %v11122 = vadd.f32 %v11118, 1e-05
  %v11123 = vadd.f32 %v11119, 1e-05
  %v11124 = vadd.f32 %v11120, 1e-05
  %v11125 = vadd.f32 %v11121, 1e-05
  %v11126 = vrsqrt.pop %v11122
  %v11127 = vrsqrt.pop %v11123
  %v11128 = vrsqrt.pop %v11124
  %v11129 = vrsqrt.pop %v11125
  %v11130 = vmul.f32 %v11098, %v11126
  %v11131 = vmul.f32 %v11099, %v11127
  %v11132 = vmul.f32 %v11100, %v11128
  %v11133 = vmul.f32 %v11101, %v11129
  %v11135 = vlaneseq
  %v11136 = vshrl.u32 %v11135, 7
  %v11137 = vsub.s32 0, %v11136
  %v11138 = vrot.slane %v11080, %v11137
  %v11140 = vmul.f32 %v11130, %v11138
  %v11141 = vmul.f32 %v11131, %v11138
  %v11142 = vmul.f32 %v11132, %v11138
  %v11143 = vmul.f32 %v11133, %v11138
  %v11145 = vlaneseq
  %v11146 = vshrl.u32 %v11145, 7
  %v11147 = vsub.s32 0, %v11146
  %v11148 = vrot.slane %v11081, %v11147
  %v11150 = vadd.f32 %v11140, %v11148
  %v11151 = vadd.f32 %v11141, %v11148
  %v11152 = vadd.f32 %v11142, %v11148
  %v11153 = vadd.f32 %v11143, %v11148
  %v11154 = vld [vmem:[%s15] sm:$0xff]
  %v11155 = vld [vmem:[%s15 + $0x8] sm:$0xff]
  %v11156 = vld [vmem:[%s15 + $0x10] sm:$0xff]
  %v11157 = vld [vmem:[%s15 + $0x18] sm:$0xff]
  %v11158 = vld [vmem:[%s16] sm:$0x1]
  %v11160 = vlaneseq
  %v11161 = vshrl.u32 %v11160, 7
  %v11162 = vsub.s32 0, %v11161
  %v11163 = vrot.slane %v11158, %v11162
  %v11166 = vsel %vm80, %v11150, 0
  %v11169 = vsel %vm80, %v11151, 0
  %v11172 = vsel %vm80, %v11152, 0
  %v11175 = vsel %vm80, %v11153, 0
  %11177 = vmatprep.subr.mxu0 0.0
  %v11178 = vand.u32 %v11154, 4294901760
  %11179 = vmatpush1.msra.mxu0 %v11178
  %11180 = vmatprep.subr.mxu0 0.0
  %v11181 = vand.u32 %v11155, 4294901760
  %11182 = vmatpush1.msra.mxu0 %v11181
  %11183 = vmatprep.subr.mxu0 0.0
  %v11184 = vand.u32 %v11156, 4294901760
  %11185 = vmatpush1.msra.mxu0 %v11184
  %11186 = vmatprep.subr.mxu0 0.0
  %v11187 = vand.u32 %v11157, 4294901760
  %11188 = vmatpush1.msra.mxu0 %v11187
  %11189 = vmatprep.subr.mxu0 0.0
  %11190 = vmatpush1.msra.mxu0 0.0
  %11191 = vmatprep.subr.mxu0 0.0
  %11192 = vmatpush1.msra.mxu0 0.0
  %11193 = vmatprep.subr.mxu0 0.0
  %11194 = vmatpush1.msra.mxu0 0.0
  %11195 = vmatprep.subr.mxu0 0.0
  %11196 = vmatpush1.msra.mxu0 0.0
  %11197 = vmatprep.subr.mxu0 0.0
  %11198 = vmatpush1.msra.mxu0 0.0
  %11199 = vmatprep.subr.mxu0 0.0
  %11200 = vmatpush1.msra.mxu0 0.0
  %11201 = vmatprep.subr.mxu0 0.0
  %11202 = vmatpush1.msra.mxu0 0.0
  %11203 = vmatprep.subr.mxu0 0.0
  %11204 = vmatpush1.msra.mxu0 0.0
  %11205 = vmatprep.subr.mxu0 0.0
  %11206 = vmatpush1.msra.mxu0 0.0
  %11207 = vmatprep.subr.mxu0 0.0
  %11208 = vmatpush1.msra.mxu0 0.0
  %11209 = vmatprep.subr.mxu0 0.0
  %11210 = vmatpush1.msra.mxu0 0.0
  %11211 = vmatprep.subr.mxu0 0.0
  %11212 = vmatpush1.msra.mxu0 0.0
  %11213 = vmatprep.subr.mxu0 0.0
  %11214 = vmatpush1.msra.mxu0 0.0
  %11215 = vmatprep.subr.mxu0 0.0
  %11216 = vmatpush1.msra.mxu0 0.0
  %11217 = vmatprep.subr.mxu0 0.0
  %11218 = vmatpush1.msra.mxu0 0.0
  %11219 = vmatprep.subr.mxu0 0.0
  %11220 = vmatpush1.msra.mxu0 0.0
  %11221 = vmatprep.subr.mxu0 0.0
  %11222 = vmatpush1.msra.mxu0 0.0
  %11223 = vmatprep.subr.mxu0 0.0
  %11224 = vmatpush1.msra.mxu0 0.0
  %11225 = vmatprep.subr.mxu0 0.0
  %11226 = vmatpush1.msra.mxu0 0.0
  %11227 = vmatprep.subr.mxu0 0.0
  %11228 = vmatpush1.msra.mxu0 0.0
  %11229 = vmatprep.subr.mxu0 0.0
  %11230 = vmatpush1.msra.mxu0 0.0
  %11231 = vmatprep.subr.mxu0 0.0
  %11232 = vmatpush1.msra.mxu0 0.0
  %11233 = vmatprep.subr.mxu0 0.0
  %11234 = vmatpush1.msra.mxu0 0.0
  %11235 = vmatprep.subr.mxu0 0.0
  %11236 = vmatpush1.msra.mxu0 0.0
  %11237 = vmatprep.subr.mxu0 0.0
  %11238 = vmatpush1.msra.mxu0 0.0
  %11239 = vmatprep.subr.mxu0 0.0
  %11240 = vmatpush1.msra.mxu0 0.0
  %11241 = vmatprep.subr.mxu0 0.0
  %11242 = vmatpush1.msra.mxu0 0.0
  %11243 = vmatprep.subr.mxu0 0.0
  %11244 = vmatpush1.msra.mxu0 0.0
  %11245 = vmatprep.mubr.f32.mxu0 0.0
  %v11246 = vand.u32 %v11166, 4294901760
  %v11247 = vsub.f32 %v11166, %v11246
  %v11248 = vand.u32 %v11247, 4294901760
  %v11249 = vsub.f32 %v11247, %v11248
  %v11250 = vand.u32 %v11249, 4294901760
  %11251 = vmatmul.mubr.f32.gmra.mrb[0].mxu0 %v11250
  %v11252 = vpop.f32.mrb[0].mxu0
  %v11253 = vadd.f32 %v11163, %v11252
  %v11254 = vpop.f32.mrb[0].mxu0
  %11255 = vmatprep.mubr.f32.mxu0 0.0
  %v11256 = vand.u32 %v11169, 4294901760
  %v11257 = vsub.f32 %v11169, %v11256
  %v11258 = vand.u32 %v11257, 4294901760
  %v11259 = vsub.f32 %v11257, %v11258
  %v11260 = vand.u32 %v11259, 4294901760
  %11261 = vmatmul.mubr.f32.gmra.mrb[0].mxu0 %v11260
  %v11262 = vpop.f32.mrb[0].mxu0
  %v11263 = vadd.f32 %v11163, %v11262
  %v11264 = vpop.f32.mrb[0].mxu0
  %11265 = vmatprep.mubr.f32.mxu0 0.0
  %v11266 = vand.u32 %v11172, 4294901760
  %v11267 = vsub.f32 %v11172, %v11266
  %v11268 = vand.u32 %v11267, 4294901760
  %v11269 = vsub.f32 %v11267, %v11268
  %v11270 = vand.u32 %v11269, 4294901760
  %11271 = vmatmul.mubr.f32.gmra.mrb[0].mxu0 %v11270
  %v11272 = vpop.f32.mrb[0].mxu0
  %v11273 = vadd.f32 %v11163, %v11272
  %v11274 = vpop.f32.mrb[0].mxu0
  %11275 = vmatprep.mubr.f32.mxu0 0.0
  %v11276 = vand.u32 %v11175, 4294901760
  %v11277 = vsub.f32 %v11175, %v11276
  %v11278 = vand.u32 %v11277, 4294901760
  %v11279 = vsub.f32 %v11277, %v11278
  %v11280 = vand.u32 %v11279, 4294901760
  %11281 = vmatmul.mubr.f32.gmra.mrb[0].mxu0 %v11280
  %v11282 = vpop.f32.mrb[0].mxu0
  %v11283 = vadd.f32 %v11163, %v11282
  %v11284 = vpop.f32.mrb[0].mxu0
  %11285 = vdwg.mxu0
  %11286 = vmatprep.subr.mxu0 0.0
  %v11287 = vand.u32 %v11154, 4294901760
  %v11288 = vsub.f32 %v11154, %v11287
  %v11289 = vand.u32 %v11288, 4294901760
  %v11290 = vsub.f32 %v11288, %v11289
  %v11291 = vand.u32 %v11290, 4294901760
  %11292 = vmatpush1.msra.mxu0 %v11291
  %11293 = vmatprep.subr.mxu0 0.0
  %v11294 = vand.u32 %v11155, 4294901760
  %v11295 = vsub.f32 %v11155, %v11294
  %v11296 = vand.u32 %v11295, 4294901760
  %v11297 = vsub.f32 %v11295, %v11296
  %v11298 = vand.u32 %v11297, 4294901760
  %11299 = vmatpush1.msra.mxu0 %v11298
  %11300 = vmatprep.subr.mxu0 0.0
  %v11301 = vand.u32 %v11156, 4294901760
  %v11302 = vsub.f32 %v11156, %v11301
  %v11303 = vand.u32 %v11302, 4294901760
  %v11304 = vsub.f32 %v11302, %v11303
  %v11305 = vand.u32 %v11304, 4294901760
  %11306 = vmatpush1.msra.mxu0 %v11305
  %11307 = vmatprep.subr.mxu0 0.0
  %v11308 = vand.u32 %v11157, 4294901760
  %v11309 = vsub.f32 %v11157, %v11308
  %v11310 = vand.u32 %v11309, 4294901760
  %v11311 = vsub.f32 %v11309, %v11310
  %v11312 = vand.u32 %v11311, 4294901760
  %11313 = vmatpush1.msra.mxu0 %v11312
  %11314 = vmatprep.subr.mxu0 0.0
  %11315 = vmatpush1.msra.mxu0 0.0
  %11316 = vmatprep.subr.mxu0 0.0
  %11317 = vmatpush1.msra.mxu0 0.0
  %11318 = vmatprep.subr.mxu0 0.0
  %11319 = vmatpush1.msra.mxu0 0.0
  %11320 = vmatprep.subr.mxu0 0.0
  %11321 = vmatpush1.msra.mxu0 0.0
  %11322 = vmatprep.subr.mxu0 0.0
  %11323 = vmatpush1.msra.mxu0 0.0
  %11324 = vmatprep.subr.mxu0 0.0
  %11325 = vmatpush1.msra.mxu0 0.0
  %11326 = vmatprep.subr.mxu0 0.0
  %11327 = vmatpush1.msra.mxu0 0.0
  %11328 = vmatprep.subr.mxu0 0.0
  %11329 = vmatpush1.msra.mxu0 0.0
  %11330 = vmatprep.subr.mxu0 0.0
  %11331 = vmatpush1.msra.mxu0 0.0
  %11332 = vmatprep.subr.mxu0 0.0
  %11333 = vmatpush1.msra.mxu0 0.0
  %11334 = vmatprep.subr.mxu0 0.0
  %11335 = vmatpush1.msra.mxu0 0.0
  %11336 = vmatprep.subr.mxu0 0.0
  %11337 = vmatpush1.msra.mxu0 0.0
  %11338 = vmatprep.subr.mxu0 0.0
  %11339 = vmatpush1.msra.mxu0 0.0
  %11340 = vmatprep.subr.mxu0 0.0
  %11341 = vmatpush1.msra.mxu0 0.0
  %11342 = vmatprep.subr.mxu0 0.0
  %11343 = vmatpush1.msra.mxu0 0.0
  %11344 = vmatprep.subr.mxu0 0.0
  %11345 = vmatpush1.msra.mxu0 0.0
  %11346 = vmatprep.subr.mxu0 0.0
  %11347 = vmatpush1.msra.mxu0 0.0
  %11348 = vmatprep.subr.mxu0 0.0
  %11349 = vmatpush1.msra.mxu0 0.0
  %11350 = vmatprep.subr.mxu0 0.0
  %11351 = vmatpush1.msra.mxu0 0.0
  %11352 = vmatprep.subr.mxu0 0.0
  %11353 = vmatpush1.msra.mxu0 0.0
  %11354 = vmatprep.subr.mxu0 0.0
  %11355 = vmatpush1.msra.mxu0 0.0
  %11356 = vmatprep.subr.mxu0 0.0
  %11357 = vmatpush1.msra.mxu0 0.0
  %11358 = vmatprep.subr.mxu0 0.0
  %11359 = vmatpush1.msra.mxu0 0.0
  %11360 = vmatprep.subr.mxu0 0.0
  %11361 = vmatpush1.msra.mxu0 0.0
  %11362 = vmatprep.subr.mxu0 0.0
  %11363 = vmatpush1.msra.mxu0 0.0
  %11364 = vmatprep.subr.mxu0 0.0
  %11365 = vmatpush1.msra.mxu0 0.0
  %11366 = vmatprep.subr.mxu0 0.0
  %11367 = vmatpush1.msra.mxu0 0.0
  %11368 = vmatprep.subr.mxu0 0.0
  %11369 = vmatpush1.msra.mxu0 0.0
  %11370 = vmatprep.mubr.f32.mxu0 0.0
  %v11371 = vand.u32 %v11166, 4294901760
  %11372 = vmatmul.mubr.f32.gmra.mrb[0].mxu0 %v11371
  %v11373 = vpop.f32.mrb[0].mxu0
  %v11374 = vadd.f32 %v11253, %v11373
  %v11375 = vpop.f32.mrb[0].mxu0
  %11376 = vmatprep.mubr.f32.mxu0 0.0
  %v11377 = vand.u32 %v11169, 4294901760
  %11378 = vmatmul.mubr.f32.gmra.mrb[0].mxu0 %v11377
  %v11379 = vpop.f32.mrb[0].mxu0
  %v11380 = vadd.f32 %v11263, %v11379
  %v11381 = vpop.f32.mrb[0].mxu0
  %11382 = vmatprep.mubr.f32.mxu0 0.0
  %v11383 = vand.u32 %v11172, 4294901760
  %11384 = vmatmul.mubr.f32.gmra.mrb[0].mxu0 %v11383
  %v11385 = vpop.f32.mrb[0].mxu0
  %v11386 = vadd.f32 %v11273, %v11385
  %v11387 = vpop.f32.mrb[0].mxu0
  %11388 = vmatprep.mubr.f32.mxu0 0.0
  %v11389 = vand.u32 %v11175, 4294901760
  %11390 = vmatmul.mubr.f32.gmra.mrb[0].mxu0 %v11389
  %v11391 = vpop.f32.mrb[0].mxu0
  %v11392 = vadd.f32 %v11283, %v11391
  %v11393 = vpop.f32.mrb[0].mxu0
  %11394 = vdwg.mxu0
  %11395 = vmatprep.subr.mxu0 0.0
  %v11396 = vand.u32 %v11154, 4294901760
  %v11397 = vsub.f32 %v11154, %v11396
  %11398 = vmatpush1.msra.mxu0 %v11397
  %11399 = vmatprep.subr.mxu0 0.0
  %v11400 = vand.u32 %v11155, 4294901760
  %v11401 = vsub.f32 %v11155, %v11400
  %11402 = vmatpush1.msra.mxu0 %v11401
  %11403 = vmatprep.subr.mxu0 0.0
  %v11404 = vand.u32 %v11156, 4294901760
  %v11405 = vsub.f32 %v11156, %v11404
  %11406 = vmatpush1.msra.mxu0 %v11405
  %11407 = vmatprep.subr.mxu0 0.0
  %v11408 = vand.u32 %v11157, 4294901760
  %v11409 = vsub.f32 %v11157, %v11408
  %11410 = vmatpush1.msra.mxu0 %v11409
  %11411 = vmatprep.subr.mxu0 0.0
  %11412 = vmatpush1.msra.mxu0 0.0
  %11413 = vmatprep.subr.mxu0 0.0
  %11414 = vmatpush1.msra.mxu0 0.0
  %11415 = vmatprep.subr.mxu0 0.0
  %11416 = vmatpush1.msra.mxu0 0.0
  %11417 = vmatprep.subr.mxu0 0.0
  %11418 = vmatpush1.msra.mxu0 0.0
  %11419 = vmatprep.subr.mxu0 0.0
  %11420 = vmatpush1.msra.mxu0 0.0
  %11421 = vmatprep.subr.mxu0 0.0
  %11422 = vmatpush1.msra.mxu0 0.0
  %11423 = vmatprep.subr.mxu0 0.0
  %11424 = vmatpush1.msra.mxu0 0.0
  %11425 = vmatprep.subr.mxu0 0.0
  %11426 = vmatpush1.msra.mxu0 0.0
  %11427 = vmatprep.subr.mxu0 0.0
  %11428 = vmatpush1.msra.mxu0 0.0
  %11429 = vmatprep.subr.mxu0 0.0
  %11430 = vmatpush1.msra.mxu0 0.0
  %11431 = vmatprep.subr.mxu0 0.0
  %11432 = vmatpush1.msra.mxu0 0.0
  %11433 = vmatprep.subr.mxu0 0.0
  %11434 = vmatpush1.msra.mxu0 0.0
  %11435 = vmatprep.subr.mxu0 0.0
  %11436 = vmatpush1.msra.mxu0 0.0
  %11437 = vmatprep.subr.mxu0 0.0
  %11438 = vmatpush1.msra.mxu0 0.0
  %11439 = vmatprep.subr.mxu0 0.0
  %11440 = vmatpush1.msra.mxu0 0.0
  %11441 = vmatprep.subr.mxu0 0.0
  %11442 = vmatpush1.msra.mxu0 0.0
  %11443 = vmatprep.subr.mxu0 0.0
  %11444 = vmatpush1.msra.mxu0 0.0
  %11445 = vmatprep.subr.mxu0 0.0
  %11446 = vmatpush1.msra.mxu0 0.0
  %11447 = vmatprep.subr.mxu0 0.0
  %11448 = vmatpush1.msra.mxu0 0.0
  %11449 = vmatprep.subr.mxu0 0.0
  %11450 = vmatpush1.msra.mxu0 0.0
  %11451 = vmatprep.subr.mxu0 0.0
  %11452 = vmatpush1.msra.mxu0 0.0
  %11453 = vmatprep.subr.mxu0 0.0
  %11454 = vmatpush1.msra.mxu0 0.0
  %11455 = vmatprep.subr.mxu0 0.0
  %11456 = vmatpush1.msra.mxu0 0.0
  %11457 = vmatprep.subr.mxu0 0.0
  %11458 = vmatpush1.msra.mxu0 0.0
  %11459 = vmatprep.subr.mxu0 0.0
  %11460 = vmatpush1.msra.mxu0 0.0
  %11461 = vmatprep.subr.mxu0 0.0
  %11462 = vmatpush1.msra.mxu0 0.0
  %11463 = vmatprep.subr.mxu0 0.0
  %11464 = vmatpush1.msra.mxu0 0.0
  %11465 = vmatprep.subr.mxu0 0.0
  %11466 = vmatpush1.msra.mxu0 0.0
  %11467 = vmatprep.mubr.f32.mxu0 0.0
  %v11468 = vand.u32 %v11166, 4294901760
  %v11469 = vsub.f32 %v11166, %v11468
  %11470 = vmatmul.mubr.f32.gmra.mrb[0].mxu0 %v11469
  %v11471 = vpop.f32.mrb[0].mxu0
  %v11472 = vadd.f32 %v11374, %v11471
  %v11473 = vpop.f32.mrb[0].mxu0
  %11474 = vmatprep.mubr.f32.mxu0 0.0
  %v11475 = vand.u32 %v11169, 4294901760
  %v11476 = vsub.f32 %v11169, %v11475
  %11477 = vmatmul.mubr.f32.gmra.mrb[0].mxu0 %v11476
  %v11478 = vpop.f32.mrb[0].mxu0
  %v11479 = vadd.f32 %v11380, %v11478
  %v11480 = vpop.f32.mrb[0].mxu0
  %11481 = vmatprep.mubr.f32.mxu0 0.0
  %v11482 = vand.u32 %v11172, 4294901760
  %v11483 = vsub.f32 %v11172, %v11482
  %11484 = vmatmul.mubr.f32.gmra.mrb[0].mxu0 %v11483
  %v11485 = vpop.f32.mrb[0].mxu0
  %v11486 = vadd.f32 %v11386, %v11485
  %v11487 = vpop.f32.mrb[0].mxu0
  %11488 = vmatprep.mubr.f32.mxu0 0.0
  %v11489 = vand.u32 %v11175, 4294901760
  %v11490 = vsub.f32 %v11175, %v11489
  %11491 = vmatmul.mubr.f32.gmra.mrb[0].mxu0 %v11490
  %v11492 = vpop.f32.mrb[0].mxu0
  %v11493 = vadd.f32 %v11392, %v11492
  %v11494 = vpop.f32.mrb[0].mxu0
  %11495 = vdwg.mxu0
  %11496 = vmatprep.subr.mxu0 0.0
  %v11497 = vand.u32 %v11154, 4294901760
  %11498 = vmatpush1.msra.mxu0 %v11497
  %11499 = vmatprep.subr.mxu0 0.0
  %v11500 = vand.u32 %v11155, 4294901760
  %11501 = vmatpush1.msra.mxu0 %v11500
  %11502 = vmatprep.subr.mxu0 0.0
  %v11503 = vand.u32 %v11156, 4294901760
  %11504 = vmatpush1.msra.mxu0 %v11503
  %11505 = vmatprep.subr.mxu0 0.0
  %v11506 = vand.u32 %v11157, 4294901760
  %11507 = vmatpush1.msra.mxu0 %v11506
  %11508 = vmatprep.subr.mxu0 0.0
  %11509 = vmatpush1.msra.mxu0 0.0
  %11510 = vmatprep.subr.mxu0 0.0
  %11511 = vmatpush1.msra.mxu0 0.0
  %11512 = vmatprep.subr.mxu0 0.0
  %11513 = vmatpush1.msra.mxu0 0.0
  %11514 = vmatprep.subr.mxu0 0.0
  %11515 = vmatpush1.msra.mxu0 0.0
  %11516 = vmatprep.subr.mxu0 0.0
  %11517 = vmatpush1.msra.mxu0 0.0
  %11518 = vmatprep.subr.mxu0 0.0
  %11519 = vmatpush1.msra.mxu0 0.0
  %11520 = vmatprep.subr.mxu0 0.0
  %11521 = vmatpush1.msra.mxu0 0.0
  %11522 = vmatprep.subr.mxu0 0.0
  %11523 = vmatpush1.msra.mxu0 0.0
  %11524 = vmatprep.subr.mxu0 0.0
  %11525 = vmatpush1.msra.mxu0 0.0
  %11526 = vmatprep.subr.mxu0 0.0
  %11527 = vmatpush1.msra.mxu0 0.0
  %11528 = vmatprep.subr.mxu0 0.0
  %11529 = vmatpush1.msra.mxu0 0.0
  %11530 = vmatprep.subr.mxu0 0.0
  %11531 = vmatpush1.msra.mxu0 0.0
  %11532 = vmatprep.subr.mxu0 0.0
  %11533 = vmatpush1.msra.mxu0 0.0
  %11534 = vmatprep.subr.mxu0 0.0
  %11535 = vmatpush1.msra.mxu0 0.0
  %11536 = vmatprep.subr.mxu0 0.0
  %11537 = vmatpush1.msra.mxu0 0.0
  %11538 = vmatprep.subr.mxu0 0.0
  %11539 = vmatpush1.msra.mxu0 0.0
  %11540 = vmatprep.subr.mxu0 0.0
  %11541 = vmatpush1.msra.mxu0 0.0
  %11542 = vmatprep.subr.mxu0 0.0
  %11543 = vmatpush1.msra.mxu0 0.0
  %11544 = vmatprep.subr.mxu0 0.0
  %11545 = vmatpush1.msra.mxu0 0.0
  %11546 = vmatprep.subr.mxu0 0.0
  %11547 = vmatpush1.msra.mxu0 0.0
  %11548 = vmatprep.subr.mxu0 0.0
  %11549 = vmatpush1.msra.mxu0 0.0
  %11550 = vmatprep.subr.mxu0 0.0
  %11551 = vmatpush1.msra.mxu0 0.0
  %11552 = vmatprep.subr.mxu0 0.0
  %11553 = vmatpush1.msra.mxu0 0.0
  %11554 = vmatprep.subr.mxu0 0.0
  %11555 = vmatpush1.msra.mxu0 0.0
  %11556 = vmatprep.subr.mxu0 0.0
  %11557 = vmatpush1.msra.mxu0 0.0
  %11558 = vmatprep.subr.mxu0 0.0
  %11559 = vmatpush1.msra.mxu0 0.0
  %11560 = vmatprep.subr.mxu0 0.0
  %11561 = vmatpush1.msra.mxu0 0.0
  %11562 = vmatprep.subr.mxu0 0.0
  %11563 = vmatpush1.msra.mxu0 0.0
  %11564 = vmatprep.mubr.f32.mxu0 0.0
  %v11565 = vand.u32 %v11166, 4294901760
  %v11566 = vsub.f32 %v11166, %v11565
  %v11567 = vand.u32 %v11566, 4294901760
  %11568 = vmatmul.mubr.f32.gmra.mrb[0].mxu0 %v11567
  %v11569 = vpop.f32.mrb[0].mxu0
  %v11570 = vadd.f32 %v11472, %v11569
  %v11571 = vpop.f32.mrb[0].mxu0
  %11572 = vmatprep.mubr.f32.mxu0 0.0
  %v11573 = vand.u32 %v11169, 4294901760
  %v11574 = vsub.f32 %v11169, %v11573
  %v11575 = vand.u32 %v11574, 4294901760
  %11576 = vmatmul.mubr.f32.gmra.mrb[0].mxu0 %v11575
  %v11577 = vpop.f32.mrb[0].mxu0
  %v11578 = vadd.f32 %v11479, %v11577
  %v11579 = vpop.f32.mrb[0].mxu0
  %11580 = vmatprep.mubr.f32.mxu0 0.0
  %v11581 = vand.u32 %v11172, 4294901760
  %v11582 = vsub.f32 %v11172, %v11581
  %v11583 = vand.u32 %v11582, 4294901760
  %11584 = vmatmul.mubr.f32.gmra.mrb[0].mxu0 %v11583
  %v11585 = vpop.f32.mrb[0].mxu0
  %v11586 = vadd.f32 %v11486, %v11585
  %v11587 = vpop.f32.mrb[0].mxu0
  %11588 = vmatprep.mubr.f32.mxu0 0.0
  %v11589 = vand.u32 %v11175, 4294901760
  %v11590 = vsub.f32 %v11175, %v11589
  %v11591 = vand.u32 %v11590, 4294901760
  %11592 = vmatmul.mubr.f32.gmra.mrb[0].mxu0 %v11591
  %v11593 = vpop.f32.mrb[0].mxu0
  %v11594 = vadd.f32 %v11493, %v11593
  %v11595 = vpop.f32.mrb[0].mxu0
  %11596 = vdwg.mxu0
  %11597 = vmatprep.subr.mxu0 0.0
  %v11598 = vand.u32 %v11154, 4294901760
  %v11599 = vsub.f32 %v11154, %v11598
  %v11600 = vand.u32 %v11599, 4294901760
  %11601 = vmatpush1.msra.mxu0 %v11600
  %11602 = vmatprep.subr.mxu0 0.0
  %v11603 = vand.u32 %v11155, 4294901760
  %v11604 = vsub.f32 %v11155, %v11603
  %v11605 = vand.u32 %v11604, 4294901760
  %11606 = vmatpush1.msra.mxu0 %v11605
  %11607 = vmatprep.subr.mxu0 0.0
  %v11608 = vand.u32 %v11156, 4294901760
  %v11609 = vsub.f32 %v11156, %v11608
  %v11610 = vand.u32 %v11609, 4294901760
  %11611 = vmatpush1.msra.mxu0 %v11610
  %11612 = vmatprep.subr.mxu0 0.0
  %v11613 = vand.u32 %v11157, 4294901760
  %v11614 = vsub.f32 %v11157, %v11613
  %v11615 = vand.u32 %v11614, 4294901760
  %11616 = vmatpush1.msra.mxu0 %v11615
  %11617 = vmatprep.subr.mxu0 0.0
  %11618 = vmatpush1.msra.mxu0 0.0
  %11619 = vmatprep.subr.mxu0 0.0
  %11620 = vmatpush1.msra.mxu0 0.0
  %11621 = vmatprep.subr.mxu0 0.0
  %11622 = vmatpush1.msra.mxu0 0.0
  %11623 = vmatprep.subr.mxu0 0.0
  %11624 = vmatpush1.msra.mxu0 0.0
  %11625 = vmatprep.subr.mxu0 0.0
  %11626 = vmatpush1.msra.mxu0 0.0
  %11627 = vmatprep.subr.mxu0 0.0
  %11628 = vmatpush1.msra.mxu0 0.0
  %11629 = vmatprep.subr.mxu0 0.0
  %11630 = vmatpush1.msra.mxu0 0.0
  %11631 = vmatprep.subr.mxu0 0.0
  %11632 = vmatpush1.msra.mxu0 0.0
  %11633 = vmatprep.subr.mxu0 0.0
  %11634 = vmatpush1.msra.mxu0 0.0
  %11635 = vmatprep.subr.mxu0 0.0
  %11636 = vmatpush1.msra.mxu0 0.0
  %11637 = vmatprep.subr.mxu0 0.0
  %11638 = vmatpush1.msra.mxu0 0.0
  %11639 = vmatprep.subr.mxu0 0.0
  %11640 = vmatpush1.msra.mxu0 0.0
  %11641 = vmatprep.subr.mxu0 0.0
  %11642 = vmatpush1.msra.mxu0 0.0
  %11643 = vmatprep.subr.mxu0 0.0
  %11644 = vmatpush1.msra.mxu0 0.0
  %11645 = vmatprep.subr.mxu0 0.0
  %11646 = vmatpush1.msra.mxu0 0.0
  %11647 = vmatprep.subr.mxu0 0.0
  %11648 = vmatpush1.msra.mxu0 0.0
  %11649 = vmatprep.subr.mxu0 0.0
  %11650 = vmatpush1.msra.mxu0 0.0
  %11651 = vmatprep.subr.mxu0 0.0
  %11652 = vmatpush1.msra.mxu0 0.0
  %11653 = vmatprep.subr.mxu0 0.0
  %11654 = vmatpush1.msra.mxu0 0.0
  %11655 = vmatprep.subr.mxu0 0.0
  %11656 = vmatpush1.msra.mxu0 0.0
  %11657 = vmatprep.subr.mxu0 0.0
  %11658 = vmatpush1.msra.mxu0 0.0
  %11659 = vmatprep.subr.mxu0 0.0
  %11660 = vmatpush1.msra.mxu0 0.0
  %11661 = vmatprep.subr.mxu0 0.0
  %11662 = vmatpush1.msra.mxu0 0.0
  %11663 = vmatprep.subr.mxu0 0.0
  %11664 = vmatpush1.msra.mxu0 0.0
  %11665 = vmatprep.subr.mxu0 0.0
  %11666 = vmatpush1.msra.mxu0 0.0
  %11667 = vmatprep.subr.mxu0 0.0
  %11668 = vmatpush1.msra.mxu0 0.0
  %11669 = vmatprep.subr.mxu0 0.0
  %11670 = vmatpush1.msra.mxu0 0.0
  %11671 = vmatprep.subr.mxu0 0.0
  %11672 = vmatpush1.msra.mxu0 0.0
  %11673 = vmatprep.mubr.f32.mxu0 0.0
  %v11674 = vand.u32 %v11166, 4294901760
  %11675 = vmatmul.mubr.f32.gmra.mrb[0].mxu0 %v11674
  %v11676 = vpop.f32.mrb[0].mxu0
  %v11677 = vadd.f32 %v11570, %v11676
  %v11678 = vpop.f32.mrb[0].mxu0
  %11679 = vmatprep.mubr.f32.mxu0 0.0
  %v11680 = vand.u32 %v11169, 4294901760
  %11681 = vmatmul.mubr.f32.gmra.mrb[0].mxu0 %v11680
  %v11682 = vpop.f32.mrb[0].mxu0
  %v11683 = vadd.f32 %v11578, %v11682
  %v11684 = vpop.f32.mrb[0].mxu0
  %11685 = vmatprep.mubr.f32.mxu0 0.0
  %v11686 = vand.u32 %v11172, 4294901760
  %11687 = vmatmul.mubr.f32.gmra.mrb[0].mxu0 %v11686
  %v11688 = vpop.f32.mrb[0].mxu0
  %v11689 = vadd.f32 %v11586, %v11688
  %v11690 = vpop.f32.mrb[0].mxu0
  %11691 = vmatprep.mubr.f32.mxu0 0.0
  %v11692 = vand.u32 %v11175, 4294901760
  %11693 = vmatmul.mubr.f32.gmra.mrb[0].mxu0 %v11692
  %v11694 = vpop.f32.mrb[0].mxu0
  %v11695 = vadd.f32 %v11594, %v11694
  %v11696 = vpop.f32.mrb[0].mxu0
  %11697 = vdwg.mxu0
  %11698 = vmatprep.subr.mxu0 0.0
  %v11699 = vand.u32 %v11154, 4294901760
  %11700 = vmatpush1.msra.mxu0 %v11699
  %11701 = vmatprep.subr.mxu0 0.0
  %v11702 = vand.u32 %v11155, 4294901760
  %11703 = vmatpush1.msra.mxu0 %v11702
  %11704 = vmatprep.subr.mxu0 0.0
  %v11705 = vand.u32 %v11156, 4294901760
  %11706 = vmatpush1.msra.mxu0 %v11705
  %11707 = vmatprep.subr.mxu0 0.0
  %v11708 = vand.u32 %v11157, 4294901760
  %11709 = vmatpush1.msra.mxu0 %v11708
  %11710 = vmatprep.subr.mxu0 0.0
  %11711 = vmatpush1.msra.mxu0 0.0
  %11712 = vmatprep.subr.mxu0 0.0
  %11713 = vmatpush1.msra.mxu0 0.0
  %11714 = vmatprep.subr.mxu0 0.0
  %11715 = vmatpush1.msra.mxu0 0.0
  %11716 = vmatprep.subr.mxu0 0.0
  %11717 = vmatpush1.msra.mxu0 0.0
  %11718 = vmatprep.subr.mxu0 0.0
  %11719 = vmatpush1.msra.mxu0 0.0
  %11720 = vmatprep.subr.mxu0 0.0
  %11721 = vmatpush1.msra.mxu0 0.0
  %11722 = vmatprep.subr.mxu0 0.0
  %11723 = vmatpush1.msra.mxu0 0.0
  %11724 = vmatprep.subr.mxu0 0.0
  %11725 = vmatpush1.msra.mxu0 0.0
  %11726 = vmatprep.subr.mxu0 0.0
  %11727 = vmatpush1.msra.mxu0 0.0
  %11728 = vmatprep.subr.mxu0 0.0
  %11729 = vmatpush1.msra.mxu0 0.0
  %11730 = vmatprep.subr.mxu0 0.0
  %11731 = vmatpush1.msra.mxu0 0.0
  %11732 = vmatprep.subr.mxu0 0.0
  %11733 = vmatpush1.msra.mxu0 0.0
  %11734 = vmatprep.subr.mxu0 0.0
  %11735 = vmatpush1.msra.mxu0 0.0
  %11736 = vmatprep.subr.mxu0 0.0
  %11737 = vmatpush1.msra.mxu0 0.0
  %11738 = vmatprep.subr.mxu0 0.0
  %11739 = vmatpush1.msra.mxu0 0.0
  %11740 = vmatprep.subr.mxu0 0.0
  %11741 = vmatpush1.msra.mxu0 0.0
  %11742 = vmatprep.subr.mxu0 0.0
  %11743 = vmatpush1.msra.mxu0 0.0
  %11744 = vmatprep.subr.mxu0 0.0
  %11745 = vmatpush1.msra.mxu0 0.0
  %11746 = vmatprep.subr.mxu0 0.0
  %11747 = vmatpush1.msra.mxu0 0.0
  %11748 = vmatprep.subr.mxu0 0.0
  %11749 = vmatpush1.msra.mxu0 0.0
  %11750 = vmatprep.subr.mxu0 0.0
  %11751 = vmatpush1.msra.mxu0 0.0
  %11752 = vmatprep.subr.mxu0 0.0
  %11753 = vmatpush1.msra.mxu0 0.0
  %11754 = vmatprep.subr.mxu0 0.0
  %11755 = vmatpush1.msra.mxu0 0.0
  %11756 = vmatprep.subr.mxu0 0.0
  %11757 = vmatpush1.msra.mxu0 0.0
  %11758 = vmatprep.subr.mxu0 0.0
  %11759 = vmatpush1.msra.mxu0 0.0
  %11760 = vmatprep.subr.mxu0 0.0
  %11761 = vmatpush1.msra.mxu0 0.0
  %11762 = vmatprep.subr.mxu0 0.0
  %11763 = vmatpush1.msra.mxu0 0.0
  %11764 = vmatprep.subr.mxu0 0.0
  %11765 = vmatpush1.msra.mxu0 0.0
  %11766 = vmatprep.mubr.f32.mxu0 0.0
  %v11767 = vand.u32 %v11166, 4294901760
  %11768 = vmatmul.mubr.f32.gmra.mrb[0].mxu0 %v11767
  %v11769 = vpop.f32.mrb[0].mxu0
  %v11770 = vadd.f32 %v11677, %v11769
  %v11771 = vpop.f32.mrb[0].mxu0
  %11772 = vmatprep.mubr.f32.mxu0 0.0
  %v11773 = vand.u32 %v11169, 4294901760
  %11774 = vmatmul.mubr.f32.gmra.mrb[0].mxu0 %v11773
  %v11775 = vpop.f32.mrb[0].mxu0
  %v11776 = vadd.f32 %v11683, %v11775
  %v11777 = vpop.f32.mrb[0].mxu0
  %11778 = vmatprep.mubr.f32.mxu0 0.0
  %v11779 = vand.u32 %v11172, 4294901760
  %11780 = vmatmul.mubr.f32.gmra.mrb[0].mxu0 %v11779
  %v11781 = vpop.f32.mrb[0].mxu0
  %v11782 = vadd.f32 %v11689, %v11781
  %v11783 = vpop.f32.mrb[0].mxu0
  %11784 = vmatprep.mubr.f32.mxu0 0.0
  %v11785 = vand.u32 %v11175, 4294901760
  %11786 = vmatmul.mubr.f32.gmra.mrb[0].mxu0 %v11785
  %v11787 = vpop.f32.mrb[0].mxu0
  %v11788 = vadd.f32 %v11695, %v11787
  %v11789 = vpop.f32.mrb[0].mxu0
  %11790 = vdwg.mxu0
  %11791 = vst [vmem:[%s18] sm:$0xff] %v11770
  %11792 = vst [vmem:[%s18 + $0x8] sm:$0xff] %v11776
  %11793 = vst [vmem:[%s18 + $0x10] sm:$0xff] %v11782
  %11794 = vst [vmem:[%s18 + $0x18] sm:$0xff] %v11788
  // Predicated region
  $region74: #{transformer_forward.1} parent=0 // pred_check
    _
  $region75: #{transformer_forward.1} parent=0 // pred_check_branch
    %11796 = sbr.rel (0) target = $region77
  $region76: #{transformer_forward.1} parent=0 // pred_region
    _
  $region77: #{transformer_forward.1} parent=0 // pred_fallthru
    _
  // Predicated region
  $region78: #{transformer_forward.1} parent=0 // pred_check
    _
  $region79: #{transformer_forward.1} parent=0 // pred_check_branch
    %11798 = sbr.rel (0) target = $region81
  $region80: #{transformer_forward.1} parent=0 // pred_region
    _
  $region81: #{transformer_forward.1} parent=0 // pred_fallthru
    _

</llo_original>
